<compile_context>
chip_gen: v7x
topology: tpu7x:2x2x1
jax: 0.10.0
libtpu: 0.0.40
codegen_flags: <defaults>
</compile_context>

<pallas_src>
import jax
import jax.numpy as jnp
from jax.experimental import pallas as pl
from jax.experimental.pallas import tpu as pltpu

EPS = 1e-5
Z_DIM = 62
LATENT = 1024
IN_H = 28
IN_W = 28
FC2_OUT = 128 * (IN_H // 4) * (IN_W // 4)   # 128 * 7 * 7 = 6272
FC2_TN = 896                                # 7 blocks of 896 (multiple of 128)


# -----------------------------------------------------------------------------
# Pallas kernels
# -----------------------------------------------------------------------------
def _bn_relu(y, gamma, beta):
    # Training-mode BatchNorm over rows (biased variance), one-pass moments,
    # then affine + ReLU.  All math in f32.  rsqrt goes to the EUP slot.
    mean = jnp.mean(y, axis=0, keepdims=True)
    msq = jnp.mean(y * y, axis=0, keepdims=True)
    var = jnp.maximum(msq - mean * mean, 0.0)
    return jnp.maximum((y - mean) * jax.lax.rsqrt(var + EPS) * gamma + beta, 0.0)


def _fc_fused_kernel(x_ref, w1_ref, b1_ref, g1_ref, bb1_ref,
                     w2_ref, b2_ref, g2_ref, bb2_ref, o_ref):
    # Full fc stack: Linear(62,1024)+BN+ReLU -> Linear(1024,6272)+BN+ReLU.
    # fc1 is recomputed per N-block (cheap); grid is over fc2's N only, so BN2
    # per-column stats are exact within each block.
    y1 = jnp.dot(x_ref[...], w1_ref[...],
                 preferred_element_type=jnp.float32) + b1_ref[...]
    h1 = _bn_relu(y1, g1_ref[...], bb1_ref[...])
    w2 = w2_ref[...].astype(jnp.float32)       # bf16 in HBM/VMEM, f32 matmul math
    y2 = jnp.dot(h1, w2, preferred_element_type=jnp.float32) + b2_ref[...]
    o_ref[...] = _bn_relu(y2, g2_ref[...], bb2_ref[...])


def _matmul_kernel(x_ref, w_ref, o_ref):
    # Plain lane-dense matmul (dc1 col2im GEMM: (B*49,128) @ (128,1024)).
    o_ref[...] = jnp.dot(x_ref[...], w_ref[...], preferred_element_type=jnp.float32)


def _bias_bn_relu_matmul_kernel(x_ref, cb_ref, g_ref, b_ref, w_ref, o_ref):
    # dc1 conv-bias + BatchNorm2d(64) (per-channel = per-column, stats over all
    # rows = B*14*14) + ReLU, then dc2 col2im GEMM (64 -> 128 padded lanes).
    h = _bn_relu(x_ref[...] + cb_ref[...], g_ref[...], b_ref[...])
    o_ref[...] = jnp.dot(h, w_ref[...], preferred_element_type=jnp.float32)


def _bias_sigmoid_kernel(x_ref, b_ref, o_ref):
    o_ref[...] = jax.nn.sigmoid(x_ref[...] + b_ref[...])


# -----------------------------------------------------------------------------
# pallas_call wrappers
# -----------------------------------------------------------------------------
def fc_block(x, p, *, tn=FC2_TN):
    """(B,62) -> (B,6272) : fused Linear+BN+ReLU -> Linear+BN+ReLU."""
    B = x.shape[0]
    assert FC2_OUT % tn == 0
    full = lambda j: (0, 0)
    colj = lambda j: (0, j)
    return pl.pallas_call(
        _fc_fused_kernel,
        out_shape=jax.ShapeDtypeStruct((B, FC2_OUT), jnp.float32),
        grid=(FC2_OUT // tn,),
        in_specs=[
            pl.BlockSpec((B, Z_DIM), full),
            pl.BlockSpec((Z_DIM, LATENT), full),
            pl.BlockSpec((1, LATENT), full),
            pl.BlockSpec((1, LATENT), full),
            pl.BlockSpec((1, LATENT), full),
            pl.BlockSpec((LATENT, tn), colj),     # bf16 weight block (~1.75MB)
            pl.BlockSpec((1, tn), colj),
            pl.BlockSpec((1, tn), colj),
            pl.BlockSpec((1, tn), colj),
        ],
        out_specs=pl.BlockSpec((B, tn), colj),    # 896-lane unmasked stores
        compiler_params=pltpu.CompilerParams(dimension_semantics=("parallel",)),
    )(x, p["fc1_w"], p["fc1_b"], p["bn1_g"], p["bn1_b"],
      p["fc2_w"], p["fc2_b"], p["bn2_g"], p["bn2_b"])


def matmul_f32(x, w):
    M, K = x.shape
    N = w.shape[1]
    return pl.pallas_call(
        _matmul_kernel,
        out_shape=jax.ShapeDtypeStruct((M, N), jnp.float32),
        grid=(1,),
        in_specs=[pl.BlockSpec((M, K), lambda i: (0, 0)),
                  pl.BlockSpec((K, N), lambda i: (0, 0))],
        out_specs=pl.BlockSpec((M, N), lambda i: (0, 0)),
    )(x, w)


def bias_bn_relu_matmul(x, cb, g, b, w):
    # BN3 stats need every row (B*14*14), so this kernel is a single grid step;
    # at MNIST sizes the whole working set is far below VMEM limits.
    M, C = x.shape
    N = w.shape[1]
    return pl.pallas_call(
        _bias_bn_relu_matmul_kernel,
        out_shape=jax.ShapeDtypeStruct((M, N), jnp.float32),
        grid=(1,),
        in_specs=[pl.BlockSpec((M, C), lambda i: (0, 0)),
                  pl.BlockSpec((1, C), lambda i: (0, 0)),
                  pl.BlockSpec((1, C), lambda i: (0, 0)),
                  pl.BlockSpec((1, C), lambda i: (0, 0)),
                  pl.BlockSpec((C, N), lambda i: (0, 0))],
        out_specs=pl.BlockSpec((M, N), lambda i: (0, 0)),
    )(x, cb, g, b, w)


def bias_sigmoid(x, b):
    M, N = x.shape
    return pl.pallas_call(
        _bias_sigmoid_kernel,
        out_shape=jax.ShapeDtypeStruct((M, N), jnp.float32),
        grid=(1,),
        in_specs=[pl.BlockSpec((M, N), lambda i: (0, 0)),
                  pl.BlockSpec((1, 1), lambda i: (0, 0))],
        out_specs=pl.BlockSpec((M, N), lambda i: (0, 0)),
    )(x, b)


# -----------------------------------------------------------------------------
# JAX glue: col2im (scatter-free sub-pixel overlap-add) + weight reordering
# TODO(synk): the overlap-add is pad/add/reshape-only XLA glue between the GEMM
# kernels; doing it inside a Pallas kernel would force tile-crossing reshapes.
# -----------------------------------------------------------------------------
def convT_to_col2im_matrix(w_t):
    """PyTorch ConvTranspose2d weight (Cin, Cout, k, k) -> (Cin, k*k*Cout) GEMM
    matrix for the col2im lowering; column order (kh, kw, co), no spatial flip."""
    Cin, Cout, kh, kw = w_t.shape
    return w_t.transpose(0, 2, 3, 1).reshape(Cin, kh * kw * Cout)


def col2im_s2k4p1(y, H, W, Cout):
    """Overlap-add for ConvTranspose2d(k=4, s=2, p=1).

    y: (B*H*W, 16*Cout) f32 with columns ordered (kh, kw, co)
       -> (B, 2H, 2W, Cout) NHWC.
    Scatter-free 4-phase sub-pixel decomposition: output row oh'=2*ih+kh with
    kh = 2*t_h + ph_h, so each output-row phase is the sum of two shifted tap
    planes (pads + adds + reshapes only).
    """
    B = y.shape[0] // (H * W)
    y = y.reshape(B, H, W, 2, 2, 4, Cout)            # kh -> (t_h, ph_h)
    top = jnp.pad(y[:, :, :, 0], ((0, 0), (0, 1), (0, 0), (0, 0), (0, 0), (0, 0)))
    bot = jnp.pad(y[:, :, :, 1], ((0, 0), (1, 0), (0, 0), (0, 0), (0, 0), (0, 0)))
    z = top + bot                                    # (B, H+1, W, ph_h, kw, C)
    z = jnp.moveaxis(z, 3, 2).reshape(B, 2 * (H + 1), W, 4, Cout)   # interleave rows
    z = z.reshape(B, 2 * (H + 1), W, 2, 2, Cout)     # kw -> (t_w, ph_w)
    left = jnp.pad(z[:, :, :, 0], ((0, 0), (0, 0), (0, 1), (0, 0), (0, 0)))
    right = jnp.pad(z[:, :, :, 1], ((0, 0), (0, 0), (1, 0), (0, 0), (0, 0)))
    z = (left + right).reshape(B, 2 * (H + 1), 2 * (W + 1), Cout)   # interleave cols
    return z[:, 1:-1, 1:-1, :]                       # crop transposed-conv padding p=1


# -----------------------------------------------------------------------------
# Parameter initialization (deterministic, matches module __init__ shapes)
# -----------------------------------------------------------------------------
def init_params(key):
    ks = jax.random.split(key, 10)
    n = lambda k, shape, std, mean=0.0: mean + std * jax.random.normal(k, shape, jnp.float32)
    raw = {
        "fc1_w": n(ks[0], (Z_DIM, LATENT), 1.0 / jnp.sqrt(Z_DIM)),
        "fc1_b": n(ks[1], (1, LATENT), 0.01),
        "bn1_g": n(ks[2], (1, LATENT), 0.02, mean=1.0),
        "bn1_b": jnp.zeros((1, LATENT), jnp.float32),
        # fc2 output columns are generated directly in NHWC (ih, iw, c) order so the
        # deconv path needs no NCHW transpose.  To load real PyTorch weights permute:
        # col_nhwc[ih*896 + iw*128 + c] = col_pt[c*49 + ih*7 + iw] (same for bias/BN2).
        "fc2_w": n(ks[3], (LATENT, FC2_OUT), 1.0 / jnp.sqrt(LATENT)).astype(jnp.bfloat16),
        "fc2_b": n(ks[4], (1, FC2_OUT), 0.01),
        "bn2_g": n(ks[5], (1, FC2_OUT), 0.02, mean=1.0),
        "bn2_b": jnp.zeros((1, FC2_OUT), jnp.float32),
        "dc1_t": n(ks[6], (128, 64, 4, 4), 0.02),    # ConvT weight, PyTorch layout
        "dc1_b": n(ks[7], (1, 64), 0.01),
        "bn3_g": n(ks[8], (1, 64), 0.02, mean=1.0),
        "bn3_b": jnp.zeros((1, 64), jnp.float32),
        "dc2_t": n(ks[9], (64, 1, 4, 4), 0.02),
        "dc2_b": jnp.zeros((1, 1), jnp.float32),
    }
    params = {k: v for k, v in raw.items() if k not in ("dc1_t", "dc2_t")}
    params["dc1_w"] = convT_to_col2im_matrix(raw["dc1_t"])              # (128, 1024)
    dc2_mat = convT_to_col2im_matrix(raw["dc2_t"])                      # (64, 16)
    params["dc2_w"] = jnp.pad(dc2_mat, ((0, 0), (0, 128 - dc2_mat.shape[1])))  # lane pad
    return params, raw


# -----------------------------------------------------------------------------
# Forward pass
# -----------------------------------------------------------------------------
@jax.jit
def mnist_generator_forward(z, params):
    B = z.shape[0]
    x = z.reshape(B, Z_DIM)

    # fc block (fused into one pallas_call), output columns in NHWC order.
    h2 = fc_block(x, params)                                   # (B, 6272)

    # ConvTranspose2d(128->64,4,2,1): col2im GEMM (N=1024 lane dense) + overlap-add.
    feat = h2.reshape(B * 7 * 7, 128)                          # rows = (b, ih, iw)
    y1 = matmul_f32(feat, params["dc1_w"])                     # (B*49, 1024)
    o1 = col2im_s2k4p1(y1, 7, 7, 64)                           # (B, 14, 14, 64) NHWC

    # conv bias + BN2d(64) + ReLU fused into the second col2im GEMM.
    d1 = o1.reshape(B * 14 * 14, 64)
    y2 = bias_bn_relu_matmul(d1, params["dc1_b"], params["bn3_g"], params["bn3_b"],
                             params["dc2_w"])                  # (B*196, 128); cols 0..15 real
    o2 = col2im_s2k4p1(y2[:, :16], 14, 14, 1)                  # (B, 28, 28, 1)

    # ConvTranspose2d bias + Sigmoid.
    img = bias_sigmoid(o2.reshape(B, IN_H * IN_W), params["dc2_b"])
    return img.reshape(B, 1, IN_H, IN_W)                       # NCHW, like PyTorch


# -----------------------------------------------------------------------------
# Pure-JAX reference (no Pallas) for a numerical cross-check
# -----------------------------------------------------------------------------
def _ref_bn(y, g, b, axes):
    mean = jnp.mean(y, axis=axes, keepdims=True)
    var = jnp.mean((y - mean) ** 2, axis=axes, keepdims=True)
    return (y - mean) * jax.lax.rsqrt(var + EPS) * g + b


def _ref_convT(x, w_t):
    # PyTorch ConvTranspose2d(k=4,s=2,p=1) == stride-1 correlation of the 2x
    # lhs-dilated input (padding k-1-p=2) with the spatially flipped kernel.
    w = jnp.flip(w_t, (2, 3)).transpose(1, 0, 2, 3)            # (Cout, Cin, 4, 4)
    return jax.lax.conv_general_dilated(
        x, w, window_strides=(1, 1), padding=((2, 2), (2, 2)),
        lhs_dilation=(2, 2), dimension_numbers=("NCHW", "OIHW", "NCHW"),
        precision=jax.lax.Precision.HIGHEST)


@jax.jit
def ref_forward(z, raw):
    hp = jax.lax.Precision.HIGHEST
    x = z.reshape(-1, Z_DIM)
    h1 = jnp.maximum(_ref_bn(jnp.dot(x, raw["fc1_w"], precision=hp) + raw["fc1_b"],
                             raw["bn1_g"], raw["bn1_b"], 0), 0.0)
    h2 = jnp.maximum(_ref_bn(jnp.dot(h1, raw["fc2_w"].astype(jnp.float32), precision=hp)
                             + raw["fc2_b"], raw["bn2_g"], raw["bn2_b"], 0), 0.0)
    feat = h2.reshape(-1, 7, 7, 128).transpose(0, 3, 1, 2)     # NCHW
    c1 = _ref_convT(feat, raw["dc1_t"]) + raw["dc1_b"].reshape(1, -1, 1, 1)
    d1 = jnp.maximum(_ref_bn(c1, raw["bn3_g"].reshape(1, -1, 1, 1),
                             raw["bn3_b"].reshape(1, -1, 1, 1), (0, 2, 3)), 0.0)
    c2 = _ref_convT(d1, raw["dc2_t"]) + raw["dc2_b"].reshape(1, 1, 1, 1)
    return jax.nn.sigmoid(c2)


if __name__ == "__main__":
    key = jax.random.PRNGKey(0)
    k_param, k_z = jax.random.split(key)
    params, raw = init_params(k_param)

    B = 2
    z = jax.random.normal(k_z, (B, Z_DIM), jnp.float32)

    out = jax.block_until_ready(mnist_generator_forward(z, params))

    assert out.shape == (B, 1, IN_H, IN_W), out.shape
    assert out.dtype == jnp.float32
    assert bool(jnp.all(jnp.isfinite(out)))
    assert bool(jnp.all((out >= 0.0) & (out <= 1.0)))           # sigmoid range

    # Cross-check the Pallas pipeline against a pure-XLA reference of the module.
    ref = jax.block_until_ready(ref_forward(z, raw))
    max_err = float(jnp.max(jnp.abs(out - ref)))
    assert max_err < 3e-3, f"mismatch vs reference: max_err={max_err}"

    print("KERNEL_OK")
</pallas_src>

<mosaic_0001>
module attributes {stable_mosaic.version = 11 : i64} {
  func.func @_matmul_kernel(%arg0: i32, %arg1: memref<98x128xf32, #tpu.memory_space<vmem>>, %arg2: memref<128x1024xf32, #tpu.memory_space<vmem>>, %arg3: memref<98x1024xf32, #tpu.memory_space<vmem>>) attributes {dimension_semantics = [#tpu.dimension_semantics<arbitrary>], iteration_bounds = array<i64: 1>, scalar_prefetch = 0 : i64, scratch_operands = 0 : i64, tpu.core_type = #tpu.core_type<tc>, window_params = [{pipeline_mode = #tpu.pipeline_mode<synchronous>, transform_indices = @transform_0, window_bounds = array<i64: 98, 128>}, {pipeline_mode = #tpu.pipeline_mode<synchronous>, transform_indices = @transform_1, window_bounds = array<i64: 128, 1024>}, {pipeline_mode = #tpu.pipeline_mode<synchronous>, transform_indices = @transform_2, window_bounds = array<i64: 98, 1024>}]} {
    %c0 = arith.constant 0 : index
    %c0_0 = arith.constant 0 : index
    %0 = vector.load %arg1[%c0, %c0_0] : memref<98x128xf32, #tpu.memory_space<vmem>>, vector<98x128xf32>
    %c0_1 = arith.constant 0 : index
    %c0_2 = arith.constant 0 : index
    %1 = vector.load %arg2[%c0_1, %c0_2] : memref<128x1024xf32, #tpu.memory_space<vmem>>, vector<128x1024xf32>
    %cst = arith.constant dense<0.000000e+00> : vector<98x1024xf32>
    %2 = tpu.matmul %0, %1, %cst {dimension_numbers = #tpu.dot_dimension_numbers<[1], [0], [0], [1], [0, 0, 1, 1], [], []>} : vector<98x128xf32>, vector<128x1024xf32>, vector<98x1024xf32> -> vector<98x1024xf32>
    %c0_3 = arith.constant 0 : index
    %c0_4 = arith.constant 0 : index
    %3 = vector.load %arg3[%c0_3, %c0_4] : memref<98x1024xf32, #tpu.memory_space<vmem>>, vector<98x1024xf32>
    tpu.vector_store %arg3[%c0_3, %c0_4], %2 {strides = array<i32>} : memref<98x1024xf32, #tpu.memory_space<vmem>>, vector<98x1024xf32>,
    return
  }
  func.func @transform_0(%arg0: i32) -> (i32, i32) {
    %c0_i32 = arith.constant 0 : i32
    %c0_i32_0 = arith.constant 0 : i32
    %c0_i32_1 = arith.constant 0 : i32
    return %c0_i32, %c0_i32_0 : i32, i32
  }
  func.func @transform_1(%arg0: i32) -> (i32, i32) {
    %c0_i32 = arith.constant 0 : i32
    %c0_i32_0 = arith.constant 0 : i32
    %c0_i32_1 = arith.constant 0 : i32
    return %c0_i32, %c0_i32_0 : i32, i32
  }
  func.func @transform_2(%arg0: i32) -> (i32, i32) {
    %c0_i32 = arith.constant 0 : i32
    %c0_i32_0 = arith.constant 0 : i32
    %c0_i32_1 = arith.constant 0 : i32
    return %c0_i32, %c0_i32_0 : i32, i32
  }
}

module attributes {stable_mosaic.version = 11 : i64} {
  func.func @_fc_fused_kernel(%arg0: i32, %arg1: memref<2x62xf32, #tpu.memory_space<vmem>>, %arg2: memref<62x1024xf32, #tpu.memory_space<vmem>>, %arg3: memref<1x1024xf32, #tpu.memory_space<vmem>>, %arg4: memref<1x1024xf32, #tpu.memory_space<vmem>>, %arg5: memref<1x1024xf32, #tpu.memory_space<vmem>>, %arg6: memref<1024x896xbf16, #tpu.memory_space<vmem>>, %arg7: memref<1x896xf32, #tpu.memory_space<vmem>>, %arg8: memref<1x896xf32, #tpu.memory_space<vmem>>, %arg9: memref<1x896xf32, #tpu.memory_space<vmem>>, %arg10: memref<2x896xf32, #tpu.memory_space<vmem>>) attributes {dimension_semantics = [#tpu.dimension_semantics<parallel>], iteration_bounds = array<i64: 7>, scalar_prefetch = 0 : i64, scratch_operands = 0 : i64, tpu.core_type = #tpu.core_type<tc>, window_params = [{pipeline_mode = #tpu.pipeline_mode<synchronous>, transform_indices = @transform_0, window_bounds = array<i64: 2, 62>}, {pipeline_mode = #tpu.pipeline_mode<synchronous>, transform_indices = @transform_1, window_bounds = array<i64: 62, 1024>}, {pipeline_mode = #tpu.pipeline_mode<synchronous>, transform_indices = @transform_2, window_bounds = array<i64: 1, 1024>}, {pipeline_mode = #tpu.pipeline_mode<synchronous>, transform_indices = @transform_3, window_bounds = array<i64: 1, 1024>}, {pipeline_mode = #tpu.pipeline_mode<synchronous>, transform_indices = @transform_4, window_bounds = array<i64: 1, 1024>}, {transform_indices = @transform_5, window_bounds = array<i64: 1024, 896>}, {transform_indices = @transform_6, window_bounds = array<i64: 1, 896>}, {transform_indices = @transform_7, window_bounds = array<i64: 1, 896>}, {transform_indices = @transform_8, window_bounds = array<i64: 1, 896>}, {transform_indices = @transform_9, window_bounds = array<i64: 2, 896>}]} {
    %c0 = arith.constant 0 : index
    %c0_0 = arith.constant 0 : index
    %0 = vector.load %arg1[%c0, %c0_0] : memref<2x62xf32, #tpu.memory_space<vmem>>, vector<2x62xf32>
    %c0_1 = arith.constant 0 : index
    %c0_2 = arith.constant 0 : index
    %1 = vector.load %arg2[%c0_1, %c0_2] : memref<62x1024xf32, #tpu.memory_space<vmem>>, vector<62x1024xf32>
    %cst = arith.constant dense<0.000000e+00> : vector<2x1024xf32>
    %2 = tpu.matmul %0, %1, %cst {dimension_numbers = #tpu.dot_dimension_numbers<[1], [0], [0], [1], [0, 0, 1, 1], [], []>} : vector<2x62xf32>, vector<62x1024xf32>, vector<2x1024xf32> -> vector<2x1024xf32>
    %c0_3 = arith.constant 0 : index
    %c0_4 = arith.constant 0 : index
    %3 = vector.load %arg3[%c0_3, %c0_4] : memref<1x1024xf32, #tpu.memory_space<vmem>>, vector<1x1024xf32>
    %4 = vector.broadcast %3 : vector<1x1024xf32> to vector<2x1024xf32>
    %5 = arith.addf %2, %4 : vector<2x1024xf32>
    %c0_5 = arith.constant 0 : index
    %c0_6 = arith.constant 0 : index
    %6 = vector.load %arg4[%c0_5, %c0_6] : memref<1x1024xf32, #tpu.memory_space<vmem>>, vector<1x1024xf32>
    %c0_7 = arith.constant 0 : index
    %c0_8 = arith.constant 0 : index
    %7 = vector.load %arg5[%c0_7, %c0_8] : memref<1x1024xf32, #tpu.memory_space<vmem>>, vector<1x1024xf32>
    %cst_9 = arith.constant dense<0.000000e+00> : vector<1024xf32>
    %8 = vector.multi_reduction <add>, %5, %cst_9 [0] : vector<2x1024xf32> to vector<1024xf32>
    %9 = vector.shape_cast %8 : vector<1024xf32> to vector<1x1024xf32>
    %cst_10 = arith.constant 2.000000e+00 : f32
    %10 = vector.broadcast %cst_10 : f32 to vector<1x1024xf32>
    %11 = arith.divf %9, %10 : vector<1x1024xf32>
    %12 = arith.mulf %5, %5 : vector<2x1024xf32>
    %cst_11 = arith.constant dense<0.000000e+00> : vector<1024xf32>
    %13 = vector.multi_reduction <add>, %12, %cst_11 [0] : vector<2x1024xf32> to vector<1024xf32>
    %14 = vector.shape_cast %13 : vector<1024xf32> to vector<1x1024xf32>
    %cst_12 = arith.constant 2.000000e+00 : f32
    %15 = vector.broadcast %cst_12 : f32 to vector<1x1024xf32>
    %16 = arith.divf %14, %15 : vector<1x1024xf32>
    %17 = arith.mulf %11, %11 : vector<1x1024xf32>
    %18 = arith.subf %16, %17 : vector<1x1024xf32>
    %cst_13 = arith.constant 0.000000e+00 : f32
    %19 = vector.broadcast %cst_13 : f32 to vector<1x1024xf32>
    %20 = arith.maximumf %18, %19 : vector<1x1024xf32>
    %21 = vector.broadcast %11 : vector<1x1024xf32> to vector<2x1024xf32>
    %22 = arith.subf %5, %21 : vector<2x1024xf32>
    %cst_14 = arith.constant 9.99999974E-6 : f32
    %23 = vector.broadcast %cst_14 : f32 to vector<1x1024xf32>
    %24 = arith.addf %20, %23 : vector<1x1024xf32>
    %25 = math.rsqrt %24 : vector<1x1024xf32>
    %26 = vector.broadcast %25 : vector<1x1024xf32> to vector<2x1024xf32>
    %27 = arith.mulf %22, %26 : vector<2x1024xf32>
    %28 = vector.broadcast %6 : vector<1x1024xf32> to vector<2x1024xf32>
    %29 = arith.mulf %27, %28 : vector<2x1024xf32>
    %30 = vector.broadcast %7 : vector<1x1024xf32> to vector<2x1024xf32>
    %31 = arith.addf %29, %30 : vector<2x1024xf32>
    %cst_15 = arith.constant 0.000000e+00 : f32
    %32 = vector.broadcast %cst_15 : f32 to vector<2x1024xf32>
    %33 = arith.maximumf %31, %32 : vector<2x1024xf32>
    %c0_16 = arith.constant 0 : index
    %c0_17 = arith.constant 0 : index
    %34 = vector.load %arg6[%c0_16, %c0_17] : memref<1024x896xbf16, #tpu.memory_space<vmem>>, vector<1024x896xbf16>
    %35 = arith.extf %34 : vector<1024x896xbf16> to vector<1024x896xf32>
    %cst_18 = arith.constant dense<0.000000e+00> : vector<2x896xf32>
    %36 = tpu.matmul %33, %35, %cst_18 {dimension_numbers = #tpu.dot_dimension_numbers<[1], [0], [0], [1], [0, 0, 1, 1], [], []>} : vector<2x1024xf32>, vector<1024x896xf32>, vector<2x896xf32> -> vector<2x896xf32>
    %c0_19 = arith.constant 0 : index
    %c0_20 = arith.constant 0 : index
    %37 = vector.load %arg7[%c0_19, %c0_20] : memref<1x896xf32, #tpu.memory_space<vmem>>, vector<1x896xf32>
    %38 = vector.broadcast %37 : vector<1x896xf32> to vector<2x896xf32>
    %39 = arith.addf %36, %38 : vector<2x896xf32>
    %c0_21 = arith.constant 0 : index
    %c0_22 = arith.constant 0 : index
    %40 = vector.load %arg8[%c0_21, %c0_22] : memref<1x896xf32, #tpu.memory_space<vmem>>, vector<1x896xf32>
    %c0_23 = arith.constant 0 : index
    %c0_24 = arith.constant 0 : index
    %41 = vector.load %arg9[%c0_23, %c0_24] : memref<1x896xf32, #tpu.memory_space<vmem>>, vector<1x896xf32>
    %cst_25 = arith.constant dense<0.000000e+00> : vector<896xf32>
    %42 = vector.multi_reduction <add>, %39, %cst_25 [0] : vector<2x896xf32> to vector<896xf32>
    %43 = vector.shape_cast %42 : vector<896xf32> to vector<1x896xf32>
    %cst_26 = arith.constant 2.000000e+00 : f32
    %44 = vector.broadcast %cst_26 : f32 to vector<1x896xf32>
    %45 = arith.divf %43, %44 : vector<1x896xf32>
    %46 = arith.mulf %39, %39 : vector<2x896xf32>
    %cst_27 = arith.constant dense<0.000000e+00> : vector<896xf32>
    %47 = vector.multi_reduction <add>, %46, %cst_27 [0] : vector<2x896xf32> to vector<896xf32>
    %48 = vector.shape_cast %47 : vector<896xf32> to vector<1x896xf32>
    %cst_28 = arith.constant 2.000000e+00 : f32
    %49 = vector.broadcast %cst_28 : f32 to vector<1x896xf32>
    %50 = arith.divf %48, %49 : vector<1x896xf32>
    %51 = arith.mulf %45, %45 : vector<1x896xf32>
    %52 = arith.subf %50, %51 : vector<1x896xf32>
    %cst_29 = arith.constant 0.000000e+00 : f32
    %53 = vector.broadcast %cst_29 : f32 to vector<1x896xf32>
    %54 = arith.maximumf %52, %53 : vector<1x896xf32>
    %55 = vector.broadcast %45 : vector<1x896xf32> to vector<2x896xf32>
    %56 = arith.subf %39, %55 : vector<2x896xf32>
    %cst_30 = arith.constant 9.99999974E-6 : f32
    %57 = vector.broadcast %cst_30 : f32 to vector<1x896xf32>
    %58 = arith.addf %54, %57 : vector<1x896xf32>
    %59 = math.rsqrt %58 : vector<1x896xf32>
    %60 = vector.broadcast %59 : vector<1x896xf32> to vector<2x896xf32>
    %61 = arith.mulf %56, %60 : vector<2x896xf32>
    %62 = vector.broadcast %40 : vector<1x896xf32> to vector<2x896xf32>
    %63 = arith.mulf %61, %62 : vector<2x896xf32>
    %64 = vector.broadcast %41 : vector<1x896xf32> to vector<2x896xf32>
    %65 = arith.addf %63, %64 : vector<2x896xf32>
    %cst_31 = arith.constant 0.000000e+00 : f32
    %66 = vector.broadcast %cst_31 : f32 to vector<2x896xf32>
    %67 = arith.maximumf %65, %66 : vector<2x896xf32>
    %c0_32 = arith.constant 0 : index
    %c0_33 = arith.constant 0 : index
    %68 = vector.load %arg10[%c0_32, %c0_33] : memref<2x896xf32, #tpu.memory_space<vmem>>, vector<2x896xf32>
    tpu.vector_store %arg10[%c0_32, %c0_33], %67 {strides = array<i32>} : memref<2x896xf32, #tpu.memory_space<vmem>>, vector<2x896xf32>,
    return
  }
  func.func @transform_0(%arg0: i32) -> (i32, i32) {
    %c0_i32 = arith.constant 0 : i32
    %c0_i32_0 = arith.constant 0 : i32
    %c0_i32_1 = arith.constant 0 : i32
    return %c0_i32, %c0_i32_0 : i32, i32
  }
  func.func @transform_1(%arg0: i32) -> (i32, i32) {
    %c0_i32 = arith.constant 0 : i32
    %c0_i32_0 = arith.constant 0 : i32
    %c0_i32_1 = arith.constant 0 : i32
    return %c0_i32, %c0_i32_0 : i32, i32
  }
  func.func @transform_2(%arg0: i32) -> (i32, i32) {
    %c0_i32 = arith.constant 0 : i32
    %c0_i32_0 = arith.constant 0 : i32
    %c0_i32_1 = arith.constant 0 : i32
    return %c0_i32, %c0_i32_0 : i32, i32
  }
  func.func @transform_3(%arg0: i32) -> (i32, i32) {
    %c0_i32 = arith.constant 0 : i32
    %c0_i32_0 = arith.constant 0 : i32
    %c0_i32_1 = arith.constant 0 : i32
    return %c0_i32, %c0_i32_0 : i32, i32
  }
  func.func @transform_4(%arg0: i32) -> (i32, i32) {
    %c0_i32 = arith.constant 0 : i32
    %c0_i32_0 = arith.constant 0 : i32
    %c0_i32_1 = arith.constant 0 : i32
    return %c0_i32, %c0_i32_0 : i32, i32
  }
  func.func @transform_5(%arg0: i32) -> (i32, i32) {
    %c0_i32 = arith.constant 0 : i32
    %c0_i32_0 = arith.constant 0 : i32
    return %c0_i32, %arg0 : i32, i32
  }
  func.func @transform_6(%arg0: i32) -> (i32, i32) {
    %c0_i32 = arith.constant 0 : i32
    %c0_i32_0 = arith.constant 0 : i32
    return %c0_i32, %arg0 : i32, i32
  }
  func.func @transform_7(%arg0: i32) -> (i32, i32) {
    %c0_i32 = arith.constant 0 : i32
    %c0_i32_0 = arith.constant 0 : i32
    return %c0_i32, %arg0 : i32, i32
  }
  func.func @transform_8(%arg0: i32) -> (i32, i32) {
    %c0_i32 = arith.constant 0 : i32
    %c0_i32_0 = arith.constant 0 : i32
    return %c0_i32, %arg0 : i32, i32
  }
  func.func @transform_9(%arg0: i32) -> (i32, i32) {
    %c0_i32 = arith.constant 0 : i32
    %c0_i32_0 = arith.constant 0 : i32
    return %c0_i32, %arg0 : i32, i32
  }
}

module attributes {stable_mosaic.version = 11 : i64} {
  func.func @_bias_bn_relu_matmul_kernel(%arg0: i32, %arg1: memref<392x64xf32, #tpu.memory_space<vmem>>, %arg2: memref<1x64xf32, #tpu.memory_space<vmem>>, %arg3: memref<1x64xf32, #tpu.memory_space<vmem>>, %arg4: memref<1x64xf32, #tpu.memory_space<vmem>>, %arg5: memref<64x128xf32, #tpu.memory_space<vmem>>, %arg6: memref<392x128xf32, #tpu.memory_space<vmem>>) attributes {dimension_semantics = [#tpu.dimension_semantics<arbitrary>], iteration_bounds = array<i64: 1>, scalar_prefetch = 0 : i64, scratch_operands = 0 : i64, tpu.core_type = #tpu.core_type<tc>, window_params = [{pipeline_mode = #tpu.pipeline_mode<synchronous>, transform_indices = @transform_0, window_bounds = array<i64: 392, 64>}, {pipeline_mode = #tpu.pipeline_mode<synchronous>, transform_indices = @transform_1, window_bounds = array<i64: 1, 64>}, {pipeline_mode = #tpu.pipeline_mode<synchronous>, transform_indices = @transform_2, window_bounds = array<i64: 1, 64>}, {pipeline_mode = #tpu.pipeline_mode<synchronous>, transform_indices = @transform_3, window_bounds = array<i64: 1, 64>}, {pipeline_mode = #tpu.pipeline_mode<synchronous>, transform_indices = @transform_4, window_bounds = array<i64: 64, 128>}, {pipeline_mode = #tpu.pipeline_mode<synchronous>, transform_indices = @transform_5, window_bounds = array<i64: 392, 128>}]} {
    %c0 = arith.constant 0 : index
    %c0_0 = arith.constant 0 : index
    %0 = vector.load %arg1[%c0, %c0_0] : memref<392x64xf32, #tpu.memory_space<vmem>>, vector<392x64xf32>
    %c0_1 = arith.constant 0 : index
    %c0_2 = arith.constant 0 : index
    %1 = vector.load %arg2[%c0_1, %c0_2] : memref<1x64xf32, #tpu.memory_space<vmem>>, vector<1x64xf32>
    %2 = vector.broadcast %1 : vector<1x64xf32> to vector<392x64xf32>
    %3 = arith.addf %0, %2 : vector<392x64xf32>
    %c0_3 = arith.constant 0 : index
    %c0_4 = arith.constant 0 : index
    %4 = vector.load %arg3[%c0_3, %c0_4] : memref<1x64xf32, #tpu.memory_space<vmem>>, vector<1x64xf32>
    %c0_5 = arith.constant 0 : index
    %c0_6 = arith.constant 0 : index
    %5 = vector.load %arg4[%c0_5, %c0_6] : memref<1x64xf32, #tpu.memory_space<vmem>>, vector<1x64xf32>
    %cst = arith.constant dense<0.000000e+00> : vector<64xf32>
    %6 = vector.multi_reduction <add>, %3, %cst [0] : vector<392x64xf32> to vector<64xf32>
    %7 = vector.shape_cast %6 : vector<64xf32> to vector<1x64xf32>
    %cst_7 = arith.constant 3.920000e+02 : f32
    %8 = vector.broadcast %cst_7 : f32 to vector<1x64xf32>
    %9 = arith.divf %7, %8 : vector<1x64xf32>
    %10 = arith.mulf %3, %3 : vector<392x64xf32>
    %cst_8 = arith.constant dense<0.000000e+00> : vector<64xf32>
    %11 = vector.multi_reduction <add>, %10, %cst_8 [0] : vector<392x64xf32> to vector<64xf32>
    %12 = vector.shape_cast %11 : vector<64xf32> to vector<1x64xf32>
    %cst_9 = arith.constant 3.920000e+02 : f32
    %13 = vector.broadcast %cst_9 : f32 to vector<1x64xf32>
    %14 = arith.divf %12, %13 : vector<1x64xf32>
    %15 = arith.mulf %9, %9 : vector<1x64xf32>
    %16 = arith.subf %14, %15 : vector<1x64xf32>
    %cst_10 = arith.constant 0.000000e+00 : f32
    %17 = vector.broadcast %cst_10 : f32 to vector<1x64xf32>
    %18 = arith.maximumf %16, %17 : vector<1x64xf32>
    %19 = vector.broadcast %9 : vector<1x64xf32> to vector<392x64xf32>
    %20 = arith.subf %3, %19 : vector<392x64xf32>
    %cst_11 = arith.constant 9.99999974E-6 : f32
    %21 = vector.broadcast %cst_11 : f32 to vector<1x64xf32>
    %22 = arith.addf %18, %21 : vector<1x64xf32>
    %23 = math.rsqrt %22 : vector<1x64xf32>
    %24 = vector.broadcast %23 : vector<1x64xf32> to vector<392x64xf32>
    %25 = arith.mulf %20, %24 : vector<392x64xf32>
    %26 = vector.broadcast %4 : vector<1x64xf32> to vector<392x64xf32>
    %27 = arith.mulf %25, %26 : vector<392x64xf32>
    %28 = vector.broadcast %5 : vector<1x64xf32> to vector<392x64xf32>
    %29 = arith.addf %27, %28 : vector<392x64xf32>
    %cst_12 = arith.constant 0.000000e+00 : f32
    %30 = vector.broadcast %cst_12 : f32 to vector<392x64xf32>
    %31 = arith.maximumf %29, %30 : vector<392x64xf32>
    %c0_13 = arith.constant 0 : index
    %c0_14 = arith.constant 0 : index
    %32 = vector.load %arg5[%c0_13, %c0_14] : memref<64x128xf32, #tpu.memory_space<vmem>>, vector<64x128xf32>
    %cst_15 = arith.constant dense<0.000000e+00> : vector<392x128xf32>
    %33 = tpu.matmul %31, %32, %cst_15 {dimension_numbers = #tpu.dot_dimension_numbers<[1], [0], [0], [1], [0, 0, 1, 1], [], []>} : vector<392x64xf32>, vector<64x128xf32>, vector<392x128xf32> -> vector<392x128xf32>
    %c0_16 = arith.constant 0 : index
    %c0_17 = arith.constant 0 : index
    %34 = vector.load %arg6[%c0_16, %c0_17] : memref<392x128xf32, #tpu.memory_space<vmem>>, vector<392x128xf32>
    tpu.vector_store %arg6[%c0_16, %c0_17], %33 {strides = array<i32>} : memref<392x128xf32, #tpu.memory_space<vmem>>, vector<392x128xf32>,
    return
  }
  func.func @transform_0(%arg0: i32) -> (i32, i32) {
    %c0_i32 = arith.constant 0 : i32
    %c0_i32_0 = arith.constant 0 : i32
    %c0_i32_1 = arith.constant 0 : i32
    return %c0_i32, %c0_i32_0 : i32, i32
  }
  func.func @transform_1(%arg0: i32) -> (i32, i32) {
    %c0_i32 = arith.constant 0 : i32
    %c0_i32_0 = arith.constant 0 : i32
    %c0_i32_1 = arith.constant 0 : i32
    return %c0_i32, %c0_i32_0 : i32, i32
  }
  func.func @transform_2(%arg0: i32) -> (i32, i32) {
    %c0_i32 = arith.constant 0 : i32
    %c0_i32_0 = arith.constant 0 : i32
    %c0_i32_1 = arith.constant 0 : i32
    return %c0_i32, %c0_i32_0 : i32, i32
  }
  func.func @transform_3(%arg0: i32) -> (i32, i32) {
    %c0_i32 = arith.constant 0 : i32
    %c0_i32_0 = arith.constant 0 : i32
    %c0_i32_1 = arith.constant 0 : i32
    return %c0_i32, %c0_i32_0 : i32, i32
  }
  func.func @transform_4(%arg0: i32) -> (i32, i32) {
    %c0_i32 = arith.constant 0 : i32
    %c0_i32_0 = arith.constant 0 : i32
    %c0_i32_1 = arith.constant 0 : i32
    return %c0_i32, %c0_i32_0 : i32, i32
  }
  func.func @transform_5(%arg0: i32) -> (i32, i32) {
    %c0_i32 = arith.constant 0 : i32
    %c0_i32_0 = arith.constant 0 : i32
    %c0_i32_1 = arith.constant 0 : i32
    return %c0_i32, %c0_i32_0 : i32, i32
  }
}

module attributes {stable_mosaic.version = 11 : i64} {
  func.func @_bias_sigmoid_kernel(%arg0: i32, %arg1: memref<2x784xf32, #tpu.memory_space<vmem>>, %arg2: memref<1x1xf32, #tpu.memory_space<vmem>>, %arg3: memref<2x784xf32, #tpu.memory_space<vmem>>) attributes {dimension_semantics = [#tpu.dimension_semantics<arbitrary>], iteration_bounds = array<i64: 1>, scalar_prefetch = 0 : i64, scratch_operands = 0 : i64, tpu.core_type = #tpu.core_type<tc>, window_params = [{pipeline_mode = #tpu.pipeline_mode<synchronous>, transform_indices = @transform_0, window_bounds = array<i64: 2, 784>}, {pipeline_mode = #tpu.pipeline_mode<synchronous>, transform_indices = @transform_1, window_bounds = array<i64: 1, 1>}, {pipeline_mode = #tpu.pipeline_mode<synchronous>, transform_indices = @transform_2, window_bounds = array<i64: 2, 784>}]} {
    %c0 = arith.constant 0 : index
    %c0_0 = arith.constant 0 : index
    %0 = vector.load %arg1[%c0, %c0_0] : memref<2x784xf32, #tpu.memory_space<vmem>>, vector<2x784xf32>
    %c0_1 = arith.constant 0 : index
    %c0_2 = arith.constant 0 : index
    %1 = vector.load %arg2[%c0_1, %c0_2] : memref<1x1xf32, #tpu.memory_space<vmem>>, vector<1x1xf32>
    %2 = vector.broadcast %1 : vector<1x1xf32> to vector<2x784xf32>
    %3 = arith.addf %0, %2 : vector<2x784xf32>
    %4 = arith.negf %3 : vector<2x784xf32>
    %5 = math.exp %4 : vector<2x784xf32>
    %cst = arith.constant 1.000000e+00 : f32
    %6 = vector.broadcast %cst : f32 to vector<2x784xf32>
    %7 = arith.addf %6, %5 : vector<2x784xf32>
    %8 = arith.divf %6, %7 : vector<2x784xf32>
    %c0_3 = arith.constant 0 : index
    %c0_4 = arith.constant 0 : index
    %9 = vector.load %arg3[%c0_3, %c0_4] : memref<2x784xf32, #tpu.memory_space<vmem>>, vector<2x784xf32>
    tpu.vector_store %arg3[%c0_3, %c0_4], %8 {strides = array<i32>} : memref<2x784xf32, #tpu.memory_space<vmem>>, vector<2x784xf32>,
    return
  }
  func.func @transform_0(%arg0: i32) -> (i32, i32) {
    %c0_i32 = arith.constant 0 : i32
    %c0_i32_0 = arith.constant 0 : i32
    %c0_i32_1 = arith.constant 0 : i32
    return %c0_i32, %c0_i32_0 : i32, i32
  }
  func.func @transform_1(%arg0: i32) -> (i32, i32) {
    %c0_i32 = arith.constant 0 : i32
    %c0_i32_0 = arith.constant 0 : i32
    %c0_i32_1 = arith.constant 0 : i32
    return %c0_i32, %c0_i32_0 : i32, i32
  }
  func.func @transform_2(%arg0: i32) -> (i32, i32) {
    %c0_i32 = arith.constant 0 : i32
    %c0_i32_0 = arith.constant 0 : i32
    %c0_i32_1 = arith.constant 0 : i32
    return %c0_i32, %c0_i32_0 : i32, i32
  }
}

</mosaic_0001>

<llo_original>
// kernel: mnist_generator_forward.5
$region0: #{mnist_generator_forward.5}
  #allocation0 [shape = 'u32[]', space=smem, size = 0x4, offset = 0x4, fixed_abs, tag = 'smem constant byte address 0x4 - core index']
  #allocation1 [shape = 'u32[144,128]{1,0:T(1,128)}', space=vmem, size = 0x12000, scoped, tag = 'internal scratch']
  %s0 = inlined_call_operand.vmem [shape: f32[98,128], index: 0, kind: input, shape index: {}]
  %s1 = inlined_call_operand.vmem [shape: f32[128,1024], index: 1, kind: input, shape index: {}]
  %s2 = inlined_call_operand.vmem [shape: f32[98,1024], index: 2, kind: output, shape index: {}]
  %s3 = sld [smem:[#allocation0]]
  $region18: #{mnist_generator_forward.5} parent=0
    _
  %s5 = ssub.s32 1, %s3
  %s6 = scalar_select 0, %s5, %s3
  // Predicated region
  $region2: #{mnist_generator_forward.5} parent=0 // pred_check
    _
  $region3: #{mnist_generator_forward.5} parent=0 // pred_check_branch
    %8 = sbr.rel (0) target = $region5
  $region4: #{mnist_generator_forward.5} parent=0 // pred_region
    _
  $region5: #{mnist_generator_forward.5} parent=0 // pred_fallthru
    _
  // Predicated region
  $region6: #{mnist_generator_forward.5} parent=0 // pred_check
    _
  $region7: #{mnist_generator_forward.5} parent=0 // pred_check_branch
    %10 = sbr.rel (0) target = $region9
  $region8: #{mnist_generator_forward.5} parent=0 // pred_region
    _
  $region9: #{mnist_generator_forward.5} parent=0 // pred_fallthru
    _
  %v11 = vld [vmem:[%s0] sm:$0xff]
  %v12 = vld [vmem:[%s0 + $0x8] sm:$0xff]
  %v13 = vld [vmem:[%s0 + $0x10] sm:$0xff]
  %v14 = vld [vmem:[%s0 + $0x18] sm:$0xff]
  %v15 = vld [vmem:[%s0 + $0x20] sm:$0xff]
  %v16 = vld [vmem:[%s0 + $0x28] sm:$0xff]
  %v17 = vld [vmem:[%s0 + $0x30] sm:$0xff]
  %v18 = vld [vmem:[%s0 + $0x38] sm:$0xff]
  %v19 = vld [vmem:[%s0 + $0x40] sm:$0xff]
  %v20 = vld [vmem:[%s0 + $0x48] sm:$0xff]
  %v21 = vld [vmem:[%s0 + $0x50] sm:$0xff]
  %v22 = vld [vmem:[%s0 + $0x58] sm:$0xff]
  %v23 = vld [vmem:[%s0 + $0x60] sm:$0x3]
  %v24 = vld [vmem:[%s1] sm:$0xff]
  %v25 = vld [vmem:[%s1 + $0x8] sm:$0xff]
  %v26 = vld [vmem:[%s1 + $0x10] sm:$0xff]
  %v27 = vld [vmem:[%s1 + $0x18] sm:$0xff]
  %v28 = vld [vmem:[%s1 + $0x20] sm:$0xff]
  %v29 = vld [vmem:[%s1 + $0x28] sm:$0xff]
  %v30 = vld [vmem:[%s1 + $0x30] sm:$0xff]
  %v31 = vld [vmem:[%s1 + $0x38] sm:$0xff]
  %v32 = vld [vmem:[%s1 + $0x40] sm:$0xff]
  %v33 = vld [vmem:[%s1 + $0x48] sm:$0xff]
  %v34 = vld [vmem:[%s1 + $0x50] sm:$0xff]
  %v35 = vld [vmem:[%s1 + $0x58] sm:$0xff]
  %v36 = vld [vmem:[%s1 + $0x60] sm:$0xff]
  %v37 = vld [vmem:[%s1 + $0x68] sm:$0xff]
  %v38 = vld [vmem:[%s1 + $0x70] sm:$0xff]
  %v39 = vld [vmem:[%s1 + $0x78] sm:$0xff]
  %v40 = vld [vmem:[%s1 + $0x80] sm:$0xff]
  %v41 = vld [vmem:[%s1 + $0x88] sm:$0xff]
  %v42 = vld [vmem:[%s1 + $0x90] sm:$0xff]
  %v43 = vld [vmem:[%s1 + $0x98] sm:$0xff]
  %v44 = vld [vmem:[%s1 + $0xa0] sm:$0xff]
  %v45 = vld [vmem:[%s1 + $0xa8] sm:$0xff]
  %v46 = vld [vmem:[%s1 + $0xb0] sm:$0xff]
  %v47 = vld [vmem:[%s1 + $0xb8] sm:$0xff]
  %v48 = vld [vmem:[%s1 + $0xc0] sm:$0xff]
  %v49 = vld [vmem:[%s1 + $0xc8] sm:$0xff]
  %v50 = vld [vmem:[%s1 + $0xd0] sm:$0xff]
  %v51 = vld [vmem:[%s1 + $0xd8] sm:$0xff]
  %v52 = vld [vmem:[%s1 + $0xe0] sm:$0xff]
  %v53 = vld [vmem:[%s1 + $0xe8] sm:$0xff]
  %v54 = vld [vmem:[%s1 + $0xf0] sm:$0xff]
  %v55 = vld [vmem:[%s1 + $0xf8] sm:$0xff]
  %v56 = vld [vmem:[%s1 + $0x100] sm:$0xff]
  %v57 = vld [vmem:[%s1 + $0x108] sm:$0xff]
  %v58 = vld [vmem:[%s1 + $0x110] sm:$0xff]
  %v59 = vld [vmem:[%s1 + $0x118] sm:$0xff]
  %v60 = vld [vmem:[%s1 + $0x120] sm:$0xff]
  %v61 = vld [vmem:[%s1 + $0x128] sm:$0xff]
  %v62 = vld [vmem:[%s1 + $0x130] sm:$0xff]
  %v63 = vld [vmem:[%s1 + $0x138] sm:$0xff]
  %v64 = vld [vmem:[%s1 + $0x140] sm:$0xff]
  %v65 = vld [vmem:[%s1 + $0x148] sm:$0xff]
  %v66 = vld [vmem:[%s1 + $0x150] sm:$0xff]
  %v67 = vld [vmem:[%s1 + $0x158] sm:$0xff]
  %v68 = vld [vmem:[%s1 + $0x160] sm:$0xff]
  %v69 = vld [vmem:[%s1 + $0x168] sm:$0xff]
  %v70 = vld [vmem:[%s1 + $0x170] sm:$0xff]
  %v71 = vld [vmem:[%s1 + $0x178] sm:$0xff]
  %v72 = vld [vmem:[%s1 + $0x180] sm:$0xff]
  %v73 = vld [vmem:[%s1 + $0x188] sm:$0xff]
  %v74 = vld [vmem:[%s1 + $0x190] sm:$0xff]
  %v75 = vld [vmem:[%s1 + $0x198] sm:$0xff]
  %v76 = vld [vmem:[%s1 + $0x1a0] sm:$0xff]
  %v77 = vld [vmem:[%s1 + $0x1a8] sm:$0xff]
  %v78 = vld [vmem:[%s1 + $0x1b0] sm:$0xff]
  %v79 = vld [vmem:[%s1 + $0x1b8] sm:$0xff]
  %v80 = vld [vmem:[%s1 + $0x1c0] sm:$0xff]
  %v81 = vld [vmem:[%s1 + $0x1c8] sm:$0xff]
  %v82 = vld [vmem:[%s1 + $0x1d0] sm:$0xff]
  %v83 = vld [vmem:[%s1 + $0x1d8] sm:$0xff]
  %v84 = vld [vmem:[%s1 + $0x1e0] sm:$0xff]
  %v85 = vld [vmem:[%s1 + $0x1e8] sm:$0xff]
  %v86 = vld [vmem:[%s1 + $0x1f0] sm:$0xff]
  %v87 = vld [vmem:[%s1 + $0x1f8] sm:$0xff]
  %v88 = vld [vmem:[%s1 + $0x200] sm:$0xff]
  %v89 = vld [vmem:[%s1 + $0x208] sm:$0xff]
  %v90 = vld [vmem:[%s1 + $0x210] sm:$0xff]
  %v91 = vld [vmem:[%s1 + $0x218] sm:$0xff]
  %v92 = vld [vmem:[%s1 + $0x220] sm:$0xff]
  %v93 = vld [vmem:[%s1 + $0x228] sm:$0xff]
  %v94 = vld [vmem:[%s1 + $0x230] sm:$0xff]
  %v95 = vld [vmem:[%s1 + $0x238] sm:$0xff]
  %v96 = vld [vmem:[%s1 + $0x240] sm:$0xff]
  %v97 = vld [vmem:[%s1 + $0x248] sm:$0xff]
  %v98 = vld [vmem:[%s1 + $0x250] sm:$0xff]
  %v99 = vld [vmem:[%s1 + $0x258] sm:$0xff]
  %v100 = vld [vmem:[%s1 + $0x260] sm:$0xff]
  %v101 = vld [vmem:[%s1 + $0x268] sm:$0xff]
  %v102 = vld [vmem:[%s1 + $0x270] sm:$0xff]
  %v103 = vld [vmem:[%s1 + $0x278] sm:$0xff]
  %v104 = vld [vmem:[%s1 + $0x280] sm:$0xff]
  %v105 = vld [vmem:[%s1 + $0x288] sm:$0xff]
  %v106 = vld [vmem:[%s1 + $0x290] sm:$0xff]
  %v107 = vld [vmem:[%s1 + $0x298] sm:$0xff]
  %v108 = vld [vmem:[%s1 + $0x2a0] sm:$0xff]
  %v109 = vld [vmem:[%s1 + $0x2a8] sm:$0xff]
  %v110 = vld [vmem:[%s1 + $0x2b0] sm:$0xff]
  %v111 = vld [vmem:[%s1 + $0x2b8] sm:$0xff]
  %v112 = vld [vmem:[%s1 + $0x2c0] sm:$0xff]
  %v113 = vld [vmem:[%s1 + $0x2c8] sm:$0xff]
  %v114 = vld [vmem:[%s1 + $0x2d0] sm:$0xff]
  %v115 = vld [vmem:[%s1 + $0x2d8] sm:$0xff]
  %v116 = vld [vmem:[%s1 + $0x2e0] sm:$0xff]
  %v117 = vld [vmem:[%s1 + $0x2e8] sm:$0xff]
  %v118 = vld [vmem:[%s1 + $0x2f0] sm:$0xff]
  %v119 = vld [vmem:[%s1 + $0x2f8] sm:$0xff]
  %v120 = vld [vmem:[%s1 + $0x300] sm:$0xff]
  %v121 = vld [vmem:[%s1 + $0x308] sm:$0xff]
  %v122 = vld [vmem:[%s1 + $0x310] sm:$0xff]
  %v123 = vld [vmem:[%s1 + $0x318] sm:$0xff]
  %v124 = vld [vmem:[%s1 + $0x320] sm:$0xff]
  %v125 = vld [vmem:[%s1 + $0x328] sm:$0xff]
  %v126 = vld [vmem:[%s1 + $0x330] sm:$0xff]
  %v127 = vld [vmem:[%s1 + $0x338] sm:$0xff]
  %v128 = vld [vmem:[%s1 + $0x340] sm:$0xff]
  %v129 = vld [vmem:[%s1 + $0x348] sm:$0xff]
  %v130 = vld [vmem:[%s1 + $0x350] sm:$0xff]
  %v131 = vld [vmem:[%s1 + $0x358] sm:$0xff]
  %v132 = vld [vmem:[%s1 + $0x360] sm:$0xff]
  %v133 = vld [vmem:[%s1 + $0x368] sm:$0xff]
  %v134 = vld [vmem:[%s1 + $0x370] sm:$0xff]
  %v135 = vld [vmem:[%s1 + $0x378] sm:$0xff]
  %v136 = vld [vmem:[%s1 + $0x380] sm:$0xff]
  %v137 = vld [vmem:[%s1 + $0x388] sm:$0xff]
  %v138 = vld [vmem:[%s1 + $0x390] sm:$0xff]
  %v139 = vld [vmem:[%s1 + $0x398] sm:$0xff]
  %v140 = vld [vmem:[%s1 + $0x3a0] sm:$0xff]
  %v141 = vld [vmem:[%s1 + $0x3a8] sm:$0xff]
  %v142 = vld [vmem:[%s1 + $0x3b0] sm:$0xff]
  %v143 = vld [vmem:[%s1 + $0x3b8] sm:$0xff]
  %v144 = vld [vmem:[%s1 + $0x3c0] sm:$0xff]
  %v145 = vld [vmem:[%s1 + $0x3c8] sm:$0xff]
  %v146 = vld [vmem:[%s1 + $0x3d0] sm:$0xff]
  %v147 = vld [vmem:[%s1 + $0x3d8] sm:$0xff]
  %v148 = vld [vmem:[%s1 + $0x3e0] sm:$0xff]
  %v149 = vld [vmem:[%s1 + $0x3e8] sm:$0xff]
  %v150 = vld [vmem:[%s1 + $0x3f0] sm:$0xff]
  %v151 = vld [vmem:[%s1 + $0x3f8] sm:$0xff]
  %152 = vmatprep.subr.mxu0 %v25
  %153 = vmatpush1.msra.mxu0 %v24
  %154 = vmatprep.subr.mxu0 %v33
  %155 = vmatpush1.msra.mxu0 %v32
  %156 = vmatprep.subr.mxu0 %v41
  %157 = vmatpush1.msra.mxu0 %v40
  %158 = vmatprep.subr.mxu0 %v49
  %159 = vmatpush1.msra.mxu0 %v48
  %160 = vmatprep.subr.mxu0 %v57
  %161 = vmatpush1.msra.mxu0 %v56
  %162 = vmatprep.subr.mxu0 %v65
  %163 = vmatpush1.msra.mxu0 %v64
  %164 = vmatprep.subr.mxu0 %v73
  %165 = vmatpush1.msra.mxu0 %v72
  %166 = vmatprep.subr.mxu0 %v81
  %167 = vmatpush1.msra.mxu0 %v80
  %168 = vmatprep.subr.mxu0 %v89
  %169 = vmatpush1.msra.mxu0 %v88
  %170 = vmatprep.subr.mxu0 %v97
  %171 = vmatpush1.msra.mxu0 %v96
  %172 = vmatprep.subr.mxu0 %v105
  %173 = vmatpush1.msra.mxu0 %v104
  %174 = vmatprep.subr.mxu0 %v113
  %175 = vmatpush1.msra.mxu0 %v112
  %176 = vmatprep.subr.mxu0 %v121
  %177 = vmatpush1.msra.mxu0 %v120
  %178 = vmatprep.subr.mxu0 %v129
  %179 = vmatpush1.msra.mxu0 %v128
  %180 = vmatprep.subr.mxu0 %v137
  %181 = vmatpush1.msra.mxu0 %v136
  %182 = vmatprep.subr.mxu0 %v145
  %183 = vmatpush1.msra.mxu0 %v144
  %184 = vmatprep.subr.mxu0 0.0
  %185 = vmatpush1.msra.mxu0 0.0
  %186 = vmatprep.subr.mxu0 0.0
  %187 = vmatpush1.msra.mxu0 0.0
  %188 = vmatprep.subr.mxu0 0.0
  %189 = vmatpush1.msra.mxu0 0.0
  %190 = vmatprep.subr.mxu0 0.0
  %191 = vmatpush1.msra.mxu0 0.0
  %192 = vmatprep.subr.mxu0 0.0
  %193 = vmatpush1.msra.mxu0 0.0
  %194 = vmatprep.subr.mxu0 0.0
  %195 = vmatpush1.msra.mxu0 0.0
  %196 = vmatprep.subr.mxu0 0.0
  %197 = vmatpush1.msra.mxu0 0.0
  %198 = vmatprep.subr.mxu0 0.0
  %199 = vmatpush1.msra.mxu0 0.0
  %200 = vmatprep.subr.mxu0 0.0
  %201 = vmatpush1.msra.mxu0 0.0
  %202 = vmatprep.subr.mxu0 0.0
  %203 = vmatpush1.msra.mxu0 0.0
  %204 = vmatprep.subr.mxu0 0.0
  %205 = vmatpush1.msra.mxu0 0.0
  %206 = vmatprep.subr.mxu0 0.0
  %207 = vmatpush1.msra.mxu0 0.0
  %208 = vmatprep.subr.mxu0 0.0
  %209 = vmatpush1.msra.mxu0 0.0
  %210 = vmatprep.subr.mxu0 0.0
  %211 = vmatpush1.msra.mxu0 0.0
  %212 = vmatprep.subr.mxu0 0.0
  %213 = vmatpush1.msra.mxu0 0.0
  %214 = vmatprep.subr.mxu0 0.0
  %215 = vmatpush1.msra.mxu0 0.0
  %216 = vmatprep.mubr.f32.mxu0 0.0
  %217 = vmatmul.mubr.f32.gmra.mrb[0].mxu0 %v11
  %v218 = vpop.f32.mrb[0].mxu0
  %v219 = vadd.f32 0.0, %v218
  %v220 = vpop.f32.mrb[0].mxu0
  %v221 = vadd.f32 0.0, %v220
  %222 = vmatprep.mubr.f32.mxu0 0.0
  %223 = vmatmul.mubr.f32.gmra.mrb[0].mxu0 %v12
  %v224 = vpop.f32.mrb[0].mxu0
  %v225 = vadd.f32 0.0, %v224
  %v226 = vpop.f32.mrb[0].mxu0
  %v227 = vadd.f32 0.0, %v226
  %228 = vmatprep.mubr.f32.mxu0 0.0
  %229 = vmatmul.mubr.f32.gmra.mrb[0].mxu0 %v13
  %v230 = vpop.f32.mrb[0].mxu0
  %v231 = vadd.f32 0.0, %v230
  %v232 = vpop.f32.mrb[0].mxu0
  %v233 = vadd.f32 0.0, %v232
  %234 = vmatprep.mubr.f32.mxu0 0.0
  %235 = vmatmul.mubr.f32.gmra.mrb[0].mxu0 %v14
  %v236 = vpop.f32.mrb[0].mxu0
  %v237 = vadd.f32 0.0, %v236
  %v238 = vpop.f32.mrb[0].mxu0
  %v239 = vadd.f32 0.0, %v238
  %240 = vmatprep.mubr.f32.mxu0 0.0
  %241 = vmatmul.mubr.f32.gmra.mrb[0].mxu0 %v15
  %v242 = vpop.f32.mrb[0].mxu0
  %v243 = vadd.f32 0.0, %v242
  %v244 = vpop.f32.mrb[0].mxu0
  %v245 = vadd.f32 0.0, %v244
  %246 = vmatprep.mubr.f32.mxu0 0.0
  %247 = vmatmul.mubr.f32.gmra.mrb[0].mxu0 %v16
  %v248 = vpop.f32.mrb[0].mxu0
  %v249 = vadd.f32 0.0, %v248
  %v250 = vpop.f32.mrb[0].mxu0
  %v251 = vadd.f32 0.0, %v250
  %252 = vmatprep.mubr.f32.mxu0 0.0
  %253 = vmatmul.mubr.f32.gmra.mrb[0].mxu0 %v17
  %v254 = vpop.f32.mrb[0].mxu0
  %v255 = vadd.f32 0.0, %v254
  %v256 = vpop.f32.mrb[0].mxu0
  %v257 = vadd.f32 0.0, %v256
  %258 = vmatprep.mubr.f32.mxu0 0.0
  %259 = vmatmul.mubr.f32.gmra.mrb[0].mxu0 %v18
  %v260 = vpop.f32.mrb[0].mxu0
  %v261 = vadd.f32 0.0, %v260
  %v262 = vpop.f32.mrb[0].mxu0
  %v263 = vadd.f32 0.0, %v262
  %264 = vmatprep.mubr.f32.mxu0 0.0
  %265 = vmatmul.mubr.f32.gmra.mrb[0].mxu0 %v19
  %v266 = vpop.f32.mrb[0].mxu0
  %v267 = vadd.f32 0.0, %v266
  %v268 = vpop.f32.mrb[0].mxu0
  %v269 = vadd.f32 0.0, %v268
  %270 = vmatprep.mubr.f32.mxu0 0.0
  %271 = vmatmul.mubr.f32.gmra.mrb[0].mxu0 %v20
  %v272 = vpop.f32.mrb[0].mxu0
  %v273 = vadd.f32 0.0, %v272
  %v274 = vpop.f32.mrb[0].mxu0
  %v275 = vadd.f32 0.0, %v274
  %276 = vmatprep.mubr.f32.mxu0 0.0
  %277 = vmatmul.mubr.f32.gmra.mrb[0].mxu0 %v21
  %v278 = vpop.f32.mrb[0].mxu0
  %v279 = vadd.f32 0.0, %v278
  %v280 = vpop.f32.mrb[0].mxu0
  %v281 = vadd.f32 0.0, %v280
  %282 = vmatprep.mubr.f32.mxu0 0.0
  %283 = vmatmul.mubr.f32.gmra.mrb[0].mxu0 %v22
  %v284 = vpop.f32.mrb[0].mxu0
  %v285 = vadd.f32 0.0, %v284
  %v286 = vpop.f32.mrb[0].mxu0
  %v287 = vadd.f32 0.0, %v286
  %288 = vmatprep.mubr.f32.mxu0 0.0
  %289 = vmatmul.mubr.f32.gmra.mrb[0].mxu0 %v23
  %v290 = vpop.f32.mrb[0].mxu0
  %v291 = vadd.f32 0.0, %v290
  %v292 = vpop.f32.mrb[0].mxu0
  %v293 = vadd.f32 0.0, %v292
  %294 = vdwg.mxu0
  %295 = vmatprep.subr.mxu0 %v27
  %296 = vmatpush1.msra.mxu0 %v26
  %297 = vmatprep.subr.mxu0 %v35
  %298 = vmatpush1.msra.mxu0 %v34
  %299 = vmatprep.subr.mxu0 %v43
  %300 = vmatpush1.msra.mxu0 %v42
  %301 = vmatprep.subr.mxu0 %v51
  %302 = vmatpush1.msra.mxu0 %v50
  %303 = vmatprep.subr.mxu0 %v59
  %304 = vmatpush1.msra.mxu0 %v58
  %305 = vmatprep.subr.mxu0 %v67
  %306 = vmatpush1.msra.mxu0 %v66
  %307 = vmatprep.subr.mxu0 %v75
  %308 = vmatpush1.msra.mxu0 %v74
  %309 = vmatprep.subr.mxu0 %v83
  %310 = vmatpush1.msra.mxu0 %v82
  %311 = vmatprep.subr.mxu0 %v91
  %312 = vmatpush1.msra.mxu0 %v90
  %313 = vmatprep.subr.mxu0 %v99
  %314 = vmatpush1.msra.mxu0 %v98
  %315 = vmatprep.subr.mxu0 %v107
  %316 = vmatpush1.msra.mxu0 %v106
  %317 = vmatprep.subr.mxu0 %v115
  %318 = vmatpush1.msra.mxu0 %v114
  %319 = vmatprep.subr.mxu0 %v123
  %320 = vmatpush1.msra.mxu0 %v122
  %321 = vmatprep.subr.mxu0 %v131
  %322 = vmatpush1.msra.mxu0 %v130
  %323 = vmatprep.subr.mxu0 %v139
  %324 = vmatpush1.msra.mxu0 %v138
  %325 = vmatprep.subr.mxu0 %v147
  %326 = vmatpush1.msra.mxu0 %v146
  %327 = vmatprep.subr.mxu0 0.0
  %328 = vmatpush1.msra.mxu0 0.0
  %329 = vmatprep.subr.mxu0 0.0
  %330 = vmatpush1.msra.mxu0 0.0
  %331 = vmatprep.subr.mxu0 0.0
  %332 = vmatpush1.msra.mxu0 0.0
  %333 = vmatprep.subr.mxu0 0.0
  %334 = vmatpush1.msra.mxu0 0.0
  %335 = vmatprep.subr.mxu0 0.0
  %336 = vmatpush1.msra.mxu0 0.0
  %337 = vmatprep.subr.mxu0 0.0
  %338 = vmatpush1.msra.mxu0 0.0
  %339 = vmatprep.subr.mxu0 0.0
  %340 = vmatpush1.msra.mxu0 0.0
  %341 = vmatprep.subr.mxu0 0.0
  %342 = vmatpush1.msra.mxu0 0.0
  %343 = vmatprep.subr.mxu0 0.0
  %344 = vmatpush1.msra.mxu0 0.0
  %345 = vmatprep.subr.mxu0 0.0
  %346 = vmatpush1.msra.mxu0 0.0
  %347 = vmatprep.subr.mxu0 0.0
  %348 = vmatpush1.msra.mxu0 0.0
  %349 = vmatprep.subr.mxu0 0.0
  %350 = vmatpush1.msra.mxu0 0.0
  %351 = vmatprep.subr.mxu0 0.0
  %352 = vmatpush1.msra.mxu0 0.0
  %353 = vmatprep.subr.mxu0 0.0
  %354 = vmatpush1.msra.mxu0 0.0
  %355 = vmatprep.subr.mxu0 0.0
  %356 = vmatpush1.msra.mxu0 0.0
  %357 = vmatprep.subr.mxu0 0.0
  %358 = vmatpush1.msra.mxu0 0.0
  %359 = vmatprep.mubr.f32.mxu0 0.0
  %360 = vmatmul.mubr.f32.gmra.mrb[0].mxu0 %v11
  %v361 = vpop.f32.mrb[0].mxu0
  %v362 = vadd.f32 0.0, %v361
  %v363 = vpop.f32.mrb[0].mxu0
  %v364 = vadd.f32 0.0, %v363
  %365 = vmatprep.mubr.f32.mxu0 0.0
  %366 = vmatmul.mubr.f32.gmra.mrb[0].mxu0 %v12
  %v367 = vpop.f32.mrb[0].mxu0
  %v368 = vadd.f32 0.0, %v367
  %v369 = vpop.f32.mrb[0].mxu0
  %v370 = vadd.f32 0.0, %v369
  %371 = vmatprep.mubr.f32.mxu0 0.0
  %372 = vmatmul.mubr.f32.gmra.mrb[0].mxu0 %v13
  %v373 = vpop.f32.mrb[0].mxu0
  %v374 = vadd.f32 0.0, %v373
  %v375 = vpop.f32.mrb[0].mxu0
  %v376 = vadd.f32 0.0, %v375
  %377 = vmatprep.mubr.f32.mxu0 0.0
  %378 = vmatmul.mubr.f32.gmra.mrb[0].mxu0 %v14
  %v379 = vpop.f32.mrb[0].mxu0
  %v380 = vadd.f32 0.0, %v379
  %v381 = vpop.f32.mrb[0].mxu0
  %v382 = vadd.f32 0.0, %v381
  %383 = vmatprep.mubr.f32.mxu0 0.0
  %384 = vmatmul.mubr.f32.gmra.mrb[0].mxu0 %v15
  %v385 = vpop.f32.mrb[0].mxu0
  %v386 = vadd.f32 0.0, %v385
  %v387 = vpop.f32.mrb[0].mxu0
  %v388 = vadd.f32 0.0, %v387
  %389 = vmatprep.mubr.f32.mxu0 0.0
  %390 = vmatmul.mubr.f32.gmra.mrb[0].mxu0 %v16
  %v391 = vpop.f32.mrb[0].mxu0
  %v392 = vadd.f32 0.0, %v391
  %v393 = vpop.f32.mrb[0].mxu0
  %v394 = vadd.f32 0.0, %v393
  %395 = vmatprep.mubr.f32.mxu0 0.0
  %396 = vmatmul.mubr.f32.gmra.mrb[0].mxu0 %v17
  %v397 = vpop.f32.mrb[0].mxu0
  %v398 = vadd.f32 0.0, %v397
  %v399 = vpop.f32.mrb[0].mxu0
  %v400 = vadd.f32 0.0, %v399
  %401 = vmatprep.mubr.f32.mxu0 0.0
  %402 = vmatmul.mubr.f32.gmra.mrb[0].mxu0 %v18
  %v403 = vpop.f32.mrb[0].mxu0
  %v404 = vadd.f32 0.0, %v403
  %v405 = vpop.f32.mrb[0].mxu0
  %v406 = vadd.f32 0.0, %v405
  %407 = vmatprep.mubr.f32.mxu0 0.0
  %408 = vmatmul.mubr.f32.gmra.mrb[0].mxu0 %v19
  %v409 = vpop.f32.mrb[0].mxu0
  %v410 = vadd.f32 0.0, %v409
  %v411 = vpop.f32.mrb[0].mxu0
  %v412 = vadd.f32 0.0, %v411
  %413 = vmatprep.mubr.f32.mxu0 0.0
  %414 = vmatmul.mubr.f32.gmra.mrb[0].mxu0 %v20
  %v415 = vpop.f32.mrb[0].mxu0
  %v416 = vadd.f32 0.0, %v415
  %v417 = vpop.f32.mrb[0].mxu0
  %v418 = vadd.f32 0.0, %v417
  %419 = vmatprep.mubr.f32.mxu0 0.0
  %420 = vmatmul.mubr.f32.gmra.mrb[0].mxu0 %v21
  %v421 = vpop.f32.mrb[0].mxu0
  %v422 = vadd.f32 0.0, %v421
  %v423 = vpop.f32.mrb[0].mxu0
  %v424 = vadd.f32 0.0, %v423
  %425 = vmatprep.mubr.f32.mxu0 0.0
  %426 = vmatmul.mubr.f32.gmra.mrb[0].mxu0 %v22
  %v427 = vpop.f32.mrb[0].mxu0
  %v428 = vadd.f32 0.0, %v427
  %v429 = vpop.f32.mrb[0].mxu0
  %v430 = vadd.f32 0.0, %v429
  %431 = vmatprep.mubr.f32.mxu0 0.0
  %432 = vmatmul.mubr.f32.gmra.mrb[0].mxu0 %v23
  %v433 = vpop.f32.mrb[0].mxu0
  %v434 = vadd.f32 0.0, %v433
  %v435 = vpop.f32.mrb[0].mxu0
  %v436 = vadd.f32 0.0, %v435
  %437 = vdwg.mxu0
  %438 = vmatprep.subr.mxu0 %v29
  %439 = vmatpush1.msra.mxu0 %v28
  %440 = vmatprep.subr.mxu0 %v37
  %441 = vmatpush1.msra.mxu0 %v36
  %442 = vmatprep.subr.mxu0 %v45
  %443 = vmatpush1.msra.mxu0 %v44
  %444 = vmatprep.subr.mxu0 %v53
  %445 = vmatpush1.msra.mxu0 %v52
  %446 = vmatprep.subr.mxu0 %v61
  %447 = vmatpush1.msra.mxu0 %v60
  %448 = vmatprep.subr.mxu0 %v69
  %449 = vmatpush1.msra.mxu0 %v68
  %450 = vmatprep.subr.mxu0 %v77
  %451 = vmatpush1.msra.mxu0 %v76
  %452 = vmatprep.subr.mxu0 %v85
  %453 = vmatpush1.msra.mxu0 %v84
  %454 = vmatprep.subr.mxu0 %v93
  %455 = vmatpush1.msra.mxu0 %v92
  %456 = vmatprep.subr.mxu0 %v101
  %457 = vmatpush1.msra.mxu0 %v100
  %458 = vmatprep.subr.mxu0 %v109
  %459 = vmatpush1.msra.mxu0 %v108
  %460 = vmatprep.subr.mxu0 %v117
  %461 = vmatpush1.msra.mxu0 %v116
  %462 = vmatprep.subr.mxu0 %v125
  %463 = vmatpush1.msra.mxu0 %v124
  %464 = vmatprep.subr.mxu0 %v133
  %465 = vmatpush1.msra.mxu0 %v132
  %466 = vmatprep.subr.mxu0 %v141
  %467 = vmatpush1.msra.mxu0 %v140
  %468 = vmatprep.subr.mxu0 %v149
  %469 = vmatpush1.msra.mxu0 %v148
  %470 = vmatprep.subr.mxu0 0.0
  %471 = vmatpush1.msra.mxu0 0.0
  %472 = vmatprep.subr.mxu0 0.0
  %473 = vmatpush1.msra.mxu0 0.0
  %474 = vmatprep.subr.mxu0 0.0
  %475 = vmatpush1.msra.mxu0 0.0
  %476 = vmatprep.subr.mxu0 0.0
  %477 = vmatpush1.msra.mxu0 0.0
  %478 = vmatprep.subr.mxu0 0.0
  %479 = vmatpush1.msra.mxu0 0.0
  %480 = vmatprep.subr.mxu0 0.0
  %481 = vmatpush1.msra.mxu0 0.0
  %482 = vmatprep.subr.mxu0 0.0
  %483 = vmatpush1.msra.mxu0 0.0
  %484 = vmatprep.subr.mxu0 0.0
  %485 = vmatpush1.msra.mxu0 0.0
  %486 = vmatprep.subr.mxu0 0.0
  %487 = vmatpush1.msra.mxu0 0.0
  %488 = vmatprep.subr.mxu0 0.0
  %489 = vmatpush1.msra.mxu0 0.0
  %490 = vmatprep.subr.mxu0 0.0
  %491 = vmatpush1.msra.mxu0 0.0
  %492 = vmatprep.subr.mxu0 0.0
  %493 = vmatpush1.msra.mxu0 0.0
  %494 = vmatprep.subr.mxu0 0.0
  %495 = vmatpush1.msra.mxu0 0.0
  %496 = vmatprep.subr.mxu0 0.0
  %497 = vmatpush1.msra.mxu0 0.0
  %498 = vmatprep.subr.mxu0 0.0
  %499 = vmatpush1.msra.mxu0 0.0
  %500 = vmatprep.subr.mxu0 0.0
  %501 = vmatpush1.msra.mxu0 0.0
  %502 = vmatprep.mubr.f32.mxu0 0.0
  %503 = vmatmul.mubr.f32.gmra.mrb[0].mxu0 %v11
  %v504 = vpop.f32.mrb[0].mxu0
  %v505 = vadd.f32 0.0, %v504
  %v506 = vpop.f32.mrb[0].mxu0
  %v507 = vadd.f32 0.0, %v506
  %508 = vmatprep.mubr.f32.mxu0 0.0
  %509 = vmatmul.mubr.f32.gmra.mrb[0].mxu0 %v12
  %v510 = vpop.f32.mrb[0].mxu0
  %v511 = vadd.f32 0.0, %v510
  %v512 = vpop.f32.mrb[0].mxu0
  %v513 = vadd.f32 0.0, %v512
  %514 = vmatprep.mubr.f32.mxu0 0.0
  %515 = vmatmul.mubr.f32.gmra.mrb[0].mxu0 %v13
  %v516 = vpop.f32.mrb[0].mxu0
  %v517 = vadd.f32 0.0, %v516
  %v518 = vpop.f32.mrb[0].mxu0
  %v519 = vadd.f32 0.0, %v518
  %520 = vmatprep.mubr.f32.mxu0 0.0
  %521 = vmatmul.mubr.f32.gmra.mrb[0].mxu0 %v14
  %v522 = vpop.f32.mrb[0].mxu0
  %v523 = vadd.f32 0.0, %v522
  %v524 = vpop.f32.mrb[0].mxu0
  %v525 = vadd.f32 0.0, %v524
  %526 = vmatprep.mubr.f32.mxu0 0.0
  %527 = vmatmul.mubr.f32.gmra.mrb[0].mxu0 %v15
  %v528 = vpop.f32.mrb[0].mxu0
  %v529 = vadd.f32 0.0, %v528
  %v530 = vpop.f32.mrb[0].mxu0
  %v531 = vadd.f32 0.0, %v530
  %532 = vmatprep.mubr.f32.mxu0 0.0
  %533 = vmatmul.mubr.f32.gmra.mrb[0].mxu0 %v16
  %v534 = vpop.f32.mrb[0].mxu0
  %v535 = vadd.f32 0.0, %v534
  %v536 = vpop.f32.mrb[0].mxu0
  %v537 = vadd.f32 0.0, %v536
  %538 = vmatprep.mubr.f32.mxu0 0.0
  %539 = vmatmul.mubr.f32.gmra.mrb[0].mxu0 %v17
  %v540 = vpop.f32.mrb[0].mxu0
  %v541 = vadd.f32 0.0, %v540
  %v542 = vpop.f32.mrb[0].mxu0
  %v543 = vadd.f32 0.0, %v542
  %544 = vmatprep.mubr.f32.mxu0 0.0
  %545 = vmatmul.mubr.f32.gmra.mrb[0].mxu0 %v18
  %v546 = vpop.f32.mrb[0].mxu0
  %v547 = vadd.f32 0.0, %v546
  %v548 = vpop.f32.mrb[0].mxu0
  %v549 = vadd.f32 0.0, %v548
  %550 = vmatprep.mubr.f32.mxu0 0.0
  %551 = vmatmul.mubr.f32.gmra.mrb[0].mxu0 %v19
  %v552 = vpop.f32.mrb[0].mxu0
  %v553 = vadd.f32 0.0, %v552
  %v554 = vpop.f32.mrb[0].mxu0
  %v555 = vadd.f32 0.0, %v554
  %556 = vmatprep.mubr.f32.mxu0 0.0
  %557 = vmatmul.mubr.f32.gmra.mrb[0].mxu0 %v20
  %v558 = vpop.f32.mrb[0].mxu0
  %v559 = vadd.f32 0.0, %v558
  %v560 = vpop.f32.mrb[0].mxu0
  %v561 = vadd.f32 0.0, %v560
  %562 = vmatprep.mubr.f32.mxu0 0.0
  %563 = vmatmul.mubr.f32.gmra.mrb[0].mxu0 %v21
  %v564 = vpop.f32.mrb[0].mxu0
  %v565 = vadd.f32 0.0, %v564
  %v566 = vpop.f32.mrb[0].mxu0
  %v567 = vadd.f32 0.0, %v566
  %568 = vmatprep.mubr.f32.mxu0 0.0
  %569 = vmatmul.mubr.f32.gmra.mrb[0].mxu0 %v22
  %v570 = vpop.f32.mrb[0].mxu0
  %v571 = vadd.f32 0.0, %v570
  %v572 = vpop.f32.mrb[0].mxu0
  %v573 = vadd.f32 0.0, %v572
  %574 = vmatprep.mubr.f32.mxu0 0.0
  %575 = vmatmul.mubr.f32.gmra.mrb[0].mxu0 %v23
  %v576 = vpop.f32.mrb[0].mxu0
  %v577 = vadd.f32 0.0, %v576
  %v578 = vpop.f32.mrb[0].mxu0
  %v579 = vadd.f32 0.0, %v578
  %580 = vdwg.mxu0
  %581 = vmatprep.subr.mxu0 %v31
  %582 = vmatpush1.msra.mxu0 %v30
  %583 = vmatprep.subr.mxu0 %v39
  %584 = vmatpush1.msra.mxu0 %v38
  %585 = vmatprep.subr.mxu0 %v47
  %586 = vmatpush1.msra.mxu0 %v46
  %587 = vmatprep.subr.mxu0 %v55
  %588 = vmatpush1.msra.mxu0 %v54
  %589 = vmatprep.subr.mxu0 %v63
  %590 = vmatpush1.msra.mxu0 %v62
  %591 = vmatprep.subr.mxu0 %v71
  %592 = vmatpush1.msra.mxu0 %v70
  %593 = vmatprep.subr.mxu0 %v79
  %594 = vmatpush1.msra.mxu0 %v78
  %595 = vmatprep.subr.mxu0 %v87
  %596 = vmatpush1.msra.mxu0 %v86
  %597 = vmatprep.subr.mxu0 %v95
  %598 = vmatpush1.msra.mxu0 %v94
  %599 = vmatprep.subr.mxu0 %v103
  %600 = vmatpush1.msra.mxu0 %v102
  %601 = vmatprep.subr.mxu0 %v111
  %602 = vmatpush1.msra.mxu0 %v110
  %603 = vmatprep.subr.mxu0 %v119
  %604 = vmatpush1.msra.mxu0 %v118
  %605 = vmatprep.subr.mxu0 %v127
  %606 = vmatpush1.msra.mxu0 %v126
  %607 = vmatprep.subr.mxu0 %v135
  %608 = vmatpush1.msra.mxu0 %v134
  %609 = vmatprep.subr.mxu0 %v143
  %610 = vmatpush1.msra.mxu0 %v142
  %611 = vmatprep.subr.mxu0 %v151
  %612 = vmatpush1.msra.mxu0 %v150
  %613 = vmatprep.subr.mxu0 0.0
  %614 = vmatpush1.msra.mxu0 0.0
  %615 = vmatprep.subr.mxu0 0.0
  %616 = vmatpush1.msra.mxu0 0.0
  %617 = vmatprep.subr.mxu0 0.0
  %618 = vmatpush1.msra.mxu0 0.0
  %619 = vmatprep.subr.mxu0 0.0
  %620 = vmatpush1.msra.mxu0 0.0
  %621 = vmatprep.subr.mxu0 0.0
  %622 = vmatpush1.msra.mxu0 0.0
  %623 = vmatprep.subr.mxu0 0.0
  %624 = vmatpush1.msra.mxu0 0.0
  %625 = vmatprep.subr.mxu0 0.0
  %626 = vmatpush1.msra.mxu0 0.0
  %627 = vmatprep.subr.mxu0 0.0
  %628 = vmatpush1.msra.mxu0 0.0
  %629 = vmatprep.subr.mxu0 0.0
  %630 = vmatpush1.msra.mxu0 0.0
  %631 = vmatprep.subr.mxu0 0.0
  %632 = vmatpush1.msra.mxu0 0.0
  %633 = vmatprep.subr.mxu0 0.0
  %634 = vmatpush1.msra.mxu0 0.0
  %635 = vmatprep.subr.mxu0 0.0
  %636 = vmatpush1.msra.mxu0 0.0
  %637 = vmatprep.subr.mxu0 0.0
  %638 = vmatpush1.msra.mxu0 0.0
  %639 = vmatprep.subr.mxu0 0.0
  %640 = vmatpush1.msra.mxu0 0.0
  %641 = vmatprep.subr.mxu0 0.0
  %642 = vmatpush1.msra.mxu0 0.0
  %643 = vmatprep.subr.mxu0 0.0
  %644 = vmatpush1.msra.mxu0 0.0
  %645 = vmatprep.mubr.f32.mxu0 0.0
  %646 = vmatmul.mubr.f32.gmra.mrb[0].mxu0 %v11
  %v647 = vpop.f32.mrb[0].mxu0
  %v648 = vadd.f32 0.0, %v647
  %v649 = vpop.f32.mrb[0].mxu0
  %v650 = vadd.f32 0.0, %v649
  %651 = vmatprep.mubr.f32.mxu0 0.0
  %652 = vmatmul.mubr.f32.gmra.mrb[0].mxu0 %v12
  %v653 = vpop.f32.mrb[0].mxu0
  %v654 = vadd.f32 0.0, %v653
  %v655 = vpop.f32.mrb[0].mxu0
  %v656 = vadd.f32 0.0, %v655
  %657 = vmatprep.mubr.f32.mxu0 0.0
  %658 = vmatmul.mubr.f32.gmra.mrb[0].mxu0 %v13
  %v659 = vpop.f32.mrb[0].mxu0
  %v660 = vadd.f32 0.0, %v659
  %v661 = vpop.f32.mrb[0].mxu0
  %v662 = vadd.f32 0.0, %v661
  %663 = vmatprep.mubr.f32.mxu0 0.0
  %664 = vmatmul.mubr.f32.gmra.mrb[0].mxu0 %v14
  %v665 = vpop.f32.mrb[0].mxu0
  %v666 = vadd.f32 0.0, %v665
  %v667 = vpop.f32.mrb[0].mxu0
  %v668 = vadd.f32 0.0, %v667
  %669 = vmatprep.mubr.f32.mxu0 0.0
  %670 = vmatmul.mubr.f32.gmra.mrb[0].mxu0 %v15
  %v671 = vpop.f32.mrb[0].mxu0
  %v672 = vadd.f32 0.0, %v671
  %v673 = vpop.f32.mrb[0].mxu0
  %v674 = vadd.f32 0.0, %v673
  %675 = vmatprep.mubr.f32.mxu0 0.0
  %676 = vmatmul.mubr.f32.gmra.mrb[0].mxu0 %v16
  %v677 = vpop.f32.mrb[0].mxu0
  %v678 = vadd.f32 0.0, %v677
  %v679 = vpop.f32.mrb[0].mxu0
  %v680 = vadd.f32 0.0, %v679
  %681 = vmatprep.mubr.f32.mxu0 0.0
  %682 = vmatmul.mubr.f32.gmra.mrb[0].mxu0 %v17
  %v683 = vpop.f32.mrb[0].mxu0
  %v684 = vadd.f32 0.0, %v683
  %v685 = vpop.f32.mrb[0].mxu0
  %v686 = vadd.f32 0.0, %v685
  %687 = vmatprep.mubr.f32.mxu0 0.0
  %688 = vmatmul.mubr.f32.gmra.mrb[0].mxu0 %v18
  %v689 = vpop.f32.mrb[0].mxu0
  %v690 = vadd.f32 0.0, %v689
  %v691 = vpop.f32.mrb[0].mxu0
  %v692 = vadd.f32 0.0, %v691
  %693 = vmatprep.mubr.f32.mxu0 0.0
  %694 = vmatmul.mubr.f32.gmra.mrb[0].mxu0 %v19
  %v695 = vpop.f32.mrb[0].mxu0
  %v696 = vadd.f32 0.0, %v695
  %v697 = vpop.f32.mrb[0].mxu0
  %v698 = vadd.f32 0.0, %v697
  %699 = vmatprep.mubr.f32.mxu0 0.0
  %700 = vmatmul.mubr.f32.gmra.mrb[0].mxu0 %v20
  %v701 = vpop.f32.mrb[0].mxu0
  %v702 = vadd.f32 0.0, %v701
  %v703 = vpop.f32.mrb[0].mxu0
  %v704 = vadd.f32 0.0, %v703
  %705 = vmatprep.mubr.f32.mxu0 0.0
  %706 = vmatmul.mubr.f32.gmra.mrb[0].mxu0 %v21
  %v707 = vpop.f32.mrb[0].mxu0
  %v708 = vadd.f32 0.0, %v707
  %v709 = vpop.f32.mrb[0].mxu0
  %v710 = vadd.f32 0.0, %v709
  %711 = vmatprep.mubr.f32.mxu0 0.0
  %712 = vmatmul.mubr.f32.gmra.mrb[0].mxu0 %v22
  %v713 = vpop.f32.mrb[0].mxu0
  %v714 = vadd.f32 0.0, %v713
  %v715 = vpop.f32.mrb[0].mxu0
  %v716 = vadd.f32 0.0, %v715
  %717 = vmatprep.mubr.f32.mxu0 0.0
  %718 = vmatmul.mubr.f32.gmra.mrb[0].mxu0 %v23
  %v719 = vpop.f32.mrb[0].mxu0
  %v720 = vadd.f32 0.0, %v719
  %v721 = vpop.f32.mrb[0].mxu0
  %v722 = vadd.f32 0.0, %v721
  %723 = vdwg.mxu0
  %724 = vst [vmem:[%s2] sm:$0xff] %v219
  %725 = vst [vmem:[%s2 + $0x8] sm:$0xff] %v221
  %726 = vst [vmem:[%s2 + $0x10] sm:$0xff] %v362
  %727 = vst [vmem:[%s2 + $0x18] sm:$0xff] %v364
  %728 = vst [vmem:[%s2 + $0x20] sm:$0xff] %v505
  %729 = vst [vmem:[%s2 + $0x28] sm:$0xff] %v507
  %730 = vst [vmem:[%s2 + $0x30] sm:$0xff] %v648
  %731 = vst [vmem:[%s2 + $0x38] sm:$0xff] %v650
  %732 = vst [vmem:[%s2 + $0x40] sm:$0xff] %v225
  %733 = vst [vmem:[%s2 + $0x48] sm:$0xff] %v227
  %734 = vst [vmem:[%s2 + $0x50] sm:$0xff] %v368
  %735 = vst [vmem:[%s2 + $0x58] sm:$0xff] %v370
  %736 = vst [vmem:[%s2 + $0x60] sm:$0xff] %v511
  %737 = vst [vmem:[%s2 + $0x68] sm:$0xff] %v513
  %738 = vst [vmem:[%s2 + $0x70] sm:$0xff] %v654
  %739 = vst [vmem:[%s2 + $0x78] sm:$0xff] %v656
  %740 = vst [vmem:[%s2 + $0x80] sm:$0xff] %v231
  %741 = vst [vmem:[%s2 + $0x88] sm:$0xff] %v233
  %742 = vst [vmem:[%s2 + $0x90] sm:$0xff] %v374
  %743 = vst [vmem:[%s2 + $0x98] sm:$0xff] %v376
  %744 = vst [vmem:[%s2 + $0xa0] sm:$0xff] %v517
  %745 = vst [vmem:[%s2 + $0xa8] sm:$0xff] %v519
  %746 = vst [vmem:[%s2 + $0xb0] sm:$0xff] %v660
  %747 = vst [vmem:[%s2 + $0xb8] sm:$0xff] %v662
  %748 = vst [vmem:[%s2 + $0xc0] sm:$0xff] %v237
  %749 = vst [vmem:[%s2 + $0xc8] sm:$0xff] %v239
  %750 = vst [vmem:[%s2 + $0xd0] sm:$0xff] %v380
  %751 = vst [vmem:[%s2 + $0xd8] sm:$0xff] %v382
  %752 = vst [vmem:[%s2 + $0xe0] sm:$0xff] %v523
  %753 = vst [vmem:[%s2 + $0xe8] sm:$0xff] %v525
  %754 = vst [vmem:[%s2 + $0xf0] sm:$0xff] %v666
  %755 = vst [vmem:[%s2 + $0xf8] sm:$0xff] %v668
  %756 = vst [vmem:[%s2 + $0x100] sm:$0xff] %v243
  %757 = vst [vmem:[%s2 + $0x108] sm:$0xff] %v245
  %758 = vst [vmem:[%s2 + $0x110] sm:$0xff] %v386
  %759 = vst [vmem:[%s2 + $0x118] sm:$0xff] %v388
  %760 = vst [vmem:[%s2 + $0x120] sm:$0xff] %v529
  %761 = vst [vmem:[%s2 + $0x128] sm:$0xff] %v531
  %762 = vst [vmem:[%s2 + $0x130] sm:$0xff] %v672
  %763 = vst [vmem:[%s2 + $0x138] sm:$0xff] %v674
  %764 = vst [vmem:[%s2 + $0x140] sm:$0xff] %v249
  %765 = vst [vmem:[%s2 + $0x148] sm:$0xff] %v251
  %766 = vst [vmem:[%s2 + $0x150] sm:$0xff] %v392
  %767 = vst [vmem:[%s2 + $0x158] sm:$0xff] %v394
  %768 = vst [vmem:[%s2 + $0x160] sm:$0xff] %v535
  %769 = vst [vmem:[%s2 + $0x168] sm:$0xff] %v537
  %770 = vst [vmem:[%s2 + $0x170] sm:$0xff] %v678
  %771 = vst [vmem:[%s2 + $0x178] sm:$0xff] %v680
  %772 = vst [vmem:[%s2 + $0x180] sm:$0xff] %v255
  %773 = vst [vmem:[%s2 + $0x188] sm:$0xff] %v257
  %774 = vst [vmem:[%s2 + $0x190] sm:$0xff] %v398
  %775 = vst [vmem:[%s2 + $0x198] sm:$0xff] %v400
  %776 = vst [vmem:[%s2 + $0x1a0] sm:$0xff] %v541
  %777 = vst [vmem:[%s2 + $0x1a8] sm:$0xff] %v543
  %778 = vst [vmem:[%s2 + $0x1b0] sm:$0xff] %v684
  %779 = vst [vmem:[%s2 + $0x1b8] sm:$0xff] %v686
  %780 = vst [vmem:[%s2 + $0x1c0] sm:$0xff] %v261
  %781 = vst [vmem:[%s2 + $0x1c8] sm:$0xff] %v263
  %782 = vst [vmem:[%s2 + $0x1d0] sm:$0xff] %v404
  %783 = vst [vmem:[%s2 + $0x1d8] sm:$0xff] %v406
  %784 = vst [vmem:[%s2 + $0x1e0] sm:$0xff] %v547
  %785 = vst [vmem:[%s2 + $0x1e8] sm:$0xff] %v549
  %786 = vst [vmem:[%s2 + $0x1f0] sm:$0xff] %v690
  %787 = vst [vmem:[%s2 + $0x1f8] sm:$0xff] %v692
  %788 = vst [vmem:[%s2 + $0x200] sm:$0xff] %v267
  %789 = vst [vmem:[%s2 + $0x208] sm:$0xff] %v269
  %790 = vst [vmem:[%s2 + $0x210] sm:$0xff] %v410
  %791 = vst [vmem:[%s2 + $0x218] sm:$0xff] %v412
  %792 = vst [vmem:[%s2 + $0x220] sm:$0xff] %v553
  %793 = vst [vmem:[%s2 + $0x228] sm:$0xff] %v555
  %794 = vst [vmem:[%s2 + $0x230] sm:$0xff] %v696
  %795 = vst [vmem:[%s2 + $0x238] sm:$0xff] %v698
  %796 = vst [vmem:[%s2 + $0x240] sm:$0xff] %v273
  %797 = vst [vmem:[%s2 + $0x248] sm:$0xff] %v275
  %798 = vst [vmem:[%s2 + $0x250] sm:$0xff] %v416
  %799 = vst [vmem:[%s2 + $0x258] sm:$0xff] %v418
  %800 = vst [vmem:[%s2 + $0x260] sm:$0xff] %v559
  %801 = vst [vmem:[%s2 + $0x268] sm:$0xff] %v561
  %802 = vst [vmem:[%s2 + $0x270] sm:$0xff] %v702
  %803 = vst [vmem:[%s2 + $0x278] sm:$0xff] %v704
  %804 = vst [vmem:[%s2 + $0x280] sm:$0xff] %v279
  %805 = vst [vmem:[%s2 + $0x288] sm:$0xff] %v281
  %806 = vst [vmem:[%s2 + $0x290] sm:$0xff] %v422
  %807 = vst [vmem:[%s2 + $0x298] sm:$0xff] %v424
  %808 = vst [vmem:[%s2 + $0x2a0] sm:$0xff] %v565
  %809 = vst [vmem:[%s2 + $0x2a8] sm:$0xff] %v567
  %810 = vst [vmem:[%s2 + $0x2b0] sm:$0xff] %v708
  %811 = vst [vmem:[%s2 + $0x2b8] sm:$0xff] %v710
  %812 = vst [vmem:[%s2 + $0x2c0] sm:$0xff] %v285
  %813 = vst [vmem:[%s2 + $0x2c8] sm:$0xff] %v287
  %814 = vst [vmem:[%s2 + $0x2d0] sm:$0xff] %v428
  %815 = vst [vmem:[%s2 + $0x2d8] sm:$0xff] %v430
  %816 = vst [vmem:[%s2 + $0x2e0] sm:$0xff] %v571
  %817 = vst [vmem:[%s2 + $0x2e8] sm:$0xff] %v573
  %818 = vst [vmem:[%s2 + $0x2f0] sm:$0xff] %v714
  %819 = vst [vmem:[%s2 + $0x2f8] sm:$0xff] %v716
  %820 = vst [vmem:[%s2 + $0x300] sm:$0x3] %v291
  %821 = vst [vmem:[%s2 + $0x308] sm:$0x3] %v293
  %822 = vst [vmem:[%s2 + $0x310] sm:$0x3] %v434
  %823 = vst [vmem:[%s2 + $0x318] sm:$0x3] %v436
  %824 = vst [vmem:[%s2 + $0x320] sm:$0x3] %v577
  %825 = vst [vmem:[%s2 + $0x328] sm:$0x3] %v579
  %826 = vst [vmem:[%s2 + $0x330] sm:$0x3] %v720
  %827 = vst [vmem:[%s2 + $0x338] sm:$0x3] %v722
  // Predicated region
  $region10: #{mnist_generator_forward.5} parent=0 // pred_check
    _
  $region11: #{mnist_generator_forward.5} parent=0 // pred_check_branch
    %829 = sbr.rel (0) target = $region13
  $region12: #{mnist_generator_forward.5} parent=0 // pred_region
    _
  $region13: #{mnist_generator_forward.5} parent=0 // pred_fallthru
    _
  // Predicated region
  $region14: #{mnist_generator_forward.5} parent=0 // pred_check
    _
  $region15: #{mnist_generator_forward.5} parent=0 // pred_check_branch
    %831 = sbr.rel (0) target = $region17
  $region16: #{mnist_generator_forward.5} parent=0 // pred_region
    _
  $region17: #{mnist_generator_forward.5} parent=0 // pred_fallthru
    _

// kernel: mnist_generator_forward.4
$region0: #{mnist_generator_forward.4}
  #allocation0 [shape = 'u32[]', space=smem, size = 0x4, offset = 0x4, fixed_abs, tag = 'smem constant byte address 0x4 - core index']
  #allocation1 [shape = 'u32[144,128]{1,0:T(1,128)}', space=vmem, size = 0x12000, scoped, tag = 'internal scratch']
  %s0 = inlined_call_operand.hbm [shape: f32[2,62], index: 0, kind: input, shape index: {}]
  %s1 = inlined_call_operand.hbm [shape: f32[62,1024], index: 1, kind: input, shape index: {}]
  %s2 = inlined_call_operand.hbm [shape: f32[1,1024], index: 2, kind: input, shape index: {}]
  %s3 = inlined_call_operand.hbm [shape: f32[1,1024], index: 3, kind: input, shape index: {}]
  %s4 = inlined_call_operand.hbm [shape: f32[1,1024], index: 4, kind: input, shape index: {}]
  %s5 = inlined_call_operand.hbm [shape: bf16[1024,6272], index: 5, kind: input, shape index: {}]
  %s6 = inlined_call_operand.hbm [shape: f32[1,6272], index: 6, kind: input, shape index: {}]
  %s7 = inlined_call_operand.hbm [shape: f32[1,6272], index: 7, kind: input, shape index: {}]
  %s8 = inlined_call_operand.hbm [shape: f32[1,6272], index: 8, kind: input, shape index: {}]
  %s9 = inlined_call_operand.vmem [shape: f32[2,6272], index: 9, kind: output, shape index: {}]
  %s10 = sld [smem:[#allocation0]]
  $region105: #{mnist_generator_forward.4} parent=0
    _
  %s12 = ssub.s32 1, %s10
  %s13 = scalar_select 0, %s12, %s10
  $region1: #{mnist_generator_forward.4} parent=0
    #allocation2 [shape = 'u8[1024]{0}', space=vmem, size = 0x400, scoped, tag = 'input window, operand 0, single buffered']
    #allocation3 [shape = 's32[2]{0}', space=sflag, size = 0x8, scoped, tag = 'scoped memory for mnist_generator_forward.4']
    #allocation4 [shape = 'u8[262144]{0}', space=vmem, size = 0x40000, scoped, tag = 'input window, operand 1, single buffered']
    #allocation5 [shape = 's32[1]{0}', space=sflag, size = 0x4, scoped, tag = 'scoped memory for mnist_generator_forward.4']
    #allocation6 [shape = 'u8[4096]{0}', space=vmem, size = 0x1000, scoped, tag = 'input window, operand 2, single buffered']
    #allocation7 [shape = 'u8[4096]{0}', space=vmem, size = 0x1000, scoped, tag = 'input window, operand 3, single buffered']
    #allocation8 [shape = 's32[1]{0}', space=sflag, size = 0x4, scoped, tag = 'scoped memory for mnist_generator_forward.4']
    #allocation9 [shape = 'u8[4096]{0}', space=vmem, size = 0x1000, scoped, tag = 'input window, operand 4, single buffered']
    #allocation10 [shape = 'u8[3670016]{0}', space=vmem, size = 0x380000, scoped, tag = 'input window, operand 5']
    #allocation11 [shape = 's32[2]{0}', space=sflag, size = 0x8, scoped, tag = 'scoped memory for mnist_generator_forward.4']
    #allocation12 [shape = 'u8[7168]{0}', space=vmem, size = 0x1c00, scoped, tag = 'input window, operand 6']
    #allocation13 [shape = 'u8[7168]{0}', space=vmem, size = 0x1c00, scoped, tag = 'input window, operand 7']
    #allocation14 [shape = 's32[2]{0}', space=sflag, size = 0x8, scoped, tag = 'scoped memory for mnist_generator_forward.4']
    #allocation15 [shape = 'u8[7168]{0}', space=vmem, size = 0x1c00, scoped, tag = 'input window, operand 8']
    %14 = vsyncpa [#allocation3], 0
    %15 = vsyncpa [#allocation5], 0
    %16 = vsyncpa [#allocation8], 0
    %17 = vsyncpa [#allocation11], 0
    %s18 = scalar_lea.sflag [#allocation11], 1
    %19 = vsyncpa %s18, 0
    %20 = vsyncpa [#allocation14], 0
    %s21 = scalar_lea.sflag [#allocation14], 1
    %22 = vsyncpa %s21, 0
    loop: start=0, step=1, limit=9
    $region2: #{mnist_generator_forward.4} parent=1 // loop_pre_header
      _
    $region3: #{mnist_generator_forward.4} parent=1 // loop_header
      %s24 = sphi 0, %s28
      %p25 = scmp.ge.s32.totalorder %s24, 9
      %s32 = sphi 0, %s32
      %s34 = sphi 0, %s32
      %s35 = sphi 0, %s34
      %s49 = sphi 0, %s35
      %s53 = sphi 0, %s53
      %s55 = sphi 0, %s53
      %s56 = sphi 0, %s55
      %s70 = sphi 0, %s56
      %s74 = sphi 0, %s74
      %s76 = sphi 0, %s74
      %s77 = sphi 0, %s76
      %s91 = sphi 0, %s77
      %s95 = sphi 0, %s95
      %s97 = sphi 0, %s95
      %s98 = sphi 0, %s97
      %s112 = sphi 0, %s98
      %s116 = sphi 0, %s116
      %s118 = sphi 0, %s116
      %s119 = sphi 0, %s118
      %s133 = sphi 0, %s119
      %s139 = sphi 0, %s141
      %s142 = sphi 0, %s139
      %s143 = sphi 0, %s142
      %s159 = sphi 0, %s143
      %s165 = sphi 0, %s167
      %s168 = sphi 0, %s165
      %s169 = sphi 0, %s168
      %s185 = sphi 0, %s169
      %s191 = sphi 0, %s193
      %s194 = sphi 0, %s191
      %s195 = sphi 0, %s194
      %s211 = sphi 0, %s195
      %s217 = sphi 0, %s219
      %s220 = sphi 0, %s217
      %s221 = sphi 0, %s220
      %s237 = sphi 0, %s221
      %s243 = sphi 0, %s245
      %s246 = sphi 0, %s243
      %s247 = sphi 0, %s246
      %s263 = sphi 0, %s247
    $region4: #{mnist_generator_forward.4} parent=1 // loop_header_branch
      %27 = sbr.rel (%p25) target = $region8
    $region5: #{mnist_generator_forward.4} parent=1 // loop_body
      %s29 = ssub.s32 %s24, 1
      %s30 = ssub.s32 %s24, 2
      %s31 = sadd.s32 %s24, 1
      %s33 = sadd.s32 %s32, 1
      %p36 = scmp.eq.s32.totalorder %s24, 6
      %p37 = scmp.ne.s32.totalorder %s32, %s34
      %p38 = scmp.eq.s32.totalorder %s24, 0
      %p39 = por %p37, %p38
      %p40 = scmp.ne.s32.totalorder %s32, %s34
      %p41 = scmp.eq.s32.totalorder %s29, 6
      %p42 = por %p40, %p41
      %p43 = scmp.ne.s32.totalorder %s34, %s35
      %p44 = scmp.eq.s32.totalorder %s29, 0
      %p45 = por %p43, %p44
      %p46 = scmp.ne.s32.totalorder %s34, %s35
      %p47 = scmp.eq.s32.totalorder %s30, 6
      %p48 = por %p46, %p47
      %p50 = scmp.ne.s32.totalorder %s35, %s49
      %p51 = scmp.eq.s32.totalorder %s30, 0
      %p52 = por %p50, %p51
      %s54 = sadd.s32 %s53, 1
      %p57 = scmp.eq.s32.totalorder %s24, 6
      %p58 = scmp.ne.s32.totalorder %s53, %s55
      %p59 = scmp.eq.s32.totalorder %s24, 0
      %p60 = por %p58, %p59
      %p61 = scmp.ne.s32.totalorder %s53, %s55
      %p62 = scmp.eq.s32.totalorder %s29, 6
      %p63 = por %p61, %p62
      %p64 = scmp.ne.s32.totalorder %s55, %s56
      %p65 = scmp.eq.s32.totalorder %s29, 0
      %p66 = por %p64, %p65
      %p67 = scmp.ne.s32.totalorder %s55, %s56
      %p68 = scmp.eq.s32.totalorder %s30, 6
      %p69 = por %p67, %p68
      %p71 = scmp.ne.s32.totalorder %s56, %s70
      %p72 = scmp.eq.s32.totalorder %s30, 0
      %p73 = por %p71, %p72
      %s75 = sadd.s32 %s74, 1
      %p78 = scmp.eq.s32.totalorder %s24, 6
      %p79 = scmp.ne.s32.totalorder %s74, %s76
      %p80 = scmp.eq.s32.totalorder %s24, 0
      %p81 = por %p79, %p80
      %p82 = scmp.ne.s32.totalorder %s74, %s76
      %p83 = scmp.eq.s32.totalorder %s29, 6
      %p84 = por %p82, %p83
      %p85 = scmp.ne.s32.totalorder %s76, %s77
      %p86 = scmp.eq.s32.totalorder %s29, 0
      %p87 = por %p85, %p86
      %p88 = scmp.ne.s32.totalorder %s76, %s77
      %p89 = scmp.eq.s32.totalorder %s30, 6
      %p90 = por %p88, %p89
      %p92 = scmp.ne.s32.totalorder %s77, %s91
      %p93 = scmp.eq.s32.totalorder %s30, 0
      %p94 = por %p92, %p93
      %s96 = sadd.s32 %s95, 1
      %p99 = scmp.eq.s32.totalorder %s24, 6
      %p100 = scmp.ne.s32.totalorder %s95, %s97
      %p101 = scmp.eq.s32.totalorder %s24, 0
      %p102 = por %p100, %p101
      %p103 = scmp.ne.s32.totalorder %s95, %s97
      %p104 = scmp.eq.s32.totalorder %s29, 6
      %p105 = por %p103, %p104
      %p106 = scmp.ne.s32.totalorder %s97, %s98
      %p107 = scmp.eq.s32.totalorder %s29, 0
      %p108 = por %p106, %p107
      %p109 = scmp.ne.s32.totalorder %s97, %s98
      %p110 = scmp.eq.s32.totalorder %s30, 6
      %p111 = por %p109, %p110
      %p113 = scmp.ne.s32.totalorder %s98, %s112
      %p114 = scmp.eq.s32.totalorder %s30, 0
      %p115 = por %p113, %p114
      %s117 = sadd.s32 %s116, 1
      %p120 = scmp.eq.s32.totalorder %s24, 6
      %p121 = scmp.ne.s32.totalorder %s116, %s118
      %p122 = scmp.eq.s32.totalorder %s24, 0
      %p123 = por %p121, %p122
      %p124 = scmp.ne.s32.totalorder %s116, %s118
      %p125 = scmp.eq.s32.totalorder %s29, 6
      %p126 = por %p124, %p125
      %p127 = scmp.ne.s32.totalorder %s118, %s119
      %p128 = scmp.eq.s32.totalorder %s29, 0
      %p129 = por %p127, %p128
      %p130 = scmp.ne.s32.totalorder %s118, %s119
      %p131 = scmp.eq.s32.totalorder %s30, 6
      %p132 = por %p130, %p131
      %p134 = scmp.ne.s32.totalorder %s119, %s133
      %p135 = scmp.eq.s32.totalorder %s30, 0
      %p136 = por %p134, %p135
      %s137 = ssub.s32 %s24, %s31
      %p138 = scmp.eq.s32.totalorder %s137, 0
      %s140 = sadd.s32 %s139, 1
      %s141 = scalar_select %p138, %s139, %s140
      %p144 = pneg %p138
      %p145 = scmp.eq.s32.totalorder %s24, 6
      %p146 = por %p144, %p145
      %p147 = scmp.ne.s32.totalorder %s139, %s142
      %p148 = scmp.eq.s32.totalorder %s24, 0
      %p149 = por %p147, %p148
      %p150 = scmp.ne.s32.totalorder %s139, %s142
      %p151 = scmp.eq.s32.totalorder %s29, 6
      %p152 = por %p150, %p151
      %p153 = scmp.ne.s32.totalorder %s142, %s143
      %p154 = scmp.eq.s32.totalorder %s29, 0
      %p155 = por %p153, %p154
      %p156 = scmp.ne.s32.totalorder %s142, %s143
      %p157 = scmp.eq.s32.totalorder %s30, 6
      %p158 = por %p156, %p157
      %p160 = scmp.ne.s32.totalorder %s143, %s159
      %p161 = scmp.eq.s32.totalorder %s30, 0
      %p162 = por %p160, %p161
      %s163 = ssub.s32 %s24, %s31
      %p164 = scmp.eq.s32.totalorder %s163, 0
      %s166 = sadd.s32 %s165, 1
      %s167 = scalar_select %p164, %s165, %s166
      %p170 = pneg %p164
      %p171 = scmp.eq.s32.totalorder %s24, 6
      %p172 = por %p170, %p171
      %p173 = scmp.ne.s32.totalorder %s165, %s168
      %p174 = scmp.eq.s32.totalorder %s24, 0
      %p175 = por %p173, %p174
      %p176 = scmp.ne.s32.totalorder %s165, %s168
      %p177 = scmp.eq.s32.totalorder %s29, 6
      %p178 = por %p176, %p177
      %p179 = scmp.ne.s32.totalorder %s168, %s169
      %p180 = scmp.eq.s32.totalorder %s29, 0
      %p181 = por %p179, %p180
      %p182 = scmp.ne.s32.totalorder %s168, %s169
      %p183 = scmp.eq.s32.totalorder %s30, 6
      %p184 = por %p182, %p183
      %p186 = scmp.ne.s32.totalorder %s169, %s185
      %p187 = scmp.eq.s32.totalorder %s30, 0
      %p188 = por %p186, %p187
      %s189 = ssub.s32 %s24, %s31
      %p190 = scmp.eq.s32.totalorder %s189, 0
      %s192 = sadd.s32 %s191, 1
      %s193 = scalar_select %p190, %s191, %s192
      %p196 = pneg %p190
      %p197 = scmp.eq.s32.totalorder %s24, 6
      %p198 = por %p196, %p197
      %p199 = scmp.ne.s32.totalorder %s191, %s194
      %p200 = scmp.eq.s32.totalorder %s24, 0
      %p201 = por %p199, %p200
      %p202 = scmp.ne.s32.totalorder %s191, %s194
      %p203 = scmp.eq.s32.totalorder %s29, 6
      %p204 = por %p202, %p203
      %p205 = scmp.ne.s32.totalorder %s194, %s195
      %p206 = scmp.eq.s32.totalorder %s29, 0
      %p207 = por %p205, %p206
      %p208 = scmp.ne.s32.totalorder %s194, %s195
      %p209 = scmp.eq.s32.totalorder %s30, 6
      %p210 = por %p208, %p209
      %p212 = scmp.ne.s32.totalorder %s195, %s211
      %p213 = scmp.eq.s32.totalorder %s30, 0
      %p214 = por %p212, %p213
      %s215 = ssub.s32 %s24, %s31
      %p216 = scmp.eq.s32.totalorder %s215, 0
      %s218 = sadd.s32 %s217, 1
      %s219 = scalar_select %p216, %s217, %s218
      %p222 = pneg %p216
      %p223 = scmp.eq.s32.totalorder %s24, 6
      %p224 = por %p222, %p223
      %p225 = scmp.ne.s32.totalorder %s217, %s220
      %p226 = scmp.eq.s32.totalorder %s24, 0
      %p227 = por %p225, %p226
      %p228 = scmp.ne.s32.totalorder %s217, %s220
      %p229 = scmp.eq.s32.totalorder %s29, 6
      %p230 = por %p228, %p229
      %p231 = scmp.ne.s32.totalorder %s220, %s221
      %p232 = scmp.eq.s32.totalorder %s29, 0
      %p233 = por %p231, %p232
      %p234 = scmp.ne.s32.totalorder %s220, %s221
      %p235 = scmp.eq.s32.totalorder %s30, 6
      %p236 = por %p234, %p235
      %p238 = scmp.ne.s32.totalorder %s221, %s237
      %p239 = scmp.eq.s32.totalorder %s30, 0
      %p240 = por %p238, %p239
      %s241 = ssub.s32 %s24, %s31
      %p242 = scmp.eq.s32.totalorder %s241, 0
      %s244 = sadd.s32 %s243, 1
      %s245 = scalar_select %p242, %s243, %s244
      %p248 = pneg %p242
      %p249 = scmp.eq.s32.totalorder %s24, 6
      %p250 = por %p248, %p249
      %p251 = scmp.ne.s32.totalorder %s243, %s246
      %p252 = scmp.eq.s32.totalorder %s24, 0
      %p253 = por %p251, %p252
      %p254 = scmp.ne.s32.totalorder %s243, %s246
      %p255 = scmp.eq.s32.totalorder %s29, 6
      %p256 = por %p254, %p255
      %p257 = scmp.ne.s32.totalorder %s246, %s247
      %p258 = scmp.eq.s32.totalorder %s29, 0
      %p259 = por %p257, %p258
      %p260 = scmp.ne.s32.totalorder %s246, %s247
      %p261 = scmp.eq.s32.totalorder %s30, 6
      %p262 = por %p260, %p261
      %p264 = scmp.ne.s32.totalorder %s247, %s263
      %p265 = scmp.eq.s32.totalorder %s30, 0
      %p266 = por %p264, %p265
      %p267 = scmp.le.s32.totalorder 1, %s24
      %p268 = scmp.lt.s32.totalorder %s24, 8
      %p269 = pnand %p267, %p268
      %p270 = pneg %p269
      // Predicated region
      $region9: #{mnist_generator_forward.4} parent=5 // pred_check
        _
      $region10: #{mnist_generator_forward.4} parent=5 // pred_check_branch
        %272 = sbr.rel (%p269) target = $region12
      $region11: #{mnist_generator_forward.4} parent=5 // pred_region
        %s273 = ssub.s32 %s24, 1
        // Predicated region
        $region13: #{mnist_generator_forward.4} parent=11 // pred_check
          %p274 = pneg %p45
        $region14: #{mnist_generator_forward.4} parent=11 // pred_check_branch
          %276 = sbr.rel (%p274) target = $region16
        $region15: #{mnist_generator_forward.4} parent=11 // pred_region
          %s278 = ssub.s32 32, 32
          %279 = vsyncadd [#allocation3], %s278
          %s281 = sshll.u32 [#allocation2], 4
          %s282 = int_to_ptr.vmem [resolvable:$true] %s281
          %284 = dma.hbm_to_vmem [thread:$0]  %s0, 32, %s282, [#allocation3]
        $region16: #{mnist_generator_forward.4} parent=11 // pred_fallthru
          _
        // Predicated region
        $region17: #{mnist_generator_forward.4} parent=11 // pred_check
          %p285 = pneg %p66
        $region18: #{mnist_generator_forward.4} parent=11 // pred_check_branch
          %287 = sbr.rel (%p285) target = $region20
        $region19: #{mnist_generator_forward.4} parent=11 // pred_region
          %s289 = ssub.s32 8192, 8192
          %290 = vsyncadd [#allocation5], %s289
          %s291 = sshll.u32 [#allocation4], 4
          %s292 = int_to_ptr.vmem [resolvable:$true] %s291
          %297 = dma.hbm_to_vmem [thread:$0]  %s1, 8192, %s292, [#allocation5], 1024, 1024, 64
        $region20: #{mnist_generator_forward.4} parent=11 // pred_fallthru
          _
        // Predicated region
        $region21: #{mnist_generator_forward.4} parent=11 // pred_check
          %p298 = pneg %p87
        $region22: #{mnist_generator_forward.4} parent=11 // pred_check_branch
          %300 = sbr.rel (%p298) target = $region24
        $region23: #{mnist_generator_forward.4} parent=11 // pred_region
          %s302 = ssub.s32 128, 128
          %303 = vsyncadd [#allocation5], %s302
          %s305 = sshll.u32 [#allocation6], 4
          %s306 = int_to_ptr.vmem [resolvable:$true] %s305
          %308 = dma.hbm_to_vmem [thread:$0]  %s2, 128, %s306, [#allocation5]
        $region24: #{mnist_generator_forward.4} parent=11 // pred_fallthru
          _
        // Predicated region
        $region25: #{mnist_generator_forward.4} parent=11 // pred_check
          %p309 = pneg %p108
        $region26: #{mnist_generator_forward.4} parent=11 // pred_check_branch
          %311 = sbr.rel (%p309) target = $region28
        $region27: #{mnist_generator_forward.4} parent=11 // pred_region
          %s313 = ssub.s32 128, 128
          %314 = vsyncadd [#allocation8], %s313
          %s316 = sshll.u32 [#allocation7], 4
          %s317 = int_to_ptr.vmem [resolvable:$true] %s316
          %319 = dma.hbm_to_vmem [thread:$0]  %s3, 128, %s317, [#allocation8]
        $region28: #{mnist_generator_forward.4} parent=11 // pred_fallthru
          _
        // Predicated region
        $region29: #{mnist_generator_forward.4} parent=11 // pred_check
          %p320 = pneg %p129
        $region30: #{mnist_generator_forward.4} parent=11 // pred_check_branch
          %322 = sbr.rel (%p320) target = $region32
        $region31: #{mnist_generator_forward.4} parent=11 // pred_region
          %s324 = ssub.s32 128, 128
          %325 = vsyncadd [#allocation8], %s324
          %s327 = sshll.u32 [#allocation9], 4
          %s328 = int_to_ptr.vmem [resolvable:$true] %s327
          %330 = dma.hbm_to_vmem [thread:$0]  %s4, 128, %s328, [#allocation8]
        $region32: #{mnist_generator_forward.4} parent=11 // pred_fallthru
          _
      $region12: #{mnist_generator_forward.4} parent=5 // pred_fallthru
        _
      %p331 = scmp.lt.s32.totalorder %s24, 7
      // Predicated region
      $region33: #{mnist_generator_forward.4} parent=5 // pred_check
        %p332 = pneg %p331
      $region34: #{mnist_generator_forward.4} parent=5 // pred_check_branch
        %334 = sbr.rel (%p332) target = $region36
      $region35: #{mnist_generator_forward.4} parent=5 // pred_region
        // Predicated region
        $region37: #{mnist_generator_forward.4} parent=35 // pred_check
          %p335 = pneg %p149
        $region38: #{mnist_generator_forward.4} parent=35 // pred_check_branch
          %337 = sbr.rel (%p335) target = $region40
        $region39: #{mnist_generator_forward.4} parent=35 // pred_region
          %s338 = sand.u32 %s24, 1
          %s339 = scalar_lea.sflag [#allocation11], %s338
          %s340 = sand.u32 %s139, 1
          %s341 = smul.addr %s340, 3584
          %s342 = scalar_lea.vmem [#allocation10], %s341
          %s343 = smul.u32 7, %s24
          %s345 = ssub.s32 57344, 57344
          %346 = vsyncadd %s339, %s345
          %s347 = smul.addr %s343, 64
          %s348 = scalar_lea.hbm %s5, %s347
          %s349 = sshll.u32 %s342, 4
          %s350 = int_to_ptr.vmem [resolvable:$true] %s349
          %355 = dma.hbm_to_vmem [thread:$0]  %s348, 57344, %s350, %s339, 3136, 448, 28
        $region40: #{mnist_generator_forward.4} parent=35 // pred_fallthru
          _
        // Predicated region
        $region41: #{mnist_generator_forward.4} parent=35 // pred_check
          %p356 = pneg %p175
        $region42: #{mnist_generator_forward.4} parent=35 // pred_check_branch
          %358 = sbr.rel (%p356) target = $region44
        $region43: #{mnist_generator_forward.4} parent=35 // pred_region
          %s359 = sand.u32 %s24, 1
          %s360 = scalar_lea.sflag [#allocation11], %s359
          %s361 = sand.u32 %s165, 1
          %s362 = smul.addr %s361, 7
          %s363 = scalar_lea.vmem [#allocation12], %s362
          %s364 = smul.u32 7, %s24
          %s366 = ssub.s32 112, 112
          %367 = vsyncadd %s360, %s366
          %s368 = smul.addr %s364, 16
          %s369 = scalar_lea.hbm %s6, %s368
          %s371 = sshll.u32 %s363, 4
          %s372 = int_to_ptr.vmem [resolvable:$true] %s371
          %374 = dma.hbm_to_vmem [thread:$0]  %s369, 112, %s372, %s360
        $region44: #{mnist_generator_forward.4} parent=35 // pred_fallthru
          _
        // Predicated region
        $region45: #{mnist_generator_forward.4} parent=35 // pred_check
          %p375 = pneg %p201
        $region46: #{mnist_generator_forward.4} parent=35 // pred_check_branch
          %377 = sbr.rel (%p375) target = $region48
        $region47: #{mnist_generator_forward.4} parent=35 // pred_region
          %s378 = sand.u32 %s24, 1
          %s379 = scalar_lea.sflag [#allocation14], %s378
          %s380 = sand.u32 %s191, 1
          %s381 = smul.addr %s380, 7
          %s382 = scalar_lea.vmem [#allocation13], %s381
          %s383 = smul.u32 7, %s24
          %s385 = ssub.s32 112, 112
          %386 = vsyncadd %s379, %s385
          %s387 = smul.addr %s383, 16
          %s388 = scalar_lea.hbm %s7, %s387
          %s390 = sshll.u32 %s382, 4
          %s391 = int_to_ptr.vmem [resolvable:$true] %s390
          %393 = dma.hbm_to_vmem [thread:$0]  %s388, 112, %s391, %s379
        $region48: #{mnist_generator_forward.4} parent=35 // pred_fallthru
          _
        // Predicated region
        $region49: #{mnist_generator_forward.4} parent=35 // pred_check
          %p394 = pneg %p227
        $region50: #{mnist_generator_forward.4} parent=35 // pred_check_branch
          %396 = sbr.rel (%p394) target = $region52
        $region51: #{mnist_generator_forward.4} parent=35 // pred_region
          %s397 = sand.u32 %s24, 1
          %s398 = scalar_lea.sflag [#allocation14], %s397
          %s399 = sand.u32 %s217, 1
          %s400 = smul.addr %s399, 7
          %s401 = scalar_lea.vmem [#allocation15], %s400
          %s402 = smul.u32 7, %s24
          %s404 = ssub.s32 112, 112
          %405 = vsyncadd %s398, %s404
          %s406 = smul.addr %s402, 16
          %s407 = scalar_lea.hbm %s8, %s406
          %s409 = sshll.u32 %s401, 4
          %s410 = int_to_ptr.vmem [resolvable:$true] %s409
          %412 = dma.hbm_to_vmem [thread:$0]  %s407, 112, %s410, %s398
        $region52: #{mnist_generator_forward.4} parent=35 // pred_fallthru
          _
      $region36: #{mnist_generator_forward.4} parent=5 // pred_fallthru
        _
      %p413 = scmp.le.s32.totalorder 1, %s24
      %p414 = scmp.lt.s32.totalorder %s24, 8
      %p415 = pnand %p413, %p414
      %p416 = pneg %p415
      // Predicated region
      $region53: #{mnist_generator_forward.4} parent=5 // pred_check
        _
      $region54: #{mnist_generator_forward.4} parent=5 // pred_check_branch
        %418 = sbr.rel (%p415) target = $region56
      $region55: #{mnist_generator_forward.4} parent=5 // pred_region
        %s419 = ssub.s32 %s24, 1
        // Predicated region
        $region57: #{mnist_generator_forward.4} parent=55 // pred_check
          %p420 = pneg %p45
        $region58: #{mnist_generator_forward.4} parent=55 // pred_check_branch
          %422 = sbr.rel (%p420) target = $region60
        $region59: #{mnist_generator_forward.4} parent=55 // pred_region
          %423 = dma.done [#allocation3], 32
        $region60: #{mnist_generator_forward.4} parent=55 // pred_fallthru
          _
        // Predicated region
        $region61: #{mnist_generator_forward.4} parent=55 // pred_check
          %p424 = pneg %p66
        $region62: #{mnist_generator_forward.4} parent=55 // pred_check_branch
          %426 = sbr.rel (%p424) target = $region64
        $region63: #{mnist_generator_forward.4} parent=55 // pred_region
          %427 = dma.done [#allocation5], 8192
        $region64: #{mnist_generator_forward.4} parent=55 // pred_fallthru
          _
        // Predicated region
        $region65: #{mnist_generator_forward.4} parent=55 // pred_check
          %p428 = pneg %p87
        $region66: #{mnist_generator_forward.4} parent=55 // pred_check_branch
          %430 = sbr.rel (%p428) target = $region68
        $region67: #{mnist_generator_forward.4} parent=55 // pred_region
          %431 = dma.done [#allocation5], 128
        $region68: #{mnist_generator_forward.4} parent=55 // pred_fallthru
          _
        // Predicated region
        $region69: #{mnist_generator_forward.4} parent=55 // pred_check
          %p432 = pneg %p108
        $region70: #{mnist_generator_forward.4} parent=55 // pred_check_branch
          %434 = sbr.rel (%p432) target = $region72
        $region71: #{mnist_generator_forward.4} parent=55 // pred_region
          %435 = dma.done [#allocation8], 128
        $region72: #{mnist_generator_forward.4} parent=55 // pred_fallthru
          _
        // Predicated region
        $region73: #{mnist_generator_forward.4} parent=55 // pred_check
          %p436 = pneg %p129
        $region74: #{mnist_generator_forward.4} parent=55 // pred_check_branch
          %438 = sbr.rel (%p436) target = $region76
        $region75: #{mnist_generator_forward.4} parent=55 // pred_region
          %439 = dma.done [#allocation8], 128
        $region76: #{mnist_generator_forward.4} parent=55 // pred_fallthru
          _
        %s440 = sand.u32 %s29, 1
        %s441 = scalar_lea.sflag [#allocation11], %s440
        %s442 = sand.u32 %s142, 1
        %s443 = smul.addr %s442, 3584
        %s444 = scalar_lea.vmem [#allocation10], %s443
        // Predicated region
        $region77: #{mnist_generator_forward.4} parent=55 // pred_check
          %p445 = pneg %p155
        $region78: #{mnist_generator_forward.4} parent=55 // pred_check_branch
          %447 = sbr.rel (%p445) target = $region80
        $region79: #{mnist_generator_forward.4} parent=55 // pred_region
          %448 = dma.done %s441, 57344
        $region80: #{mnist_generator_forward.4} parent=55 // pred_fallthru
          _
        %s449 = sand.u32 %s29, 1
        %s450 = scalar_lea.sflag [#allocation11], %s449
        %s451 = sand.u32 %s168, 1
        %s452 = smul.addr %s451, 7
        %s453 = scalar_lea.vmem [#allocation12], %s452
        // Predicated region
        $region81: #{mnist_generator_forward.4} parent=55 // pred_check
          %p454 = pneg %p181
        $region82: #{mnist_generator_forward.4} parent=55 // pred_check_branch
          %456 = sbr.rel (%p454) target = $region84
        $region83: #{mnist_generator_forward.4} parent=55 // pred_region
          %457 = dma.done %s450, 112
        $region84: #{mnist_generator_forward.4} parent=55 // pred_fallthru
          _
        %s458 = sand.u32 %s29, 1
        %s459 = scalar_lea.sflag [#allocation14], %s458
        %s460 = sand.u32 %s194, 1
        %s461 = smul.addr %s460, 7
        %s462 = scalar_lea.vmem [#allocation13], %s461
        // Predicated region
        $region85: #{mnist_generator_forward.4} parent=55 // pred_check
          %p463 = pneg %p207
        $region86: #{mnist_generator_forward.4} parent=55 // pred_check_branch
          %465 = sbr.rel (%p463) target = $region88
        $region87: #{mnist_generator_forward.4} parent=55 // pred_region
          %466 = dma.done %s459, 112
        $region88: #{mnist_generator_forward.4} parent=55 // pred_fallthru
          _
        %s467 = sand.u32 %s29, 1
        %s468 = scalar_lea.sflag [#allocation14], %s467
        %s469 = sand.u32 %s220, 1
        %s470 = smul.addr %s469, 7
        %s471 = scalar_lea.vmem [#allocation15], %s470
        // Predicated region
        $region89: #{mnist_generator_forward.4} parent=55 // pred_check
          %p472 = pneg %p233
        $region90: #{mnist_generator_forward.4} parent=55 // pred_check_branch
          %474 = sbr.rel (%p472) target = $region92
        $region91: #{mnist_generator_forward.4} parent=55 // pred_region
          %475 = dma.done %s468, 112
        $region92: #{mnist_generator_forward.4} parent=55 // pred_fallthru
          _
        %p476 = pneg %p45
        %p477 = pneg %p42
        %p478 = pneg %p66
        %p479 = pneg %p63
        %p480 = pneg %p87
        %p481 = pneg %p84
        %p482 = pneg %p108
        %p483 = pneg %p105
        %p484 = pneg %p129
        %p485 = pneg %p126
        %s486 = sand.u32 %s29, 1
        %s487 = scalar_lea.sflag [#allocation11], %s486
        %s488 = sand.u32 %s142, 1
        %s489 = smul.addr %s488, 3584
        %s490 = scalar_lea.vmem [#allocation10], %s489
        %p491 = pneg %p155
        %p492 = pneg %p152
        %s493 = sand.u32 %s29, 1
        %s494 = scalar_lea.sflag [#allocation11], %s493
        %s495 = sand.u32 %s168, 1
        %s496 = smul.addr %s495, 7
        %s497 = scalar_lea.vmem [#allocation12], %s496
        %p498 = pneg %p181
        %p499 = pneg %p178
        %s500 = sand.u32 %s29, 1
        %s501 = scalar_lea.sflag [#allocation14], %s500
        %s502 = sand.u32 %s194, 1
        %s503 = smul.addr %s502, 7
        %s504 = scalar_lea.vmem [#allocation13], %s503
        %p505 = pneg %p207
        %p506 = pneg %p204
        %s507 = sand.u32 %s29, 1
        %s508 = scalar_lea.sflag [#allocation14], %s507
        %s509 = sand.u32 %s220, 1
        %s510 = smul.addr %s509, 7
        %s511 = scalar_lea.vmem [#allocation15], %s510
        %p512 = pneg %p233
        %p513 = pneg %p230
        %p514 = pneg %p259
        %p515 = pneg %p256
        %s516 = smul.u32 7, %s29
        %p517 = scmp.lt.s32.totalorder %s516, 48
        %s518 = scalar_select %p517, %s516, 48
        %s519 = smul.addr %s518, 2
        %s520 = scalar_lea.vmem %s9, %s519
        %s521 = smul.u32 7, %s29
        %s522 = smul.u32 7, %s29
        %s523 = smul.u32 7, %s29
        %s524 = smul.u32 7, %s29
        %s525 = smul.u32 7, %s29
        %p526 = scmp.lt.s32.totalorder %s525, 48
        %s527 = scalar_select %p526, %s525, 48
        %s528 = smul.addr %s527, 2
        %s529 = scalar_lea.vmem %s9, %s528
        %s530 = smul.u32 7, %s29
        %v531 = vld [vmem:[#allocation2] sm:$0x3]
        %v532 = vld [vmem:[#allocation4] sm:$0xff]
        %v533 = vld [vmem:[#allocation4 + $0x8] sm:$0xff]
        %v534 = vld [vmem:[#allocation4 + $0x10] sm:$0xff]
        %v535 = vld [vmem:[#allocation4 + $0x18] sm:$0xff]
        %v536 = vld [vmem:[#allocation4 + $0x20] sm:$0xff]
        %v537 = vld [vmem:[#allocation4 + $0x28] sm:$0xff]
        %v538 = vld [vmem:[#allocation4 + $0x30] sm:$0xff]
        %v539 = vld [vmem:[#allocation4 + $0x38] sm:$0xff]
        %v540 = vld [vmem:[#allocation4 + $0x40] sm:$0xff]
        %v541 = vld [vmem:[#allocation4 + $0x48] sm:$0xff]
        %v542 = vld [vmem:[#allocation4 + $0x50] sm:$0xff]
        %v543 = vld [vmem:[#allocation4 + $0x58] sm:$0xff]
        %v544 = vld [vmem:[#allocation4 + $0x60] sm:$0xff]
        %v545 = vld [vmem:[#allocation4 + $0x68] sm:$0xff]
        %v546 = vld [vmem:[#allocation4 + $0x70] sm:$0xff]
        %v547 = vld [vmem:[#allocation4 + $0x78] sm:$0xff]
        %v548 = vld [vmem:[#allocation4 + $0x80] sm:$0xff]
        %v549 = vld [vmem:[#allocation4 + $0x88] sm:$0xff]
        %v550 = vld [vmem:[#allocation4 + $0x90] sm:$0xff]
        %v551 = vld [vmem:[#allocation4 + $0x98] sm:$0xff]
        %v552 = vld [vmem:[#allocation4 + $0xa0] sm:$0xff]
        %v553 = vld [vmem:[#allocation4 + $0xa8] sm:$0xff]
        %v554 = vld [vmem:[#allocation4 + $0xb0] sm:$0xff]
        %v555 = vld [vmem:[#allocation4 + $0xb8] sm:$0xff]
        %v556 = vld [vmem:[#allocation4 + $0xc0] sm:$0xff]
        %v557 = vld [vmem:[#allocation4 + $0xc8] sm:$0xff]
        %v558 = vld [vmem:[#allocation4 + $0xd0] sm:$0xff]
        %v559 = vld [vmem:[#allocation4 + $0xd8] sm:$0xff]
        %v560 = vld [vmem:[#allocation4 + $0xe0] sm:$0xff]
        %v561 = vld [vmem:[#allocation4 + $0xe8] sm:$0xff]
        %v562 = vld [vmem:[#allocation4 + $0xf0] sm:$0xff]
        %v563 = vld [vmem:[#allocation4 + $0xf8] sm:$0xff]
        %v564 = vld [vmem:[#allocation4 + $0x100] sm:$0xff]
        %v565 = vld [vmem:[#allocation4 + $0x108] sm:$0xff]
        %v566 = vld [vmem:[#allocation4 + $0x110] sm:$0xff]
        %v567 = vld [vmem:[#allocation4 + $0x118] sm:$0xff]
        %v568 = vld [vmem:[#allocation4 + $0x120] sm:$0xff]
        %v569 = vld [vmem:[#allocation4 + $0x128] sm:$0xff]
        %v570 = vld [vmem:[#allocation4 + $0x130] sm:$0xff]
        %v571 = vld [vmem:[#allocation4 + $0x138] sm:$0xff]
        %v572 = vld [vmem:[#allocation4 + $0x140] sm:$0xff]
        %v573 = vld [vmem:[#allocation4 + $0x148] sm:$0xff]
        %v574 = vld [vmem:[#allocation4 + $0x150] sm:$0xff]
        %v575 = vld [vmem:[#allocation4 + $0x158] sm:$0xff]
        %v576 = vld [vmem:[#allocation4 + $0x160] sm:$0xff]
        %v577 = vld [vmem:[#allocation4 + $0x168] sm:$0xff]
        %v578 = vld [vmem:[#allocation4 + $0x170] sm:$0xff]
        %v579 = vld [vmem:[#allocation4 + $0x178] sm:$0xff]
        %v580 = vld [vmem:[#allocation4 + $0x180] sm:$0xff]
        %v581 = vld [vmem:[#allocation4 + $0x188] sm:$0xff]
        %v582 = vld [vmem:[#allocation4 + $0x190] sm:$0xff]
        %v583 = vld [vmem:[#allocation4 + $0x198] sm:$0xff]
        %v584 = vld [vmem:[#allocation4 + $0x1a0] sm:$0xff]
        %v585 = vld [vmem:[#allocation4 + $0x1a8] sm:$0xff]
        %v586 = vld [vmem:[#allocation4 + $0x1b0] sm:$0xff]
        %v587 = vld [vmem:[#allocation4 + $0x1b8] sm:$0xff]
        %v588 = vld [vmem:[#allocation4 + $0x1c0] sm:$0x3f]
        %v589 = vld [vmem:[#allocation4 + $0x1c8] sm:$0x3f]
        %v590 = vld [vmem:[#allocation4 + $0x1d0] sm:$0x3f]
        %v591 = vld [vmem:[#allocation4 + $0x1d8] sm:$0x3f]
        %v592 = vld [vmem:[#allocation4 + $0x1e0] sm:$0x3f]
        %v593 = vld [vmem:[#allocation4 + $0x1e8] sm:$0x3f]
        %v594 = vld [vmem:[#allocation4 + $0x1f0] sm:$0x3f]
        %v595 = vld [vmem:[#allocation4 + $0x1f8] sm:$0x3f]
        %v596 = vld [vmem:[#allocation6] sm:$0xff]
        %v598 = vlaneseq
        %v599 = vshrl.u32 %v598, 7
        %v600 = vsub.s32 0, %v599
        %v601 = vrot.slane %v596, %v600
        %v602 = vlaneseq
        %v603 = vshrl.u32 %v602, 7
        %v604 = vsub.s32 1, %v603
        %v605 = vrot.slane %v596, %v604
        %v606 = vlaneseq
        %v607 = vshrl.u32 %v606, 7
        %v608 = vsub.s32 2, %v607
        %v609 = vrot.slane %v596, %v608
        %v610 = vlaneseq
        %v611 = vshrl.u32 %v610, 7
        %v612 = vsub.s32 3, %v611
        %v613 = vrot.slane %v596, %v612
        %v614 = vlaneseq
        %v615 = vshrl.u32 %v614, 7
        %v616 = vsub.s32 4, %v615
        %v617 = vrot.slane %v596, %v616
        %v618 = vlaneseq
        %v619 = vshrl.u32 %v618, 7
        %v620 = vsub.s32 5, %v619
        %v621 = vrot.slane %v596, %v620
        %v622 = vlaneseq
        %v623 = vshrl.u32 %v622, 7
        %v624 = vsub.s32 6, %v623
        %v625 = vrot.slane %v596, %v624
        %v626 = vlaneseq
        %v627 = vshrl.u32 %v626, 7
        %v628 = vsub.s32 7, %v627
        %v629 = vrot.slane %v596, %v628
        %vm638 = vcmask 506880
        %v640 = vsel %vm638, %v531, 0
        %vm642 = vcmask 1045504
        %v644 = vsel %vm642, %v588, 0
        %v647 = vsel %vm642, %v589, 0
        %v650 = vsel %vm642, %v590, 0
        %v653 = vsel %vm642, %v591, 0
        %v656 = vsel %vm642, %v592, 0
        %v659 = vsel %vm642, %v593, 0
        %v662 = vsel %vm642, %v594, 0
        %v665 = vsel %vm642, %v595, 0
        %667 = vmatprep.subr.mxu0 %v533
        %668 = vmatpush1.msra.mxu0 %v532
        %669 = vmatprep.subr.mxu0 %v541
        %670 = vmatpush1.msra.mxu0 %v540
        %671 = vmatprep.subr.mxu0 %v549
        %672 = vmatpush1.msra.mxu0 %v548
        %673 = vmatprep.subr.mxu0 %v557
        %674 = vmatpush1.msra.mxu0 %v556
        %675 = vmatprep.subr.mxu0 %v565
        %676 = vmatpush1.msra.mxu0 %v564
        %677 = vmatprep.subr.mxu0 %v573
        %678 = vmatpush1.msra.mxu0 %v572
        %679 = vmatprep.subr.mxu0 %v581
        %680 = vmatpush1.msra.mxu0 %v580
        %681 = vmatprep.subr.mxu0 %v647
        %682 = vmatpush1.msra.mxu0 %v644
        %683 = vmatprep.subr.mxu0 0.0
        %684 = vmatpush1.msra.mxu0 0.0
        %685 = vmatprep.subr.mxu0 0.0
        %686 = vmatpush1.msra.mxu0 0.0
        %687 = vmatprep.subr.mxu0 0.0
        %688 = vmatpush1.msra.mxu0 0.0
        %689 = vmatprep.subr.mxu0 0.0
        %690 = vmatpush1.msra.mxu0 0.0
        %691 = vmatprep.subr.mxu0 0.0
        %692 = vmatpush1.msra.mxu0 0.0
        %693 = vmatprep.subr.mxu0 0.0
        %694 = vmatpush1.msra.mxu0 0.0
        %695 = vmatprep.subr.mxu0 0.0
        %696 = vmatpush1.msra.mxu0 0.0
        %697 = vmatprep.subr.mxu0 0.0
        %698 = vmatpush1.msra.mxu0 0.0
        %699 = vmatprep.subr.mxu0 0.0
        %700 = vmatpush1.msra.mxu0 0.0
        %701 = vmatprep.subr.mxu0 0.0
        %702 = vmatpush1.msra.mxu0 0.0
        %703 = vmatprep.subr.mxu0 0.0
        %704 = vmatpush1.msra.mxu0 0.0
        %705 = vmatprep.subr.mxu0 0.0
        %706 = vmatpush1.msra.mxu0 0.0
        %707 = vmatprep.subr.mxu0 0.0
        %708 = vmatpush1.msra.mxu0 0.0
        %709 = vmatprep.subr.mxu0 0.0
        %710 = vmatpush1.msra.mxu0 0.0
        %711 = vmatprep.subr.mxu0 0.0
        %712 = vmatpush1.msra.mxu0 0.0
        %713 = vmatprep.subr.mxu0 0.0
        %714 = vmatpush1.msra.mxu0 0.0
        %715 = vmatprep.subr.mxu0 0.0
        %716 = vmatpush1.msra.mxu0 0.0
        %717 = vmatprep.subr.mxu0 0.0
        %718 = vmatpush1.msra.mxu0 0.0
        %719 = vmatprep.subr.mxu0 0.0
        %720 = vmatpush1.msra.mxu0 0.0
        %721 = vmatprep.subr.mxu0 0.0
        %722 = vmatpush1.msra.mxu0 0.0
        %723 = vmatprep.subr.mxu0 0.0
        %724 = vmatpush1.msra.mxu0 0.0
        %725 = vmatprep.subr.mxu0 0.0
        %726 = vmatpush1.msra.mxu0 0.0
        %727 = vmatprep.subr.mxu0 0.0
        %728 = vmatpush1.msra.mxu0 0.0
        %729 = vmatprep.subr.mxu0 0.0
        %730 = vmatpush1.msra.mxu0 0.0
        %731 = vmatprep.mubr.f32.mxu0 0.0
        %732 = vmatmul.mubr.f32.gmra.mrb[0].mxu0 %v640
        %v733 = vpop.f32.mrb[0].mxu0
        %v734 = vadd.f32 %v601, %v733
        %v735 = vpop.f32.mrb[0].mxu0
        %v736 = vadd.f32 %v605, %v735
        %737 = vdwg.mxu0
        %738 = vmatprep.subr.mxu0 %v535
        %739 = vmatpush1.msra.mxu0 %v534
        %740 = vmatprep.subr.mxu0 %v543
        %741 = vmatpush1.msra.mxu0 %v542
        %742 = vmatprep.subr.mxu0 %v551
        %743 = vmatpush1.msra.mxu0 %v550
        %744 = vmatprep.subr.mxu0 %v559
        %745 = vmatpush1.msra.mxu0 %v558
        %746 = vmatprep.subr.mxu0 %v567
        %747 = vmatpush1.msra.mxu0 %v566
        %748 = vmatprep.subr.mxu0 %v575
        %749 = vmatpush1.msra.mxu0 %v574
        %750 = vmatprep.subr.mxu0 %v583
        %751 = vmatpush1.msra.mxu0 %v582
        %752 = vmatprep.subr.mxu0 %v653
        %753 = vmatpush1.msra.mxu0 %v650
        %754 = vmatprep.subr.mxu0 0.0
        %755 = vmatpush1.msra.mxu0 0.0
        %756 = vmatprep.subr.mxu0 0.0
        %757 = vmatpush1.msra.mxu0 0.0
        %758 = vmatprep.subr.mxu0 0.0
        %759 = vmatpush1.msra.mxu0 0.0
        %760 = vmatprep.subr.mxu0 0.0
        %761 = vmatpush1.msra.mxu0 0.0
        %762 = vmatprep.subr.mxu0 0.0
        %763 = vmatpush1.msra.mxu0 0.0
        %764 = vmatprep.subr.mxu0 0.0
        %765 = vmatpush1.msra.mxu0 0.0
        %766 = vmatprep.subr.mxu0 0.0
        %767 = vmatpush1.msra.mxu0 0.0
        %768 = vmatprep.subr.mxu0 0.0
        %769 = vmatpush1.msra.mxu0 0.0
        %770 = vmatprep.subr.mxu0 0.0
        %771 = vmatpush1.msra.mxu0 0.0
        %772 = vmatprep.subr.mxu0 0.0
        %773 = vmatpush1.msra.mxu0 0.0
        %774 = vmatprep.subr.mxu0 0.0
        %775 = vmatpush1.msra.mxu0 0.0
        %776 = vmatprep.subr.mxu0 0.0
        %777 = vmatpush1.msra.mxu0 0.0
        %778 = vmatprep.subr.mxu0 0.0
        %779 = vmatpush1.msra.mxu0 0.0
        %780 = vmatprep.subr.mxu0 0.0
        %781 = vmatpush1.msra.mxu0 0.0
        %782 = vmatprep.subr.mxu0 0.0
        %783 = vmatpush1.msra.mxu0 0.0
        %784 = vmatprep.subr.mxu0 0.0
        %785 = vmatpush1.msra.mxu0 0.0
        %786 = vmatprep.subr.mxu0 0.0
        %787 = vmatpush1.msra.mxu0 0.0
        %788 = vmatprep.subr.mxu0 0.0
        %789 = vmatpush1.msra.mxu0 0.0
        %790 = vmatprep.subr.mxu0 0.0
        %791 = vmatpush1.msra.mxu0 0.0
        %792 = vmatprep.subr.mxu0 0.0
        %793 = vmatpush1.msra.mxu0 0.0
        %794 = vmatprep.subr.mxu0 0.0
        %795 = vmatpush1.msra.mxu0 0.0
        %796 = vmatprep.subr.mxu0 0.0
        %797 = vmatpush1.msra.mxu0 0.0
        %798 = vmatprep.subr.mxu0 0.0
        %799 = vmatpush1.msra.mxu0 0.0
        %800 = vmatprep.subr.mxu0 0.0
        %801 = vmatpush1.msra.mxu0 0.0
        %802 = vmatprep.mubr.f32.mxu0 0.0
        %803 = vmatmul.mubr.f32.gmra.mrb[0].mxu0 %v640
        %v804 = vpop.f32.mrb[0].mxu0
        %v805 = vadd.f32 %v609, %v804
        %v806 = vpop.f32.mrb[0].mxu0
        %v807 = vadd.f32 %v613, %v806
        %808 = vdwg.mxu0
        %809 = vmatprep.subr.mxu0 %v537
        %810 = vmatpush1.msra.mxu0 %v536
        %811 = vmatprep.subr.mxu0 %v545
        %812 = vmatpush1.msra.mxu0 %v544
        %813 = vmatprep.subr.mxu0 %v553
        %814 = vmatpush1.msra.mxu0 %v552
        %815 = vmatprep.subr.mxu0 %v561
        %816 = vmatpush1.msra.mxu0 %v560
        %817 = vmatprep.subr.mxu0 %v569
        %818 = vmatpush1.msra.mxu0 %v568
        %819 = vmatprep.subr.mxu0 %v577
        %820 = vmatpush1.msra.mxu0 %v576
        %821 = vmatprep.subr.mxu0 %v585
        %822 = vmatpush1.msra.mxu0 %v584
        %823 = vmatprep.subr.mxu0 %v659
        %824 = vmatpush1.msra.mxu0 %v656
        %825 = vmatprep.subr.mxu0 0.0
        %826 = vmatpush1.msra.mxu0 0.0
        %827 = vmatprep.subr.mxu0 0.0
        %828 = vmatpush1.msra.mxu0 0.0
        %829 = vmatprep.subr.mxu0 0.0
        %830 = vmatpush1.msra.mxu0 0.0
        %831 = vmatprep.subr.mxu0 0.0
        %832 = vmatpush1.msra.mxu0 0.0
        %833 = vmatprep.subr.mxu0 0.0
        %834 = vmatpush1.msra.mxu0 0.0
        %835 = vmatprep.subr.mxu0 0.0
        %836 = vmatpush1.msra.mxu0 0.0
        %837 = vmatprep.subr.mxu0 0.0
        %838 = vmatpush1.msra.mxu0 0.0
        %839 = vmatprep.subr.mxu0 0.0
        %840 = vmatpush1.msra.mxu0 0.0
        %841 = vmatprep.subr.mxu0 0.0
        %842 = vmatpush1.msra.mxu0 0.0
        %843 = vmatprep.subr.mxu0 0.0
        %844 = vmatpush1.msra.mxu0 0.0
        %845 = vmatprep.subr.mxu0 0.0
        %846 = vmatpush1.msra.mxu0 0.0
        %847 = vmatprep.subr.mxu0 0.0
        %848 = vmatpush1.msra.mxu0 0.0
        %849 = vmatprep.subr.mxu0 0.0
        %850 = vmatpush1.msra.mxu0 0.0
        %851 = vmatprep.subr.mxu0 0.0
        %852 = vmatpush1.msra.mxu0 0.0
        %853 = vmatprep.subr.mxu0 0.0
        %854 = vmatpush1.msra.mxu0 0.0
        %855 = vmatprep.subr.mxu0 0.0
        %856 = vmatpush1.msra.mxu0 0.0
        %857 = vmatprep.subr.mxu0 0.0
        %858 = vmatpush1.msra.mxu0 0.0
        %859 = vmatprep.subr.mxu0 0.0
        %860 = vmatpush1.msra.mxu0 0.0
        %861 = vmatprep.subr.mxu0 0.0
        %862 = vmatpush1.msra.mxu0 0.0
        %863 = vmatprep.subr.mxu0 0.0
        %864 = vmatpush1.msra.mxu0 0.0
        %865 = vmatprep.subr.mxu0 0.0
        %866 = vmatpush1.msra.mxu0 0.0
        %867 = vmatprep.subr.mxu0 0.0
        %868 = vmatpush1.msra.mxu0 0.0
        %869 = vmatprep.subr.mxu0 0.0
        %870 = vmatpush1.msra.mxu0 0.0
        %871 = vmatprep.subr.mxu0 0.0
        %872 = vmatpush1.msra.mxu0 0.0
        %873 = vmatprep.mubr.f32.mxu0 0.0
        %874 = vmatmul.mubr.f32.gmra.mrb[0].mxu0 %v640
        %v875 = vpop.f32.mrb[0].mxu0
        %v876 = vadd.f32 %v617, %v875
        %v877 = vpop.f32.mrb[0].mxu0
        %v878 = vadd.f32 %v621, %v877
        %879 = vdwg.mxu0
        %880 = vmatprep.subr.mxu0 %v539
        %881 = vmatpush1.msra.mxu0 %v538
        %882 = vmatprep.subr.mxu0 %v547
        %883 = vmatpush1.msra.mxu0 %v546
        %884 = vmatprep.subr.mxu0 %v555
        %885 = vmatpush1.msra.mxu0 %v554
        %886 = vmatprep.subr.mxu0 %v563
        %887 = vmatpush1.msra.mxu0 %v562
        %888 = vmatprep.subr.mxu0 %v571
        %889 = vmatpush1.msra.mxu0 %v570
        %890 = vmatprep.subr.mxu0 %v579
        %891 = vmatpush1.msra.mxu0 %v578
        %892 = vmatprep.subr.mxu0 %v587
        %893 = vmatpush1.msra.mxu0 %v586
        %894 = vmatprep.subr.mxu0 %v665
        %895 = vmatpush1.msra.mxu0 %v662
        %896 = vmatprep.subr.mxu0 0.0
        %897 = vmatpush1.msra.mxu0 0.0
        %898 = vmatprep.subr.mxu0 0.0
        %899 = vmatpush1.msra.mxu0 0.0
        %900 = vmatprep.subr.mxu0 0.0
        %901 = vmatpush1.msra.mxu0 0.0
        %902 = vmatprep.subr.mxu0 0.0
        %903 = vmatpush1.msra.mxu0 0.0
        %904 = vmatprep.subr.mxu0 0.0
        %905 = vmatpush1.msra.mxu0 0.0
        %906 = vmatprep.subr.mxu0 0.0
        %907 = vmatpush1.msra.mxu0 0.0
        %908 = vmatprep.subr.mxu0 0.0
        %909 = vmatpush1.msra.mxu0 0.0
        %910 = vmatprep.subr.mxu0 0.0
        %911 = vmatpush1.msra.mxu0 0.0
        %912 = vmatprep.subr.mxu0 0.0
        %913 = vmatpush1.msra.mxu0 0.0
        %914 = vmatprep.subr.mxu0 0.0
        %915 = vmatpush1.msra.mxu0 0.0
        %916 = vmatprep.subr.mxu0 0.0
        %917 = vmatpush1.msra.mxu0 0.0
        %918 = vmatprep.subr.mxu0 0.0
        %919 = vmatpush1.msra.mxu0 0.0
        %920 = vmatprep.subr.mxu0 0.0
        %921 = vmatpush1.msra.mxu0 0.0
        %922 = vmatprep.subr.mxu0 0.0
        %923 = vmatpush1.msra.mxu0 0.0
        %924 = vmatprep.subr.mxu0 0.0
        %925 = vmatpush1.msra.mxu0 0.0
        %926 = vmatprep.subr.mxu0 0.0
        %927 = vmatpush1.msra.mxu0 0.0
        %928 = vmatprep.subr.mxu0 0.0
        %929 = vmatpush1.msra.mxu0 0.0
        %930 = vmatprep.subr.mxu0 0.0
        %931 = vmatpush1.msra.mxu0 0.0
        %932 = vmatprep.subr.mxu0 0.0
        %933 = vmatpush1.msra.mxu0 0.0
        %934 = vmatprep.subr.mxu0 0.0
        %935 = vmatpush1.msra.mxu0 0.0
        %936 = vmatprep.subr.mxu0 0.0
        %937 = vmatpush1.msra.mxu0 0.0
        %938 = vmatprep.subr.mxu0 0.0
        %939 = vmatpush1.msra.mxu0 0.0
        %940 = vmatprep.subr.mxu0 0.0
        %941 = vmatpush1.msra.mxu0 0.0
        %942 = vmatprep.subr.mxu0 0.0
        %943 = vmatpush1.msra.mxu0 0.0
        %944 = vmatprep.mubr.f32.mxu0 0.0
        %945 = vmatmul.mubr.f32.gmra.mrb[0].mxu0 %v640
        %v946 = vpop.f32.mrb[0].mxu0
        %v947 = vadd.f32 %v625, %v946
        %v948 = vpop.f32.mrb[0].mxu0
        %v949 = vadd.f32 %v629, %v948
        %950 = vdwg.mxu0
        %v951 = vld [vmem:[#allocation7] sm:$0xff]
        %v952 = vld [vmem:[#allocation9] sm:$0xff]
        %vm953 = vcmask 1041408
        %v954 = vsel %vm953, %v734, 0.0
        %v955 = vrot.slane %v954, 4
        %v956 = vadd.f32 %v954, %v955
        %v957 = vrot.slane %v956, 2
        %v958 = vadd.f32 %v956, %v957
        %v959 = vrot.slane %v958, 1
        %v960 = vadd.f32 %v958, %v959
        %v961 = vsel %vm953, %v736, 0.0
        %v962 = vrot.slane %v961, 4
        %v963 = vadd.f32 %v961, %v962
        %v964 = vrot.slane %v963, 2
        %v965 = vadd.f32 %v963, %v964
        %v966 = vrot.slane %v965, 1
        %v967 = vadd.f32 %v965, %v966
        %v968 = vsel %vm953, %v805, 0.0
        %v969 = vrot.slane %v968, 4
        %v970 = vadd.f32 %v968, %v969
        %v971 = vrot.slane %v970, 2
        %v972 = vadd.f32 %v970, %v971
        %v973 = vrot.slane %v972, 1
        %v974 = vadd.f32 %v972, %v973
        %v975 = vsel %vm953, %v807, 0.0
        %v976 = vrot.slane %v975, 4
        %v977 = vadd.f32 %v975, %v976
        %v978 = vrot.slane %v977, 2
        %v979 = vadd.f32 %v977, %v978
        %v980 = vrot.slane %v979, 1
        %v981 = vadd.f32 %v979, %v980
        %v982 = vsel %vm953, %v876, 0.0
        %v983 = vrot.slane %v982, 4
        %v984 = vadd.f32 %v982, %v983
        %v985 = vrot.slane %v984, 2
        %v986 = vadd.f32 %v984, %v985
        %v987 = vrot.slane %v986, 1
        %v988 = vadd.f32 %v986, %v987
        %v989 = vsel %vm953, %v878, 0.0
        %v990 = vrot.slane %v989, 4
        %v991 = vadd.f32 %v989, %v990
        %v992 = vrot.slane %v991, 2
        %v993 = vadd.f32 %v991, %v992
        %v994 = vrot.slane %v993, 1
        %v995 = vadd.f32 %v993, %v994
        %v996 = vsel %vm953, %v947, 0.0
        %v997 = vrot.slane %v996, 4
        %v998 = vadd.f32 %v996, %v997
        %v999 = vrot.slane %v998, 2
        %v1000 = vadd.f32 %v998, %v999
        %v1001 = vrot.slane %v1000, 1
        %v1002 = vadd.f32 %v1000, %v1001
        %v1003 = vsel %vm953, %v949, 0.0
        %v1004 = vrot.slane %v1003, 4
        %v1005 = vadd.f32 %v1003, %v1004
        %v1006 = vrot.slane %v1005, 2
        %v1007 = vadd.f32 %v1005, %v1006
        %v1008 = vrot.slane %v1007, 1
        %v1009 = vadd.f32 %v1007, %v1008
        %v1010 = vrcp.pop 2.0
        %v1011 = vmul.f32 %v960, %v1010
        %v1012 = vmul.f32 %v967, %v1010
        %v1013 = vmul.f32 %v974, %v1010
        %v1014 = vmul.f32 %v981, %v1010
        %v1015 = vmul.f32 %v988, %v1010
        %v1016 = vmul.f32 %v995, %v1010
        %v1017 = vmul.f32 %v1002, %v1010
        %v1018 = vmul.f32 %v1009, %v1010
        %v1019 = vmul.f32 %v734, %v734
        %v1020 = vmul.f32 %v736, %v736
        %v1021 = vmul.f32 %v805, %v805
        %v1022 = vmul.f32 %v807, %v807
        %v1023 = vmul.f32 %v876, %v876
        %v1024 = vmul.f32 %v878, %v878
        %v1025 = vmul.f32 %v947, %v947
        %v1026 = vmul.f32 %v949, %v949
        %v1027 = vsel %vm953, %v1019, 0.0
        %v1028 = vrot.slane %v1027, 4
        %v1029 = vadd.f32 %v1027, %v1028
        %v1030 = vrot.slane %v1029, 2
        %v1031 = vadd.f32 %v1029, %v1030
        %v1032 = vrot.slane %v1031, 1
        %v1033 = vadd.f32 %v1031, %v1032
        %v1034 = vsel %vm953, %v1020, 0.0
        %v1035 = vrot.slane %v1034, 4
        %v1036 = vadd.f32 %v1034, %v1035
        %v1037 = vrot.slane %v1036, 2
        %v1038 = vadd.f32 %v1036, %v1037
        %v1039 = vrot.slane %v1038, 1
        %v1040 = vadd.f32 %v1038, %v1039
        %v1041 = vsel %vm953, %v1021, 0.0
        %v1042 = vrot.slane %v1041, 4
        %v1043 = vadd.f32 %v1041, %v1042
        %v1044 = vrot.slane %v1043, 2
        %v1045 = vadd.f32 %v1043, %v1044
        %v1046 = vrot.slane %v1045, 1
        %v1047 = vadd.f32 %v1045, %v1046
        %v1048 = vsel %vm953, %v1022, 0.0
        %v1049 = vrot.slane %v1048, 4
        %v1050 = vadd.f32 %v1048, %v1049
        %v1051 = vrot.slane %v1050, 2
        %v1052 = vadd.f32 %v1050, %v1051
        %v1053 = vrot.slane %v1052, 1
        %v1054 = vadd.f32 %v1052, %v1053
        %v1055 = vsel %vm953, %v1023, 0.0
        %v1056 = vrot.slane %v1055, 4
        %v1057 = vadd.f32 %v1055, %v1056
        %v1058 = vrot.slane %v1057, 2
        %v1059 = vadd.f32 %v1057, %v1058
        %v1060 = vrot.slane %v1059, 1
        %v1061 = vadd.f32 %v1059, %v1060
        %v1062 = vsel %vm953, %v1024, 0.0
        %v1063 = vrot.slane %v1062, 4
        %v1064 = vadd.f32 %v1062, %v1063
        %v1065 = vrot.slane %v1064, 2
        %v1066 = vadd.f32 %v1064, %v1065
        %v1067 = vrot.slane %v1066, 1
        %v1068 = vadd.f32 %v1066, %v1067
        %v1069 = vsel %vm953, %v1025, 0.0
        %v1070 = vrot.slane %v1069, 4
        %v1071 = vadd.f32 %v1069, %v1070
        %v1072 = vrot.slane %v1071, 2
        %v1073 = vadd.f32 %v1071, %v1072
        %v1074 = vrot.slane %v1073, 1
        %v1075 = vadd.f32 %v1073, %v1074
        %v1076 = vsel %vm953, %v1026, 0.0
        %v1077 = vrot.slane %v1076, 4
        %v1078 = vadd.f32 %v1076, %v1077
        %v1079 = vrot.slane %v1078, 2
        %v1080 = vadd.f32 %v1078, %v1079
        %v1081 = vrot.slane %v1080, 1
        %v1082 = vadd.f32 %v1080, %v1081
        %v1083 = vmul.f32 %v1033, %v1010
        %v1084 = vmul.f32 %v1040, %v1010
        %v1085 = vmul.f32 %v1047, %v1010
        %v1086 = vmul.f32 %v1054, %v1010
        %v1087 = vmul.f32 %v1061, %v1010
        %v1088 = vmul.f32 %v1068, %v1010
        %v1089 = vmul.f32 %v1075, %v1010
        %v1090 = vmul.f32 %v1082, %v1010
        %v1091 = vmul.f32 %v1011, %v1011
        %v1092 = vmul.f32 %v1012, %v1012
        %v1093 = vmul.f32 %v1013, %v1013
        %v1094 = vmul.f32 %v1014, %v1014
        %v1095 = vmul.f32 %v1015, %v1015
        %v1096 = vmul.f32 %v1016, %v1016
        %v1097 = vmul.f32 %v1017, %v1017
        %v1098 = vmul.f32 %v1018, %v1018
        %v1099 = vsub.f32 %v1083, %v1091
        %v1100 = vsub.f32 %v1084, %v1092
        %v1101 = vsub.f32 %v1085, %v1093
        %v1102 = vsub.f32 %v1086, %v1094
        %v1103 = vsub.f32 %v1087, %v1095
        %v1104 = vsub.f32 %v1088, %v1096
        %v1105 = vsub.f32 %v1089, %v1097
        %v1106 = vsub.f32 %v1090, %v1098
        %v1107 = vmax.f32 %v1099, 0.0
        %v1108 = vmax.f32 %v1100, 0.0
        %v1109 = vmax.f32 %v1101, 0.0
        %v1110 = vmax.f32 %v1102, 0.0
        %v1111 = vmax.f32 %v1103, 0.0
        %v1112 = vmax.f32 %v1104, 0.0
        %v1113 = vmax.f32 %v1105, 0.0
        %v1114 = vmax.f32 %v1106, 0.0
        %v1115 = vsub.f32 %v734, %v1011
        %v1116 = vsub.f32 %v736, %v1012
        %v1117 = vsub.f32 %v805, %v1013
        %v1118 = vsub.f32 %v807, %v1014
        %v1119 = vsub.f32 %v876, %v1015
        %v1120 = vsub.f32 %v878, %v1016
        %v1121 = vsub.f32 %v947, %v1017
        %v1122 = vsub.f32 %v949, %v1018
        %v1123 = vadd.f32 %v1107, 1e-05
        %v1124 = vadd.f32 %v1108, 1e-05
        %v1125 = vadd.f32 %v1109, 1e-05
        %v1126 = vadd.f32 %v1110, 1e-05
        %v1127 = vadd.f32 %v1111, 1e-05
        %v1128 = vadd.f32 %v1112, 1e-05
        %v1129 = vadd.f32 %v1113, 1e-05
        %v1130 = vadd.f32 %v1114, 1e-05
        %v1131 = vrsqrt.pop %v1123
        %v1132 = vrsqrt.pop %v1124
        %v1133 = vrsqrt.pop %v1125
        %v1134 = vrsqrt.pop %v1126
        %v1135 = vrsqrt.pop %v1127
        %v1136 = vrsqrt.pop %v1128
        %v1137 = vrsqrt.pop %v1129
        %v1138 = vrsqrt.pop %v1130
        %v1139 = vmul.f32 %v1115, %v1131
        %v1140 = vmul.f32 %v1116, %v1132
        %v1141 = vmul.f32 %v1117, %v1133
        %v1142 = vmul.f32 %v1118, %v1134
        %v1143 = vmul.f32 %v1119, %v1135
        %v1144 = vmul.f32 %v1120, %v1136
        %v1145 = vmul.f32 %v1121, %v1137
        %v1146 = vmul.f32 %v1122, %v1138
        %v1148 = vlaneseq
        %v1149 = vshrl.u32 %v1148, 7
        %v1150 = vsub.s32 0, %v1149
        %v1151 = vrot.slane %v951, %v1150
        %v1152 = vlaneseq
        %v1153 = vshrl.u32 %v1152, 7
        %v1154 = vsub.s32 1, %v1153
        %v1155 = vrot.slane %v951, %v1154
        %v1156 = vlaneseq
        %v1157 = vshrl.u32 %v1156, 7
        %v1158 = vsub.s32 2, %v1157
        %v1159 = vrot.slane %v951, %v1158
        %v1160 = vlaneseq
        %v1161 = vshrl.u32 %v1160, 7
        %v1162 = vsub.s32 3, %v1161
        %v1163 = vrot.slane %v951, %v1162
        %v1164 = vlaneseq
        %v1165 = vshrl.u32 %v1164, 7
        %v1166 = vsub.s32 4, %v1165
        %v1167 = vrot.slane %v951, %v1166
        %v1168 = vlaneseq
        %v1169 = vshrl.u32 %v1168, 7
        %v1170 = vsub.s32 5, %v1169
        %v1171 = vrot.slane %v951, %v1170
        %v1172 = vlaneseq
        %v1173 = vshrl.u32 %v1172, 7
        %v1174 = vsub.s32 6, %v1173
        %v1175 = vrot.slane %v951, %v1174
        %v1176 = vlaneseq
        %v1177 = vshrl.u32 %v1176, 7
        %v1178 = vsub.s32 7, %v1177
        %v1179 = vrot.slane %v951, %v1178
        %v1188 = vmul.f32 %v1139, %v1151
        %v1189 = vmul.f32 %v1140, %v1155
        %v1190 = vmul.f32 %v1141, %v1159
        %v1191 = vmul.f32 %v1142, %v1163
        %v1192 = vmul.f32 %v1143, %v1167
        %v1193 = vmul.f32 %v1144, %v1171
        %v1194 = vmul.f32 %v1145, %v1175
        %v1195 = vmul.f32 %v1146, %v1179
        %v1197 = vlaneseq
        %v1198 = vshrl.u32 %v1197, 7
        %v1199 = vsub.s32 0, %v1198
        %v1200 = vrot.slane %v952, %v1199
        %v1201 = vlaneseq
        %v1202 = vshrl.u32 %v1201, 7
        %v1203 = vsub.s32 1, %v1202
        %v1204 = vrot.slane %v952, %v1203
        %v1205 = vlaneseq
        %v1206 = vshrl.u32 %v1205, 7
        %v1207 = vsub.s32 2, %v1206
        %v1208 = vrot.slane %v952, %v1207
        %v1209 = vlaneseq
        %v1210 = vshrl.u32 %v1209, 7
        %v1211 = vsub.s32 3, %v1210
        %v1212 = vrot.slane %v952, %v1211
        %v1213 = vlaneseq
        %v1214 = vshrl.u32 %v1213, 7
        %v1215 = vsub.s32 4, %v1214
        %v1216 = vrot.slane %v952, %v1215
        %v1217 = vlaneseq
        %v1218 = vshrl.u32 %v1217, 7
        %v1219 = vsub.s32 5, %v1218
        %v1220 = vrot.slane %v952, %v1219
        %v1221 = vlaneseq
        %v1222 = vshrl.u32 %v1221, 7
        %v1223 = vsub.s32 6, %v1222
        %v1224 = vrot.slane %v952, %v1223
        %v1225 = vlaneseq
        %v1226 = vshrl.u32 %v1225, 7
        %v1227 = vsub.s32 7, %v1226
        %v1228 = vrot.slane %v952, %v1227
        %v1237 = vadd.f32 %v1188, %v1200
        %v1238 = vadd.f32 %v1189, %v1204
        %v1239 = vadd.f32 %v1190, %v1208
        %v1240 = vadd.f32 %v1191, %v1212
        %v1241 = vadd.f32 %v1192, %v1216
        %v1242 = vadd.f32 %v1193, %v1220
        %v1243 = vadd.f32 %v1194, %v1224
        %v1244 = vadd.f32 %v1195, %v1228
        %v1245 = vmax.f32 %v1237, 0.0
        %v1246 = vmax.f32 %v1238, 0.0
        %v1247 = vmax.f32 %v1239, 0.0
        %v1248 = vmax.f32 %v1240, 0.0
        %v1249 = vmax.f32 %v1241, 0.0
        %v1250 = vmax.f32 %v1242, 0.0
        %v1251 = vmax.f32 %v1243, 0.0
        %v1252 = vmax.f32 %v1244, 0.0
        %v1253 = vld [vmem:[%s444] sm:$0xff]
        %v1254 = vld [vmem:[%s444 + $0x8] sm:$0xff]
        %v1255 = vld [vmem:[%s444 + $0x10] sm:$0xff]
        %v1256 = vld [vmem:[%s444 + $0x18] sm:$0xf]
        %v1257 = vld [vmem:[%s444 + $0x1c] sm:$0xff]
        %v1258 = vld [vmem:[%s444 + $0x24] sm:$0xff]
        %v1259 = vld [vmem:[%s444 + $0x2c] sm:$0xff]
        %v1260 = vld [vmem:[%s444 + $0x34] sm:$0xf]
        %v1261 = vld [vmem:[%s444 + $0x38] sm:$0xff]
        %v1262 = vld [vmem:[%s444 + $0x40] sm:$0xff]
        %v1263 = vld [vmem:[%s444 + $0x48] sm:$0xff]
        %v1264 = vld [vmem:[%s444 + $0x50] sm:$0xf]
        %v1265 = vld [vmem:[%s444 + $0x54] sm:$0xff]
        %v1266 = vld [vmem:[%s444 + $0x5c] sm:$0xff]
        %v1267 = vld [vmem:[%s444 + $0x64] sm:$0xff]
        %v1268 = vld [vmem:[%s444 + $0x6c] sm:$0xf]
        %v1269 = vld [vmem:[%s444 + $0x70] sm:$0xff]
        %v1270 = vld [vmem:[%s444 + $0x78] sm:$0xff]
        %v1271 = vld [vmem:[%s444 + $0x80] sm:$0xff]
        %v1272 = vld [vmem:[%s444 + $0x88] sm:$0xf]
        %v1273 = vld [vmem:[%s444 + $0x8c] sm:$0xff]
        %v1274 = vld [vmem:[%s444 + $0x94] sm:$0xff]
        %v1275 = vld [vmem:[%s444 + $0x9c] sm:$0xff]
        %v1276 = vld [vmem:[%s444 + $0xa4] sm:$0xf]
        %v1277 = vld [vmem:[%s444 + $0xa8] sm:$0xff]
        %v1278 = vld [vmem:[%s444 + $0xb0] sm:$0xff]
        %v1279 = vld [vmem:[%s444 + $0xb8] sm:$0xff]
        %v1280 = vld [vmem:[%s444 + $0xc0] sm:$0xf]
        %v1281 = vld [vmem:[%s444 + $0xc4] sm:$0xff]
        %v1282 = vld [vmem:[%s444 + $0xcc] sm:$0xff]
        %v1283 = vld [vmem:[%s444 + $0xd4] sm:$0xff]
        %v1284 = vld [vmem:[%s444 + $0xdc] sm:$0xf]
        %v1285 = vld [vmem:[%s444 + $0xe0] sm:$0xff]
        %v1286 = vld [vmem:[%s444 + $0xe8] sm:$0xff]
        %v1287 = vld [vmem:[%s444 + $0xf0] sm:$0xff]
        %v1288 = vld [vmem:[%s444 + $0xf8] sm:$0xf]
        %v1289 = vld [vmem:[%s444 + $0xfc] sm:$0xff]
        %v1290 = vld [vmem:[%s444 + $0x104] sm:$0xff]
        %v1291 = vld [vmem:[%s444 + $0x10c] sm:$0xff]
        %v1292 = vld [vmem:[%s444 + $0x114] sm:$0xf]
        %v1293 = vld [vmem:[%s444 + $0x118] sm:$0xff]
        %v1294 = vld [vmem:[%s444 + $0x120] sm:$0xff]
        %v1295 = vld [vmem:[%s444 + $0x128] sm:$0xff]
        %v1296 = vld [vmem:[%s444 + $0x130] sm:$0xf]
        %v1297 = vld [vmem:[%s444 + $0x134] sm:$0xff]
        %v1298 = vld [vmem:[%s444 + $0x13c] sm:$0xff]
        %v1299 = vld [vmem:[%s444 + $0x144] sm:$0xff]
        %v1300 = vld [vmem:[%s444 + $0x14c] sm:$0xf]
        %v1301 = vld [vmem:[%s444 + $0x150] sm:$0xff]
        %v1302 = vld [vmem:[%s444 + $0x158] sm:$0xff]
        %v1303 = vld [vmem:[%s444 + $0x160] sm:$0xff]
        %v1304 = vld [vmem:[%s444 + $0x168] sm:$0xf]
        %v1305 = vld [vmem:[%s444 + $0x16c] sm:$0xff]
        %v1306 = vld [vmem:[%s444 + $0x174] sm:$0xff]
        %v1307 = vld [vmem:[%s444 + $0x17c] sm:$0xff]
        %v1308 = vld [vmem:[%s444 + $0x184] sm:$0xf]
        %v1309 = vld [vmem:[%s444 + $0x188] sm:$0xff]
        %v1310 = vld [vmem:[%s444 + $0x190] sm:$0xff]
        %v1311 = vld [vmem:[%s444 + $0x198] sm:$0xff]
        %v1312 = vld [vmem:[%s444 + $0x1a0] sm:$0xf]
        %v1313 = vld [vmem:[%s444 + $0x1a4] sm:$0xff]
        %v1314 = vld [vmem:[%s444 + $0x1ac] sm:$0xff]
        %v1315 = vld [vmem:[%s444 + $0x1b4] sm:$0xff]
        %v1316 = vld [vmem:[%s444 + $0x1bc] sm:$0xf]
        %v1317 = vld [vmem:[%s444 + $0x1c0] sm:$0xff]
        %v1318 = vld [vmem:[%s444 + $0x1c8] sm:$0xff]
        %v1319 = vld [vmem:[%s444 + $0x1d0] sm:$0xff]
        %v1320 = vld [vmem:[%s444 + $0x1d8] sm:$0xf]
        %v1321 = vld [vmem:[%s444 + $0x1dc] sm:$0xff]
        %v1322 = vld [vmem:[%s444 + $0x1e4] sm:$0xff]
        %v1323 = vld [vmem:[%s444 + $0x1ec] sm:$0xff]
        %v1324 = vld [vmem:[%s444 + $0x1f4] sm:$0xf]
        %v1325 = vld [vmem:[%s444 + $0x1f8] sm:$0xff]
        %v1326 = vld [vmem:[%s444 + $0x200] sm:$0xff]
        %v1327 = vld [vmem:[%s444 + $0x208] sm:$0xff]
        %v1328 = vld [vmem:[%s444 + $0x210] sm:$0xf]
        %v1329 = vld [vmem:[%s444 + $0x214] sm:$0xff]
        %v1330 = vld [vmem:[%s444 + $0x21c] sm:$0xff]
        %v1331 = vld [vmem:[%s444 + $0x224] sm:$0xff]
        %v1332 = vld [vmem:[%s444 + $0x22c] sm:$0xf]
        %v1333 = vld [vmem:[%s444 + $0x230] sm:$0xff]
        %v1334 = vld [vmem:[%s444 + $0x238] sm:$0xff]
        %v1335 = vld [vmem:[%s444 + $0x240] sm:$0xff]
        %v1336 = vld [vmem:[%s444 + $0x248] sm:$0xf]
        %v1337 = vld [vmem:[%s444 + $0x24c] sm:$0xff]
        %v1338 = vld [vmem:[%s444 + $0x254] sm:$0xff]
        %v1339 = vld [vmem:[%s444 + $0x25c] sm:$0xff]
        %v1340 = vld [vmem:[%s444 + $0x264] sm:$0xf]
        %v1341 = vld [vmem:[%s444 + $0x268] sm:$0xff]
        %v1342 = vld [vmem:[%s444 + $0x270] sm:$0xff]
        %v1343 = vld [vmem:[%s444 + $0x278] sm:$0xff]
        %v1344 = vld [vmem:[%s444 + $0x280] sm:$0xf]
        %v1345 = vld [vmem:[%s444 + $0x284] sm:$0xff]
        %v1346 = vld [vmem:[%s444 + $0x28c] sm:$0xff]
        %v1347 = vld [vmem:[%s444 + $0x294] sm:$0xff]
        %v1348 = vld [vmem:[%s444 + $0x29c] sm:$0xf]
        %v1349 = vld [vmem:[%s444 + $0x2a0] sm:$0xff]
        %v1350 = vld [vmem:[%s444 + $0x2a8] sm:$0xff]
        %v1351 = vld [vmem:[%s444 + $0x2b0] sm:$0xff]
        %v1352 = vld [vmem:[%s444 + $0x2b8] sm:$0xf]
        %v1353 = vld [vmem:[%s444 + $0x2bc] sm:$0xff]
        %v1354 = vld [vmem:[%s444 + $0x2c4] sm:$0xff]
        %v1355 = vld [vmem:[%s444 + $0x2cc] sm:$0xff]
        %v1356 = vld [vmem:[%s444 + $0x2d4] sm:$0xf]
        %v1357 = vld [vmem:[%s444 + $0x2d8] sm:$0xff]
        %v1358 = vld [vmem:[%s444 + $0x2e0] sm:$0xff]
        %v1359 = vld [vmem:[%s444 + $0x2e8] sm:$0xff]
        %v1360 = vld [vmem:[%s444 + $0x2f0] sm:$0xf]
        %v1361 = vld [vmem:[%s444 + $0x2f4] sm:$0xff]
        %v1362 = vld [vmem:[%s444 + $0x2fc] sm:$0xff]
        %v1363 = vld [vmem:[%s444 + $0x304] sm:$0xff]
        %v1364 = vld [vmem:[%s444 + $0x30c] sm:$0xf]
        %v1365 = vld [vmem:[%s444 + $0x310] sm:$0xff]
        %v1366 = vld [vmem:[%s444 + $0x318] sm:$0xff]
        %v1367 = vld [vmem:[%s444 + $0x320] sm:$0xff]
        %v1368 = vld [vmem:[%s444 + $0x328] sm:$0xf]
        %v1369 = vld [vmem:[%s444 + $0x32c] sm:$0xff]
        %v1370 = vld [vmem:[%s444 + $0x334] sm:$0xff]
        %v1371 = vld [vmem:[%s444 + $0x33c] sm:$0xff]
        %v1372 = vld [vmem:[%s444 + $0x344] sm:$0xf]
        %v1373 = vld [vmem:[%s444 + $0x348] sm:$0xff]
        %v1374 = vld [vmem:[%s444 + $0x350] sm:$0xff]
        %v1375 = vld [vmem:[%s444 + $0x358] sm:$0xff]
        %v1376 = vld [vmem:[%s444 + $0x360] sm:$0xf]
        %v1377 = vld [vmem:[%s444 + $0x364] sm:$0xff]
        %v1378 = vld [vmem:[%s444 + $0x36c] sm:$0xff]
        %v1379 = vld [vmem:[%s444 + $0x374] sm:$0xff]
        %v1380 = vld [vmem:[%s444 + $0x37c] sm:$0xf]
        %v1381 = vld [vmem:[%s444 + $0x380] sm:$0xff]
        %v1382 = vld [vmem:[%s444 + $0x388] sm:$0xff]
        %v1383 = vld [vmem:[%s444 + $0x390] sm:$0xff]
        %v1384 = vld [vmem:[%s444 + $0x398] sm:$0xf]
        %v1385 = vld [vmem:[%s444 + $0x39c] sm:$0xff]
        %v1386 = vld [vmem:[%s444 + $0x3a4] sm:$0xff]
        %v1387 = vld [vmem:[%s444 + $0x3ac] sm:$0xff]
        %v1388 = vld [vmem:[%s444 + $0x3b4] sm:$0xf]
        %v1389 = vld [vmem:[%s444 + $0x3b8] sm:$0xff]
        %v1390 = vld [vmem:[%s444 + $0x3c0] sm:$0xff]
        %v1391 = vld [vmem:[%s444 + $0x3c8] sm:$0xff]
        %v1392 = vld [vmem:[%s444 + $0x3d0] sm:$0xf]
        %v1393 = vld [vmem:[%s444 + $0x3d4] sm:$0xff]
        %v1394 = vld [vmem:[%s444 + $0x3dc] sm:$0xff]
        %v1395 = vld [vmem:[%s444 + $0x3e4] sm:$0xff]
        %v1396 = vld [vmem:[%s444 + $0x3ec] sm:$0xf]
        %v1397 = vld [vmem:[%s444 + $0x3f0] sm:$0xff]
        %v1398 = vld [vmem:[%s444 + $0x3f8] sm:$0xff]
        %v1399 = vld [vmem:[%s444 + $0x400] sm:$0xff]
        %v1400 = vld [vmem:[%s444 + $0x408] sm:$0xf]
        %v1401 = vld [vmem:[%s444 + $0x40c] sm:$0xff]
        %v1402 = vld [vmem:[%s444 + $0x414] sm:$0xff]
        %v1403 = vld [vmem:[%s444 + $0x41c] sm:$0xff]
        %v1404 = vld [vmem:[%s444 + $0x424] sm:$0xf]
        %v1405 = vld [vmem:[%s444 + $0x428] sm:$0xff]
        %v1406 = vld [vmem:[%s444 + $0x430] sm:$0xff]
        %v1407 = vld [vmem:[%s444 + $0x438] sm:$0xff]
        %v1408 = vld [vmem:[%s444 + $0x440] sm:$0xf]
        %v1409 = vld [vmem:[%s444 + $0x444] sm:$0xff]
        %v1410 = vld [vmem:[%s444 + $0x44c] sm:$0xff]
        %v1411 = vld [vmem:[%s444 + $0x454] sm:$0xff]
        %v1412 = vld [vmem:[%s444 + $0x45c] sm:$0xf]
        %v1413 = vld [vmem:[%s444 + $0x460] sm:$0xff]
        %v1414 = vld [vmem:[%s444 + $0x468] sm:$0xff]
        %v1415 = vld [vmem:[%s444 + $0x470] sm:$0xff]
        %v1416 = vld [vmem:[%s444 + $0x478] sm:$0xf]
        %v1417 = vld [vmem:[%s444 + $0x47c] sm:$0xff]
        %v1418 = vld [vmem:[%s444 + $0x484] sm:$0xff]
        %v1419 = vld [vmem:[%s444 + $0x48c] sm:$0xff]
        %v1420 = vld [vmem:[%s444 + $0x494] sm:$0xf]
        %v1421 = vld [vmem:[%s444 + $0x498] sm:$0xff]
        %v1422 = vld [vmem:[%s444 + $0x4a0] sm:$0xff]
        %v1423 = vld [vmem:[%s444 + $0x4a8] sm:$0xff]
        %v1424 = vld [vmem:[%s444 + $0x4b0] sm:$0xf]
        %v1425 = vld [vmem:[%s444 + $0x4b4] sm:$0xff]
        %v1426 = vld [vmem:[%s444 + $0x4bc] sm:$0xff]
        %v1427 = vld [vmem:[%s444 + $0x4c4] sm:$0xff]
        %v1428 = vld [vmem:[%s444 + $0x4cc] sm:$0xf]
        %v1429 = vld [vmem:[%s444 + $0x4d0] sm:$0xff]
        %v1430 = vld [vmem:[%s444 + $0x4d8] sm:$0xff]
        %v1431 = vld [vmem:[%s444 + $0x4e0] sm:$0xff]
        %v1432 = vld [vmem:[%s444 + $0x4e8] sm:$0xf]
        %v1433 = vld [vmem:[%s444 + $0x4ec] sm:$0xff]
        %v1434 = vld [vmem:[%s444 + $0x4f4] sm:$0xff]
        %v1435 = vld [vmem:[%s444 + $0x4fc] sm:$0xff]
        %v1436 = vld [vmem:[%s444 + $0x504] sm:$0xf]
        %v1437 = vld [vmem:[%s444 + $0x508] sm:$0xff]
        %v1438 = vld [vmem:[%s444 + $0x510] sm:$0xff]
        %v1439 = vld [vmem:[%s444 + $0x518] sm:$0xff]
        %v1440 = vld [vmem:[%s444 + $0x520] sm:$0xf]
        %v1441 = vld [vmem:[%s444 + $0x524] sm:$0xff]
        %v1442 = vld [vmem:[%s444 + $0x52c] sm:$0xff]
        %v1443 = vld [vmem:[%s444 + $0x534] sm:$0xff]
        %v1444 = vld [vmem:[%s444 + $0x53c] sm:$0xf]
        %v1445 = vld [vmem:[%s444 + $0x540] sm:$0xff]
        %v1446 = vld [vmem:[%s444 + $0x548] sm:$0xff]
        %v1447 = vld [vmem:[%s444 + $0x550] sm:$0xff]
        %v1448 = vld [vmem:[%s444 + $0x558] sm:$0xf]
        %v1449 = vld [vmem:[%s444 + $0x55c] sm:$0xff]
        %v1450 = vld [vmem:[%s444 + $0x564] sm:$0xff]
        %v1451 = vld [vmem:[%s444 + $0x56c] sm:$0xff]
        %v1452 = vld [vmem:[%s444 + $0x574] sm:$0xf]
        %v1453 = vld [vmem:[%s444 + $0x578] sm:$0xff]
        %v1454 = vld [vmem:[%s444 + $0x580] sm:$0xff]
        %v1455 = vld [vmem:[%s444 + $0x588] sm:$0xff]
        %v1456 = vld [vmem:[%s444 + $0x590] sm:$0xf]
        %v1457 = vld [vmem:[%s444 + $0x594] sm:$0xff]
        %v1458 = vld [vmem:[%s444 + $0x59c] sm:$0xff]
        %v1459 = vld [vmem:[%s444 + $0x5a4] sm:$0xff]
        %v1460 = vld [vmem:[%s444 + $0x5ac] sm:$0xf]
        %v1461 = vld [vmem:[%s444 + $0x5b0] sm:$0xff]
        %v1462 = vld [vmem:[%s444 + $0x5b8] sm:$0xff]
        %v1463 = vld [vmem:[%s444 + $0x5c0] sm:$0xff]
        %v1464 = vld [vmem:[%s444 + $0x5c8] sm:$0xf]
        %v1465 = vld [vmem:[%s444 + $0x5cc] sm:$0xff]
        %v1466 = vld [vmem:[%s444 + $0x5d4] sm:$0xff]
        %v1467 = vld [vmem:[%s444 + $0x5dc] sm:$0xff]
        %v1468 = vld [vmem:[%s444 + $0x5e4] sm:$0xf]
        %v1469 = vld [vmem:[%s444 + $0x5e8] sm:$0xff]
        %v1470 = vld [vmem:[%s444 + $0x5f0] sm:$0xff]
        %v1471 = vld [vmem:[%s444 + $0x5f8] sm:$0xff]
        %v1472 = vld [vmem:[%s444 + $0x600] sm:$0xf]
        %v1473 = vld [vmem:[%s444 + $0x604] sm:$0xff]
        %v1474 = vld [vmem:[%s444 + $0x60c] sm:$0xff]
        %v1475 = vld [vmem:[%s444 + $0x614] sm:$0xff]
        %v1476 = vld [vmem:[%s444 + $0x61c] sm:$0xf]
        %v1477 = vld [vmem:[%s444 + $0x620] sm:$0xff]
        %v1478 = vld [vmem:[%s444 + $0x628] sm:$0xff]
        %v1479 = vld [vmem:[%s444 + $0x630] sm:$0xff]
        %v1480 = vld [vmem:[%s444 + $0x638] sm:$0xf]
        %v1481 = vld [vmem:[%s444 + $0x63c] sm:$0xff]
        %v1482 = vld [vmem:[%s444 + $0x644] sm:$0xff]
        %v1483 = vld [vmem:[%s444 + $0x64c] sm:$0xff]
        %v1484 = vld [vmem:[%s444 + $0x654] sm:$0xf]
        %v1485 = vld [vmem:[%s444 + $0x658] sm:$0xff]
        %v1486 = vld [vmem:[%s444 + $0x660] sm:$0xff]
        %v1487 = vld [vmem:[%s444 + $0x668] sm:$0xff]
        %v1488 = vld [vmem:[%s444 + $0x670] sm:$0xf]
        %v1489 = vld [vmem:[%s444 + $0x674] sm:$0xff]
        %v1490 = vld [vmem:[%s444 + $0x67c] sm:$0xff]
        %v1491 = vld [vmem:[%s444 + $0x684] sm:$0xff]
        %v1492 = vld [vmem:[%s444 + $0x68c] sm:$0xf]
        %v1493 = vld [vmem:[%s444 + $0x690] sm:$0xff]
        %v1494 = vld [vmem:[%s444 + $0x698] sm:$0xff]
        %v1495 = vld [vmem:[%s444 + $0x6a0] sm:$0xff]
        %v1496 = vld [vmem:[%s444 + $0x6a8] sm:$0xf]
        %v1497 = vld [vmem:[%s444 + $0x6ac] sm:$0xff]
        %v1498 = vld [vmem:[%s444 + $0x6b4] sm:$0xff]
        %v1499 = vld [vmem:[%s444 + $0x6bc] sm:$0xff]
        %v1500 = vld [vmem:[%s444 + $0x6c4] sm:$0xf]
        %v1501 = vld [vmem:[%s444 + $0x6c8] sm:$0xff]
        %v1502 = vld [vmem:[%s444 + $0x6d0] sm:$0xff]
        %v1503 = vld [vmem:[%s444 + $0x6d8] sm:$0xff]
        %v1504 = vld [vmem:[%s444 + $0x6e0] sm:$0xf]
        %v1505 = vld [vmem:[%s444 + $0x6e4] sm:$0xff]
        %v1506 = vld [vmem:[%s444 + $0x6ec] sm:$0xff]
        %v1507 = vld [vmem:[%s444 + $0x6f4] sm:$0xff]
        %v1508 = vld [vmem:[%s444 + $0x6fc] sm:$0xf]
        %v1509 = vld [vmem:[%s444 + $0x700] sm:$0xff]
        %v1510 = vld [vmem:[%s444 + $0x708] sm:$0xff]
        %v1511 = vld [vmem:[%s444 + $0x710] sm:$0xff]
        %v1512 = vld [vmem:[%s444 + $0x718] sm:$0xf]
        %v1513 = vld [vmem:[%s444 + $0x71c] sm:$0xff]
        %v1514 = vld [vmem:[%s444 + $0x724] sm:$0xff]
        %v1515 = vld [vmem:[%s444 + $0x72c] sm:$0xff]
        %v1516 = vld [vmem:[%s444 + $0x734] sm:$0xf]
        %v1517 = vld [vmem:[%s444 + $0x738] sm:$0xff]
        %v1518 = vld [vmem:[%s444 + $0x740] sm:$0xff]
        %v1519 = vld [vmem:[%s444 + $0x748] sm:$0xff]
        %v1520 = vld [vmem:[%s444 + $0x750] sm:$0xf]
        %v1521 = vld [vmem:[%s444 + $0x754] sm:$0xff]
        %v1522 = vld [vmem:[%s444 + $0x75c] sm:$0xff]
        %v1523 = vld [vmem:[%s444 + $0x764] sm:$0xff]
        %v1524 = vld [vmem:[%s444 + $0x76c] sm:$0xf]
        %v1525 = vld [vmem:[%s444 + $0x770] sm:$0xff]
        %v1526 = vld [vmem:[%s444 + $0x778] sm:$0xff]
        %v1527 = vld [vmem:[%s444 + $0x780] sm:$0xff]
        %v1528 = vld [vmem:[%s444 + $0x788] sm:$0xf]
        %v1529 = vld [vmem:[%s444 + $0x78c] sm:$0xff]
        %v1530 = vld [vmem:[%s444 + $0x794] sm:$0xff]
        %v1531 = vld [vmem:[%s444 + $0x79c] sm:$0xff]
        %v1532 = vld [vmem:[%s444 + $0x7a4] sm:$0xf]
        %v1533 = vld [vmem:[%s444 + $0x7a8] sm:$0xff]
        %v1534 = vld [vmem:[%s444 + $0x7b0] sm:$0xff]
        %v1535 = vld [vmem:[%s444 + $0x7b8] sm:$0xff]
        %v1536 = vld [vmem:[%s444 + $0x7c0] sm:$0xf]
        %v1537 = vld [vmem:[%s444 + $0x7c4] sm:$0xff]
        %v1538 = vld [vmem:[%s444 + $0x7cc] sm:$0xff]
        %v1539 = vld [vmem:[%s444 + $0x7d4] sm:$0xff]
        %v1540 = vld [vmem:[%s444 + $0x7dc] sm:$0xf]
        %v1541 = vld [vmem:[%s444 + $0x7e0] sm:$0xff]
        %v1542 = vld [vmem:[%s444 + $0x7e8] sm:$0xff]
        %v1543 = vld [vmem:[%s444 + $0x7f0] sm:$0xff]
        %v1544 = vld [vmem:[%s444 + $0x7f8] sm:$0xf]
        %v1545 = vld [vmem:[%s444 + $0x7fc] sm:$0xff]
        %v1546 = vld [vmem:[%s444 + $0x804] sm:$0xff]
        %v1547 = vld [vmem:[%s444 + $0x80c] sm:$0xff]
        %v1548 = vld [vmem:[%s444 + $0x814] sm:$0xf]
        %v1549 = vld [vmem:[%s444 + $0x818] sm:$0xff]
        %v1550 = vld [vmem:[%s444 + $0x820] sm:$0xff]
        %v1551 = vld [vmem:[%s444 + $0x828] sm:$0xff]
        %v1552 = vld [vmem:[%s444 + $0x830] sm:$0xf]
        %v1553 = vld [vmem:[%s444 + $0x834] sm:$0xff]
        %v1554 = vld [vmem:[%s444 + $0x83c] sm:$0xff]
        %v1555 = vld [vmem:[%s444 + $0x844] sm:$0xff]
        %v1556 = vld [vmem:[%s444 + $0x84c] sm:$0xf]
        %v1557 = vld [vmem:[%s444 + $0x850] sm:$0xff]
        %v1558 = vld [vmem:[%s444 + $0x858] sm:$0xff]
        %v1559 = vld [vmem:[%s444 + $0x860] sm:$0xff]
        %v1560 = vld [vmem:[%s444 + $0x868] sm:$0xf]
        %v1561 = vld [vmem:[%s444 + $0x86c] sm:$0xff]
        %v1562 = vld [vmem:[%s444 + $0x874] sm:$0xff]
        %v1563 = vld [vmem:[%s444 + $0x87c] sm:$0xff]
        %v1564 = vld [vmem:[%s444 + $0x884] sm:$0xf]
        %v1565 = vld [vmem:[%s444 + $0x888] sm:$0xff]
        %v1566 = vld [vmem:[%s444 + $0x890] sm:$0xff]
        %v1567 = vld [vmem:[%s444 + $0x898] sm:$0xff]
        %v1568 = vld [vmem:[%s444 + $0x8a0] sm:$0xf]
        %v1569 = vld [vmem:[%s444 + $0x8a4] sm:$0xff]
        %v1570 = vld [vmem:[%s444 + $0x8ac] sm:$0xff]
        %v1571 = vld [vmem:[%s444 + $0x8b4] sm:$0xff]
        %v1572 = vld [vmem:[%s444 + $0x8bc] sm:$0xf]
        %v1573 = vld [vmem:[%s444 + $0x8c0] sm:$0xff]
        %v1574 = vld [vmem:[%s444 + $0x8c8] sm:$0xff]
        %v1575 = vld [vmem:[%s444 + $0x8d0] sm:$0xff]
        %v1576 = vld [vmem:[%s444 + $0x8d8] sm:$0xf]
        %v1577 = vld [vmem:[%s444 + $0x8dc] sm:$0xff]
        %v1578 = vld [vmem:[%s444 + $0x8e4] sm:$0xff]
        %v1579 = vld [vmem:[%s444 + $0x8ec] sm:$0xff]
        %v1580 = vld [vmem:[%s444 + $0x8f4] sm:$0xf]
        %v1581 = vld [vmem:[%s444 + $0x8f8] sm:$0xff]
        %v1582 = vld [vmem:[%s444 + $0x900] sm:$0xff]
        %v1583 = vld [vmem:[%s444 + $0x908] sm:$0xff]
        %v1584 = vld [vmem:[%s444 + $0x910] sm:$0xf]
        %v1585 = vld [vmem:[%s444 + $0x914] sm:$0xff]
        %v1586 = vld [vmem:[%s444 + $0x91c] sm:$0xff]
        %v1587 = vld [vmem:[%s444 + $0x924] sm:$0xff]
        %v1588 = vld [vmem:[%s444 + $0x92c] sm:$0xf]
        %v1589 = vld [vmem:[%s444 + $0x930] sm:$0xff]
        %v1590 = vld [vmem:[%s444 + $0x938] sm:$0xff]
        %v1591 = vld [vmem:[%s444 + $0x940] sm:$0xff]
        %v1592 = vld [vmem:[%s444 + $0x948] sm:$0xf]
        %v1593 = vld [vmem:[%s444 + $0x94c] sm:$0xff]
        %v1594 = vld [vmem:[%s444 + $0x954] sm:$0xff]
        %v1595 = vld [vmem:[%s444 + $0x95c] sm:$0xff]
        %v1596 = vld [vmem:[%s444 + $0x964] sm:$0xf]
        %v1597 = vld [vmem:[%s444 + $0x968] sm:$0xff]
        %v1598 = vld [vmem:[%s444 + $0x970] sm:$0xff]
        %v1599 = vld [vmem:[%s444 + $0x978] sm:$0xff]
        %v1600 = vld [vmem:[%s444 + $0x980] sm:$0xf]
        %v1601 = vld [vmem:[%s444 + $0x984] sm:$0xff]
        %v1602 = vld [vmem:[%s444 + $0x98c] sm:$0xff]
        %v1603 = vld [vmem:[%s444 + $0x994] sm:$0xff]
        %v1604 = vld [vmem:[%s444 + $0x99c] sm:$0xf]
        %v1605 = vld [vmem:[%s444 + $0x9a0] sm:$0xff]
        %v1606 = vld [vmem:[%s444 + $0x9a8] sm:$0xff]
        %v1607 = vld [vmem:[%s444 + $0x9b0] sm:$0xff]
        %v1608 = vld [vmem:[%s444 + $0x9b8] sm:$0xf]
        %v1609 = vld [vmem:[%s444 + $0x9bc] sm:$0xff]
        %v1610 = vld [vmem:[%s444 + $0x9c4] sm:$0xff]
        %v1611 = vld [vmem:[%s444 + $0x9cc] sm:$0xff]
        %v1612 = vld [vmem:[%s444 + $0x9d4] sm:$0xf]
        %v1613 = vld [vmem:[%s444 + $0x9d8] sm:$0xff]
        %v1614 = vld [vmem:[%s444 + $0x9e0] sm:$0xff]
        %v1615 = vld [vmem:[%s444 + $0x9e8] sm:$0xff]
        %v1616 = vld [vmem:[%s444 + $0x9f0] sm:$0xf]
        %v1617 = vld [vmem:[%s444 + $0x9f4] sm:$0xff]
        %v1618 = vld [vmem:[%s444 + $0x9fc] sm:$0xff]
        %v1619 = vld [vmem:[%s444 + $0xa04] sm:$0xff]
        %v1620 = vld [vmem:[%s444 + $0xa0c] sm:$0xf]
        %v1621 = vld [vmem:[%s444 + $0xa10] sm:$0xff]
        %v1622 = vld [vmem:[%s444 + $0xa18] sm:$0xff]
        %v1623 = vld [vmem:[%s444 + $0xa20] sm:$0xff]
        %v1624 = vld [vmem:[%s444 + $0xa28] sm:$0xf]
        %v1625 = vld [vmem:[%s444 + $0xa2c] sm:$0xff]
        %v1626 = vld [vmem:[%s444 + $0xa34] sm:$0xff]
        %v1627 = vld [vmem:[%s444 + $0xa3c] sm:$0xff]
        %v1628 = vld [vmem:[%s444 + $0xa44] sm:$0xf]
        %v1629 = vld [vmem:[%s444 + $0xa48] sm:$0xff]
        %v1630 = vld [vmem:[%s444 + $0xa50] sm:$0xff]
        %v1631 = vld [vmem:[%s444 + $0xa58] sm:$0xff]
        %v1632 = vld [vmem:[%s444 + $0xa60] sm:$0xf]
        %v1633 = vld [vmem:[%s444 + $0xa64] sm:$0xff]
        %v1634 = vld [vmem:[%s444 + $0xa6c] sm:$0xff]
        %v1635 = vld [vmem:[%s444 + $0xa74] sm:$0xff]
        %v1636 = vld [vmem:[%s444 + $0xa7c] sm:$0xf]
        %v1637 = vld [vmem:[%s444 + $0xa80] sm:$0xff]
        %v1638 = vld [vmem:[%s444 + $0xa88] sm:$0xff]
        %v1639 = vld [vmem:[%s444 + $0xa90] sm:$0xff]
        %v1640 = vld [vmem:[%s444 + $0xa98] sm:$0xf]
        %v1641 = vld [vmem:[%s444 + $0xa9c] sm:$0xff]
        %v1642 = vld [vmem:[%s444 + $0xaa4] sm:$0xff]
        %v1643 = vld [vmem:[%s444 + $0xaac] sm:$0xff]
        %v1644 = vld [vmem:[%s444 + $0xab4] sm:$0xf]
        %v1645 = vld [vmem:[%s444 + $0xab8] sm:$0xff]
        %v1646 = vld [vmem:[%s444 + $0xac0] sm:$0xff]
        %v1647 = vld [vmem:[%s444 + $0xac8] sm:$0xff]
        %v1648 = vld [vmem:[%s444 + $0xad0] sm:$0xf]
        %v1649 = vld [vmem:[%s444 + $0xad4] sm:$0xff]
        %v1650 = vld [vmem:[%s444 + $0xadc] sm:$0xff]
        %v1651 = vld [vmem:[%s444 + $0xae4] sm:$0xff]
        %v1652 = vld [vmem:[%s444 + $0xaec] sm:$0xf]
        %v1653 = vld [vmem:[%s444 + $0xaf0] sm:$0xff]
        %v1654 = vld [vmem:[%s444 + $0xaf8] sm:$0xff]
        %v1655 = vld [vmem:[%s444 + $0xb00] sm:$0xff]
        %v1656 = vld [vmem:[%s444 + $0xb08] sm:$0xf]
        %v1657 = vld [vmem:[%s444 + $0xb0c] sm:$0xff]
        %v1658 = vld [vmem:[%s444 + $0xb14] sm:$0xff]
        %v1659 = vld [vmem:[%s444 + $0xb1c] sm:$0xff]
        %v1660 = vld [vmem:[%s444 + $0xb24] sm:$0xf]
        %v1661 = vld [vmem:[%s444 + $0xb28] sm:$0xff]
        %v1662 = vld [vmem:[%s444 + $0xb30] sm:$0xff]
        %v1663 = vld [vmem:[%s444 + $0xb38] sm:$0xff]
        %v1664 = vld [vmem:[%s444 + $0xb40] sm:$0xf]
        %v1665 = vld [vmem:[%s444 + $0xb44] sm:$0xff]
        %v1666 = vld [vmem:[%s444 + $0xb4c] sm:$0xff]
        %v1667 = vld [vmem:[%s444 + $0xb54] sm:$0xff]
        %v1668 = vld [vmem:[%s444 + $0xb5c] sm:$0xf]
        %v1669 = vld [vmem:[%s444 + $0xb60] sm:$0xff]
        %v1670 = vld [vmem:[%s444 + $0xb68] sm:$0xff]
        %v1671 = vld [vmem:[%s444 + $0xb70] sm:$0xff]
        %v1672 = vld [vmem:[%s444 + $0xb78] sm:$0xf]
        %v1673 = vld [vmem:[%s444 + $0xb7c] sm:$0xff]
        %v1674 = vld [vmem:[%s444 + $0xb84] sm:$0xff]
        %v1675 = vld [vmem:[%s444 + $0xb8c] sm:$0xff]
        %v1676 = vld [vmem:[%s444 + $0xb94] sm:$0xf]
        %v1677 = vld [vmem:[%s444 + $0xb98] sm:$0xff]
        %v1678 = vld [vmem:[%s444 + $0xba0] sm:$0xff]
        %v1679 = vld [vmem:[%s444 + $0xba8] sm:$0xff]
        %v1680 = vld [vmem:[%s444 + $0xbb0] sm:$0xf]
        %v1681 = vld [vmem:[%s444 + $0xbb4] sm:$0xff]
        %v1682 = vld [vmem:[%s444 + $0xbbc] sm:$0xff]
        %v1683 = vld [vmem:[%s444 + $0xbc4] sm:$0xff]
        %v1684 = vld [vmem:[%s444 + $0xbcc] sm:$0xf]
        %v1685 = vld [vmem:[%s444 + $0xbd0] sm:$0xff]
        %v1686 = vld [vmem:[%s444 + $0xbd8] sm:$0xff]
        %v1687 = vld [vmem:[%s444 + $0xbe0] sm:$0xff]
        %v1688 = vld [vmem:[%s444 + $0xbe8] sm:$0xf]
        %v1689 = vld [vmem:[%s444 + $0xbec] sm:$0xff]
        %v1690 = vld [vmem:[%s444 + $0xbf4] sm:$0xff]
        %v1691 = vld [vmem:[%s444 + $0xbfc] sm:$0xff]
        %v1692 = vld [vmem:[%s444 + $0xc04] sm:$0xf]
        %v1693 = vld [vmem:[%s444 + $0xc08] sm:$0xff]
        %v1694 = vld [vmem:[%s444 + $0xc10] sm:$0xff]
        %v1695 = vld [vmem:[%s444 + $0xc18] sm:$0xff]
        %v1696 = vld [vmem:[%s444 + $0xc20] sm:$0xf]
        %v1697 = vld [vmem:[%s444 + $0xc24] sm:$0xff]
        %v1698 = vld [vmem:[%s444 + $0xc2c] sm:$0xff]
        %v1699 = vld [vmem:[%s444 + $0xc34] sm:$0xff]
        %v1700 = vld [vmem:[%s444 + $0xc3c] sm:$0xf]
        %v1701 = vld [vmem:[%s444 + $0xc40] sm:$0xff]
        %v1702 = vld [vmem:[%s444 + $0xc48] sm:$0xff]
        %v1703 = vld [vmem:[%s444 + $0xc50] sm:$0xff]
        %v1704 = vld [vmem:[%s444 + $0xc58] sm:$0xf]
        %v1705 = vld [vmem:[%s444 + $0xc5c] sm:$0xff]
        %v1706 = vld [vmem:[%s444 + $0xc64] sm:$0xff]
        %v1707 = vld [vmem:[%s444 + $0xc6c] sm:$0xff]
        %v1708 = vld [vmem:[%s444 + $0xc74] sm:$0xf]
        %v1709 = vld [vmem:[%s444 + $0xc78] sm:$0xff]
        %v1710 = vld [vmem:[%s444 + $0xc80] sm:$0xff]
        %v1711 = vld [vmem:[%s444 + $0xc88] sm:$0xff]
        %v1712 = vld [vmem:[%s444 + $0xc90] sm:$0xf]
        %v1713 = vld [vmem:[%s444 + $0xc94] sm:$0xff]
        %v1714 = vld [vmem:[%s444 + $0xc9c] sm:$0xff]
        %v1715 = vld [vmem:[%s444 + $0xca4] sm:$0xff]
        %v1716 = vld [vmem:[%s444 + $0xcac] sm:$0xf]
        %v1717 = vld [vmem:[%s444 + $0xcb0] sm:$0xff]
        %v1718 = vld [vmem:[%s444 + $0xcb8] sm:$0xff]
        %v1719 = vld [vmem:[%s444 + $0xcc0] sm:$0xff]
        %v1720 = vld [vmem:[%s444 + $0xcc8] sm:$0xf]
        %v1721 = vld [vmem:[%s444 + $0xccc] sm:$0xff]
        %v1722 = vld [vmem:[%s444 + $0xcd4] sm:$0xff]
        %v1723 = vld [vmem:[%s444 + $0xcdc] sm:$0xff]
        %v1724 = vld [vmem:[%s444 + $0xce4] sm:$0xf]
        %v1725 = vld [vmem:[%s444 + $0xce8] sm:$0xff]
        %v1726 = vld [vmem:[%s444 + $0xcf0] sm:$0xff]
        %v1727 = vld [vmem:[%s444 + $0xcf8] sm:$0xff]
        %v1728 = vld [vmem:[%s444 + $0xd00] sm:$0xf]
        %v1729 = vld [vmem:[%s444 + $0xd04] sm:$0xff]
        %v1730 = vld [vmem:[%s444 + $0xd0c] sm:$0xff]
        %v1731 = vld [vmem:[%s444 + $0xd14] sm:$0xff]
        %v1732 = vld [vmem:[%s444 + $0xd1c] sm:$0xf]
        %v1733 = vld [vmem:[%s444 + $0xd20] sm:$0xff]
        %v1734 = vld [vmem:[%s444 + $0xd28] sm:$0xff]
        %v1735 = vld [vmem:[%s444 + $0xd30] sm:$0xff]
        %v1736 = vld [vmem:[%s444 + $0xd38] sm:$0xf]
        %v1737 = vld [vmem:[%s444 + $0xd3c] sm:$0xff]
        %v1738 = vld [vmem:[%s444 + $0xd44] sm:$0xff]
        %v1739 = vld [vmem:[%s444 + $0xd4c] sm:$0xff]
        %v1740 = vld [vmem:[%s444 + $0xd54] sm:$0xf]
        %v1741 = vld [vmem:[%s444 + $0xd58] sm:$0xff]
        %v1742 = vld [vmem:[%s444 + $0xd60] sm:$0xff]
        %v1743 = vld [vmem:[%s444 + $0xd68] sm:$0xff]
        %v1744 = vld [vmem:[%s444 + $0xd70] sm:$0xf]
        %v1745 = vld [vmem:[%s444 + $0xd74] sm:$0xff]
        %v1746 = vld [vmem:[%s444 + $0xd7c] sm:$0xff]
        %v1747 = vld [vmem:[%s444 + $0xd84] sm:$0xff]
        %v1748 = vld [vmem:[%s444 + $0xd8c] sm:$0xf]
        %v1749 = vld [vmem:[%s444 + $0xd90] sm:$0xff]
        %v1750 = vld [vmem:[%s444 + $0xd98] sm:$0xff]
        %v1751 = vld [vmem:[%s444 + $0xda0] sm:$0xff]
        %v1752 = vld [vmem:[%s444 + $0xda8] sm:$0xf]
        %v1753 = vld [vmem:[%s444 + $0xdac] sm:$0xff]
        %v1754 = vld [vmem:[%s444 + $0xdb4] sm:$0xff]
        %v1755 = vld [vmem:[%s444 + $0xdbc] sm:$0xff]
        %v1756 = vld [vmem:[%s444 + $0xdc4] sm:$0xf]
        %v1757 = vld [vmem:[%s444 + $0xdc8] sm:$0xff]
        %v1758 = vld [vmem:[%s444 + $0xdd0] sm:$0xff]
        %v1759 = vld [vmem:[%s444 + $0xdd8] sm:$0xff]
        %v1760 = vld [vmem:[%s444 + $0xde0] sm:$0xf]
        %v1761 = vld [vmem:[%s444 + $0xde4] sm:$0xff]
        %v1762 = vld [vmem:[%s444 + $0xdec] sm:$0xff]
        %v1763 = vld [vmem:[%s444 + $0xdf4] sm:$0xff]
        %v1764 = vld [vmem:[%s444 + $0xdfc] sm:$0xf]
        %v1765 = vunpack.c.l.bf16 %v1253
        %v1766 = vunpack.c.h.bf16 %v1253
        %v1767 = vunpack.c.l.bf16 %v1254
        %v1768 = vunpack.c.h.bf16 %v1254
        %v1769 = vunpack.c.l.bf16 %v1255
        %v1770 = vunpack.c.h.bf16 %v1255
        %v1771 = vunpack.c.l.bf16 %v1256
        %v1772 = vunpack.c.l.bf16 %v1257
        %v1773 = vunpack.c.h.bf16 %v1257
        %v1774 = vunpack.c.l.bf16 %v1258
        %v1775 = vunpack.c.h.bf16 %v1258
        %v1776 = vunpack.c.l.bf16 %v1259
        %v1777 = vunpack.c.h.bf16 %v1259
        %v1778 = vunpack.c.l.bf16 %v1260
        %v1779 = vunpack.c.l.bf16 %v1261
        %v1780 = vunpack.c.h.bf16 %v1261
        %v1781 = vunpack.c.l.bf16 %v1262
        %v1782 = vunpack.c.h.bf16 %v1262
        %v1783 = vunpack.c.l.bf16 %v1263
        %v1784 = vunpack.c.h.bf16 %v1263
        %v1785 = vunpack.c.l.bf16 %v1264
        %v1786 = vunpack.c.l.bf16 %v1265
        %v1787 = vunpack.c.h.bf16 %v1265
        %v1788 = vunpack.c.l.bf16 %v1266
        %v1789 = vunpack.c.h.bf16 %v1266
        %v1790 = vunpack.c.l.bf16 %v1267
        %v1791 = vunpack.c.h.bf16 %v1267
        %v1792 = vunpack.c.l.bf16 %v1268
        %v1793 = vunpack.c.l.bf16 %v1269
        %v1794 = vunpack.c.h.bf16 %v1269
        %v1795 = vunpack.c.l.bf16 %v1270
        %v1796 = vunpack.c.h.bf16 %v1270
        %v1797 = vunpack.c.l.bf16 %v1271
        %v1798 = vunpack.c.h.bf16 %v1271
        %v1799 = vunpack.c.l.bf16 %v1272
        %v1800 = vunpack.c.l.bf16 %v1273
        %v1801 = vunpack.c.h.bf16 %v1273
        %v1802 = vunpack.c.l.bf16 %v1274
        %v1803 = vunpack.c.h.bf16 %v1274
        %v1804 = vunpack.c.l.bf16 %v1275
        %v1805 = vunpack.c.h.bf16 %v1275
        %v1806 = vunpack.c.l.bf16 %v1276
        %v1807 = vunpack.c.l.bf16 %v1277
        %v1808 = vunpack.c.h.bf16 %v1277
        %v1809 = vunpack.c.l.bf16 %v1278
        %v1810 = vunpack.c.h.bf16 %v1278
        %v1811 = vunpack.c.l.bf16 %v1279
        %v1812 = vunpack.c.h.bf16 %v1279
        %v1813 = vunpack.c.l.bf16 %v1280
        %v1814 = vunpack.c.l.bf16 %v1281
        %v1815 = vunpack.c.h.bf16 %v1281
        %v1816 = vunpack.c.l.bf16 %v1282
        %v1817 = vunpack.c.h.bf16 %v1282
        %v1818 = vunpack.c.l.bf16 %v1283
        %v1819 = vunpack.c.h.bf16 %v1283
        %v1820 = vunpack.c.l.bf16 %v1284
        %v1821 = vunpack.c.l.bf16 %v1285
        %v1822 = vunpack.c.h.bf16 %v1285
        %v1823 = vunpack.c.l.bf16 %v1286
        %v1824 = vunpack.c.h.bf16 %v1286
        %v1825 = vunpack.c.l.bf16 %v1287
        %v1826 = vunpack.c.h.bf16 %v1287
        %v1827 = vunpack.c.l.bf16 %v1288
        %v1828 = vunpack.c.l.bf16 %v1289
        %v1829 = vunpack.c.h.bf16 %v1289
        %v1830 = vunpack.c.l.bf16 %v1290
        %v1831 = vunpack.c.h.bf16 %v1290
        %v1832 = vunpack.c.l.bf16 %v1291
        %v1833 = vunpack.c.h.bf16 %v1291
        %v1834 = vunpack.c.l.bf16 %v1292
        %v1835 = vunpack.c.l.bf16 %v1293
        %v1836 = vunpack.c.h.bf16 %v1293
        %v1837 = vunpack.c.l.bf16 %v1294
        %v1838 = vunpack.c.h.bf16 %v1294
        %v1839 = vunpack.c.l.bf16 %v1295
        %v1840 = vunpack.c.h.bf16 %v1295
        %v1841 = vunpack.c.l.bf16 %v1296
        %v1842 = vunpack.c.l.bf16 %v1297
        %v1843 = vunpack.c.h.bf16 %v1297
        %v1844 = vunpack.c.l.bf16 %v1298
        %v1845 = vunpack.c.h.bf16 %v1298
        %v1846 = vunpack.c.l.bf16 %v1299
        %v1847 = vunpack.c.h.bf16 %v1299
        %v1848 = vunpack.c.l.bf16 %v1300
        %v1849 = vunpack.c.l.bf16 %v1301
        %v1850 = vunpack.c.h.bf16 %v1301
        %v1851 = vunpack.c.l.bf16 %v1302
        %v1852 = vunpack.c.h.bf16 %v1302
        %v1853 = vunpack.c.l.bf16 %v1303
        %v1854 = vunpack.c.h.bf16 %v1303
        %v1855 = vunpack.c.l.bf16 %v1304
        %v1856 = vunpack.c.l.bf16 %v1305
        %v1857 = vunpack.c.h.bf16 %v1305
        %v1858 = vunpack.c.l.bf16 %v1306
        %v1859 = vunpack.c.h.bf16 %v1306
        %v1860 = vunpack.c.l.bf16 %v1307
        %v1861 = vunpack.c.h.bf16 %v1307
        %v1862 = vunpack.c.l.bf16 %v1308
        %v1863 = vunpack.c.l.bf16 %v1309
        %v1864 = vunpack.c.h.bf16 %v1309
        %v1865 = vunpack.c.l.bf16 %v1310
        %v1866 = vunpack.c.h.bf16 %v1310
        %v1867 = vunpack.c.l.bf16 %v1311
        %v1868 = vunpack.c.h.bf16 %v1311
        %v1869 = vunpack.c.l.bf16 %v1312
        %v1870 = vunpack.c.l.bf16 %v1313
        %v1871 = vunpack.c.h.bf16 %v1313
        %v1872 = vunpack.c.l.bf16 %v1314
        %v1873 = vunpack.c.h.bf16 %v1314
        %v1874 = vunpack.c.l.bf16 %v1315
        %v1875 = vunpack.c.h.bf16 %v1315
        %v1876 = vunpack.c.l.bf16 %v1316
        %v1877 = vunpack.c.l.bf16 %v1317
        %v1878 = vunpack.c.h.bf16 %v1317
        %v1879 = vunpack.c.l.bf16 %v1318
        %v1880 = vunpack.c.h.bf16 %v1318
        %v1881 = vunpack.c.l.bf16 %v1319
        %v1882 = vunpack.c.h.bf16 %v1319
        %v1883 = vunpack.c.l.bf16 %v1320
        %v1884 = vunpack.c.l.bf16 %v1321
        %v1885 = vunpack.c.h.bf16 %v1321
        %v1886 = vunpack.c.l.bf16 %v1322
        %v1887 = vunpack.c.h.bf16 %v1322
        %v1888 = vunpack.c.l.bf16 %v1323
        %v1889 = vunpack.c.h.bf16 %v1323
        %v1890 = vunpack.c.l.bf16 %v1324
        %v1891 = vunpack.c.l.bf16 %v1325
        %v1892 = vunpack.c.h.bf16 %v1325
        %v1893 = vunpack.c.l.bf16 %v1326
        %v1894 = vunpack.c.h.bf16 %v1326
        %v1895 = vunpack.c.l.bf16 %v1327
        %v1896 = vunpack.c.h.bf16 %v1327
        %v1897 = vunpack.c.l.bf16 %v1328
        %v1898 = vunpack.c.l.bf16 %v1329
        %v1899 = vunpack.c.h.bf16 %v1329
        %v1900 = vunpack.c.l.bf16 %v1330
        %v1901 = vunpack.c.h.bf16 %v1330
        %v1902 = vunpack.c.l.bf16 %v1331
        %v1903 = vunpack.c.h.bf16 %v1331
        %v1904 = vunpack.c.l.bf16 %v1332
        %v1905 = vunpack.c.l.bf16 %v1333
        %v1906 = vunpack.c.h.bf16 %v1333
        %v1907 = vunpack.c.l.bf16 %v1334
        %v1908 = vunpack.c.h.bf16 %v1334
        %v1909 = vunpack.c.l.bf16 %v1335
        %v1910 = vunpack.c.h.bf16 %v1335
        %v1911 = vunpack.c.l.bf16 %v1336
        %v1912 = vunpack.c.l.bf16 %v1337
        %v1913 = vunpack.c.h.bf16 %v1337
        %v1914 = vunpack.c.l.bf16 %v1338
        %v1915 = vunpack.c.h.bf16 %v1338
        %v1916 = vunpack.c.l.bf16 %v1339
        %v1917 = vunpack.c.h.bf16 %v1339
        %v1918 = vunpack.c.l.bf16 %v1340
        %v1919 = vunpack.c.l.bf16 %v1341
        %v1920 = vunpack.c.h.bf16 %v1341
        %v1921 = vunpack.c.l.bf16 %v1342
        %v1922 = vunpack.c.h.bf16 %v1342
        %v1923 = vunpack.c.l.bf16 %v1343
        %v1924 = vunpack.c.h.bf16 %v1343
        %v1925 = vunpack.c.l.bf16 %v1344
        %v1926 = vunpack.c.l.bf16 %v1345
        %v1927 = vunpack.c.h.bf16 %v1345
        %v1928 = vunpack.c.l.bf16 %v1346
        %v1929 = vunpack.c.h.bf16 %v1346
        %v1930 = vunpack.c.l.bf16 %v1347
        %v1931 = vunpack.c.h.bf16 %v1347
        %v1932 = vunpack.c.l.bf16 %v1348
        %v1933 = vunpack.c.l.bf16 %v1349
        %v1934 = vunpack.c.h.bf16 %v1349
        %v1935 = vunpack.c.l.bf16 %v1350
        %v1936 = vunpack.c.h.bf16 %v1350
        %v1937 = vunpack.c.l.bf16 %v1351
        %v1938 = vunpack.c.h.bf16 %v1351
        %v1939 = vunpack.c.l.bf16 %v1352
        %v1940 = vunpack.c.l.bf16 %v1353
        %v1941 = vunpack.c.h.bf16 %v1353
        %v1942 = vunpack.c.l.bf16 %v1354
        %v1943 = vunpack.c.h.bf16 %v1354
        %v1944 = vunpack.c.l.bf16 %v1355
        %v1945 = vunpack.c.h.bf16 %v1355
        %v1946 = vunpack.c.l.bf16 %v1356
        %v1947 = vunpack.c.l.bf16 %v1357
        %v1948 = vunpack.c.h.bf16 %v1357
        %v1949 = vunpack.c.l.bf16 %v1358
        %v1950 = vunpack.c.h.bf16 %v1358
        %v1951 = vunpack.c.l.bf16 %v1359
        %v1952 = vunpack.c.h.bf16 %v1359
        %v1953 = vunpack.c.l.bf16 %v1360
        %v1954 = vunpack.c.l.bf16 %v1361
        %v1955 = vunpack.c.h.bf16 %v1361
        %v1956 = vunpack.c.l.bf16 %v1362
        %v1957 = vunpack.c.h.bf16 %v1362
        %v1958 = vunpack.c.l.bf16 %v1363
        %v1959 = vunpack.c.h.bf16 %v1363
        %v1960 = vunpack.c.l.bf16 %v1364
        %v1961 = vunpack.c.l.bf16 %v1365
        %v1962 = vunpack.c.h.bf16 %v1365
        %v1963 = vunpack.c.l.bf16 %v1366
        %v1964 = vunpack.c.h.bf16 %v1366
        %v1965 = vunpack.c.l.bf16 %v1367
        %v1966 = vunpack.c.h.bf16 %v1367
        %v1967 = vunpack.c.l.bf16 %v1368
        %v1968 = vunpack.c.l.bf16 %v1369
        %v1969 = vunpack.c.h.bf16 %v1369
        %v1970 = vunpack.c.l.bf16 %v1370
        %v1971 = vunpack.c.h.bf16 %v1370
        %v1972 = vunpack.c.l.bf16 %v1371
        %v1973 = vunpack.c.h.bf16 %v1371
        %v1974 = vunpack.c.l.bf16 %v1372
        %v1975 = vunpack.c.l.bf16 %v1373
        %v1976 = vunpack.c.h.bf16 %v1373
        %v1977 = vunpack.c.l.bf16 %v1374
        %v1978 = vunpack.c.h.bf16 %v1374
        %v1979 = vunpack.c.l.bf16 %v1375
        %v1980 = vunpack.c.h.bf16 %v1375
        %v1981 = vunpack.c.l.bf16 %v1376
        %v1982 = vunpack.c.l.bf16 %v1377
        %v1983 = vunpack.c.h.bf16 %v1377
        %v1984 = vunpack.c.l.bf16 %v1378
        %v1985 = vunpack.c.h.bf16 %v1378
        %v1986 = vunpack.c.l.bf16 %v1379
        %v1987 = vunpack.c.h.bf16 %v1379
        %v1988 = vunpack.c.l.bf16 %v1380
        %v1989 = vunpack.c.l.bf16 %v1381
        %v1990 = vunpack.c.h.bf16 %v1381
        %v1991 = vunpack.c.l.bf16 %v1382
        %v1992 = vunpack.c.h.bf16 %v1382
        %v1993 = vunpack.c.l.bf16 %v1383
        %v1994 = vunpack.c.h.bf16 %v1383
        %v1995 = vunpack.c.l.bf16 %v1384
        %v1996 = vunpack.c.l.bf16 %v1385
        %v1997 = vunpack.c.h.bf16 %v1385
        %v1998 = vunpack.c.l.bf16 %v1386
        %v1999 = vunpack.c.h.bf16 %v1386
        %v2000 = vunpack.c.l.bf16 %v1387
        %v2001 = vunpack.c.h.bf16 %v1387
        %v2002 = vunpack.c.l.bf16 %v1388
        %v2003 = vunpack.c.l.bf16 %v1389
        %v2004 = vunpack.c.h.bf16 %v1389
        %v2005 = vunpack.c.l.bf16 %v1390
        %v2006 = vunpack.c.h.bf16 %v1390
        %v2007 = vunpack.c.l.bf16 %v1391
        %v2008 = vunpack.c.h.bf16 %v1391
        %v2009 = vunpack.c.l.bf16 %v1392
        %v2010 = vunpack.c.l.bf16 %v1393
        %v2011 = vunpack.c.h.bf16 %v1393
        %v2012 = vunpack.c.l.bf16 %v1394
        %v2013 = vunpack.c.h.bf16 %v1394
        %v2014 = vunpack.c.l.bf16 %v1395
        %v2015 = vunpack.c.h.bf16 %v1395
        %v2016 = vunpack.c.l.bf16 %v1396
        %v2017 = vunpack.c.l.bf16 %v1397
        %v2018 = vunpack.c.h.bf16 %v1397
        %v2019 = vunpack.c.l.bf16 %v1398
        %v2020 = vunpack.c.h.bf16 %v1398
        %v2021 = vunpack.c.l.bf16 %v1399
        %v2022 = vunpack.c.h.bf16 %v1399
        %v2023 = vunpack.c.l.bf16 %v1400
        %v2024 = vunpack.c.l.bf16 %v1401
        %v2025 = vunpack.c.h.bf16 %v1401
        %v2026 = vunpack.c.l.bf16 %v1402
        %v2027 = vunpack.c.h.bf16 %v1402
        %v2028 = vunpack.c.l.bf16 %v1403
        %v2029 = vunpack.c.h.bf16 %v1403
        %v2030 = vunpack.c.l.bf16 %v1404
        %v2031 = vunpack.c.l.bf16 %v1405
        %v2032 = vunpack.c.h.bf16 %v1405
        %v2033 = vunpack.c.l.bf16 %v1406
        %v2034 = vunpack.c.h.bf16 %v1406
        %v2035 = vunpack.c.l.bf16 %v1407
        %v2036 = vunpack.c.h.bf16 %v1407
        %v2037 = vunpack.c.l.bf16 %v1408
        %v2038 = vunpack.c.l.bf16 %v1409
        %v2039 = vunpack.c.h.bf16 %v1409
        %v2040 = vunpack.c.l.bf16 %v1410
        %v2041 = vunpack.c.h.bf16 %v1410
        %v2042 = vunpack.c.l.bf16 %v1411
        %v2043 = vunpack.c.h.bf16 %v1411
        %v2044 = vunpack.c.l.bf16 %v1412
        %v2045 = vunpack.c.l.bf16 %v1413
        %v2046 = vunpack.c.h.bf16 %v1413
        %v2047 = vunpack.c.l.bf16 %v1414
        %v2048 = vunpack.c.h.bf16 %v1414
        %v2049 = vunpack.c.l.bf16 %v1415
        %v2050 = vunpack.c.h.bf16 %v1415
        %v2051 = vunpack.c.l.bf16 %v1416
        %v2052 = vunpack.c.l.bf16 %v1417
        %v2053 = vunpack.c.h.bf16 %v1417
        %v2054 = vunpack.c.l.bf16 %v1418
        %v2055 = vunpack.c.h.bf16 %v1418
        %v2056 = vunpack.c.l.bf16 %v1419
        %v2057 = vunpack.c.h.bf16 %v1419
        %v2058 = vunpack.c.l.bf16 %v1420
        %v2059 = vunpack.c.l.bf16 %v1421
        %v2060 = vunpack.c.h.bf16 %v1421
        %v2061 = vunpack.c.l.bf16 %v1422
        %v2062 = vunpack.c.h.bf16 %v1422
        %v2063 = vunpack.c.l.bf16 %v1423
        %v2064 = vunpack.c.h.bf16 %v1423
        %v2065 = vunpack.c.l.bf16 %v1424
        %v2066 = vunpack.c.l.bf16 %v1425
        %v2067 = vunpack.c.h.bf16 %v1425
        %v2068 = vunpack.c.l.bf16 %v1426
        %v2069 = vunpack.c.h.bf16 %v1426
        %v2070 = vunpack.c.l.bf16 %v1427
        %v2071 = vunpack.c.h.bf16 %v1427
        %v2072 = vunpack.c.l.bf16 %v1428
        %v2073 = vunpack.c.l.bf16 %v1429
        %v2074 = vunpack.c.h.bf16 %v1429
        %v2075 = vunpack.c.l.bf16 %v1430
        %v2076 = vunpack.c.h.bf16 %v1430
        %v2077 = vunpack.c.l.bf16 %v1431
        %v2078 = vunpack.c.h.bf16 %v1431
        %v2079 = vunpack.c.l.bf16 %v1432
        %v2080 = vunpack.c.l.bf16 %v1433
        %v2081 = vunpack.c.h.bf16 %v1433
        %v2082 = vunpack.c.l.bf16 %v1434
        %v2083 = vunpack.c.h.bf16 %v1434
        %v2084 = vunpack.c.l.bf16 %v1435
        %v2085 = vunpack.c.h.bf16 %v1435
        %v2086 = vunpack.c.l.bf16 %v1436
        %v2087 = vunpack.c.l.bf16 %v1437
        %v2088 = vunpack.c.h.bf16 %v1437
        %v2089 = vunpack.c.l.bf16 %v1438
        %v2090 = vunpack.c.h.bf16 %v1438
        %v2091 = vunpack.c.l.bf16 %v1439
        %v2092 = vunpack.c.h.bf16 %v1439
        %v2093 = vunpack.c.l.bf16 %v1440
        %v2094 = vunpack.c.l.bf16 %v1441
        %v2095 = vunpack.c.h.bf16 %v1441
        %v2096 = vunpack.c.l.bf16 %v1442
        %v2097 = vunpack.c.h.bf16 %v1442
        %v2098 = vunpack.c.l.bf16 %v1443
        %v2099 = vunpack.c.h.bf16 %v1443
        %v2100 = vunpack.c.l.bf16 %v1444
        %v2101 = vunpack.c.l.bf16 %v1445
        %v2102 = vunpack.c.h.bf16 %v1445
        %v2103 = vunpack.c.l.bf16 %v1446
        %v2104 = vunpack.c.h.bf16 %v1446
        %v2105 = vunpack.c.l.bf16 %v1447
        %v2106 = vunpack.c.h.bf16 %v1447
        %v2107 = vunpack.c.l.bf16 %v1448
        %v2108 = vunpack.c.l.bf16 %v1449
        %v2109 = vunpack.c.h.bf16 %v1449
        %v2110 = vunpack.c.l.bf16 %v1450
        %v2111 = vunpack.c.h.bf16 %v1450
        %v2112 = vunpack.c.l.bf16 %v1451
        %v2113 = vunpack.c.h.bf16 %v1451
        %v2114 = vunpack.c.l.bf16 %v1452
        %v2115 = vunpack.c.l.bf16 %v1453
        %v2116 = vunpack.c.h.bf16 %v1453
        %v2117 = vunpack.c.l.bf16 %v1454
        %v2118 = vunpack.c.h.bf16 %v1454
        %v2119 = vunpack.c.l.bf16 %v1455
        %v2120 = vunpack.c.h.bf16 %v1455
        %v2121 = vunpack.c.l.bf16 %v1456
        %v2122 = vunpack.c.l.bf16 %v1457
        %v2123 = vunpack.c.h.bf16 %v1457
        %v2124 = vunpack.c.l.bf16 %v1458
        %v2125 = vunpack.c.h.bf16 %v1458
        %v2126 = vunpack.c.l.bf16 %v1459
        %v2127 = vunpack.c.h.bf16 %v1459
        %v2128 = vunpack.c.l.bf16 %v1460
        %v2129 = vunpack.c.l.bf16 %v1461
        %v2130 = vunpack.c.h.bf16 %v1461
        %v2131 = vunpack.c.l.bf16 %v1462
        %v2132 = vunpack.c.h.bf16 %v1462
        %v2133 = vunpack.c.l.bf16 %v1463
        %v2134 = vunpack.c.h.bf16 %v1463
        %v2135 = vunpack.c.l.bf16 %v1464
        %v2136 = vunpack.c.l.bf16 %v1465
        %v2137 = vunpack.c.h.bf16 %v1465
        %v2138 = vunpack.c.l.bf16 %v1466
        %v2139 = vunpack.c.h.bf16 %v1466
        %v2140 = vunpack.c.l.bf16 %v1467
        %v2141 = vunpack.c.h.bf16 %v1467
        %v2142 = vunpack.c.l.bf16 %v1468
        %v2143 = vunpack.c.l.bf16 %v1469
        %v2144 = vunpack.c.h.bf16 %v1469
        %v2145 = vunpack.c.l.bf16 %v1470
        %v2146 = vunpack.c.h.bf16 %v1470
        %v2147 = vunpack.c.l.bf16 %v1471
        %v2148 = vunpack.c.h.bf16 %v1471
        %v2149 = vunpack.c.l.bf16 %v1472
        %v2150 = vunpack.c.l.bf16 %v1473
        %v2151 = vunpack.c.h.bf16 %v1473
        %v2152 = vunpack.c.l.bf16 %v1474
        %v2153 = vunpack.c.h.bf16 %v1474
        %v2154 = vunpack.c.l.bf16 %v1475
        %v2155 = vunpack.c.h.bf16 %v1475
        %v2156 = vunpack.c.l.bf16 %v1476
        %v2157 = vunpack.c.l.bf16 %v1477
        %v2158 = vunpack.c.h.bf16 %v1477
        %v2159 = vunpack.c.l.bf16 %v1478
        %v2160 = vunpack.c.h.bf16 %v1478
        %v2161 = vunpack.c.l.bf16 %v1479
        %v2162 = vunpack.c.h.bf16 %v1479
        %v2163 = vunpack.c.l.bf16 %v1480
        %v2164 = vunpack.c.l.bf16 %v1481
        %v2165 = vunpack.c.h.bf16 %v1481
        %v2166 = vunpack.c.l.bf16 %v1482
        %v2167 = vunpack.c.h.bf16 %v1482
        %v2168 = vunpack.c.l.bf16 %v1483
        %v2169 = vunpack.c.h.bf16 %v1483
        %v2170 = vunpack.c.l.bf16 %v1484
        %v2171 = vunpack.c.l.bf16 %v1485
        %v2172 = vunpack.c.h.bf16 %v1485
        %v2173 = vunpack.c.l.bf16 %v1486
        %v2174 = vunpack.c.h.bf16 %v1486
        %v2175 = vunpack.c.l.bf16 %v1487
        %v2176 = vunpack.c.h.bf16 %v1487
        %v2177 = vunpack.c.l.bf16 %v1488
        %v2178 = vunpack.c.l.bf16 %v1489
        %v2179 = vunpack.c.h.bf16 %v1489
        %v2180 = vunpack.c.l.bf16 %v1490
        %v2181 = vunpack.c.h.bf16 %v1490
        %v2182 = vunpack.c.l.bf16 %v1491
        %v2183 = vunpack.c.h.bf16 %v1491
        %v2184 = vunpack.c.l.bf16 %v1492
        %v2185 = vunpack.c.l.bf16 %v1493
        %v2186 = vunpack.c.h.bf16 %v1493
        %v2187 = vunpack.c.l.bf16 %v1494
        %v2188 = vunpack.c.h.bf16 %v1494
        %v2189 = vunpack.c.l.bf16 %v1495
        %v2190 = vunpack.c.h.bf16 %v1495
        %v2191 = vunpack.c.l.bf16 %v1496
        %v2192 = vunpack.c.l.bf16 %v1497
        %v2193 = vunpack.c.h.bf16 %v1497
        %v2194 = vunpack.c.l.bf16 %v1498
        %v2195 = vunpack.c.h.bf16 %v1498
        %v2196 = vunpack.c.l.bf16 %v1499
        %v2197 = vunpack.c.h.bf16 %v1499
        %v2198 = vunpack.c.l.bf16 %v1500
        %v2199 = vunpack.c.l.bf16 %v1501
        %v2200 = vunpack.c.h.bf16 %v1501
        %v2201 = vunpack.c.l.bf16 %v1502
        %v2202 = vunpack.c.h.bf16 %v1502
        %v2203 = vunpack.c.l.bf16 %v1503
        %v2204 = vunpack.c.h.bf16 %v1503
        %v2205 = vunpack.c.l.bf16 %v1504
        %v2206 = vunpack.c.l.bf16 %v1505
        %v2207 = vunpack.c.h.bf16 %v1505
        %v2208 = vunpack.c.l.bf16 %v1506
        %v2209 = vunpack.c.h.bf16 %v1506
        %v2210 = vunpack.c.l.bf16 %v1507
        %v2211 = vunpack.c.h.bf16 %v1507
        %v2212 = vunpack.c.l.bf16 %v1508
        %v2213 = vunpack.c.l.bf16 %v1509
        %v2214 = vunpack.c.h.bf16 %v1509
        %v2215 = vunpack.c.l.bf16 %v1510
        %v2216 = vunpack.c.h.bf16 %v1510
        %v2217 = vunpack.c.l.bf16 %v1511
        %v2218 = vunpack.c.h.bf16 %v1511
        %v2219 = vunpack.c.l.bf16 %v1512
        %v2220 = vunpack.c.l.bf16 %v1513
        %v2221 = vunpack.c.h.bf16 %v1513
        %v2222 = vunpack.c.l.bf16 %v1514
        %v2223 = vunpack.c.h.bf16 %v1514
        %v2224 = vunpack.c.l.bf16 %v1515
        %v2225 = vunpack.c.h.bf16 %v1515
        %v2226 = vunpack.c.l.bf16 %v1516
        %v2227 = vunpack.c.l.bf16 %v1517
        %v2228 = vunpack.c.h.bf16 %v1517
        %v2229 = vunpack.c.l.bf16 %v1518
        %v2230 = vunpack.c.h.bf16 %v1518
        %v2231 = vunpack.c.l.bf16 %v1519
        %v2232 = vunpack.c.h.bf16 %v1519
        %v2233 = vunpack.c.l.bf16 %v1520
        %v2234 = vunpack.c.l.bf16 %v1521
        %v2235 = vunpack.c.h.bf16 %v1521
        %v2236 = vunpack.c.l.bf16 %v1522
        %v2237 = vunpack.c.h.bf16 %v1522
        %v2238 = vunpack.c.l.bf16 %v1523
        %v2239 = vunpack.c.h.bf16 %v1523
        %v2240 = vunpack.c.l.bf16 %v1524
        %v2241 = vunpack.c.l.bf16 %v1525
        %v2242 = vunpack.c.h.bf16 %v1525
        %v2243 = vunpack.c.l.bf16 %v1526
        %v2244 = vunpack.c.h.bf16 %v1526
        %v2245 = vunpack.c.l.bf16 %v1527
        %v2246 = vunpack.c.h.bf16 %v1527
        %v2247 = vunpack.c.l.bf16 %v1528
        %v2248 = vunpack.c.l.bf16 %v1529
        %v2249 = vunpack.c.h.bf16 %v1529
        %v2250 = vunpack.c.l.bf16 %v1530
        %v2251 = vunpack.c.h.bf16 %v1530
        %v2252 = vunpack.c.l.bf16 %v1531
        %v2253 = vunpack.c.h.bf16 %v1531
        %v2254 = vunpack.c.l.bf16 %v1532
        %v2255 = vunpack.c.l.bf16 %v1533
        %v2256 = vunpack.c.h.bf16 %v1533
        %v2257 = vunpack.c.l.bf16 %v1534
        %v2258 = vunpack.c.h.bf16 %v1534
        %v2259 = vunpack.c.l.bf16 %v1535
        %v2260 = vunpack.c.h.bf16 %v1535
        %v2261 = vunpack.c.l.bf16 %v1536
        %v2262 = vunpack.c.l.bf16 %v1537
        %v2263 = vunpack.c.h.bf16 %v1537
        %v2264 = vunpack.c.l.bf16 %v1538
        %v2265 = vunpack.c.h.bf16 %v1538
        %v2266 = vunpack.c.l.bf16 %v1539
        %v2267 = vunpack.c.h.bf16 %v1539
        %v2268 = vunpack.c.l.bf16 %v1540
        %v2269 = vunpack.c.l.bf16 %v1541
        %v2270 = vunpack.c.h.bf16 %v1541
        %v2271 = vunpack.c.l.bf16 %v1542
        %v2272 = vunpack.c.h.bf16 %v1542
        %v2273 = vunpack.c.l.bf16 %v1543
        %v2274 = vunpack.c.h.bf16 %v1543
        %v2275 = vunpack.c.l.bf16 %v1544
        %v2276 = vunpack.c.l.bf16 %v1545
        %v2277 = vunpack.c.h.bf16 %v1545
        %v2278 = vunpack.c.l.bf16 %v1546
        %v2279 = vunpack.c.h.bf16 %v1546
        %v2280 = vunpack.c.l.bf16 %v1547
        %v2281 = vunpack.c.h.bf16 %v1547
        %v2282 = vunpack.c.l.bf16 %v1548
        %v2283 = vunpack.c.l.bf16 %v1549
        %v2284 = vunpack.c.h.bf16 %v1549
        %v2285 = vunpack.c.l.bf16 %v1550
        %v2286 = vunpack.c.h.bf16 %v1550
        %v2287 = vunpack.c.l.bf16 %v1551
        %v2288 = vunpack.c.h.bf16 %v1551
        %v2289 = vunpack.c.l.bf16 %v1552
        %v2290 = vunpack.c.l.bf16 %v1553
        %v2291 = vunpack.c.h.bf16 %v1553
        %v2292 = vunpack.c.l.bf16 %v1554
        %v2293 = vunpack.c.h.bf16 %v1554
        %v2294 = vunpack.c.l.bf16 %v1555
        %v2295 = vunpack.c.h.bf16 %v1555
        %v2296 = vunpack.c.l.bf16 %v1556
        %v2297 = vunpack.c.l.bf16 %v1557
        %v2298 = vunpack.c.h.bf16 %v1557
        %v2299 = vunpack.c.l.bf16 %v1558
        %v2300 = vunpack.c.h.bf16 %v1558
        %v2301 = vunpack.c.l.bf16 %v1559
        %v2302 = vunpack.c.h.bf16 %v1559
        %v2303 = vunpack.c.l.bf16 %v1560
        %v2304 = vunpack.c.l.bf16 %v1561
        %v2305 = vunpack.c.h.bf16 %v1561
        %v2306 = vunpack.c.l.bf16 %v1562
        %v2307 = vunpack.c.h.bf16 %v1562
        %v2308 = vunpack.c.l.bf16 %v1563
        %v2309 = vunpack.c.h.bf16 %v1563
        %v2310 = vunpack.c.l.bf16 %v1564
        %v2311 = vunpack.c.l.bf16 %v1565
        %v2312 = vunpack.c.h.bf16 %v1565
        %v2313 = vunpack.c.l.bf16 %v1566
        %v2314 = vunpack.c.h.bf16 %v1566
        %v2315 = vunpack.c.l.bf16 %v1567
        %v2316 = vunpack.c.h.bf16 %v1567
        %v2317 = vunpack.c.l.bf16 %v1568
        %v2318 = vunpack.c.l.bf16 %v1569
        %v2319 = vunpack.c.h.bf16 %v1569
        %v2320 = vunpack.c.l.bf16 %v1570
        %v2321 = vunpack.c.h.bf16 %v1570
        %v2322 = vunpack.c.l.bf16 %v1571
        %v2323 = vunpack.c.h.bf16 %v1571
        %v2324 = vunpack.c.l.bf16 %v1572
        %v2325 = vunpack.c.l.bf16 %v1573
        %v2326 = vunpack.c.h.bf16 %v1573
        %v2327 = vunpack.c.l.bf16 %v1574
        %v2328 = vunpack.c.h.bf16 %v1574
        %v2329 = vunpack.c.l.bf16 %v1575
        %v2330 = vunpack.c.h.bf16 %v1575
        %v2331 = vunpack.c.l.bf16 %v1576
        %v2332 = vunpack.c.l.bf16 %v1577
        %v2333 = vunpack.c.h.bf16 %v1577
        %v2334 = vunpack.c.l.bf16 %v1578
        %v2335 = vunpack.c.h.bf16 %v1578
        %v2336 = vunpack.c.l.bf16 %v1579
        %v2337 = vunpack.c.h.bf16 %v1579
        %v2338 = vunpack.c.l.bf16 %v1580
        %v2339 = vunpack.c.l.bf16 %v1581
        %v2340 = vunpack.c.h.bf16 %v1581
        %v2341 = vunpack.c.l.bf16 %v1582
        %v2342 = vunpack.c.h.bf16 %v1582
        %v2343 = vunpack.c.l.bf16 %v1583
        %v2344 = vunpack.c.h.bf16 %v1583
        %v2345 = vunpack.c.l.bf16 %v1584
        %v2346 = vunpack.c.l.bf16 %v1585
        %v2347 = vunpack.c.h.bf16 %v1585
        %v2348 = vunpack.c.l.bf16 %v1586
        %v2349 = vunpack.c.h.bf16 %v1586
        %v2350 = vunpack.c.l.bf16 %v1587
        %v2351 = vunpack.c.h.bf16 %v1587
        %v2352 = vunpack.c.l.bf16 %v1588
        %v2353 = vunpack.c.l.bf16 %v1589
        %v2354 = vunpack.c.h.bf16 %v1589
        %v2355 = vunpack.c.l.bf16 %v1590
        %v2356 = vunpack.c.h.bf16 %v1590
        %v2357 = vunpack.c.l.bf16 %v1591
        %v2358 = vunpack.c.h.bf16 %v1591
        %v2359 = vunpack.c.l.bf16 %v1592
        %v2360 = vunpack.c.l.bf16 %v1593
        %v2361 = vunpack.c.h.bf16 %v1593
        %v2362 = vunpack.c.l.bf16 %v1594
        %v2363 = vunpack.c.h.bf16 %v1594
        %v2364 = vunpack.c.l.bf16 %v1595
        %v2365 = vunpack.c.h.bf16 %v1595
        %v2366 = vunpack.c.l.bf16 %v1596
        %v2367 = vunpack.c.l.bf16 %v1597
        %v2368 = vunpack.c.h.bf16 %v1597
        %v2369 = vunpack.c.l.bf16 %v1598
        %v2370 = vunpack.c.h.bf16 %v1598
        %v2371 = vunpack.c.l.bf16 %v1599
        %v2372 = vunpack.c.h.bf16 %v1599
        %v2373 = vunpack.c.l.bf16 %v1600
        %v2374 = vunpack.c.l.bf16 %v1601
        %v2375 = vunpack.c.h.bf16 %v1601
        %v2376 = vunpack.c.l.bf16 %v1602
        %v2377 = vunpack.c.h.bf16 %v1602
        %v2378 = vunpack.c.l.bf16 %v1603
        %v2379 = vunpack.c.h.bf16 %v1603
        %v2380 = vunpack.c.l.bf16 %v1604
        %v2381 = vunpack.c.l.bf16 %v1605
        %v2382 = vunpack.c.h.bf16 %v1605
        %v2383 = vunpack.c.l.bf16 %v1606
        %v2384 = vunpack.c.h.bf16 %v1606
        %v2385 = vunpack.c.l.bf16 %v1607
        %v2386 = vunpack.c.h.bf16 %v1607
        %v2387 = vunpack.c.l.bf16 %v1608
        %v2388 = vunpack.c.l.bf16 %v1609
        %v2389 = vunpack.c.h.bf16 %v1609
        %v2390 = vunpack.c.l.bf16 %v1610
        %v2391 = vunpack.c.h.bf16 %v1610
        %v2392 = vunpack.c.l.bf16 %v1611
        %v2393 = vunpack.c.h.bf16 %v1611
        %v2394 = vunpack.c.l.bf16 %v1612
        %v2395 = vunpack.c.l.bf16 %v1613
        %v2396 = vunpack.c.h.bf16 %v1613
        %v2397 = vunpack.c.l.bf16 %v1614
        %v2398 = vunpack.c.h.bf16 %v1614
        %v2399 = vunpack.c.l.bf16 %v1615
        %v2400 = vunpack.c.h.bf16 %v1615
        %v2401 = vunpack.c.l.bf16 %v1616
        %v2402 = vunpack.c.l.bf16 %v1617
        %v2403 = vunpack.c.h.bf16 %v1617
        %v2404 = vunpack.c.l.bf16 %v1618
        %v2405 = vunpack.c.h.bf16 %v1618
        %v2406 = vunpack.c.l.bf16 %v1619
        %v2407 = vunpack.c.h.bf16 %v1619
        %v2408 = vunpack.c.l.bf16 %v1620
        %v2409 = vunpack.c.l.bf16 %v1621
        %v2410 = vunpack.c.h.bf16 %v1621
        %v2411 = vunpack.c.l.bf16 %v1622
        %v2412 = vunpack.c.h.bf16 %v1622
        %v2413 = vunpack.c.l.bf16 %v1623
        %v2414 = vunpack.c.h.bf16 %v1623
        %v2415 = vunpack.c.l.bf16 %v1624
        %v2416 = vunpack.c.l.bf16 %v1625
        %v2417 = vunpack.c.h.bf16 %v1625
        %v2418 = vunpack.c.l.bf16 %v1626
        %v2419 = vunpack.c.h.bf16 %v1626
        %v2420 = vunpack.c.l.bf16 %v1627
        %v2421 = vunpack.c.h.bf16 %v1627
        %v2422 = vunpack.c.l.bf16 %v1628
        %v2423 = vunpack.c.l.bf16 %v1629
        %v2424 = vunpack.c.h.bf16 %v1629
        %v2425 = vunpack.c.l.bf16 %v1630
        %v2426 = vunpack.c.h.bf16 %v1630
        %v2427 = vunpack.c.l.bf16 %v1631
        %v2428 = vunpack.c.h.bf16 %v1631
        %v2429 = vunpack.c.l.bf16 %v1632
        %v2430 = vunpack.c.l.bf16 %v1633
        %v2431 = vunpack.c.h.bf16 %v1633
        %v2432 = vunpack.c.l.bf16 %v1634
        %v2433 = vunpack.c.h.bf16 %v1634
        %v2434 = vunpack.c.l.bf16 %v1635
        %v2435 = vunpack.c.h.bf16 %v1635
        %v2436 = vunpack.c.l.bf16 %v1636
        %v2437 = vunpack.c.l.bf16 %v1637
        %v2438 = vunpack.c.h.bf16 %v1637
        %v2439 = vunpack.c.l.bf16 %v1638
        %v2440 = vunpack.c.h.bf16 %v1638
        %v2441 = vunpack.c.l.bf16 %v1639
        %v2442 = vunpack.c.h.bf16 %v1639
        %v2443 = vunpack.c.l.bf16 %v1640
        %v2444 = vunpack.c.l.bf16 %v1641
        %v2445 = vunpack.c.h.bf16 %v1641
        %v2446 = vunpack.c.l.bf16 %v1642
        %v2447 = vunpack.c.h.bf16 %v1642
        %v2448 = vunpack.c.l.bf16 %v1643
        %v2449 = vunpack.c.h.bf16 %v1643
        %v2450 = vunpack.c.l.bf16 %v1644
        %v2451 = vunpack.c.l.bf16 %v1645
        %v2452 = vunpack.c.h.bf16 %v1645
        %v2453 = vunpack.c.l.bf16 %v1646
        %v2454 = vunpack.c.h.bf16 %v1646
        %v2455 = vunpack.c.l.bf16 %v1647
        %v2456 = vunpack.c.h.bf16 %v1647
        %v2457 = vunpack.c.l.bf16 %v1648
        %v2458 = vunpack.c.l.bf16 %v1649
        %v2459 = vunpack.c.h.bf16 %v1649
        %v2460 = vunpack.c.l.bf16 %v1650
        %v2461 = vunpack.c.h.bf16 %v1650
        %v2462 = vunpack.c.l.bf16 %v1651
        %v2463 = vunpack.c.h.bf16 %v1651
        %v2464 = vunpack.c.l.bf16 %v1652
        %v2465 = vunpack.c.l.bf16 %v1653
        %v2466 = vunpack.c.h.bf16 %v1653
        %v2467 = vunpack.c.l.bf16 %v1654
        %v2468 = vunpack.c.h.bf16 %v1654
        %v2469 = vunpack.c.l.bf16 %v1655
        %v2470 = vunpack.c.h.bf16 %v1655
        %v2471 = vunpack.c.l.bf16 %v1656
        %v2472 = vunpack.c.l.bf16 %v1657
        %v2473 = vunpack.c.h.bf16 %v1657
        %v2474 = vunpack.c.l.bf16 %v1658
        %v2475 = vunpack.c.h.bf16 %v1658
        %v2476 = vunpack.c.l.bf16 %v1659
        %v2477 = vunpack.c.h.bf16 %v1659
        %v2478 = vunpack.c.l.bf16 %v1660
        %v2479 = vunpack.c.l.bf16 %v1661
        %v2480 = vunpack.c.h.bf16 %v1661
        %v2481 = vunpack.c.l.bf16 %v1662
        %v2482 = vunpack.c.h.bf16 %v1662
        %v2483 = vunpack.c.l.bf16 %v1663
        %v2484 = vunpack.c.h.bf16 %v1663
        %v2485 = vunpack.c.l.bf16 %v1664
        %v2486 = vunpack.c.l.bf16 %v1665
        %v2487 = vunpack.c.h.bf16 %v1665
        %v2488 = vunpack.c.l.bf16 %v1666
        %v2489 = vunpack.c.h.bf16 %v1666
        %v2490 = vunpack.c.l.bf16 %v1667
        %v2491 = vunpack.c.h.bf16 %v1667
        %v2492 = vunpack.c.l.bf16 %v1668
        %v2493 = vunpack.c.l.bf16 %v1669
        %v2494 = vunpack.c.h.bf16 %v1669
        %v2495 = vunpack.c.l.bf16 %v1670
        %v2496 = vunpack.c.h.bf16 %v1670
        %v2497 = vunpack.c.l.bf16 %v1671
        %v2498 = vunpack.c.h.bf16 %v1671
        %v2499 = vunpack.c.l.bf16 %v1672
        %v2500 = vunpack.c.l.bf16 %v1673
        %v2501 = vunpack.c.h.bf16 %v1673
        %v2502 = vunpack.c.l.bf16 %v1674
        %v2503 = vunpack.c.h.bf16 %v1674
        %v2504 = vunpack.c.l.bf16 %v1675
        %v2505 = vunpack.c.h.bf16 %v1675
        %v2506 = vunpack.c.l.bf16 %v1676
        %v2507 = vunpack.c.l.bf16 %v1677
        %v2508 = vunpack.c.h.bf16 %v1677
        %v2509 = vunpack.c.l.bf16 %v1678
        %v2510 = vunpack.c.h.bf16 %v1678
        %v2511 = vunpack.c.l.bf16 %v1679
        %v2512 = vunpack.c.h.bf16 %v1679
        %v2513 = vunpack.c.l.bf16 %v1680
        %v2514 = vunpack.c.l.bf16 %v1681
        %v2515 = vunpack.c.h.bf16 %v1681
        %v2516 = vunpack.c.l.bf16 %v1682
        %v2517 = vunpack.c.h.bf16 %v1682
        %v2518 = vunpack.c.l.bf16 %v1683
        %v2519 = vunpack.c.h.bf16 %v1683
        %v2520 = vunpack.c.l.bf16 %v1684
        %v2521 = vunpack.c.l.bf16 %v1685
        %v2522 = vunpack.c.h.bf16 %v1685
        %v2523 = vunpack.c.l.bf16 %v1686
        %v2524 = vunpack.c.h.bf16 %v1686
        %v2525 = vunpack.c.l.bf16 %v1687
        %v2526 = vunpack.c.h.bf16 %v1687
        %v2527 = vunpack.c.l.bf16 %v1688
        %v2528 = vunpack.c.l.bf16 %v1689
        %v2529 = vunpack.c.h.bf16 %v1689
        %v2530 = vunpack.c.l.bf16 %v1690
        %v2531 = vunpack.c.h.bf16 %v1690
        %v2532 = vunpack.c.l.bf16 %v1691
        %v2533 = vunpack.c.h.bf16 %v1691
        %v2534 = vunpack.c.l.bf16 %v1692
        %v2535 = vunpack.c.l.bf16 %v1693
        %v2536 = vunpack.c.h.bf16 %v1693
        %v2537 = vunpack.c.l.bf16 %v1694
        %v2538 = vunpack.c.h.bf16 %v1694
        %v2539 = vunpack.c.l.bf16 %v1695
        %v2540 = vunpack.c.h.bf16 %v1695
        %v2541 = vunpack.c.l.bf16 %v1696
        %v2542 = vunpack.c.l.bf16 %v1697
        %v2543 = vunpack.c.h.bf16 %v1697
        %v2544 = vunpack.c.l.bf16 %v1698
        %v2545 = vunpack.c.h.bf16 %v1698
        %v2546 = vunpack.c.l.bf16 %v1699
        %v2547 = vunpack.c.h.bf16 %v1699
        %v2548 = vunpack.c.l.bf16 %v1700
        %v2549 = vunpack.c.l.bf16 %v1701
        %v2550 = vunpack.c.h.bf16 %v1701
        %v2551 = vunpack.c.l.bf16 %v1702
        %v2552 = vunpack.c.h.bf16 %v1702
        %v2553 = vunpack.c.l.bf16 %v1703
        %v2554 = vunpack.c.h.bf16 %v1703
        %v2555 = vunpack.c.l.bf16 %v1704
        %v2556 = vunpack.c.l.bf16 %v1705
        %v2557 = vunpack.c.h.bf16 %v1705
        %v2558 = vunpack.c.l.bf16 %v1706
        %v2559 = vunpack.c.h.bf16 %v1706
        %v2560 = vunpack.c.l.bf16 %v1707
        %v2561 = vunpack.c.h.bf16 %v1707
        %v2562 = vunpack.c.l.bf16 %v1708
        %v2563 = vunpack.c.l.bf16 %v1709
        %v2564 = vunpack.c.h.bf16 %v1709
        %v2565 = vunpack.c.l.bf16 %v1710
        %v2566 = vunpack.c.h.bf16 %v1710
        %v2567 = vunpack.c.l.bf16 %v1711
        %v2568 = vunpack.c.h.bf16 %v1711
        %v2569 = vunpack.c.l.bf16 %v1712
        %v2570 = vunpack.c.l.bf16 %v1713
        %v2571 = vunpack.c.h.bf16 %v1713
        %v2572 = vunpack.c.l.bf16 %v1714
        %v2573 = vunpack.c.h.bf16 %v1714
        %v2574 = vunpack.c.l.bf16 %v1715
        %v2575 = vunpack.c.h.bf16 %v1715
        %v2576 = vunpack.c.l.bf16 %v1716
        %v2577 = vunpack.c.l.bf16 %v1717
        %v2578 = vunpack.c.h.bf16 %v1717
        %v2579 = vunpack.c.l.bf16 %v1718
        %v2580 = vunpack.c.h.bf16 %v1718
        %v2581 = vunpack.c.l.bf16 %v1719
        %v2582 = vunpack.c.h.bf16 %v1719
        %v2583 = vunpack.c.l.bf16 %v1720
        %v2584 = vunpack.c.l.bf16 %v1721
        %v2585 = vunpack.c.h.bf16 %v1721
        %v2586 = vunpack.c.l.bf16 %v1722
        %v2587 = vunpack.c.h.bf16 %v1722
        %v2588 = vunpack.c.l.bf16 %v1723
        %v2589 = vunpack.c.h.bf16 %v1723
        %v2590 = vunpack.c.l.bf16 %v1724
        %v2591 = vunpack.c.l.bf16 %v1725
        %v2592 = vunpack.c.h.bf16 %v1725
        %v2593 = vunpack.c.l.bf16 %v1726
        %v2594 = vunpack.c.h.bf16 %v1726
        %v2595 = vunpack.c.l.bf16 %v1727
        %v2596 = vunpack.c.h.bf16 %v1727
        %v2597 = vunpack.c.l.bf16 %v1728
        %v2598 = vunpack.c.l.bf16 %v1729
        %v2599 = vunpack.c.h.bf16 %v1729
        %v2600 = vunpack.c.l.bf16 %v1730
        %v2601 = vunpack.c.h.bf16 %v1730
        %v2602 = vunpack.c.l.bf16 %v1731
        %v2603 = vunpack.c.h.bf16 %v1731
        %v2604 = vunpack.c.l.bf16 %v1732
        %v2605 = vunpack.c.l.bf16 %v1733
        %v2606 = vunpack.c.h.bf16 %v1733
        %v2607 = vunpack.c.l.bf16 %v1734
        %v2608 = vunpack.c.h.bf16 %v1734
        %v2609 = vunpack.c.l.bf16 %v1735
        %v2610 = vunpack.c.h.bf16 %v1735
        %v2611 = vunpack.c.l.bf16 %v1736
        %v2612 = vunpack.c.l.bf16 %v1737
        %v2613 = vunpack.c.h.bf16 %v1737
        %v2614 = vunpack.c.l.bf16 %v1738
        %v2615 = vunpack.c.h.bf16 %v1738
        %v2616 = vunpack.c.l.bf16 %v1739
        %v2617 = vunpack.c.h.bf16 %v1739
        %v2618 = vunpack.c.l.bf16 %v1740
        %v2619 = vunpack.c.l.bf16 %v1741
        %v2620 = vunpack.c.h.bf16 %v1741
        %v2621 = vunpack.c.l.bf16 %v1742
        %v2622 = vunpack.c.h.bf16 %v1742
        %v2623 = vunpack.c.l.bf16 %v1743
        %v2624 = vunpack.c.h.bf16 %v1743
        %v2625 = vunpack.c.l.bf16 %v1744
        %v2626 = vunpack.c.l.bf16 %v1745
        %v2627 = vunpack.c.h.bf16 %v1745
        %v2628 = vunpack.c.l.bf16 %v1746
        %v2629 = vunpack.c.h.bf16 %v1746
        %v2630 = vunpack.c.l.bf16 %v1747
        %v2631 = vunpack.c.h.bf16 %v1747
        %v2632 = vunpack.c.l.bf16 %v1748
        %v2633 = vunpack.c.l.bf16 %v1749
        %v2634 = vunpack.c.h.bf16 %v1749
        %v2635 = vunpack.c.l.bf16 %v1750
        %v2636 = vunpack.c.h.bf16 %v1750
        %v2637 = vunpack.c.l.bf16 %v1751
        %v2638 = vunpack.c.h.bf16 %v1751
        %v2639 = vunpack.c.l.bf16 %v1752
        %v2640 = vunpack.c.l.bf16 %v1753
        %v2641 = vunpack.c.h.bf16 %v1753
        %v2642 = vunpack.c.l.bf16 %v1754
        %v2643 = vunpack.c.h.bf16 %v1754
        %v2644 = vunpack.c.l.bf16 %v1755
        %v2645 = vunpack.c.h.bf16 %v1755
        %v2646 = vunpack.c.l.bf16 %v1756
        %v2647 = vunpack.c.l.bf16 %v1757
        %v2648 = vunpack.c.h.bf16 %v1757
        %v2649 = vunpack.c.l.bf16 %v1758
        %v2650 = vunpack.c.h.bf16 %v1758
        %v2651 = vunpack.c.l.bf16 %v1759
        %v2652 = vunpack.c.h.bf16 %v1759
        %v2653 = vunpack.c.l.bf16 %v1760
        %v2654 = vunpack.c.l.bf16 %v1761
        %v2655 = vunpack.c.h.bf16 %v1761
        %v2656 = vunpack.c.l.bf16 %v1762
        %v2657 = vunpack.c.h.bf16 %v1762
        %v2658 = vunpack.c.l.bf16 %v1763
        %v2659 = vunpack.c.h.bf16 %v1763
        %v2660 = vunpack.c.l.bf16 %v1764
        %v2661 = vld [vmem:[%s453] sm:$0xff]
        %v2663 = vlaneseq
        %v2664 = vshrl.u32 %v2663, 7
        %v2665 = vsub.s32 0, %v2664
        %v2666 = vrot.slane %v2661, %v2665
        %v2667 = vlaneseq
        %v2668 = vshrl.u32 %v2667, 7
        %v2669 = vsub.s32 1, %v2668
        %v2670 = vrot.slane %v2661, %v2669
        %v2671 = vlaneseq
        %v2672 = vshrl.u32 %v2671, 7
        %v2673 = vsub.s32 2, %v2672
        %v2674 = vrot.slane %v2661, %v2673
        %v2675 = vlaneseq
        %v2676 = vshrl.u32 %v2675, 7
        %v2677 = vsub.s32 3, %v2676
        %v2678 = vrot.slane %v2661, %v2677
        %v2679 = vlaneseq
        %v2680 = vshrl.u32 %v2679, 7
        %v2681 = vsub.s32 4, %v2680
        %v2682 = vrot.slane %v2661, %v2681
        %v2683 = vlaneseq
        %v2684 = vshrl.u32 %v2683, 7
        %v2685 = vsub.s32 5, %v2684
        %v2686 = vrot.slane %v2661, %v2685
        %v2687 = vlaneseq
        %v2688 = vshrl.u32 %v2687, 7
        %v2689 = vsub.s32 6, %v2688
        %v2690 = vrot.slane %v2661, %v2689
        %2698 = vmatprep.subr.mxu0 %v1766
        %2699 = vmatpush1.msra.mxu0 %v1765
        %2700 = vmatprep.subr.mxu0 %v1773
        %2701 = vmatpush1.msra.mxu0 %v1772
        %2702 = vmatprep.subr.mxu0 %v1780
        %2703 = vmatpush1.msra.mxu0 %v1779
        %2704 = vmatprep.subr.mxu0 %v1787
        %2705 = vmatpush1.msra.mxu0 %v1786
        %2706 = vmatprep.subr.mxu0 %v1794
        %2707 = vmatpush1.msra.mxu0 %v1793
        %2708 = vmatprep.subr.mxu0 %v1801
        %2709 = vmatpush1.msra.mxu0 %v1800
        %2710 = vmatprep.subr.mxu0 %v1808
        %2711 = vmatpush1.msra.mxu0 %v1807
        %2712 = vmatprep.subr.mxu0 %v1815
        %2713 = vmatpush1.msra.mxu0 %v1814
        %2714 = vmatprep.subr.mxu0 %v1822
        %2715 = vmatpush1.msra.mxu0 %v1821
        %2716 = vmatprep.subr.mxu0 %v1829
        %2717 = vmatpush1.msra.mxu0 %v1828
        %2718 = vmatprep.subr.mxu0 %v1836
        %2719 = vmatpush1.msra.mxu0 %v1835
        %2720 = vmatprep.subr.mxu0 %v1843
        %2721 = vmatpush1.msra.mxu0 %v1842
        %2722 = vmatprep.subr.mxu0 %v1850
        %2723 = vmatpush1.msra.mxu0 %v1849
        %2724 = vmatprep.subr.mxu0 %v1857
        %2725 = vmatpush1.msra.mxu0 %v1856
        %2726 = vmatprep.subr.mxu0 %v1864
        %2727 = vmatpush1.msra.mxu0 %v1863
        %2728 = vmatprep.subr.mxu0 %v1871
        %2729 = vmatpush1.msra.mxu0 %v1870
        %2730 = vmatprep.subr.mxu0 %v1878
        %2731 = vmatpush1.msra.mxu0 %v1877
        %2732 = vmatprep.subr.mxu0 %v1885
        %2733 = vmatpush1.msra.mxu0 %v1884
        %2734 = vmatprep.subr.mxu0 %v1892
        %2735 = vmatpush1.msra.mxu0 %v1891
        %2736 = vmatprep.subr.mxu0 %v1899
        %2737 = vmatpush1.msra.mxu0 %v1898
        %2738 = vmatprep.subr.mxu0 %v1906
        %2739 = vmatpush1.msra.mxu0 %v1905
        %2740 = vmatprep.subr.mxu0 %v1913
        %2741 = vmatpush1.msra.mxu0 %v1912
        %2742 = vmatprep.subr.mxu0 %v1920
        %2743 = vmatpush1.msra.mxu0 %v1919
        %2744 = vmatprep.subr.mxu0 %v1927
        %2745 = vmatpush1.msra.mxu0 %v1926
        %2746 = vmatprep.subr.mxu0 %v1934
        %2747 = vmatpush1.msra.mxu0 %v1933
        %2748 = vmatprep.subr.mxu0 %v1941
        %2749 = vmatpush1.msra.mxu0 %v1940
        %2750 = vmatprep.subr.mxu0 %v1948
        %2751 = vmatpush1.msra.mxu0 %v1947
        %2752 = vmatprep.subr.mxu0 %v1955
        %2753 = vmatpush1.msra.mxu0 %v1954
        %2754 = vmatprep.subr.mxu0 %v1962
        %2755 = vmatpush1.msra.mxu0 %v1961
        %2756 = vmatprep.subr.mxu0 %v1969
        %2757 = vmatpush1.msra.mxu0 %v1968
        %2758 = vmatprep.subr.mxu0 %v1976
        %2759 = vmatpush1.msra.mxu0 %v1975
        %2760 = vmatprep.subr.mxu0 %v1983
        %2761 = vmatpush1.msra.mxu0 %v1982
        %2762 = vmatprep.mubr.f32.mxu0 %v1246
        %2763 = vmatmul.mubr.f32.gmra.mrb[0].mxu0 %v1245
        %v2764 = vpop.f32.mrb[0].mxu0
        %v2765 = vadd.f32 %v2666, %v2764
        %v2766 = vpop.f32.mrb[0].mxu0
        %v2767 = vadd.f32 %v2670, %v2766
        %2768 = vdwg.mxu0
        %2769 = vmatprep.subr.mxu0 %v1990
        %2770 = vmatpush1.msra.mxu0 %v1989
        %2771 = vmatprep.subr.mxu0 %v1997
        %2772 = vmatpush1.msra.mxu0 %v1996
        %2773 = vmatprep.subr.mxu0 %v2004
        %2774 = vmatpush1.msra.mxu0 %v2003
        %2775 = vmatprep.subr.mxu0 %v2011
        %2776 = vmatpush1.msra.mxu0 %v2010
        %2777 = vmatprep.subr.mxu0 %v2018
        %2778 = vmatpush1.msra.mxu0 %v2017
        %2779 = vmatprep.subr.mxu0 %v2025
        %2780 = vmatpush1.msra.mxu0 %v2024
        %2781 = vmatprep.subr.mxu0 %v2032
        %2782 = vmatpush1.msra.mxu0 %v2031
        %2783 = vmatprep.subr.mxu0 %v2039
        %2784 = vmatpush1.msra.mxu0 %v2038
        %2785 = vmatprep.subr.mxu0 %v2046
        %2786 = vmatpush1.msra.mxu0 %v2045
        %2787 = vmatprep.subr.mxu0 %v2053
        %2788 = vmatpush1.msra.mxu0 %v2052
        %2789 = vmatprep.subr.mxu0 %v2060
        %2790 = vmatpush1.msra.mxu0 %v2059
        %2791 = vmatprep.subr.mxu0 %v2067
        %2792 = vmatpush1.msra.mxu0 %v2066
        %2793 = vmatprep.subr.mxu0 %v2074
        %2794 = vmatpush1.msra.mxu0 %v2073
        %2795 = vmatprep.subr.mxu0 %v2081
        %2796 = vmatpush1.msra.mxu0 %v2080
        %2797 = vmatprep.subr.mxu0 %v2088
        %2798 = vmatpush1.msra.mxu0 %v2087
        %2799 = vmatprep.subr.mxu0 %v2095
        %2800 = vmatpush1.msra.mxu0 %v2094
        %2801 = vmatprep.subr.mxu0 %v2102
        %2802 = vmatpush1.msra.mxu0 %v2101
        %2803 = vmatprep.subr.mxu0 %v2109
        %2804 = vmatpush1.msra.mxu0 %v2108
        %2805 = vmatprep.subr.mxu0 %v2116
        %2806 = vmatpush1.msra.mxu0 %v2115
        %2807 = vmatprep.subr.mxu0 %v2123
        %2808 = vmatpush1.msra.mxu0 %v2122
        %2809 = vmatprep.subr.mxu0 %v2130
        %2810 = vmatpush1.msra.mxu0 %v2129
        %2811 = vmatprep.subr.mxu0 %v2137
        %2812 = vmatpush1.msra.mxu0 %v2136
        %2813 = vmatprep.subr.mxu0 %v2144
        %2814 = vmatpush1.msra.mxu0 %v2143
        %2815 = vmatprep.subr.mxu0 %v2151
        %2816 = vmatpush1.msra.mxu0 %v2150
        %2817 = vmatprep.subr.mxu0 %v2158
        %2818 = vmatpush1.msra.mxu0 %v2157
        %2819 = vmatprep.subr.mxu0 %v2165
        %2820 = vmatpush1.msra.mxu0 %v2164
        %2821 = vmatprep.subr.mxu0 %v2172
        %2822 = vmatpush1.msra.mxu0 %v2171
        %2823 = vmatprep.subr.mxu0 %v2179
        %2824 = vmatpush1.msra.mxu0 %v2178
        %2825 = vmatprep.subr.mxu0 %v2186
        %2826 = vmatpush1.msra.mxu0 %v2185
        %2827 = vmatprep.subr.mxu0 %v2193
        %2828 = vmatpush1.msra.mxu0 %v2192
        %2829 = vmatprep.subr.mxu0 %v2200
        %2830 = vmatpush1.msra.mxu0 %v2199
        %2831 = vmatprep.subr.mxu0 %v2207
        %2832 = vmatpush1.msra.mxu0 %v2206
        %2833 = vmatprep.mubr.f32.mxu0 %v1248
        %2834 = vmatmul.mubr.f32.gmra.mrb[0].mxu0 %v1247
        %v2835 = vpop.f32.mrb[0].mxu0
        %v2836 = vadd.f32 %v2765, %v2835
        %v2837 = vpop.f32.mrb[0].mxu0
        %v2838 = vadd.f32 %v2767, %v2837
        %2839 = vdwg.mxu0
        %2840 = vmatprep.subr.mxu0 %v2214
        %2841 = vmatpush1.msra.mxu0 %v2213
        %2842 = vmatprep.subr.mxu0 %v2221
        %2843 = vmatpush1.msra.mxu0 %v2220
        %2844 = vmatprep.subr.mxu0 %v2228
        %2845 = vmatpush1.msra.mxu0 %v2227
        %2846 = vmatprep.subr.mxu0 %v2235
        %2847 = vmatpush1.msra.mxu0 %v2234
        %2848 = vmatprep.subr.mxu0 %v2242
        %2849 = vmatpush1.msra.mxu0 %v2241
        %2850 = vmatprep.subr.mxu0 %v2249
        %2851 = vmatpush1.msra.mxu0 %v2248
        %2852 = vmatprep.subr.mxu0 %v2256
        %2853 = vmatpush1.msra.mxu0 %v2255
        %2854 = vmatprep.subr.mxu0 %v2263
        %2855 = vmatpush1.msra.mxu0 %v2262
        %2856 = vmatprep.subr.mxu0 %v2270
        %2857 = vmatpush1.msra.mxu0 %v2269
        %2858 = vmatprep.subr.mxu0 %v2277
        %2859 = vmatpush1.msra.mxu0 %v2276
        %2860 = vmatprep.subr.mxu0 %v2284
        %2861 = vmatpush1.msra.mxu0 %v2283
        %2862 = vmatprep.subr.mxu0 %v2291
        %2863 = vmatpush1.msra.mxu0 %v2290
        %2864 = vmatprep.subr.mxu0 %v2298
        %2865 = vmatpush1.msra.mxu0 %v2297
        %2866 = vmatprep.subr.mxu0 %v2305
        %2867 = vmatpush1.msra.mxu0 %v2304
        %2868 = vmatprep.subr.mxu0 %v2312
        %2869 = vmatpush1.msra.mxu0 %v2311
        %2870 = vmatprep.subr.mxu0 %v2319
        %2871 = vmatpush1.msra.mxu0 %v2318
        %2872 = vmatprep.subr.mxu0 %v2326
        %2873 = vmatpush1.msra.mxu0 %v2325
        %2874 = vmatprep.subr.mxu0 %v2333
        %2875 = vmatpush1.msra.mxu0 %v2332
        %2876 = vmatprep.subr.mxu0 %v2340
        %2877 = vmatpush1.msra.mxu0 %v2339
        %2878 = vmatprep.subr.mxu0 %v2347
        %2879 = vmatpush1.msra.mxu0 %v2346
        %2880 = vmatprep.subr.mxu0 %v2354
        %2881 = vmatpush1.msra.mxu0 %v2353
        %2882 = vmatprep.subr.mxu0 %v2361
        %2883 = vmatpush1.msra.mxu0 %v2360
        %2884 = vmatprep.subr.mxu0 %v2368
        %2885 = vmatpush1.msra.mxu0 %v2367
        %2886 = vmatprep.subr.mxu0 %v2375
        %2887 = vmatpush1.msra.mxu0 %v2374
        %2888 = vmatprep.subr.mxu0 %v2382
        %2889 = vmatpush1.msra.mxu0 %v2381
        %2890 = vmatprep.subr.mxu0 %v2389
        %2891 = vmatpush1.msra.mxu0 %v2388
        %2892 = vmatprep.subr.mxu0 %v2396
        %2893 = vmatpush1.msra.mxu0 %v2395
        %2894 = vmatprep.subr.mxu0 %v2403
        %2895 = vmatpush1.msra.mxu0 %v2402
        %2896 = vmatprep.subr.mxu0 %v2410
        %2897 = vmatpush1.msra.mxu0 %v2409
        %2898 = vmatprep.subr.mxu0 %v2417
        %2899 = vmatpush1.msra.mxu0 %v2416
        %2900 = vmatprep.subr.mxu0 %v2424
        %2901 = vmatpush1.msra.mxu0 %v2423
        %2902 = vmatprep.subr.mxu0 %v2431
        %2903 = vmatpush1.msra.mxu0 %v2430
        %2904 = vmatprep.mubr.f32.mxu0 %v1250
        %2905 = vmatmul.mubr.f32.gmra.mrb[0].mxu0 %v1249
        %v2906 = vpop.f32.mrb[0].mxu0
        %v2907 = vadd.f32 %v2836, %v2906
        %v2908 = vpop.f32.mrb[0].mxu0
        %v2909 = vadd.f32 %v2838, %v2908
        %2910 = vdwg.mxu0
        %2911 = vmatprep.subr.mxu0 %v2438
        %2912 = vmatpush1.msra.mxu0 %v2437
        %2913 = vmatprep.subr.mxu0 %v2445
        %2914 = vmatpush1.msra.mxu0 %v2444
        %2915 = vmatprep.subr.mxu0 %v2452
        %2916 = vmatpush1.msra.mxu0 %v2451
        %2917 = vmatprep.subr.mxu0 %v2459
        %2918 = vmatpush1.msra.mxu0 %v2458
        %2919 = vmatprep.subr.mxu0 %v2466
        %2920 = vmatpush1.msra.mxu0 %v2465
        %2921 = vmatprep.subr.mxu0 %v2473
        %2922 = vmatpush1.msra.mxu0 %v2472
        %2923 = vmatprep.subr.mxu0 %v2480
        %2924 = vmatpush1.msra.mxu0 %v2479
        %2925 = vmatprep.subr.mxu0 %v2487
        %2926 = vmatpush1.msra.mxu0 %v2486
        %2927 = vmatprep.subr.mxu0 %v2494
        %2928 = vmatpush1.msra.mxu0 %v2493
        %2929 = vmatprep.subr.mxu0 %v2501
        %2930 = vmatpush1.msra.mxu0 %v2500
        %2931 = vmatprep.subr.mxu0 %v2508
        %2932 = vmatpush1.msra.mxu0 %v2507
        %2933 = vmatprep.subr.mxu0 %v2515
        %2934 = vmatpush1.msra.mxu0 %v2514
        %2935 = vmatprep.subr.mxu0 %v2522
        %2936 = vmatpush1.msra.mxu0 %v2521
        %2937 = vmatprep.subr.mxu0 %v2529
        %2938 = vmatpush1.msra.mxu0 %v2528
        %2939 = vmatprep.subr.mxu0 %v2536
        %2940 = vmatpush1.msra.mxu0 %v2535
        %2941 = vmatprep.subr.mxu0 %v2543
        %2942 = vmatpush1.msra.mxu0 %v2542
        %2943 = vmatprep.subr.mxu0 %v2550
        %2944 = vmatpush1.msra.mxu0 %v2549
        %2945 = vmatprep.subr.mxu0 %v2557
        %2946 = vmatpush1.msra.mxu0 %v2556
        %2947 = vmatprep.subr.mxu0 %v2564
        %2948 = vmatpush1.msra.mxu0 %v2563
        %2949 = vmatprep.subr.mxu0 %v2571
        %2950 = vmatpush1.msra.mxu0 %v2570
        %2951 = vmatprep.subr.mxu0 %v2578
        %2952 = vmatpush1.msra.mxu0 %v2577
        %2953 = vmatprep.subr.mxu0 %v2585
        %2954 = vmatpush1.msra.mxu0 %v2584
        %2955 = vmatprep.subr.mxu0 %v2592
        %2956 = vmatpush1.msra.mxu0 %v2591
        %2957 = vmatprep.subr.mxu0 %v2599
        %2958 = vmatpush1.msra.mxu0 %v2598
        %2959 = vmatprep.subr.mxu0 %v2606
        %2960 = vmatpush1.msra.mxu0 %v2605
        %2961 = vmatprep.subr.mxu0 %v2613
        %2962 = vmatpush1.msra.mxu0 %v2612
        %2963 = vmatprep.subr.mxu0 %v2620
        %2964 = vmatpush1.msra.mxu0 %v2619
        %2965 = vmatprep.subr.mxu0 %v2627
        %2966 = vmatpush1.msra.mxu0 %v2626
        %2967 = vmatprep.subr.mxu0 %v2634
        %2968 = vmatpush1.msra.mxu0 %v2633
        %2969 = vmatprep.subr.mxu0 %v2641
        %2970 = vmatpush1.msra.mxu0 %v2640
        %2971 = vmatprep.subr.mxu0 %v2648
        %2972 = vmatpush1.msra.mxu0 %v2647
        %2973 = vmatprep.subr.mxu0 %v2655
        %2974 = vmatpush1.msra.mxu0 %v2654
        %2975 = vmatprep.mubr.f32.mxu0 %v1252
        %2976 = vmatmul.mubr.f32.gmra.mrb[0].mxu0 %v1251
        %v2977 = vpop.f32.mrb[0].mxu0
        %v2978 = vadd.f32 %v2907, %v2977
        %v2979 = vpop.f32.mrb[0].mxu0
        %v2980 = vadd.f32 %v2909, %v2979
        %2981 = vdwg.mxu0
        %2982 = vmatprep.subr.mxu0 %v1768
        %2983 = vmatpush1.msra.mxu0 %v1767
        %2984 = vmatprep.subr.mxu0 %v1775
        %2985 = vmatpush1.msra.mxu0 %v1774
        %2986 = vmatprep.subr.mxu0 %v1782
        %2987 = vmatpush1.msra.mxu0 %v1781
        %2988 = vmatprep.subr.mxu0 %v1789
        %2989 = vmatpush1.msra.mxu0 %v1788
        %2990 = vmatprep.subr.mxu0 %v1796
        %2991 = vmatpush1.msra.mxu0 %v1795
        %2992 = vmatprep.subr.mxu0 %v1803
        %2993 = vmatpush1.msra.mxu0 %v1802
        %2994 = vmatprep.subr.mxu0 %v1810
        %2995 = vmatpush1.msra.mxu0 %v1809
        %2996 = vmatprep.subr.mxu0 %v1817
        %2997 = vmatpush1.msra.mxu0 %v1816
        %2998 = vmatprep.subr.mxu0 %v1824
        %2999 = vmatpush1.msra.mxu0 %v1823
        %3000 = vmatprep.subr.mxu0 %v1831
        %3001 = vmatpush1.msra.mxu0 %v1830
        %3002 = vmatprep.subr.mxu0 %v1838
        %3003 = vmatpush1.msra.mxu0 %v1837
        %3004 = vmatprep.subr.mxu0 %v1845
        %3005 = vmatpush1.msra.mxu0 %v1844
        %3006 = vmatprep.subr.mxu0 %v1852
        %3007 = vmatpush1.msra.mxu0 %v1851
        %3008 = vmatprep.subr.mxu0 %v1859
        %3009 = vmatpush1.msra.mxu0 %v1858
        %3010 = vmatprep.subr.mxu0 %v1866
        %3011 = vmatpush1.msra.mxu0 %v1865
        %3012 = vmatprep.subr.mxu0 %v1873
        %3013 = vmatpush1.msra.mxu0 %v1872
        %3014 = vmatprep.subr.mxu0 %v1880
        %3015 = vmatpush1.msra.mxu0 %v1879
        %3016 = vmatprep.subr.mxu0 %v1887
        %3017 = vmatpush1.msra.mxu0 %v1886
        %3018 = vmatprep.subr.mxu0 %v1894
        %3019 = vmatpush1.msra.mxu0 %v1893
        %3020 = vmatprep.subr.mxu0 %v1901
        %3021 = vmatpush1.msra.mxu0 %v1900
        %3022 = vmatprep.subr.mxu0 %v1908
        %3023 = vmatpush1.msra.mxu0 %v1907
        %3024 = vmatprep.subr.mxu0 %v1915
        %3025 = vmatpush1.msra.mxu0 %v1914
        %3026 = vmatprep.subr.mxu0 %v1922
        %3027 = vmatpush1.msra.mxu0 %v1921
        %3028 = vmatprep.subr.mxu0 %v1929
        %3029 = vmatpush1.msra.mxu0 %v1928
        %3030 = vmatprep.subr.mxu0 %v1936
        %3031 = vmatpush1.msra.mxu0 %v1935
        %3032 = vmatprep.subr.mxu0 %v1943
        %3033 = vmatpush1.msra.mxu0 %v1942
        %3034 = vmatprep.subr.mxu0 %v1950
        %3035 = vmatpush1.msra.mxu0 %v1949
        %3036 = vmatprep.subr.mxu0 %v1957
        %3037 = vmatpush1.msra.mxu0 %v1956
        %3038 = vmatprep.subr.mxu0 %v1964
        %3039 = vmatpush1.msra.mxu0 %v1963
        %3040 = vmatprep.subr.mxu0 %v1971
        %3041 = vmatpush1.msra.mxu0 %v1970
        %3042 = vmatprep.subr.mxu0 %v1978
        %3043 = vmatpush1.msra.mxu0 %v1977
        %3044 = vmatprep.subr.mxu0 %v1985
        %3045 = vmatpush1.msra.mxu0 %v1984
        %3046 = vmatprep.mubr.f32.mxu0 %v1246
        %3047 = vmatmul.mubr.f32.gmra.mrb[0].mxu0 %v1245
        %v3048 = vpop.f32.mrb[0].mxu0
        %v3049 = vadd.f32 %v2674, %v3048
        %v3050 = vpop.f32.mrb[0].mxu0
        %v3051 = vadd.f32 %v2678, %v3050
        %3052 = vdwg.mxu0
        %3053 = vmatprep.subr.mxu0 %v1992
        %3054 = vmatpush1.msra.mxu0 %v1991
        %3055 = vmatprep.subr.mxu0 %v1999
        %3056 = vmatpush1.msra.mxu0 %v1998
        %3057 = vmatprep.subr.mxu0 %v2006
        %3058 = vmatpush1.msra.mxu0 %v2005
        %3059 = vmatprep.subr.mxu0 %v2013
        %3060 = vmatpush1.msra.mxu0 %v2012
        %3061 = vmatprep.subr.mxu0 %v2020
        %3062 = vmatpush1.msra.mxu0 %v2019
        %3063 = vmatprep.subr.mxu0 %v2027
        %3064 = vmatpush1.msra.mxu0 %v2026
        %3065 = vmatprep.subr.mxu0 %v2034
        %3066 = vmatpush1.msra.mxu0 %v2033
        %3067 = vmatprep.subr.mxu0 %v2041
        %3068 = vmatpush1.msra.mxu0 %v2040
        %3069 = vmatprep.subr.mxu0 %v2048
        %3070 = vmatpush1.msra.mxu0 %v2047
        %3071 = vmatprep.subr.mxu0 %v2055
        %3072 = vmatpush1.msra.mxu0 %v2054
        %3073 = vmatprep.subr.mxu0 %v2062
        %3074 = vmatpush1.msra.mxu0 %v2061
        %3075 = vmatprep.subr.mxu0 %v2069
        %3076 = vmatpush1.msra.mxu0 %v2068
        %3077 = vmatprep.subr.mxu0 %v2076
        %3078 = vmatpush1.msra.mxu0 %v2075
        %3079 = vmatprep.subr.mxu0 %v2083
        %3080 = vmatpush1.msra.mxu0 %v2082
        %3081 = vmatprep.subr.mxu0 %v2090
        %3082 = vmatpush1.msra.mxu0 %v2089
        %3083 = vmatprep.subr.mxu0 %v2097
        %3084 = vmatpush1.msra.mxu0 %v2096
        %3085 = vmatprep.subr.mxu0 %v2104
        %3086 = vmatpush1.msra.mxu0 %v2103
        %3087 = vmatprep.subr.mxu0 %v2111
        %3088 = vmatpush1.msra.mxu0 %v2110
        %3089 = vmatprep.subr.mxu0 %v2118
        %3090 = vmatpush1.msra.mxu0 %v2117
        %3091 = vmatprep.subr.mxu0 %v2125
        %3092 = vmatpush1.msra.mxu0 %v2124
        %3093 = vmatprep.subr.mxu0 %v2132
        %3094 = vmatpush1.msra.mxu0 %v2131
        %3095 = vmatprep.subr.mxu0 %v2139
        %3096 = vmatpush1.msra.mxu0 %v2138
        %3097 = vmatprep.subr.mxu0 %v2146
        %3098 = vmatpush1.msra.mxu0 %v2145
        %3099 = vmatprep.subr.mxu0 %v2153
        %3100 = vmatpush1.msra.mxu0 %v2152
        %3101 = vmatprep.subr.mxu0 %v2160
        %3102 = vmatpush1.msra.mxu0 %v2159
        %3103 = vmatprep.subr.mxu0 %v2167
        %3104 = vmatpush1.msra.mxu0 %v2166
        %3105 = vmatprep.subr.mxu0 %v2174
        %3106 = vmatpush1.msra.mxu0 %v2173
        %3107 = vmatprep.subr.mxu0 %v2181
        %3108 = vmatpush1.msra.mxu0 %v2180
        %3109 = vmatprep.subr.mxu0 %v2188
        %3110 = vmatpush1.msra.mxu0 %v2187
        %3111 = vmatprep.subr.mxu0 %v2195
        %3112 = vmatpush1.msra.mxu0 %v2194
        %3113 = vmatprep.subr.mxu0 %v2202
        %3114 = vmatpush1.msra.mxu0 %v2201
        %3115 = vmatprep.subr.mxu0 %v2209
        %3116 = vmatpush1.msra.mxu0 %v2208
        %3117 = vmatprep.mubr.f32.mxu0 %v1248
        %3118 = vmatmul.mubr.f32.gmra.mrb[0].mxu0 %v1247
        %v3119 = vpop.f32.mrb[0].mxu0
        %v3120 = vadd.f32 %v3049, %v3119
        %v3121 = vpop.f32.mrb[0].mxu0
        %v3122 = vadd.f32 %v3051, %v3121
        %3123 = vdwg.mxu0
        %3124 = vmatprep.subr.mxu0 %v2216
        %3125 = vmatpush1.msra.mxu0 %v2215
        %3126 = vmatprep.subr.mxu0 %v2223
        %3127 = vmatpush1.msra.mxu0 %v2222
        %3128 = vmatprep.subr.mxu0 %v2230
        %3129 = vmatpush1.msra.mxu0 %v2229
        %3130 = vmatprep.subr.mxu0 %v2237
        %3131 = vmatpush1.msra.mxu0 %v2236
        %3132 = vmatprep.subr.mxu0 %v2244
        %3133 = vmatpush1.msra.mxu0 %v2243
        %3134 = vmatprep.subr.mxu0 %v2251
        %3135 = vmatpush1.msra.mxu0 %v2250
        %3136 = vmatprep.subr.mxu0 %v2258
        %3137 = vmatpush1.msra.mxu0 %v2257
        %3138 = vmatprep.subr.mxu0 %v2265
        %3139 = vmatpush1.msra.mxu0 %v2264
        %3140 = vmatprep.subr.mxu0 %v2272
        %3141 = vmatpush1.msra.mxu0 %v2271
        %3142 = vmatprep.subr.mxu0 %v2279
        %3143 = vmatpush1.msra.mxu0 %v2278
        %3144 = vmatprep.subr.mxu0 %v2286
        %3145 = vmatpush1.msra.mxu0 %v2285
        %3146 = vmatprep.subr.mxu0 %v2293
        %3147 = vmatpush1.msra.mxu0 %v2292
        %3148 = vmatprep.subr.mxu0 %v2300
        %3149 = vmatpush1.msra.mxu0 %v2299
        %3150 = vmatprep.subr.mxu0 %v2307
        %3151 = vmatpush1.msra.mxu0 %v2306
        %3152 = vmatprep.subr.mxu0 %v2314
        %3153 = vmatpush1.msra.mxu0 %v2313
        %3154 = vmatprep.subr.mxu0 %v2321
        %3155 = vmatpush1.msra.mxu0 %v2320
        %3156 = vmatprep.subr.mxu0 %v2328
        %3157 = vmatpush1.msra.mxu0 %v2327
        %3158 = vmatprep.subr.mxu0 %v2335
        %3159 = vmatpush1.msra.mxu0 %v2334
        %3160 = vmatprep.subr.mxu0 %v2342
        %3161 = vmatpush1.msra.mxu0 %v2341
        %3162 = vmatprep.subr.mxu0 %v2349
        %3163 = vmatpush1.msra.mxu0 %v2348
        %3164 = vmatprep.subr.mxu0 %v2356
        %3165 = vmatpush1.msra.mxu0 %v2355
        %3166 = vmatprep.subr.mxu0 %v2363
        %3167 = vmatpush1.msra.mxu0 %v2362
        %3168 = vmatprep.subr.mxu0 %v2370
        %3169 = vmatpush1.msra.mxu0 %v2369
        %3170 = vmatprep.subr.mxu0 %v2377
        %3171 = vmatpush1.msra.mxu0 %v2376
        %3172 = vmatprep.subr.mxu0 %v2384
        %3173 = vmatpush1.msra.mxu0 %v2383
        %3174 = vmatprep.subr.mxu0 %v2391
        %3175 = vmatpush1.msra.mxu0 %v2390
        %3176 = vmatprep.subr.mxu0 %v2398
        %3177 = vmatpush1.msra.mxu0 %v2397
        %3178 = vmatprep.subr.mxu0 %v2405
        %3179 = vmatpush1.msra.mxu0 %v2404
        %3180 = vmatprep.subr.mxu0 %v2412
        %3181 = vmatpush1.msra.mxu0 %v2411
        %3182 = vmatprep.subr.mxu0 %v2419
        %3183 = vmatpush1.msra.mxu0 %v2418
        %3184 = vmatprep.subr.mxu0 %v2426
        %3185 = vmatpush1.msra.mxu0 %v2425
        %3186 = vmatprep.subr.mxu0 %v2433
        %3187 = vmatpush1.msra.mxu0 %v2432
        %3188 = vmatprep.mubr.f32.mxu0 %v1250
        %3189 = vmatmul.mubr.f32.gmra.mrb[0].mxu0 %v1249
        %v3190 = vpop.f32.mrb[0].mxu0
        %v3191 = vadd.f32 %v3120, %v3190
        %v3192 = vpop.f32.mrb[0].mxu0
        %v3193 = vadd.f32 %v3122, %v3192
        %3194 = vdwg.mxu0
        %3195 = vmatprep.subr.mxu0 %v2440
        %3196 = vmatpush1.msra.mxu0 %v2439
        %3197 = vmatprep.subr.mxu0 %v2447
        %3198 = vmatpush1.msra.mxu0 %v2446
        %3199 = vmatprep.subr.mxu0 %v2454
        %3200 = vmatpush1.msra.mxu0 %v2453
        %3201 = vmatprep.subr.mxu0 %v2461
        %3202 = vmatpush1.msra.mxu0 %v2460
        %3203 = vmatprep.subr.mxu0 %v2468
        %3204 = vmatpush1.msra.mxu0 %v2467
        %3205 = vmatprep.subr.mxu0 %v2475
        %3206 = vmatpush1.msra.mxu0 %v2474
        %3207 = vmatprep.subr.mxu0 %v2482
        %3208 = vmatpush1.msra.mxu0 %v2481
        %3209 = vmatprep.subr.mxu0 %v2489
        %3210 = vmatpush1.msra.mxu0 %v2488
        %3211 = vmatprep.subr.mxu0 %v2496
        %3212 = vmatpush1.msra.mxu0 %v2495
        %3213 = vmatprep.subr.mxu0 %v2503
        %3214 = vmatpush1.msra.mxu0 %v2502
        %3215 = vmatprep.subr.mxu0 %v2510
        %3216 = vmatpush1.msra.mxu0 %v2509
        %3217 = vmatprep.subr.mxu0 %v2517
        %3218 = vmatpush1.msra.mxu0 %v2516
        %3219 = vmatprep.subr.mxu0 %v2524
        %3220 = vmatpush1.msra.mxu0 %v2523
        %3221 = vmatprep.subr.mxu0 %v2531
        %3222 = vmatpush1.msra.mxu0 %v2530
        %3223 = vmatprep.subr.mxu0 %v2538
        %3224 = vmatpush1.msra.mxu0 %v2537
        %3225 = vmatprep.subr.mxu0 %v2545
        %3226 = vmatpush1.msra.mxu0 %v2544
        %3227 = vmatprep.subr.mxu0 %v2552
        %3228 = vmatpush1.msra.mxu0 %v2551
        %3229 = vmatprep.subr.mxu0 %v2559
        %3230 = vmatpush1.msra.mxu0 %v2558
        %3231 = vmatprep.subr.mxu0 %v2566
        %3232 = vmatpush1.msra.mxu0 %v2565
        %3233 = vmatprep.subr.mxu0 %v2573
        %3234 = vmatpush1.msra.mxu0 %v2572
        %3235 = vmatprep.subr.mxu0 %v2580
        %3236 = vmatpush1.msra.mxu0 %v2579
        %3237 = vmatprep.subr.mxu0 %v2587
        %3238 = vmatpush1.msra.mxu0 %v2586
        %3239 = vmatprep.subr.mxu0 %v2594
        %3240 = vmatpush1.msra.mxu0 %v2593
        %3241 = vmatprep.subr.mxu0 %v2601
        %3242 = vmatpush1.msra.mxu0 %v2600
        %3243 = vmatprep.subr.mxu0 %v2608
        %3244 = vmatpush1.msra.mxu0 %v2607
        %3245 = vmatprep.subr.mxu0 %v2615
        %3246 = vmatpush1.msra.mxu0 %v2614
        %3247 = vmatprep.subr.mxu0 %v2622
        %3248 = vmatpush1.msra.mxu0 %v2621
        %3249 = vmatprep.subr.mxu0 %v2629
        %3250 = vmatpush1.msra.mxu0 %v2628
        %3251 = vmatprep.subr.mxu0 %v2636
        %3252 = vmatpush1.msra.mxu0 %v2635
        %3253 = vmatprep.subr.mxu0 %v2643
        %3254 = vmatpush1.msra.mxu0 %v2642
        %3255 = vmatprep.subr.mxu0 %v2650
        %3256 = vmatpush1.msra.mxu0 %v2649
        %3257 = vmatprep.subr.mxu0 %v2657
        %3258 = vmatpush1.msra.mxu0 %v2656
        %3259 = vmatprep.mubr.f32.mxu0 %v1252
        %3260 = vmatmul.mubr.f32.gmra.mrb[0].mxu0 %v1251
        %v3261 = vpop.f32.mrb[0].mxu0
        %v3262 = vadd.f32 %v3191, %v3261
        %v3263 = vpop.f32.mrb[0].mxu0
        %v3264 = vadd.f32 %v3193, %v3263
        %3265 = vdwg.mxu0
        %3266 = vmatprep.subr.mxu0 %v1770
        %3267 = vmatpush1.msra.mxu0 %v1769
        %3268 = vmatprep.subr.mxu0 %v1777
        %3269 = vmatpush1.msra.mxu0 %v1776
        %3270 = vmatprep.subr.mxu0 %v1784
        %3271 = vmatpush1.msra.mxu0 %v1783
        %3272 = vmatprep.subr.mxu0 %v1791
        %3273 = vmatpush1.msra.mxu0 %v1790
        %3274 = vmatprep.subr.mxu0 %v1798
        %3275 = vmatpush1.msra.mxu0 %v1797
        %3276 = vmatprep.subr.mxu0 %v1805
        %3277 = vmatpush1.msra.mxu0 %v1804
        %3278 = vmatprep.subr.mxu0 %v1812
        %3279 = vmatpush1.msra.mxu0 %v1811
        %3280 = vmatprep.subr.mxu0 %v1819
        %3281 = vmatpush1.msra.mxu0 %v1818
        %3282 = vmatprep.subr.mxu0 %v1826
        %3283 = vmatpush1.msra.mxu0 %v1825
        %3284 = vmatprep.subr.mxu0 %v1833
        %3285 = vmatpush1.msra.mxu0 %v1832
        %3286 = vmatprep.subr.mxu0 %v1840
        %3287 = vmatpush1.msra.mxu0 %v1839
        %3288 = vmatprep.subr.mxu0 %v1847
        %3289 = vmatpush1.msra.mxu0 %v1846
        %3290 = vmatprep.subr.mxu0 %v1854
        %3291 = vmatpush1.msra.mxu0 %v1853
        %3292 = vmatprep.subr.mxu0 %v1861
        %3293 = vmatpush1.msra.mxu0 %v1860
        %3294 = vmatprep.subr.mxu0 %v1868
        %3295 = vmatpush1.msra.mxu0 %v1867
        %3296 = vmatprep.subr.mxu0 %v1875
        %3297 = vmatpush1.msra.mxu0 %v1874
        %3298 = vmatprep.subr.mxu0 %v1882
        %3299 = vmatpush1.msra.mxu0 %v1881
        %3300 = vmatprep.subr.mxu0 %v1889
        %3301 = vmatpush1.msra.mxu0 %v1888
        %3302 = vmatprep.subr.mxu0 %v1896
        %3303 = vmatpush1.msra.mxu0 %v1895
        %3304 = vmatprep.subr.mxu0 %v1903
        %3305 = vmatpush1.msra.mxu0 %v1902
        %3306 = vmatprep.subr.mxu0 %v1910
        %3307 = vmatpush1.msra.mxu0 %v1909
        %3308 = vmatprep.subr.mxu0 %v1917
        %3309 = vmatpush1.msra.mxu0 %v1916
        %3310 = vmatprep.subr.mxu0 %v1924
        %3311 = vmatpush1.msra.mxu0 %v1923
        %3312 = vmatprep.subr.mxu0 %v1931
        %3313 = vmatpush1.msra.mxu0 %v1930
        %3314 = vmatprep.subr.mxu0 %v1938
        %3315 = vmatpush1.msra.mxu0 %v1937
        %3316 = vmatprep.subr.mxu0 %v1945
        %3317 = vmatpush1.msra.mxu0 %v1944
        %3318 = vmatprep.subr.mxu0 %v1952
        %3319 = vmatpush1.msra.mxu0 %v1951
        %3320 = vmatprep.subr.mxu0 %v1959
        %3321 = vmatpush1.msra.mxu0 %v1958
        %3322 = vmatprep.subr.mxu0 %v1966
        %3323 = vmatpush1.msra.mxu0 %v1965
        %3324 = vmatprep.subr.mxu0 %v1973
        %3325 = vmatpush1.msra.mxu0 %v1972
        %3326 = vmatprep.subr.mxu0 %v1980
        %3327 = vmatpush1.msra.mxu0 %v1979
        %3328 = vmatprep.subr.mxu0 %v1987
        %3329 = vmatpush1.msra.mxu0 %v1986
        %3330 = vmatprep.mubr.f32.mxu0 %v1246
        %3331 = vmatmul.mubr.f32.gmra.mrb[0].mxu0 %v1245
        %v3332 = vpop.f32.mrb[0].mxu0
        %v3333 = vadd.f32 %v2682, %v3332
        %v3334 = vpop.f32.mrb[0].mxu0
        %v3335 = vadd.f32 %v2686, %v3334
        %3336 = vdwg.mxu0
        %3337 = vmatprep.subr.mxu0 %v1994
        %3338 = vmatpush1.msra.mxu0 %v1993
        %3339 = vmatprep.subr.mxu0 %v2001
        %3340 = vmatpush1.msra.mxu0 %v2000
        %3341 = vmatprep.subr.mxu0 %v2008
        %3342 = vmatpush1.msra.mxu0 %v2007
        %3343 = vmatprep.subr.mxu0 %v2015
        %3344 = vmatpush1.msra.mxu0 %v2014
        %3345 = vmatprep.subr.mxu0 %v2022
        %3346 = vmatpush1.msra.mxu0 %v2021
        %3347 = vmatprep.subr.mxu0 %v2029
        %3348 = vmatpush1.msra.mxu0 %v2028
        %3349 = vmatprep.subr.mxu0 %v2036
        %3350 = vmatpush1.msra.mxu0 %v2035
        %3351 = vmatprep.subr.mxu0 %v2043
        %3352 = vmatpush1.msra.mxu0 %v2042
        %3353 = vmatprep.subr.mxu0 %v2050
        %3354 = vmatpush1.msra.mxu0 %v2049
        %3355 = vmatprep.subr.mxu0 %v2057
        %3356 = vmatpush1.msra.mxu0 %v2056
        %3357 = vmatprep.subr.mxu0 %v2064
        %3358 = vmatpush1.msra.mxu0 %v2063
        %3359 = vmatprep.subr.mxu0 %v2071
        %3360 = vmatpush1.msra.mxu0 %v2070
        %3361 = vmatprep.subr.mxu0 %v2078
        %3362 = vmatpush1.msra.mxu0 %v2077
        %3363 = vmatprep.subr.mxu0 %v2085
        %3364 = vmatpush1.msra.mxu0 %v2084
        %3365 = vmatprep.subr.mxu0 %v2092
        %3366 = vmatpush1.msra.mxu0 %v2091
        %3367 = vmatprep.subr.mxu0 %v2099
        %3368 = vmatpush1.msra.mxu0 %v2098
        %3369 = vmatprep.subr.mxu0 %v2106
        %3370 = vmatpush1.msra.mxu0 %v2105
        %3371 = vmatprep.subr.mxu0 %v2113
        %3372 = vmatpush1.msra.mxu0 %v2112
        %3373 = vmatprep.subr.mxu0 %v2120
        %3374 = vmatpush1.msra.mxu0 %v2119
        %3375 = vmatprep.subr.mxu0 %v2127
        %3376 = vmatpush1.msra.mxu0 %v2126
        %3377 = vmatprep.subr.mxu0 %v2134
        %3378 = vmatpush1.msra.mxu0 %v2133
        %3379 = vmatprep.subr.mxu0 %v2141
        %3380 = vmatpush1.msra.mxu0 %v2140
        %3381 = vmatprep.subr.mxu0 %v2148
        %3382 = vmatpush1.msra.mxu0 %v2147
        %3383 = vmatprep.subr.mxu0 %v2155
        %3384 = vmatpush1.msra.mxu0 %v2154
        %3385 = vmatprep.subr.mxu0 %v2162
        %3386 = vmatpush1.msra.mxu0 %v2161
        %3387 = vmatprep.subr.mxu0 %v2169
        %3388 = vmatpush1.msra.mxu0 %v2168
        %3389 = vmatprep.subr.mxu0 %v2176
        %3390 = vmatpush1.msra.mxu0 %v2175
        %3391 = vmatprep.subr.mxu0 %v2183
        %3392 = vmatpush1.msra.mxu0 %v2182
        %3393 = vmatprep.subr.mxu0 %v2190
        %3394 = vmatpush1.msra.mxu0 %v2189
        %3395 = vmatprep.subr.mxu0 %v2197
        %3396 = vmatpush1.msra.mxu0 %v2196
        %3397 = vmatprep.subr.mxu0 %v2204
        %3398 = vmatpush1.msra.mxu0 %v2203
        %3399 = vmatprep.subr.mxu0 %v2211
        %3400 = vmatpush1.msra.mxu0 %v2210
        %3401 = vmatprep.mubr.f32.mxu0 %v1248
        %3402 = vmatmul.mubr.f32.gmra.mrb[0].mxu0 %v1247
        %v3403 = vpop.f32.mrb[0].mxu0
        %v3404 = vadd.f32 %v3333, %v3403
        %v3405 = vpop.f32.mrb[0].mxu0
        %v3406 = vadd.f32 %v3335, %v3405
        %3407 = vdwg.mxu0
        %3408 = vmatprep.subr.mxu0 %v2218
        %3409 = vmatpush1.msra.mxu0 %v2217
        %3410 = vmatprep.subr.mxu0 %v2225
        %3411 = vmatpush1.msra.mxu0 %v2224
        %3412 = vmatprep.subr.mxu0 %v2232
        %3413 = vmatpush1.msra.mxu0 %v2231
        %3414 = vmatprep.subr.mxu0 %v2239
        %3415 = vmatpush1.msra.mxu0 %v2238
        %3416 = vmatprep.subr.mxu0 %v2246
        %3417 = vmatpush1.msra.mxu0 %v2245
        %3418 = vmatprep.subr.mxu0 %v2253
        %3419 = vmatpush1.msra.mxu0 %v2252
        %3420 = vmatprep.subr.mxu0 %v2260
        %3421 = vmatpush1.msra.mxu0 %v2259
        %3422 = vmatprep.subr.mxu0 %v2267
        %3423 = vmatpush1.msra.mxu0 %v2266
        %3424 = vmatprep.subr.mxu0 %v2274
        %3425 = vmatpush1.msra.mxu0 %v2273
        %3426 = vmatprep.subr.mxu0 %v2281
        %3427 = vmatpush1.msra.mxu0 %v2280
        %3428 = vmatprep.subr.mxu0 %v2288
        %3429 = vmatpush1.msra.mxu0 %v2287
        %3430 = vmatprep.subr.mxu0 %v2295
        %3431 = vmatpush1.msra.mxu0 %v2294
        %3432 = vmatprep.subr.mxu0 %v2302
        %3433 = vmatpush1.msra.mxu0 %v2301
        %3434 = vmatprep.subr.mxu0 %v2309
        %3435 = vmatpush1.msra.mxu0 %v2308
        %3436 = vmatprep.subr.mxu0 %v2316
        %3437 = vmatpush1.msra.mxu0 %v2315
        %3438 = vmatprep.subr.mxu0 %v2323
        %3439 = vmatpush1.msra.mxu0 %v2322
        %3440 = vmatprep.subr.mxu0 %v2330
        %3441 = vmatpush1.msra.mxu0 %v2329
        %3442 = vmatprep.subr.mxu0 %v2337
        %3443 = vmatpush1.msra.mxu0 %v2336
        %3444 = vmatprep.subr.mxu0 %v2344
        %3445 = vmatpush1.msra.mxu0 %v2343
        %3446 = vmatprep.subr.mxu0 %v2351
        %3447 = vmatpush1.msra.mxu0 %v2350
        %3448 = vmatprep.subr.mxu0 %v2358
        %3449 = vmatpush1.msra.mxu0 %v2357
        %3450 = vmatprep.subr.mxu0 %v2365
        %3451 = vmatpush1.msra.mxu0 %v2364
        %3452 = vmatprep.subr.mxu0 %v2372
        %3453 = vmatpush1.msra.mxu0 %v2371
        %3454 = vmatprep.subr.mxu0 %v2379
        %3455 = vmatpush1.msra.mxu0 %v2378
        %3456 = vmatprep.subr.mxu0 %v2386
        %3457 = vmatpush1.msra.mxu0 %v2385
        %3458 = vmatprep.subr.mxu0 %v2393
        %3459 = vmatpush1.msra.mxu0 %v2392
        %3460 = vmatprep.subr.mxu0 %v2400
        %3461 = vmatpush1.msra.mxu0 %v2399
        %3462 = vmatprep.subr.mxu0 %v2407
        %3463 = vmatpush1.msra.mxu0 %v2406
        %3464 = vmatprep.subr.mxu0 %v2414
        %3465 = vmatpush1.msra.mxu0 %v2413
        %3466 = vmatprep.subr.mxu0 %v2421
        %3467 = vmatpush1.msra.mxu0 %v2420
        %3468 = vmatprep.subr.mxu0 %v2428
        %3469 = vmatpush1.msra.mxu0 %v2427
        %3470 = vmatprep.subr.mxu0 %v2435
        %3471 = vmatpush1.msra.mxu0 %v2434
        %3472 = vmatprep.mubr.f32.mxu0 %v1250
        %3473 = vmatmul.mubr.f32.gmra.mrb[0].mxu0 %v1249
        %v3474 = vpop.f32.mrb[0].mxu0
        %v3475 = vadd.f32 %v3404, %v3474
        %v3476 = vpop.f32.mrb[0].mxu0
        %v3477 = vadd.f32 %v3406, %v3476
        %3478 = vdwg.mxu0
        %3479 = vmatprep.subr.mxu0 %v2442
        %3480 = vmatpush1.msra.mxu0 %v2441
        %3481 = vmatprep.subr.mxu0 %v2449
        %3482 = vmatpush1.msra.mxu0 %v2448
        %3483 = vmatprep.subr.mxu0 %v2456
        %3484 = vmatpush1.msra.mxu0 %v2455
        %3485 = vmatprep.subr.mxu0 %v2463
        %3486 = vmatpush1.msra.mxu0 %v2462
        %3487 = vmatprep.subr.mxu0 %v2470
        %3488 = vmatpush1.msra.mxu0 %v2469
        %3489 = vmatprep.subr.mxu0 %v2477
        %3490 = vmatpush1.msra.mxu0 %v2476
        %3491 = vmatprep.subr.mxu0 %v2484
        %3492 = vmatpush1.msra.mxu0 %v2483
        %3493 = vmatprep.subr.mxu0 %v2491
        %3494 = vmatpush1.msra.mxu0 %v2490
        %3495 = vmatprep.subr.mxu0 %v2498
        %3496 = vmatpush1.msra.mxu0 %v2497
        %3497 = vmatprep.subr.mxu0 %v2505
        %3498 = vmatpush1.msra.mxu0 %v2504
        %3499 = vmatprep.subr.mxu0 %v2512
        %3500 = vmatpush1.msra.mxu0 %v2511
        %3501 = vmatprep.subr.mxu0 %v2519
        %3502 = vmatpush1.msra.mxu0 %v2518
        %3503 = vmatprep.subr.mxu0 %v2526
        %3504 = vmatpush1.msra.mxu0 %v2525
        %3505 = vmatprep.subr.mxu0 %v2533
        %3506 = vmatpush1.msra.mxu0 %v2532
        %3507 = vmatprep.subr.mxu0 %v2540
        %3508 = vmatpush1.msra.mxu0 %v2539
        %3509 = vmatprep.subr.mxu0 %v2547
        %3510 = vmatpush1.msra.mxu0 %v2546
        %3511 = vmatprep.subr.mxu0 %v2554
        %3512 = vmatpush1.msra.mxu0 %v2553
        %3513 = vmatprep.subr.mxu0 %v2561
        %3514 = vmatpush1.msra.mxu0 %v2560
        %3515 = vmatprep.subr.mxu0 %v2568
        %3516 = vmatpush1.msra.mxu0 %v2567
        %3517 = vmatprep.subr.mxu0 %v2575
        %3518 = vmatpush1.msra.mxu0 %v2574
        %3519 = vmatprep.subr.mxu0 %v2582
        %3520 = vmatpush1.msra.mxu0 %v2581
        %3521 = vmatprep.subr.mxu0 %v2589
        %3522 = vmatpush1.msra.mxu0 %v2588
        %3523 = vmatprep.subr.mxu0 %v2596
        %3524 = vmatpush1.msra.mxu0 %v2595
        %3525 = vmatprep.subr.mxu0 %v2603
        %3526 = vmatpush1.msra.mxu0 %v2602
        %3527 = vmatprep.subr.mxu0 %v2610
        %3528 = vmatpush1.msra.mxu0 %v2609
        %3529 = vmatprep.subr.mxu0 %v2617
        %3530 = vmatpush1.msra.mxu0 %v2616
        %3531 = vmatprep.subr.mxu0 %v2624
        %3532 = vmatpush1.msra.mxu0 %v2623
        %3533 = vmatprep.subr.mxu0 %v2631
        %3534 = vmatpush1.msra.mxu0 %v2630
        %3535 = vmatprep.subr.mxu0 %v2638
        %3536 = vmatpush1.msra.mxu0 %v2637
        %3537 = vmatprep.subr.mxu0 %v2645
        %3538 = vmatpush1.msra.mxu0 %v2644
        %3539 = vmatprep.subr.mxu0 %v2652
        %3540 = vmatpush1.msra.mxu0 %v2651
        %3541 = vmatprep.subr.mxu0 %v2659
        %3542 = vmatpush1.msra.mxu0 %v2658
        %3543 = vmatprep.mubr.f32.mxu0 %v1252
        %3544 = vmatmul.mubr.f32.gmra.mrb[0].mxu0 %v1251
        %v3545 = vpop.f32.mrb[0].mxu0
        %v3546 = vadd.f32 %v3475, %v3545
        %v3547 = vpop.f32.mrb[0].mxu0
        %v3548 = vadd.f32 %v3477, %v3547
        %3549 = vdwg.mxu0
        %3550 = vmatprep.subr.mxu0 0.0
        %3551 = vmatpush1.msra.mxu0 %v1771
        %3552 = vmatprep.subr.mxu0 0.0
        %3553 = vmatpush1.msra.mxu0 %v1778
        %3554 = vmatprep.subr.mxu0 0.0
        %3555 = vmatpush1.msra.mxu0 %v1785
        %3556 = vmatprep.subr.mxu0 0.0
        %3557 = vmatpush1.msra.mxu0 %v1792
        %3558 = vmatprep.subr.mxu0 0.0
        %3559 = vmatpush1.msra.mxu0 %v1799
        %3560 = vmatprep.subr.mxu0 0.0
        %3561 = vmatpush1.msra.mxu0 %v1806
        %3562 = vmatprep.subr.mxu0 0.0
        %3563 = vmatpush1.msra.mxu0 %v1813
        %3564 = vmatprep.subr.mxu0 0.0
        %3565 = vmatpush1.msra.mxu0 %v1820
        %3566 = vmatprep.subr.mxu0 0.0
        %3567 = vmatpush1.msra.mxu0 %v1827
        %3568 = vmatprep.subr.mxu0 0.0
        %3569 = vmatpush1.msra.mxu0 %v1834
        %3570 = vmatprep.subr.mxu0 0.0
        %3571 = vmatpush1.msra.mxu0 %v1841
        %3572 = vmatprep.subr.mxu0 0.0
        %3573 = vmatpush1.msra.mxu0 %v1848
        %3574 = vmatprep.subr.mxu0 0.0
        %3575 = vmatpush1.msra.mxu0 %v1855
        %3576 = vmatprep.subr.mxu0 0.0
        %3577 = vmatpush1.msra.mxu0 %v1862
        %3578 = vmatprep.subr.mxu0 0.0
        %3579 = vmatpush1.msra.mxu0 %v1869
        %3580 = vmatprep.subr.mxu0 0.0
        %3581 = vmatpush1.msra.mxu0 %v1876
        %3582 = vmatprep.subr.mxu0 0.0
        %3583 = vmatpush1.msra.mxu0 %v1883
        %3584 = vmatprep.subr.mxu0 0.0
        %3585 = vmatpush1.msra.mxu0 %v1890
        %3586 = vmatprep.subr.mxu0 0.0
        %3587 = vmatpush1.msra.mxu0 %v1897
        %3588 = vmatprep.subr.mxu0 0.0
        %3589 = vmatpush1.msra.mxu0 %v1904
        %3590 = vmatprep.subr.mxu0 0.0
        %3591 = vmatpush1.msra.mxu0 %v1911
        %3592 = vmatprep.subr.mxu0 0.0
        %3593 = vmatpush1.msra.mxu0 %v1918
        %3594 = vmatprep.subr.mxu0 0.0
        %3595 = vmatpush1.msra.mxu0 %v1925
        %3596 = vmatprep.subr.mxu0 0.0
        %3597 = vmatpush1.msra.mxu0 %v1932
        %3598 = vmatprep.subr.mxu0 0.0
        %3599 = vmatpush1.msra.mxu0 %v1939
        %3600 = vmatprep.subr.mxu0 0.0
        %3601 = vmatpush1.msra.mxu0 %v1946
        %3602 = vmatprep.subr.mxu0 0.0
        %3603 = vmatpush1.msra.mxu0 %v1953
        %3604 = vmatprep.subr.mxu0 0.0
        %3605 = vmatpush1.msra.mxu0 %v1960
        %3606 = vmatprep.subr.mxu0 0.0
        %3607 = vmatpush1.msra.mxu0 %v1967
        %3608 = vmatprep.subr.mxu0 0.0
        %3609 = vmatpush1.msra.mxu0 %v1974
        %3610 = vmatprep.subr.mxu0 0.0
        %3611 = vmatpush1.msra.mxu0 %v1981
        %3612 = vmatprep.subr.mxu0 0.0
        %3613 = vmatpush1.msra.mxu0 %v1988
        %3614 = vmatprep.mubr.f32.mxu0 %v1246
        %3615 = vmatmul.mubr.f32.gmra.mrb[0].mxu0 %v1245
        %v3616 = vpop.f32.mrb[0].mxu0
        %v3617 = vadd.f32 %v2690, %v3616
        %v3618 = vpop.f32.mrb[0].mxu0
        %3619 = vdwg.mxu0
        %3620 = vmatprep.subr.mxu0 0.0
        %3621 = vmatpush1.msra.mxu0 %v1995
        %3622 = vmatprep.subr.mxu0 0.0
        %3623 = vmatpush1.msra.mxu0 %v2002
        %3624 = vmatprep.subr.mxu0 0.0
        %3625 = vmatpush1.msra.mxu0 %v2009
        %3626 = vmatprep.subr.mxu0 0.0
        %3627 = vmatpush1.msra.mxu0 %v2016
        %3628 = vmatprep.subr.mxu0 0.0
        %3629 = vmatpush1.msra.mxu0 %v2023
        %3630 = vmatprep.subr.mxu0 0.0
        %3631 = vmatpush1.msra.mxu0 %v2030
        %3632 = vmatprep.subr.mxu0 0.0
        %3633 = vmatpush1.msra.mxu0 %v2037
        %3634 = vmatprep.subr.mxu0 0.0
        %3635 = vmatpush1.msra.mxu0 %v2044
        %3636 = vmatprep.subr.mxu0 0.0
        %3637 = vmatpush1.msra.mxu0 %v2051
        %3638 = vmatprep.subr.mxu0 0.0
        %3639 = vmatpush1.msra.mxu0 %v2058
        %3640 = vmatprep.subr.mxu0 0.0
        %3641 = vmatpush1.msra.mxu0 %v2065
        %3642 = vmatprep.subr.mxu0 0.0
        %3643 = vmatpush1.msra.mxu0 %v2072
        %3644 = vmatprep.subr.mxu0 0.0
        %3645 = vmatpush1.msra.mxu0 %v2079
        %3646 = vmatprep.subr.mxu0 0.0
        %3647 = vmatpush1.msra.mxu0 %v2086
        %3648 = vmatprep.subr.mxu0 0.0
        %3649 = vmatpush1.msra.mxu0 %v2093
        %3650 = vmatprep.subr.mxu0 0.0
        %3651 = vmatpush1.msra.mxu0 %v2100
        %3652 = vmatprep.subr.mxu0 0.0
        %3653 = vmatpush1.msra.mxu0 %v2107
        %3654 = vmatprep.subr.mxu0 0.0
        %3655 = vmatpush1.msra.mxu0 %v2114
        %3656 = vmatprep.subr.mxu0 0.0
        %3657 = vmatpush1.msra.mxu0 %v2121
        %3658 = vmatprep.subr.mxu0 0.0
        %3659 = vmatpush1.msra.mxu0 %v2128
        %3660 = vmatprep.subr.mxu0 0.0
        %3661 = vmatpush1.msra.mxu0 %v2135
        %3662 = vmatprep.subr.mxu0 0.0
        %3663 = vmatpush1.msra.mxu0 %v2142
        %3664 = vmatprep.subr.mxu0 0.0
        %3665 = vmatpush1.msra.mxu0 %v2149
        %3666 = vmatprep.subr.mxu0 0.0
        %3667 = vmatpush1.msra.mxu0 %v2156
        %3668 = vmatprep.subr.mxu0 0.0
        %3669 = vmatpush1.msra.mxu0 %v2163
        %3670 = vmatprep.subr.mxu0 0.0
        %3671 = vmatpush1.msra.mxu0 %v2170
        %3672 = vmatprep.subr.mxu0 0.0
        %3673 = vmatpush1.msra.mxu0 %v2177
        %3674 = vmatprep.subr.mxu0 0.0
        %3675 = vmatpush1.msra.mxu0 %v2184
        %3676 = vmatprep.subr.mxu0 0.0
        %3677 = vmatpush1.msra.mxu0 %v2191
        %3678 = vmatprep.subr.mxu0 0.0
        %3679 = vmatpush1.msra.mxu0 %v2198
        %3680 = vmatprep.subr.mxu0 0.0
        %3681 = vmatpush1.msra.mxu0 %v2205
        %3682 = vmatprep.subr.mxu0 0.0
        %3683 = vmatpush1.msra.mxu0 %v2212
        %3684 = vmatprep.mubr.f32.mxu0 %v1248
        %3685 = vmatmul.mubr.f32.gmra.mrb[0].mxu0 %v1247
        %v3686 = vpop.f32.mrb[0].mxu0
        %v3687 = vadd.f32 %v3617, %v3686
        %v3688 = vpop.f32.mrb[0].mxu0
        %3689 = vdwg.mxu0
        %3690 = vmatprep.subr.mxu0 0.0
        %3691 = vmatpush1.msra.mxu0 %v2219
        %3692 = vmatprep.subr.mxu0 0.0
        %3693 = vmatpush1.msra.mxu0 %v2226
        %3694 = vmatprep.subr.mxu0 0.0
        %3695 = vmatpush1.msra.mxu0 %v2233
        %3696 = vmatprep.subr.mxu0 0.0
        %3697 = vmatpush1.msra.mxu0 %v2240
        %3698 = vmatprep.subr.mxu0 0.0
        %3699 = vmatpush1.msra.mxu0 %v2247
        %3700 = vmatprep.subr.mxu0 0.0
        %3701 = vmatpush1.msra.mxu0 %v2254
        %3702 = vmatprep.subr.mxu0 0.0
        %3703 = vmatpush1.msra.mxu0 %v2261
        %3704 = vmatprep.subr.mxu0 0.0
        %3705 = vmatpush1.msra.mxu0 %v2268
        %3706 = vmatprep.subr.mxu0 0.0
        %3707 = vmatpush1.msra.mxu0 %v2275
        %3708 = vmatprep.subr.mxu0 0.0
        %3709 = vmatpush1.msra.mxu0 %v2282
        %3710 = vmatprep.subr.mxu0 0.0
        %3711 = vmatpush1.msra.mxu0 %v2289
        %3712 = vmatprep.subr.mxu0 0.0
        %3713 = vmatpush1.msra.mxu0 %v2296
        %3714 = vmatprep.subr.mxu0 0.0
        %3715 = vmatpush1.msra.mxu0 %v2303
        %3716 = vmatprep.subr.mxu0 0.0
        %3717 = vmatpush1.msra.mxu0 %v2310
        %3718 = vmatprep.subr.mxu0 0.0
        %3719 = vmatpush1.msra.mxu0 %v2317
        %3720 = vmatprep.subr.mxu0 0.0
        %3721 = vmatpush1.msra.mxu0 %v2324
        %3722 = vmatprep.subr.mxu0 0.0
        %3723 = vmatpush1.msra.mxu0 %v2331
        %3724 = vmatprep.subr.mxu0 0.0
        %3725 = vmatpush1.msra.mxu0 %v2338
        %3726 = vmatprep.subr.mxu0 0.0
        %3727 = vmatpush1.msra.mxu0 %v2345
        %3728 = vmatprep.subr.mxu0 0.0
        %3729 = vmatpush1.msra.mxu0 %v2352
        %3730 = vmatprep.subr.mxu0 0.0
        %3731 = vmatpush1.msra.mxu0 %v2359
        %3732 = vmatprep.subr.mxu0 0.0
        %3733 = vmatpush1.msra.mxu0 %v2366
        %3734 = vmatprep.subr.mxu0 0.0
        %3735 = vmatpush1.msra.mxu0 %v2373
        %3736 = vmatprep.subr.mxu0 0.0
        %3737 = vmatpush1.msra.mxu0 %v2380
        %3738 = vmatprep.subr.mxu0 0.0
        %3739 = vmatpush1.msra.mxu0 %v2387
        %3740 = vmatprep.subr.mxu0 0.0
        %3741 = vmatpush1.msra.mxu0 %v2394
        %3742 = vmatprep.subr.mxu0 0.0
        %3743 = vmatpush1.msra.mxu0 %v2401
        %3744 = vmatprep.subr.mxu0 0.0
        %3745 = vmatpush1.msra.mxu0 %v2408
        %3746 = vmatprep.subr.mxu0 0.0
        %3747 = vmatpush1.msra.mxu0 %v2415
        %3748 = vmatprep.subr.mxu0 0.0
        %3749 = vmatpush1.msra.mxu0 %v2422
        %3750 = vmatprep.subr.mxu0 0.0
        %3751 = vmatpush1.msra.mxu0 %v2429
        %3752 = vmatprep.subr.mxu0 0.0
        %3753 = vmatpush1.msra.mxu0 %v2436
        %3754 = vmatprep.mubr.f32.mxu0 %v1250
        %3755 = vmatmul.mubr.f32.gmra.mrb[0].mxu0 %v1249
        %v3756 = vpop.f32.mrb[0].mxu0
        %v3757 = vadd.f32 %v3687, %v3756
        %v3758 = vpop.f32.mrb[0].mxu0
        %3759 = vdwg.mxu0
        %3760 = vmatprep.subr.mxu0 0.0
        %3761 = vmatpush1.msra.mxu0 %v2443
        %3762 = vmatprep.subr.mxu0 0.0
        %3763 = vmatpush1.msra.mxu0 %v2450
        %3764 = vmatprep.subr.mxu0 0.0
        %3765 = vmatpush1.msra.mxu0 %v2457
        %3766 = vmatprep.subr.mxu0 0.0
        %3767 = vmatpush1.msra.mxu0 %v2464
        %3768 = vmatprep.subr.mxu0 0.0
        %3769 = vmatpush1.msra.mxu0 %v2471
        %3770 = vmatprep.subr.mxu0 0.0
        %3771 = vmatpush1.msra.mxu0 %v2478
        %3772 = vmatprep.subr.mxu0 0.0
        %3773 = vmatpush1.msra.mxu0 %v2485
        %3774 = vmatprep.subr.mxu0 0.0
        %3775 = vmatpush1.msra.mxu0 %v2492
        %3776 = vmatprep.subr.mxu0 0.0
        %3777 = vmatpush1.msra.mxu0 %v2499
        %3778 = vmatprep.subr.mxu0 0.0
        %3779 = vmatpush1.msra.mxu0 %v2506
        %3780 = vmatprep.subr.mxu0 0.0
        %3781 = vmatpush1.msra.mxu0 %v2513
        %3782 = vmatprep.subr.mxu0 0.0
        %3783 = vmatpush1.msra.mxu0 %v2520
        %3784 = vmatprep.subr.mxu0 0.0
        %3785 = vmatpush1.msra.mxu0 %v2527
        %3786 = vmatprep.subr.mxu0 0.0
        %3787 = vmatpush1.msra.mxu0 %v2534
        %3788 = vmatprep.subr.mxu0 0.0
        %3789 = vmatpush1.msra.mxu0 %v2541
        %3790 = vmatprep.subr.mxu0 0.0
        %3791 = vmatpush1.msra.mxu0 %v2548
        %3792 = vmatprep.subr.mxu0 0.0
        %3793 = vmatpush1.msra.mxu0 %v2555
        %3794 = vmatprep.subr.mxu0 0.0
        %3795 = vmatpush1.msra.mxu0 %v2562
        %3796 = vmatprep.subr.mxu0 0.0
        %3797 = vmatpush1.msra.mxu0 %v2569
        %3798 = vmatprep.subr.mxu0 0.0
        %3799 = vmatpush1.msra.mxu0 %v2576
        %3800 = vmatprep.subr.mxu0 0.0
        %3801 = vmatpush1.msra.mxu0 %v2583
        %3802 = vmatprep.subr.mxu0 0.0
        %3803 = vmatpush1.msra.mxu0 %v2590
        %3804 = vmatprep.subr.mxu0 0.0
        %3805 = vmatpush1.msra.mxu0 %v2597
        %3806 = vmatprep.subr.mxu0 0.0
        %3807 = vmatpush1.msra.mxu0 %v2604
        %3808 = vmatprep.subr.mxu0 0.0
        %3809 = vmatpush1.msra.mxu0 %v2611
        %3810 = vmatprep.subr.mxu0 0.0
        %3811 = vmatpush1.msra.mxu0 %v2618
        %3812 = vmatprep.subr.mxu0 0.0
        %3813 = vmatpush1.msra.mxu0 %v2625
        %3814 = vmatprep.subr.mxu0 0.0
        %3815 = vmatpush1.msra.mxu0 %v2632
        %3816 = vmatprep.subr.mxu0 0.0
        %3817 = vmatpush1.msra.mxu0 %v2639
        %3818 = vmatprep.subr.mxu0 0.0
        %3819 = vmatpush1.msra.mxu0 %v2646
        %3820 = vmatprep.subr.mxu0 0.0
        %3821 = vmatpush1.msra.mxu0 %v2653
        %3822 = vmatprep.subr.mxu0 0.0
        %3823 = vmatpush1.msra.mxu0 %v2660
        %3824 = vmatprep.mubr.f32.mxu0 %v1252
        %3825 = vmatmul.mubr.f32.gmra.mrb[0].mxu0 %v1251
        %v3826 = vpop.f32.mrb[0].mxu0
        %v3827 = vadd.f32 %v3757, %v3826
        %v3828 = vpop.f32.mrb[0].mxu0
        %3829 = vdwg.mxu0
        %v3830 = vld [vmem:[%s462] sm:$0xff]
        %v3831 = vld [vmem:[%s471] sm:$0xff]
        %v3832 = vsel %vm953, %v2978, 0.0
        %v3833 = vrot.slane %v3832, 4
        %v3834 = vadd.f32 %v3832, %v3833
        %v3835 = vrot.slane %v3834, 2
        %v3836 = vadd.f32 %v3834, %v3835
        %v3837 = vrot.slane %v3836, 1
        %v3838 = vadd.f32 %v3836, %v3837
        %v3839 = vsel %vm953, %v2980, 0.0
        %v3840 = vrot.slane %v3839, 4
        %v3841 = vadd.f32 %v3839, %v3840
        %v3842 = vrot.slane %v3841, 2
        %v3843 = vadd.f32 %v3841, %v3842
        %v3844 = vrot.slane %v3843, 1
        %v3845 = vadd.f32 %v3843, %v3844
        %v3846 = vsel %vm953, %v3262, 0.0
        %v3847 = vrot.slane %v3846, 4
        %v3848 = vadd.f32 %v3846, %v3847
        %v3849 = vrot.slane %v3848, 2
        %v3850 = vadd.f32 %v3848, %v3849
        %v3851 = vrot.slane %v3850, 1
        %v3852 = vadd.f32 %v3850, %v3851
        %v3853 = vsel %vm953, %v3264, 0.0
        %v3854 = vrot.slane %v3853, 4
        %v3855 = vadd.f32 %v3853, %v3854
        %v3856 = vrot.slane %v3855, 2
        %v3857 = vadd.f32 %v3855, %v3856
        %v3858 = vrot.slane %v3857, 1
        %v3859 = vadd.f32 %v3857, %v3858
        %v3860 = vsel %vm953, %v3546, 0.0
        %v3861 = vrot.slane %v3860, 4
        %v3862 = vadd.f32 %v3860, %v3861
        %v3863 = vrot.slane %v3862, 2
        %v3864 = vadd.f32 %v3862, %v3863
        %v3865 = vrot.slane %v3864, 1
        %v3866 = vadd.f32 %v3864, %v3865
        %v3867 = vsel %vm953, %v3548, 0.0
        %v3868 = vrot.slane %v3867, 4
        %v3869 = vadd.f32 %v3867, %v3868
        %v3870 = vrot.slane %v3869, 2
        %v3871 = vadd.f32 %v3869, %v3870
        %v3872 = vrot.slane %v3871, 1
        %v3873 = vadd.f32 %v3871, %v3872
        %v3874 = vsel %vm953, %v3827, 0.0
        %v3875 = vrot.slane %v3874, 4
        %v3876 = vadd.f32 %v3874, %v3875
        %v3877 = vrot.slane %v3876, 2
        %v3878 = vadd.f32 %v3876, %v3877
        %v3879 = vrot.slane %v3878, 1
        %v3880 = vadd.f32 %v3878, %v3879
        %v3881 = vmul.f32 %v3838, %v1010
        %v3882 = vmul.f32 %v3845, %v1010
        %v3883 = vmul.f32 %v3852, %v1010
        %v3884 = vmul.f32 %v3859, %v1010
        %v3885 = vmul.f32 %v3866, %v1010
        %v3886 = vmul.f32 %v3873, %v1010
        %v3887 = vmul.f32 %v3880, %v1010
        %v3888 = vmul.f32 %v2978, %v2978
        %v3889 = vmul.f32 %v2980, %v2980
        %v3890 = vmul.f32 %v3262, %v3262
        %v3891 = vmul.f32 %v3264, %v3264
        %v3892 = vmul.f32 %v3546, %v3546
        %v3893 = vmul.f32 %v3548, %v3548
        %v3894 = vmul.f32 %v3827, %v3827
        %v3895 = vsel %vm953, %v3888, 0.0
        %v3896 = vrot.slane %v3895, 4
        %v3897 = vadd.f32 %v3895, %v3896
        %v3898 = vrot.slane %v3897, 2
        %v3899 = vadd.f32 %v3897, %v3898
        %v3900 = vrot.slane %v3899, 1
        %v3901 = vadd.f32 %v3899, %v3900
        %v3902 = vsel %vm953, %v3889, 0.0
        %v3903 = vrot.slane %v3902, 4
        %v3904 = vadd.f32 %v3902, %v3903
        %v3905 = vrot.slane %v3904, 2
        %v3906 = vadd.f32 %v3904, %v3905
        %v3907 = vrot.slane %v3906, 1
        %v3908 = vadd.f32 %v3906, %v3907
        %v3909 = vsel %vm953, %v3890, 0.0
        %v3910 = vrot.slane %v3909, 4
        %v3911 = vadd.f32 %v3909, %v3910
        %v3912 = vrot.slane %v3911, 2
        %v3913 = vadd.f32 %v3911, %v3912
        %v3914 = vrot.slane %v3913, 1
        %v3915 = vadd.f32 %v3913, %v3914
        %v3916 = vsel %vm953, %v3891, 0.0
        %v3917 = vrot.slane %v3916, 4
        %v3918 = vadd.f32 %v3916, %v3917
        %v3919 = vrot.slane %v3918, 2
        %v3920 = vadd.f32 %v3918, %v3919
        %v3921 = vrot.slane %v3920, 1
        %v3922 = vadd.f32 %v3920, %v3921
        %v3923 = vsel %vm953, %v3892, 0.0
        %v3924 = vrot.slane %v3923, 4
        %v3925 = vadd.f32 %v3923, %v3924
        %v3926 = vrot.slane %v3925, 2
        %v3927 = vadd.f32 %v3925, %v3926
        %v3928 = vrot.slane %v3927, 1
        %v3929 = vadd.f32 %v3927, %v3928
        %v3930 = vsel %vm953, %v3893, 0.0
        %v3931 = vrot.slane %v3930, 4
        %v3932 = vadd.f32 %v3930, %v3931
        %v3933 = vrot.slane %v3932, 2
        %v3934 = vadd.f32 %v3932, %v3933
        %v3935 = vrot.slane %v3934, 1
        %v3936 = vadd.f32 %v3934, %v3935
        %v3937 = vsel %vm953, %v3894, 0.0
        %v3938 = vrot.slane %v3937, 4
        %v3939 = vadd.f32 %v3937, %v3938
        %v3940 = vrot.slane %v3939, 2
        %v3941 = vadd.f32 %v3939, %v3940
        %v3942 = vrot.slane %v3941, 1
        %v3943 = vadd.f32 %v3941, %v3942
        %v3944 = vmul.f32 %v3901, %v1010
        %v3945 = vmul.f32 %v3908, %v1010
        %v3946 = vmul.f32 %v3915, %v1010
        %v3947 = vmul.f32 %v3922, %v1010
        %v3948 = vmul.f32 %v3929, %v1010
        %v3949 = vmul.f32 %v3936, %v1010
        %v3950 = vmul.f32 %v3943, %v1010
        %v3951 = vmul.f32 %v3881, %v3881
        %v3952 = vmul.f32 %v3882, %v3882
        %v3953 = vmul.f32 %v3883, %v3883
        %v3954 = vmul.f32 %v3884, %v3884
        %v3955 = vmul.f32 %v3885, %v3885
        %v3956 = vmul.f32 %v3886, %v3886
        %v3957 = vmul.f32 %v3887, %v3887
        %v3958 = vsub.f32 %v3944, %v3951
        %v3959 = vsub.f32 %v3945, %v3952
        %v3960 = vsub.f32 %v3946, %v3953
        %v3961 = vsub.f32 %v3947, %v3954
        %v3962 = vsub.f32 %v3948, %v3955
        %v3963 = vsub.f32 %v3949, %v3956
        %v3964 = vsub.f32 %v3950, %v3957
        %v3965 = vmax.f32 %v3958, 0.0
        %v3966 = vmax.f32 %v3959, 0.0
        %v3967 = vmax.f32 %v3960, 0.0
        %v3968 = vmax.f32 %v3961, 0.0
        %v3969 = vmax.f32 %v3962, 0.0
        %v3970 = vmax.f32 %v3963, 0.0
        %v3971 = vmax.f32 %v3964, 0.0
        %v3972 = vsub.f32 %v2978, %v3881
        %v3973 = vsub.f32 %v2980, %v3882
        %v3974 = vsub.f32 %v3262, %v3883
        %v3975 = vsub.f32 %v3264, %v3884
        %v3976 = vsub.f32 %v3546, %v3885
        %v3977 = vsub.f32 %v3548, %v3886
        %v3978 = vsub.f32 %v3827, %v3887
        %v3979 = vadd.f32 %v3965, 1e-05
        %v3980 = vadd.f32 %v3966, 1e-05
        %v3981 = vadd.f32 %v3967, 1e-05
        %v3982 = vadd.f32 %v3968, 1e-05
        %v3983 = vadd.f32 %v3969, 1e-05
        %v3984 = vadd.f32 %v3970, 1e-05
        %v3985 = vadd.f32 %v3971, 1e-05
        %v3986 = vrsqrt.pop %v3979
        %v3987 = vrsqrt.pop %v3980
        %v3988 = vrsqrt.pop %v3981
        %v3989 = vrsqrt.pop %v3982
        %v3990 = vrsqrt.pop %v3983
        %v3991 = vrsqrt.pop %v3984
        %v3992 = vrsqrt.pop %v3985
        %v3993 = vmul.f32 %v3972, %v3986
        %v3994 = vmul.f32 %v3973, %v3987
        %v3995 = vmul.f32 %v3974, %v3988
        %v3996 = vmul.f32 %v3975, %v3989
        %v3997 = vmul.f32 %v3976, %v3990
        %v3998 = vmul.f32 %v3977, %v3991
        %v3999 = vmul.f32 %v3978, %v3992
        %v4001 = vlaneseq
        %v4002 = vshrl.u32 %v4001, 7
        %v4003 = vsub.s32 0, %v4002
        %v4004 = vrot.slane %v3830, %v4003
        %v4005 = vlaneseq
        %v4006 = vshrl.u32 %v4005, 7
        %v4007 = vsub.s32 1, %v4006
        %v4008 = vrot.slane %v3830, %v4007
        %v4009 = vlaneseq
        %v4010 = vshrl.u32 %v4009, 7
        %v4011 = vsub.s32 2, %v4010
        %v4012 = vrot.slane %v3830, %v4011
        %v4013 = vlaneseq
        %v4014 = vshrl.u32 %v4013, 7
        %v4015 = vsub.s32 3, %v4014
        %v4016 = vrot.slane %v3830, %v4015
        %v4017 = vlaneseq
        %v4018 = vshrl.u32 %v4017, 7
        %v4019 = vsub.s32 4, %v4018
        %v4020 = vrot.slane %v3830, %v4019
        %v4021 = vlaneseq
        %v4022 = vshrl.u32 %v4021, 7
        %v4023 = vsub.s32 5, %v4022
        %v4024 = vrot.slane %v3830, %v4023
        %v4025 = vlaneseq
        %v4026 = vshrl.u32 %v4025, 7
        %v4027 = vsub.s32 6, %v4026
        %v4028 = vrot.slane %v3830, %v4027
        %v4036 = vmul.f32 %v3993, %v4004
        %v4037 = vmul.f32 %v3994, %v4008
        %v4038 = vmul.f32 %v3995, %v4012
        %v4039 = vmul.f32 %v3996, %v4016
        %v4040 = vmul.f32 %v3997, %v4020
        %v4041 = vmul.f32 %v3998, %v4024
        %v4042 = vmul.f32 %v3999, %v4028
        %v4044 = vlaneseq
        %v4045 = vshrl.u32 %v4044, 7
        %v4046 = vsub.s32 0, %v4045
        %v4047 = vrot.slane %v3831, %v4046
        %v4048 = vlaneseq
        %v4049 = vshrl.u32 %v4048, 7
        %v4050 = vsub.s32 1, %v4049
        %v4051 = vrot.slane %v3831, %v4050
        %v4052 = vlaneseq
        %v4053 = vshrl.u32 %v4052, 7
        %v4054 = vsub.s32 2, %v4053
        %v4055 = vrot.slane %v3831, %v4054
        %v4056 = vlaneseq
        %v4057 = vshrl.u32 %v4056, 7
        %v4058 = vsub.s32 3, %v4057
        %v4059 = vrot.slane %v3831, %v4058
        %v4060 = vlaneseq
        %v4061 = vshrl.u32 %v4060, 7
        %v4062 = vsub.s32 4, %v4061
        %v4063 = vrot.slane %v3831, %v4062
        %v4064 = vlaneseq
        %v4065 = vshrl.u32 %v4064, 7
        %v4066 = vsub.s32 5, %v4065
        %v4067 = vrot.slane %v3831, %v4066
        %v4068 = vlaneseq
        %v4069 = vshrl.u32 %v4068, 7
        %v4070 = vsub.s32 6, %v4069
        %v4071 = vrot.slane %v3831, %v4070
        %v4079 = vadd.f32 %v4036, %v4047
        %v4080 = vadd.f32 %v4037, %v4051
        %v4081 = vadd.f32 %v4038, %v4055
        %v4082 = vadd.f32 %v4039, %v4059
        %v4083 = vadd.f32 %v4040, %v4063
        %v4084 = vadd.f32 %v4041, %v4067
        %v4085 = vadd.f32 %v4042, %v4071
        %v4086 = vmax.f32 %v4079, 0.0
        %v4087 = vmax.f32 %v4080, 0.0
        %v4088 = vmax.f32 %v4081, 0.0
        %v4089 = vmax.f32 %v4082, 0.0
        %v4090 = vmax.f32 %v4083, 0.0
        %v4091 = vmax.f32 %v4084, 0.0
        %v4092 = vmax.f32 %v4085, 0.0
        %v4100 = vcombine.low %v4086, %v4087
        %v4101 = vcombine.low %v4088, %v4089
        %v4103 = vunpack.c.l.s4 1983009808
        %v4104 = vunpack.c.0.s8 %v4103
        %v4105 = vlaneseq
        %v4106 = vshrl.u32 %v4105, 7
        %v4107 = vsub.s32 %v4104, %v4106
        %v4108 = vrot.slane %v4100, %v4107
        %v4110 = vunpack.c.l.s4 1983009808
        %v4111 = vunpack.c.0.s8 %v4110
        %v4112 = vlaneseq
        %v4113 = vshrl.u32 %v4112, 7
        %v4114 = vsub.s32 %v4111, %v4113
        %v4115 = vrot.slane %v4101, %v4114
        %v4116 = vcombine.low %v4108, %v4115
        %v4117 = vcombine.low %v4090, %v4091
        %v4119 = vunpack.c.l.s4 1983009808
        %v4120 = vunpack.c.0.s8 %v4119
        %v4121 = vlaneseq
        %v4122 = vshrl.u32 %v4121, 7
        %v4123 = vsub.s32 %v4120, %v4122
        %v4124 = vrot.slane %v4117, %v4123
        %v4126 = vunpack.c.l.s4 1983009808
        %v4127 = vunpack.c.0.s8 %v4126
        %v4128 = vlaneseq
        %v4129 = vshrl.u32 %v4128, 7
        %v4130 = vsub.s32 %v4127, %v4129
        %v4131 = vrot.slane %v4092, %v4130
        %v4132 = vcombine.low %v4124, %v4131
        %4135 = vst [vmem:[%s529] sm:$0xff] %v4116
        %4136 = vst [vmem:[%s529 + $0x8] sm:$0x3f] %v4132
        %s4137 = smul.u32 7, %s29
        %p4138 = scmp.lt.s32.totalorder %s4137, 48
        %s4139 = scalar_select %p4138, %s4137, 48
        %s4140 = smul.addr %s4139, 2
        %s4141 = scalar_lea.vmem %s9, %s4140
        // Predicated region
        $region93: #{mnist_generator_forward.4} parent=55 // pred_check
          %p4142 = pneg %p256
        $region94: #{mnist_generator_forward.4} parent=55 // pred_check_branch
          %4144 = sbr.rel (%p4142) target = $region96
        $region95: #{mnist_generator_forward.4} parent=55 // pred_region
          %s4145 = smul.u32 7, %s29
        $region96: #{mnist_generator_forward.4} parent=55 // pred_fallthru
          _
      $region56: #{mnist_generator_forward.4} parent=5 // pred_fallthru
        _
      %p4146 = scmp.le.s32.totalorder 2, %s24
      // Predicated region
      $region97: #{mnist_generator_forward.4} parent=5 // pred_check
        %p4147 = pneg %p4146
      $region98: #{mnist_generator_forward.4} parent=5 // pred_check_branch
        %4149 = sbr.rel (%p4147) target = $region100
      $region99: #{mnist_generator_forward.4} parent=5 // pred_region
        %s4150 = ssub.s32 %s24, 2
        // Predicated region
        $region101: #{mnist_generator_forward.4} parent=99 // pred_check
          %p4151 = pneg %p262
        $region102: #{mnist_generator_forward.4} parent=99 // pred_check_branch
          %4153 = sbr.rel (%p4151) target = $region104
        $region103: #{mnist_generator_forward.4} parent=99 // pred_region
          %s4154 = smul.u32 7, %s30
          %p4155 = scmp.lt.s32.totalorder %s4154, 48
          %s4156 = scalar_select %p4155, %s4154, 48
          %s4157 = smul.addr %s4156, 2
          %s4158 = scalar_lea.vmem %s9, %s4157
        $region104: #{mnist_generator_forward.4} parent=99 // pred_fallthru
          _
      $region100: #{mnist_generator_forward.4} parent=5 // pred_fallthru
        _
    $region6: #{mnist_generator_forward.4} parent=1 // loop_footer
      %s28 = sadd.s32 1, %s24
    $region7: #{mnist_generator_forward.4} parent=1 // loop_footer_branch
      %23 = sbr.rel target = $region3
    $region8: #{mnist_generator_forward.4} parent=1 // loop_exit
      _
    %4159 = vsyncpa [#allocation3], 1
    %s4160 = scalar_lea.sflag [#allocation3], 1
    %4161 = vsyncpa %s4160, 1
    %4162 = vsyncpa [#allocation5], 1
    %4163 = vsyncpa [#allocation8], 1
    %4164 = vsyncpa [#allocation11], 1
    %s4165 = scalar_lea.sflag [#allocation11], 1
    %4166 = vsyncpa %s4165, 1
    %4167 = vsyncpa [#allocation14], 1
    %s4168 = scalar_lea.sflag [#allocation14], 1
    %4169 = vsyncpa %s4168, 1

// kernel: mnist_generator_forward.6
$region0: #{mnist_generator_forward.6}
  #allocation0 [shape = 'u32[]', space=smem, size = 0x4, offset = 0x4, fixed_abs, tag = 'smem constant byte address 0x4 - core index']
  #allocation1 [shape = 'u32[144,128]{1,0:T(1,128)}', space=vmem, size = 0x12000, scoped, tag = 'internal scratch']
  %s0 = inlined_call_operand.vmem [shape: f32[392,64], index: 0, kind: input, shape index: {}]
  %s1 = inlined_call_operand.vmem [shape: f32[1,64], index: 1, kind: input, shape index: {}]
  %s2 = inlined_call_operand.vmem [shape: f32[1,64], index: 2, kind: input, shape index: {}]
  %s3 = inlined_call_operand.vmem [shape: f32[1,64], index: 3, kind: input, shape index: {}]
  %s4 = inlined_call_operand.vmem [shape: f32[64,128], index: 4, kind: input, shape index: {}]
  %s5 = inlined_call_operand.vmem [shape: f32[392,128], index: 5, kind: output, shape index: {}]
  %s6 = sld [smem:[#allocation0]]
  $region30: #{mnist_generator_forward.6} parent=0
    _
  %s8 = ssub.s32 1, %s6
  %s9 = scalar_select 0, %s8, %s6
  // Predicated region
  $region2: #{mnist_generator_forward.6} parent=0 // pred_check
    _
  $region3: #{mnist_generator_forward.6} parent=0 // pred_check_branch
    %11 = sbr.rel (0) target = $region5
  $region4: #{mnist_generator_forward.6} parent=0 // pred_region
    _
  $region5: #{mnist_generator_forward.6} parent=0 // pred_fallthru
    _
  // Predicated region
  $region6: #{mnist_generator_forward.6} parent=0 // pred_check
    _
  $region7: #{mnist_generator_forward.6} parent=0 // pred_check_branch
    %13 = sbr.rel (0) target = $region9
  $region8: #{mnist_generator_forward.6} parent=0 // pred_region
    _
  $region9: #{mnist_generator_forward.6} parent=0 // pred_fallthru
    _
  // Predicated region
  $region10: #{mnist_generator_forward.6} parent=0 // pred_check
    _
  $region11: #{mnist_generator_forward.6} parent=0 // pred_check_branch
    %15 = sbr.rel (0) target = $region13
  $region12: #{mnist_generator_forward.6} parent=0 // pred_region
    _
  $region13: #{mnist_generator_forward.6} parent=0 // pred_fallthru
    _
  // Predicated region
  $region14: #{mnist_generator_forward.6} parent=0 // pred_check
    _
  $region15: #{mnist_generator_forward.6} parent=0 // pred_check_branch
    %17 = sbr.rel (0) target = $region17
  $region16: #{mnist_generator_forward.6} parent=0 // pred_region
    _
  $region17: #{mnist_generator_forward.6} parent=0 // pred_fallthru
    _
  // Predicated region
  $region18: #{mnist_generator_forward.6} parent=0 // pred_check
    _
  $region19: #{mnist_generator_forward.6} parent=0 // pred_check_branch
    %19 = sbr.rel (0) target = $region21
  $region20: #{mnist_generator_forward.6} parent=0 // pred_region
    _
  $region21: #{mnist_generator_forward.6} parent=0 // pred_fallthru
    _
  %v20 = vld [vmem:[%s0] sm:$0xff]
  %v21 = vld [vmem:[%s0 + $0x8] sm:$0xff]
  %v22 = vld [vmem:[%s0 + $0x10] sm:$0xff]
  %v23 = vld [vmem:[%s0 + $0x18] sm:$0xff]
  %v24 = vld [vmem:[%s0 + $0x20] sm:$0xff]
  %v25 = vld [vmem:[%s0 + $0x28] sm:$0xff]
  %v26 = vld [vmem:[%s0 + $0x30] sm:$0xff]
  %v27 = vld [vmem:[%s0 + $0x38] sm:$0xff]
  %v28 = vld [vmem:[%s0 + $0x40] sm:$0xff]
  %v29 = vld [vmem:[%s0 + $0x48] sm:$0xff]
  %v30 = vld [vmem:[%s0 + $0x50] sm:$0xff]
  %v31 = vld [vmem:[%s0 + $0x58] sm:$0xff]
  %v32 = vld [vmem:[%s0 + $0x60] sm:$0xff]
  %v33 = vld [vmem:[%s0 + $0x68] sm:$0xff]
  %v34 = vld [vmem:[%s0 + $0x70] sm:$0xff]
  %v35 = vld [vmem:[%s0 + $0x78] sm:$0xff]
  %v36 = vld [vmem:[%s0 + $0x80] sm:$0xff]
  %v37 = vld [vmem:[%s0 + $0x88] sm:$0xff]
  %v38 = vld [vmem:[%s0 + $0x90] sm:$0xff]
  %v39 = vld [vmem:[%s0 + $0x98] sm:$0xff]
  %v40 = vld [vmem:[%s0 + $0xa0] sm:$0xff]
  %v41 = vld [vmem:[%s0 + $0xa8] sm:$0xff]
  %v42 = vld [vmem:[%s0 + $0xb0] sm:$0xff]
  %v43 = vld [vmem:[%s0 + $0xb8] sm:$0xff]
  %v44 = vld [vmem:[%s0 + $0xc0] sm:$0xff]
  %v45 = vld [vmem:[%s0 + $0xc8] sm:$0xff]
  %v46 = vld [vmem:[%s0 + $0xd0] sm:$0xff]
  %v47 = vld [vmem:[%s0 + $0xd8] sm:$0xff]
  %v48 = vld [vmem:[%s0 + $0xe0] sm:$0xff]
  %v49 = vld [vmem:[%s0 + $0xe8] sm:$0xff]
  %v50 = vld [vmem:[%s0 + $0xf0] sm:$0xff]
  %v51 = vld [vmem:[%s0 + $0xf8] sm:$0xff]
  %v52 = vld [vmem:[%s0 + $0x100] sm:$0xff]
  %v53 = vld [vmem:[%s0 + $0x108] sm:$0xff]
  %v54 = vld [vmem:[%s0 + $0x110] sm:$0xff]
  %v55 = vld [vmem:[%s0 + $0x118] sm:$0xff]
  %v56 = vld [vmem:[%s0 + $0x120] sm:$0xff]
  %v57 = vld [vmem:[%s0 + $0x128] sm:$0xff]
  %v58 = vld [vmem:[%s0 + $0x130] sm:$0xff]
  %v59 = vld [vmem:[%s0 + $0x138] sm:$0xff]
  %v60 = vld [vmem:[%s0 + $0x140] sm:$0xff]
  %v61 = vld [vmem:[%s0 + $0x148] sm:$0xff]
  %v62 = vld [vmem:[%s0 + $0x150] sm:$0xff]
  %v63 = vld [vmem:[%s0 + $0x158] sm:$0xff]
  %v64 = vld [vmem:[%s0 + $0x160] sm:$0xff]
  %v65 = vld [vmem:[%s0 + $0x168] sm:$0xff]
  %v66 = vld [vmem:[%s0 + $0x170] sm:$0xff]
  %v67 = vld [vmem:[%s0 + $0x178] sm:$0xff]
  %v68 = vld [vmem:[%s0 + $0x180] sm:$0xff]
  %v69 = vld [vmem:[%s1] sm:$0x1]
  %v71 = vlaneseq
  %v72 = vshrl.u32 %v71, 7
  %v73 = vsub.s32 0, %v72
  %v74 = vrot.slane %v69, %v73
  %v76 = vadd.f32 %v20, %v74
  %v77 = vadd.f32 %v21, %v74
  %v78 = vadd.f32 %v22, %v74
  %v79 = vadd.f32 %v23, %v74
  %v80 = vadd.f32 %v24, %v74
  %v81 = vadd.f32 %v25, %v74
  %v82 = vadd.f32 %v26, %v74
  %v83 = vadd.f32 %v27, %v74
  %v84 = vadd.f32 %v28, %v74
  %v85 = vadd.f32 %v29, %v74
  %v86 = vadd.f32 %v30, %v74
  %v87 = vadd.f32 %v31, %v74
  %v88 = vadd.f32 %v32, %v74
  %v89 = vadd.f32 %v33, %v74
  %v90 = vadd.f32 %v34, %v74
  %v91 = vadd.f32 %v35, %v74
  %v92 = vadd.f32 %v36, %v74
  %v93 = vadd.f32 %v37, %v74
  %v94 = vadd.f32 %v38, %v74
  %v95 = vadd.f32 %v39, %v74
  %v96 = vadd.f32 %v40, %v74
  %v97 = vadd.f32 %v41, %v74
  %v98 = vadd.f32 %v42, %v74
  %v99 = vadd.f32 %v43, %v74
  %v100 = vadd.f32 %v44, %v74
  %v101 = vadd.f32 %v45, %v74
  %v102 = vadd.f32 %v46, %v74
  %v103 = vadd.f32 %v47, %v74
  %v104 = vadd.f32 %v48, %v74
  %v105 = vadd.f32 %v49, %v74
  %v106 = vadd.f32 %v50, %v74
  %v107 = vadd.f32 %v51, %v74
  %v108 = vadd.f32 %v52, %v74
  %v109 = vadd.f32 %v53, %v74
  %v110 = vadd.f32 %v54, %v74
  %v111 = vadd.f32 %v55, %v74
  %v112 = vadd.f32 %v56, %v74
  %v113 = vadd.f32 %v57, %v74
  %v114 = vadd.f32 %v58, %v74
  %v115 = vadd.f32 %v59, %v74
  %v116 = vadd.f32 %v60, %v74
  %v117 = vadd.f32 %v61, %v74
  %v118 = vadd.f32 %v62, %v74
  %v119 = vadd.f32 %v63, %v74
  %v120 = vadd.f32 %v64, %v74
  %v121 = vadd.f32 %v65, %v74
  %v122 = vadd.f32 %v66, %v74
  %v123 = vadd.f32 %v67, %v74
  %v124 = vadd.f32 %v68, %v74
  %v125 = vld [vmem:[%s2] sm:$0x1]
  %v126 = vld [vmem:[%s3] sm:$0x1]
  %vm127 = vcmask 523264
  %v128 = vsel %vm127, %v76, 0.0
  %v129 = vsel %vm127, %v77, 0.0
  %v130 = vadd.f32 %v128, %v129
  %v131 = vsel %vm127, %v78, 0.0
  %v132 = vadd.f32 %v130, %v131
  %v133 = vsel %vm127, %v79, 0.0
  %v134 = vadd.f32 %v132, %v133
  %v135 = vsel %vm127, %v80, 0.0
  %v136 = vadd.f32 %v134, %v135
  %v137 = vsel %vm127, %v81, 0.0
  %v138 = vadd.f32 %v136, %v137
  %v139 = vsel %vm127, %v82, 0.0
  %v140 = vadd.f32 %v138, %v139
  %v141 = vsel %vm127, %v83, 0.0
  %v142 = vadd.f32 %v140, %v141
  %v143 = vsel %vm127, %v84, 0.0
  %v144 = vadd.f32 %v142, %v143
  %v145 = vsel %vm127, %v85, 0.0
  %v146 = vadd.f32 %v144, %v145
  %v147 = vsel %vm127, %v86, 0.0
  %v148 = vadd.f32 %v146, %v147
  %v149 = vsel %vm127, %v87, 0.0
  %v150 = vadd.f32 %v148, %v149
  %v151 = vsel %vm127, %v88, 0.0
  %v152 = vadd.f32 %v150, %v151
  %v153 = vsel %vm127, %v89, 0.0
  %v154 = vadd.f32 %v152, %v153
  %v155 = vsel %vm127, %v90, 0.0
  %v156 = vadd.f32 %v154, %v155
  %v157 = vsel %vm127, %v91, 0.0
  %v158 = vadd.f32 %v156, %v157
  %v159 = vsel %vm127, %v92, 0.0
  %v160 = vadd.f32 %v158, %v159
  %v161 = vsel %vm127, %v93, 0.0
  %v162 = vadd.f32 %v160, %v161
  %v163 = vsel %vm127, %v94, 0.0
  %v164 = vadd.f32 %v162, %v163
  %v165 = vsel %vm127, %v95, 0.0
  %v166 = vadd.f32 %v164, %v165
  %v167 = vsel %vm127, %v96, 0.0
  %v168 = vadd.f32 %v166, %v167
  %v169 = vsel %vm127, %v97, 0.0
  %v170 = vadd.f32 %v168, %v169
  %v171 = vsel %vm127, %v98, 0.0
  %v172 = vadd.f32 %v170, %v171
  %v173 = vsel %vm127, %v99, 0.0
  %v174 = vadd.f32 %v172, %v173
  %v175 = vsel %vm127, %v100, 0.0
  %v176 = vadd.f32 %v174, %v175
  %v177 = vsel %vm127, %v101, 0.0
  %v178 = vadd.f32 %v176, %v177
  %v179 = vsel %vm127, %v102, 0.0
  %v180 = vadd.f32 %v178, %v179
  %v181 = vsel %vm127, %v103, 0.0
  %v182 = vadd.f32 %v180, %v181
  %v183 = vsel %vm127, %v104, 0.0
  %v184 = vadd.f32 %v182, %v183
  %v185 = vsel %vm127, %v105, 0.0
  %v186 = vadd.f32 %v184, %v185
  %v187 = vsel %vm127, %v106, 0.0
  %v188 = vadd.f32 %v186, %v187
  %v189 = vsel %vm127, %v107, 0.0
  %v190 = vadd.f32 %v188, %v189
  %v191 = vsel %vm127, %v108, 0.0
  %v192 = vadd.f32 %v190, %v191
  %v193 = vsel %vm127, %v109, 0.0
  %v194 = vadd.f32 %v192, %v193
  %v195 = vsel %vm127, %v110, 0.0
  %v196 = vadd.f32 %v194, %v195
  %v197 = vsel %vm127, %v111, 0.0
  %v198 = vadd.f32 %v196, %v197
  %v199 = vsel %vm127, %v112, 0.0
  %v200 = vadd.f32 %v198, %v199
  %v201 = vsel %vm127, %v113, 0.0
  %v202 = vadd.f32 %v200, %v201
  %v203 = vsel %vm127, %v114, 0.0
  %v204 = vadd.f32 %v202, %v203
  %v205 = vsel %vm127, %v115, 0.0
  %v206 = vadd.f32 %v204, %v205
  %v207 = vsel %vm127, %v116, 0.0
  %v208 = vadd.f32 %v206, %v207
  %v209 = vsel %vm127, %v117, 0.0
  %v210 = vadd.f32 %v208, %v209
  %v211 = vsel %vm127, %v118, 0.0
  %v212 = vadd.f32 %v210, %v211
  %v213 = vsel %vm127, %v119, 0.0
  %v214 = vadd.f32 %v212, %v213
  %v215 = vsel %vm127, %v120, 0.0
  %v216 = vadd.f32 %v214, %v215
  %v217 = vsel %vm127, %v121, 0.0
  %v218 = vadd.f32 %v216, %v217
  %v219 = vsel %vm127, %v122, 0.0
  %v220 = vadd.f32 %v218, %v219
  %v221 = vsel %vm127, %v123, 0.0
  %v222 = vadd.f32 %v220, %v221
  %v223 = vsel %vm127, %v124, 0.0
  %v224 = vadd.f32 %v222, %v223
  %v225 = vrot.slane %v224, 4
  %v226 = vadd.f32 %v224, %v225
  %v227 = vrot.slane %v226, 2
  %v228 = vadd.f32 %v226, %v227
  %v229 = vrot.slane %v228, 1
  %v230 = vadd.f32 %v228, %v229
  %v231 = vrcp.pop 392.0
  %v232 = vmul.f32 %v230, %v231
  %v233 = vmul.f32 %v76, %v76
  %v234 = vmul.f32 %v77, %v77
  %v235 = vmul.f32 %v78, %v78
  %v236 = vmul.f32 %v79, %v79
  %v237 = vmul.f32 %v80, %v80
  %v238 = vmul.f32 %v81, %v81
  %v239 = vmul.f32 %v82, %v82
  %v240 = vmul.f32 %v83, %v83
  %v241 = vmul.f32 %v84, %v84
  %v242 = vmul.f32 %v85, %v85
  %v243 = vmul.f32 %v86, %v86
  %v244 = vmul.f32 %v87, %v87
  %v245 = vmul.f32 %v88, %v88
  %v246 = vmul.f32 %v89, %v89
  %v247 = vmul.f32 %v90, %v90
  %v248 = vmul.f32 %v91, %v91
  %v249 = vmul.f32 %v92, %v92
  %v250 = vmul.f32 %v93, %v93
  %v251 = vmul.f32 %v94, %v94
  %v252 = vmul.f32 %v95, %v95
  %v253 = vmul.f32 %v96, %v96
  %v254 = vmul.f32 %v97, %v97
  %v255 = vmul.f32 %v98, %v98
  %v256 = vmul.f32 %v99, %v99
  %v257 = vmul.f32 %v100, %v100
  %v258 = vmul.f32 %v101, %v101
  %v259 = vmul.f32 %v102, %v102
  %v260 = vmul.f32 %v103, %v103
  %v261 = vmul.f32 %v104, %v104
  %v262 = vmul.f32 %v105, %v105
  %v263 = vmul.f32 %v106, %v106
  %v264 = vmul.f32 %v107, %v107
  %v265 = vmul.f32 %v108, %v108
  %v266 = vmul.f32 %v109, %v109
  %v267 = vmul.f32 %v110, %v110
  %v268 = vmul.f32 %v111, %v111
  %v269 = vmul.f32 %v112, %v112
  %v270 = vmul.f32 %v113, %v113
  %v271 = vmul.f32 %v114, %v114
  %v272 = vmul.f32 %v115, %v115
  %v273 = vmul.f32 %v116, %v116
  %v274 = vmul.f32 %v117, %v117
  %v275 = vmul.f32 %v118, %v118
  %v276 = vmul.f32 %v119, %v119
  %v277 = vmul.f32 %v120, %v120
  %v278 = vmul.f32 %v121, %v121
  %v279 = vmul.f32 %v122, %v122
  %v280 = vmul.f32 %v123, %v123
  %v281 = vmul.f32 %v124, %v124
  %v282 = vsel %vm127, %v233, 0.0
  %v283 = vsel %vm127, %v234, 0.0
  %v284 = vadd.f32 %v282, %v283
  %v285 = vsel %vm127, %v235, 0.0
  %v286 = vadd.f32 %v284, %v285
  %v287 = vsel %vm127, %v236, 0.0
  %v288 = vadd.f32 %v286, %v287
  %v289 = vsel %vm127, %v237, 0.0
  %v290 = vadd.f32 %v288, %v289
  %v291 = vsel %vm127, %v238, 0.0
  %v292 = vadd.f32 %v290, %v291
  %v293 = vsel %vm127, %v239, 0.0
  %v294 = vadd.f32 %v292, %v293
  %v295 = vsel %vm127, %v240, 0.0
  %v296 = vadd.f32 %v294, %v295
  %v297 = vsel %vm127, %v241, 0.0
  %v298 = vadd.f32 %v296, %v297
  %v299 = vsel %vm127, %v242, 0.0
  %v300 = vadd.f32 %v298, %v299
  %v301 = vsel %vm127, %v243, 0.0
  %v302 = vadd.f32 %v300, %v301
  %v303 = vsel %vm127, %v244, 0.0
  %v304 = vadd.f32 %v302, %v303
  %v305 = vsel %vm127, %v245, 0.0
  %v306 = vadd.f32 %v304, %v305
  %v307 = vsel %vm127, %v246, 0.0
  %v308 = vadd.f32 %v306, %v307
  %v309 = vsel %vm127, %v247, 0.0
  %v310 = vadd.f32 %v308, %v309
  %v311 = vsel %vm127, %v248, 0.0
  %v312 = vadd.f32 %v310, %v311
  %v313 = vsel %vm127, %v249, 0.0
  %v314 = vadd.f32 %v312, %v313
  %v315 = vsel %vm127, %v250, 0.0
  %v316 = vadd.f32 %v314, %v315
  %v317 = vsel %vm127, %v251, 0.0
  %v318 = vadd.f32 %v316, %v317
  %v319 = vsel %vm127, %v252, 0.0
  %v320 = vadd.f32 %v318, %v319
  %v321 = vsel %vm127, %v253, 0.0
  %v322 = vadd.f32 %v320, %v321
  %v323 = vsel %vm127, %v254, 0.0
  %v324 = vadd.f32 %v322, %v323
  %v325 = vsel %vm127, %v255, 0.0
  %v326 = vadd.f32 %v324, %v325
  %v327 = vsel %vm127, %v256, 0.0
  %v328 = vadd.f32 %v326, %v327
  %v329 = vsel %vm127, %v257, 0.0
  %v330 = vadd.f32 %v328, %v329
  %v331 = vsel %vm127, %v258, 0.0
  %v332 = vadd.f32 %v330, %v331
  %v333 = vsel %vm127, %v259, 0.0
  %v334 = vadd.f32 %v332, %v333
  %v335 = vsel %vm127, %v260, 0.0
  %v336 = vadd.f32 %v334, %v335
  %v337 = vsel %vm127, %v261, 0.0
  %v338 = vadd.f32 %v336, %v337
  %v339 = vsel %vm127, %v262, 0.0
  %v340 = vadd.f32 %v338, %v339
  %v341 = vsel %vm127, %v263, 0.0
  %v342 = vadd.f32 %v340, %v341
  %v343 = vsel %vm127, %v264, 0.0
  %v344 = vadd.f32 %v342, %v343
  %v345 = vsel %vm127, %v265, 0.0
  %v346 = vadd.f32 %v344, %v345
  %v347 = vsel %vm127, %v266, 0.0
  %v348 = vadd.f32 %v346, %v347
  %v349 = vsel %vm127, %v267, 0.0
  %v350 = vadd.f32 %v348, %v349
  %v351 = vsel %vm127, %v268, 0.0
  %v352 = vadd.f32 %v350, %v351
  %v353 = vsel %vm127, %v269, 0.0
  %v354 = vadd.f32 %v352, %v353
  %v355 = vsel %vm127, %v270, 0.0
  %v356 = vadd.f32 %v354, %v355
  %v357 = vsel %vm127, %v271, 0.0
  %v358 = vadd.f32 %v356, %v357
  %v359 = vsel %vm127, %v272, 0.0
  %v360 = vadd.f32 %v358, %v359
  %v361 = vsel %vm127, %v273, 0.0
  %v362 = vadd.f32 %v360, %v361
  %v363 = vsel %vm127, %v274, 0.0
  %v364 = vadd.f32 %v362, %v363
  %v365 = vsel %vm127, %v275, 0.0
  %v366 = vadd.f32 %v364, %v365
  %v367 = vsel %vm127, %v276, 0.0
  %v368 = vadd.f32 %v366, %v367
  %v369 = vsel %vm127, %v277, 0.0
  %v370 = vadd.f32 %v368, %v369
  %v371 = vsel %vm127, %v278, 0.0
  %v372 = vadd.f32 %v370, %v371
  %v373 = vsel %vm127, %v279, 0.0
  %v374 = vadd.f32 %v372, %v373
  %v375 = vsel %vm127, %v280, 0.0
  %v376 = vadd.f32 %v374, %v375
  %v377 = vsel %vm127, %v281, 0.0
  %v378 = vadd.f32 %v376, %v377
  %v379 = vrot.slane %v378, 4
  %v380 = vadd.f32 %v378, %v379
  %v381 = vrot.slane %v380, 2
  %v382 = vadd.f32 %v380, %v381
  %v383 = vrot.slane %v382, 1
  %v384 = vadd.f32 %v382, %v383
  %v385 = vmul.f32 %v384, %v231
  %v386 = vmul.f32 %v232, %v232
  %v387 = vsub.f32 %v385, %v386
  %v388 = vmax.f32 %v387, 0.0
  %v389 = vsub.f32 %v76, %v232
  %v390 = vsub.f32 %v77, %v232
  %v391 = vsub.f32 %v78, %v232
  %v392 = vsub.f32 %v79, %v232
  %v393 = vsub.f32 %v80, %v232
  %v394 = vsub.f32 %v81, %v232
  %v395 = vsub.f32 %v82, %v232
  %v396 = vsub.f32 %v83, %v232
  %v397 = vsub.f32 %v84, %v232
  %v398 = vsub.f32 %v85, %v232
  %v399 = vsub.f32 %v86, %v232
  %v400 = vsub.f32 %v87, %v232
  %v401 = vsub.f32 %v88, %v232
  %v402 = vsub.f32 %v89, %v232
  %v403 = vsub.f32 %v90, %v232
  %v404 = vsub.f32 %v91, %v232
  %v405 = vsub.f32 %v92, %v232
  %v406 = vsub.f32 %v93, %v232
  %v407 = vsub.f32 %v94, %v232
  %v408 = vsub.f32 %v95, %v232
  %v409 = vsub.f32 %v96, %v232
  %v410 = vsub.f32 %v97, %v232
  %v411 = vsub.f32 %v98, %v232
  %v412 = vsub.f32 %v99, %v232
  %v413 = vsub.f32 %v100, %v232
  %v414 = vsub.f32 %v101, %v232
  %v415 = vsub.f32 %v102, %v232
  %v416 = vsub.f32 %v103, %v232
  %v417 = vsub.f32 %v104, %v232
  %v418 = vsub.f32 %v105, %v232
  %v419 = vsub.f32 %v106, %v232
  %v420 = vsub.f32 %v107, %v232
  %v421 = vsub.f32 %v108, %v232
  %v422 = vsub.f32 %v109, %v232
  %v423 = vsub.f32 %v110, %v232
  %v424 = vsub.f32 %v111, %v232
  %v425 = vsub.f32 %v112, %v232
  %v426 = vsub.f32 %v113, %v232
  %v427 = vsub.f32 %v114, %v232
  %v428 = vsub.f32 %v115, %v232
  %v429 = vsub.f32 %v116, %v232
  %v430 = vsub.f32 %v117, %v232
  %v431 = vsub.f32 %v118, %v232
  %v432 = vsub.f32 %v119, %v232
  %v433 = vsub.f32 %v120, %v232
  %v434 = vsub.f32 %v121, %v232
  %v435 = vsub.f32 %v122, %v232
  %v436 = vsub.f32 %v123, %v232
  %v437 = vsub.f32 %v124, %v232
  %v438 = vadd.f32 %v388, 1e-05
  %v439 = vrsqrt.pop %v438
  %v440 = vmul.f32 %v389, %v439
  %v441 = vmul.f32 %v390, %v439
  %v442 = vmul.f32 %v391, %v439
  %v443 = vmul.f32 %v392, %v439
  %v444 = vmul.f32 %v393, %v439
  %v445 = vmul.f32 %v394, %v439
  %v446 = vmul.f32 %v395, %v439
  %v447 = vmul.f32 %v396, %v439
  %v448 = vmul.f32 %v397, %v439
  %v449 = vmul.f32 %v398, %v439
  %v450 = vmul.f32 %v399, %v439
  %v451 = vmul.f32 %v400, %v439
  %v452 = vmul.f32 %v401, %v439
  %v453 = vmul.f32 %v402, %v439
  %v454 = vmul.f32 %v403, %v439
  %v455 = vmul.f32 %v404, %v439
  %v456 = vmul.f32 %v405, %v439
  %v457 = vmul.f32 %v406, %v439
  %v458 = vmul.f32 %v407, %v439
  %v459 = vmul.f32 %v408, %v439
  %v460 = vmul.f32 %v409, %v439
  %v461 = vmul.f32 %v410, %v439
  %v462 = vmul.f32 %v411, %v439
  %v463 = vmul.f32 %v412, %v439
  %v464 = vmul.f32 %v413, %v439
  %v465 = vmul.f32 %v414, %v439
  %v466 = vmul.f32 %v415, %v439
  %v467 = vmul.f32 %v416, %v439
  %v468 = vmul.f32 %v417, %v439
  %v469 = vmul.f32 %v418, %v439
  %v470 = vmul.f32 %v419, %v439
  %v471 = vmul.f32 %v420, %v439
  %v472 = vmul.f32 %v421, %v439
  %v473 = vmul.f32 %v422, %v439
  %v474 = vmul.f32 %v423, %v439
  %v475 = vmul.f32 %v424, %v439
  %v476 = vmul.f32 %v425, %v439
  %v477 = vmul.f32 %v426, %v439
  %v478 = vmul.f32 %v427, %v439
  %v479 = vmul.f32 %v428, %v439
  %v480 = vmul.f32 %v429, %v439
  %v481 = vmul.f32 %v430, %v439
  %v482 = vmul.f32 %v431, %v439
  %v483 = vmul.f32 %v432, %v439
  %v484 = vmul.f32 %v433, %v439
  %v485 = vmul.f32 %v434, %v439
  %v486 = vmul.f32 %v435, %v439
  %v487 = vmul.f32 %v436, %v439
  %v488 = vmul.f32 %v437, %v439
  %v490 = vlaneseq
  %v491 = vshrl.u32 %v490, 7
  %v492 = vsub.s32 0, %v491
  %v493 = vrot.slane %v125, %v492
  %v495 = vmul.f32 %v440, %v493
  %v496 = vmul.f32 %v441, %v493
  %v497 = vmul.f32 %v442, %v493
  %v498 = vmul.f32 %v443, %v493
  %v499 = vmul.f32 %v444, %v493
  %v500 = vmul.f32 %v445, %v493
  %v501 = vmul.f32 %v446, %v493
  %v502 = vmul.f32 %v447, %v493
  %v503 = vmul.f32 %v448, %v493
  %v504 = vmul.f32 %v449, %v493
  %v505 = vmul.f32 %v450, %v493
  %v506 = vmul.f32 %v451, %v493
  %v507 = vmul.f32 %v452, %v493
  %v508 = vmul.f32 %v453, %v493
  %v509 = vmul.f32 %v454, %v493
  %v510 = vmul.f32 %v455, %v493
  %v511 = vmul.f32 %v456, %v493
  %v512 = vmul.f32 %v457, %v493
  %v513 = vmul.f32 %v458, %v493
  %v514 = vmul.f32 %v459, %v493
  %v515 = vmul.f32 %v460, %v493
  %v516 = vmul.f32 %v461, %v493
  %v517 = vmul.f32 %v462, %v493
  %v518 = vmul.f32 %v463, %v493
  %v519 = vmul.f32 %v464, %v493
  %v520 = vmul.f32 %v465, %v493
  %v521 = vmul.f32 %v466, %v493
  %v522 = vmul.f32 %v467, %v493
  %v523 = vmul.f32 %v468, %v493
  %v524 = vmul.f32 %v469, %v493
  %v525 = vmul.f32 %v470, %v493
  %v526 = vmul.f32 %v471, %v493
  %v527 = vmul.f32 %v472, %v493
  %v528 = vmul.f32 %v473, %v493
  %v529 = vmul.f32 %v474, %v493
  %v530 = vmul.f32 %v475, %v493
  %v531 = vmul.f32 %v476, %v493
  %v532 = vmul.f32 %v477, %v493
  %v533 = vmul.f32 %v478, %v493
  %v534 = vmul.f32 %v479, %v493
  %v535 = vmul.f32 %v480, %v493
  %v536 = vmul.f32 %v481, %v493
  %v537 = vmul.f32 %v482, %v493
  %v538 = vmul.f32 %v483, %v493
  %v539 = vmul.f32 %v484, %v493
  %v540 = vmul.f32 %v485, %v493
  %v541 = vmul.f32 %v486, %v493
  %v542 = vmul.f32 %v487, %v493
  %v543 = vmul.f32 %v488, %v493
  %v545 = vlaneseq
  %v546 = vshrl.u32 %v545, 7
  %v547 = vsub.s32 0, %v546
  %v548 = vrot.slane %v126, %v547
  %v550 = vadd.f32 %v495, %v548
  %v551 = vadd.f32 %v496, %v548
  %v552 = vadd.f32 %v497, %v548
  %v553 = vadd.f32 %v498, %v548
  %v554 = vadd.f32 %v499, %v548
  %v555 = vadd.f32 %v500, %v548
  %v556 = vadd.f32 %v501, %v548
  %v557 = vadd.f32 %v502, %v548
  %v558 = vadd.f32 %v503, %v548
  %v559 = vadd.f32 %v504, %v548
  %v560 = vadd.f32 %v505, %v548
  %v561 = vadd.f32 %v506, %v548
  %v562 = vadd.f32 %v507, %v548
  %v563 = vadd.f32 %v508, %v548
  %v564 = vadd.f32 %v509, %v548
  %v565 = vadd.f32 %v510, %v548
  %v566 = vadd.f32 %v511, %v548
  %v567 = vadd.f32 %v512, %v548
  %v568 = vadd.f32 %v513, %v548
  %v569 = vadd.f32 %v514, %v548
  %v570 = vadd.f32 %v515, %v548
  %v571 = vadd.f32 %v516, %v548
  %v572 = vadd.f32 %v517, %v548
  %v573 = vadd.f32 %v518, %v548
  %v574 = vadd.f32 %v519, %v548
  %v575 = vadd.f32 %v520, %v548
  %v576 = vadd.f32 %v521, %v548
  %v577 = vadd.f32 %v522, %v548
  %v578 = vadd.f32 %v523, %v548
  %v579 = vadd.f32 %v524, %v548
  %v580 = vadd.f32 %v525, %v548
  %v581 = vadd.f32 %v526, %v548
  %v582 = vadd.f32 %v527, %v548
  %v583 = vadd.f32 %v528, %v548
  %v584 = vadd.f32 %v529, %v548
  %v585 = vadd.f32 %v530, %v548
  %v586 = vadd.f32 %v531, %v548
  %v587 = vadd.f32 %v532, %v548
  %v588 = vadd.f32 %v533, %v548
  %v589 = vadd.f32 %v534, %v548
  %v590 = vadd.f32 %v535, %v548
  %v591 = vadd.f32 %v536, %v548
  %v592 = vadd.f32 %v537, %v548
  %v593 = vadd.f32 %v538, %v548
  %v594 = vadd.f32 %v539, %v548
  %v595 = vadd.f32 %v540, %v548
  %v596 = vadd.f32 %v541, %v548
  %v597 = vadd.f32 %v542, %v548
  %v598 = vadd.f32 %v543, %v548
  %v599 = vmax.f32 %v550, 0.0
  %v600 = vmax.f32 %v551, 0.0
  %v601 = vmax.f32 %v552, 0.0
  %v602 = vmax.f32 %v553, 0.0
  %v603 = vmax.f32 %v554, 0.0
  %v604 = vmax.f32 %v555, 0.0
  %v605 = vmax.f32 %v556, 0.0
  %v606 = vmax.f32 %v557, 0.0
  %v607 = vmax.f32 %v558, 0.0
  %v608 = vmax.f32 %v559, 0.0
  %v609 = vmax.f32 %v560, 0.0
  %v610 = vmax.f32 %v561, 0.0
  %v611 = vmax.f32 %v562, 0.0
  %v612 = vmax.f32 %v563, 0.0
  %v613 = vmax.f32 %v564, 0.0
  %v614 = vmax.f32 %v565, 0.0
  %v615 = vmax.f32 %v566, 0.0
  %v616 = vmax.f32 %v567, 0.0
  %v617 = vmax.f32 %v568, 0.0
  %v618 = vmax.f32 %v569, 0.0
  %v619 = vmax.f32 %v570, 0.0
  %v620 = vmax.f32 %v571, 0.0
  %v621 = vmax.f32 %v572, 0.0
  %v622 = vmax.f32 %v573, 0.0
  %v623 = vmax.f32 %v574, 0.0
  %v624 = vmax.f32 %v575, 0.0
  %v625 = vmax.f32 %v576, 0.0
  %v626 = vmax.f32 %v577, 0.0
  %v627 = vmax.f32 %v578, 0.0
  %v628 = vmax.f32 %v579, 0.0
  %v629 = vmax.f32 %v580, 0.0
  %v630 = vmax.f32 %v581, 0.0
  %v631 = vmax.f32 %v582, 0.0
  %v632 = vmax.f32 %v583, 0.0
  %v633 = vmax.f32 %v584, 0.0
  %v634 = vmax.f32 %v585, 0.0
  %v635 = vmax.f32 %v586, 0.0
  %v636 = vmax.f32 %v587, 0.0
  %v637 = vmax.f32 %v588, 0.0
  %v638 = vmax.f32 %v589, 0.0
  %v639 = vmax.f32 %v590, 0.0
  %v640 = vmax.f32 %v591, 0.0
  %v641 = vmax.f32 %v592, 0.0
  %v642 = vmax.f32 %v593, 0.0
  %v643 = vmax.f32 %v594, 0.0
  %v644 = vmax.f32 %v595, 0.0
  %v645 = vmax.f32 %v596, 0.0
  %v646 = vmax.f32 %v597, 0.0
  %v647 = vmax.f32 %v598, 0.0
  %v648 = vld [vmem:[%s4] sm:$0xff]
  %v649 = vld [vmem:[%s4 + $0x8] sm:$0xff]
  %v650 = vld [vmem:[%s4 + $0x10] sm:$0xff]
  %v651 = vld [vmem:[%s4 + $0x18] sm:$0xff]
  %v652 = vld [vmem:[%s4 + $0x20] sm:$0xff]
  %v653 = vld [vmem:[%s4 + $0x28] sm:$0xff]
  %v654 = vld [vmem:[%s4 + $0x30] sm:$0xff]
  %v655 = vld [vmem:[%s4 + $0x38] sm:$0xff]
  %v657 = vsel %vm127, %v599, 0
  %v660 = vsel %vm127, %v600, 0
  %v663 = vsel %vm127, %v601, 0
  %v666 = vsel %vm127, %v602, 0
  %v669 = vsel %vm127, %v603, 0
  %v672 = vsel %vm127, %v604, 0
  %v675 = vsel %vm127, %v605, 0
  %v678 = vsel %vm127, %v606, 0
  %v681 = vsel %vm127, %v607, 0
  %v684 = vsel %vm127, %v608, 0
  %v687 = vsel %vm127, %v609, 0
  %v690 = vsel %vm127, %v610, 0
  %v693 = vsel %vm127, %v611, 0
  %v696 = vsel %vm127, %v612, 0
  %v699 = vsel %vm127, %v613, 0
  %v702 = vsel %vm127, %v614, 0
  %v705 = vsel %vm127, %v615, 0
  %v708 = vsel %vm127, %v616, 0
  %v711 = vsel %vm127, %v617, 0
  %v714 = vsel %vm127, %v618, 0
  %v717 = vsel %vm127, %v619, 0
  %v720 = vsel %vm127, %v620, 0
  %v723 = vsel %vm127, %v621, 0
  %v726 = vsel %vm127, %v622, 0
  %v729 = vsel %vm127, %v623, 0
  %v732 = vsel %vm127, %v624, 0
  %v735 = vsel %vm127, %v625, 0
  %v738 = vsel %vm127, %v626, 0
  %v741 = vsel %vm127, %v627, 0
  %v744 = vsel %vm127, %v628, 0
  %v747 = vsel %vm127, %v629, 0
  %v750 = vsel %vm127, %v630, 0
  %v753 = vsel %vm127, %v631, 0
  %v756 = vsel %vm127, %v632, 0
  %v759 = vsel %vm127, %v633, 0
  %v762 = vsel %vm127, %v634, 0
  %v765 = vsel %vm127, %v635, 0
  %v768 = vsel %vm127, %v636, 0
  %v771 = vsel %vm127, %v637, 0
  %v774 = vsel %vm127, %v638, 0
  %v777 = vsel %vm127, %v639, 0
  %v780 = vsel %vm127, %v640, 0
  %v783 = vsel %vm127, %v641, 0
  %v786 = vsel %vm127, %v642, 0
  %v789 = vsel %vm127, %v643, 0
  %v792 = vsel %vm127, %v644, 0
  %v795 = vsel %vm127, %v645, 0
  %v798 = vsel %vm127, %v646, 0
  %v801 = vsel %vm127, %v647, 0
  %803 = vmatprep.subr.mxu0 0.0
  %804 = vmatpush1.msra.mxu0 %v648
  %805 = vmatprep.subr.mxu0 0.0
  %806 = vmatpush1.msra.mxu0 %v649
  %807 = vmatprep.subr.mxu0 0.0
  %808 = vmatpush1.msra.mxu0 %v650
  %809 = vmatprep.subr.mxu0 0.0
  %810 = vmatpush1.msra.mxu0 %v651
  %811 = vmatprep.subr.mxu0 0.0
  %812 = vmatpush1.msra.mxu0 %v652
  %813 = vmatprep.subr.mxu0 0.0
  %814 = vmatpush1.msra.mxu0 %v653
  %815 = vmatprep.subr.mxu0 0.0
  %816 = vmatpush1.msra.mxu0 %v654
  %817 = vmatprep.subr.mxu0 0.0
  %818 = vmatpush1.msra.mxu0 %v655
  %819 = vmatprep.subr.mxu0 0.0
  %820 = vmatpush1.msra.mxu0 0.0
  %821 = vmatprep.subr.mxu0 0.0
  %822 = vmatpush1.msra.mxu0 0.0
  %823 = vmatprep.subr.mxu0 0.0
  %824 = vmatpush1.msra.mxu0 0.0
  %825 = vmatprep.subr.mxu0 0.0
  %826 = vmatpush1.msra.mxu0 0.0
  %827 = vmatprep.subr.mxu0 0.0
  %828 = vmatpush1.msra.mxu0 0.0
  %829 = vmatprep.subr.mxu0 0.0
  %830 = vmatpush1.msra.mxu0 0.0
  %831 = vmatprep.subr.mxu0 0.0
  %832 = vmatpush1.msra.mxu0 0.0
  %833 = vmatprep.subr.mxu0 0.0
  %834 = vmatpush1.msra.mxu0 0.0
  %835 = vmatprep.subr.mxu0 0.0
  %836 = vmatpush1.msra.mxu0 0.0
  %837 = vmatprep.subr.mxu0 0.0
  %838 = vmatpush1.msra.mxu0 0.0
  %839 = vmatprep.subr.mxu0 0.0
  %840 = vmatpush1.msra.mxu0 0.0
  %841 = vmatprep.subr.mxu0 0.0
  %842 = vmatpush1.msra.mxu0 0.0
  %843 = vmatprep.subr.mxu0 0.0
  %844 = vmatpush1.msra.mxu0 0.0
  %845 = vmatprep.subr.mxu0 0.0
  %846 = vmatpush1.msra.mxu0 0.0
  %847 = vmatprep.subr.mxu0 0.0
  %848 = vmatpush1.msra.mxu0 0.0
  %849 = vmatprep.subr.mxu0 0.0
  %850 = vmatpush1.msra.mxu0 0.0
  %851 = vmatprep.subr.mxu0 0.0
  %852 = vmatpush1.msra.mxu0 0.0
  %853 = vmatprep.subr.mxu0 0.0
  %854 = vmatpush1.msra.mxu0 0.0
  %855 = vmatprep.subr.mxu0 0.0
  %856 = vmatpush1.msra.mxu0 0.0
  %857 = vmatprep.subr.mxu0 0.0
  %858 = vmatpush1.msra.mxu0 0.0
  %859 = vmatprep.subr.mxu0 0.0
  %860 = vmatpush1.msra.mxu0 0.0
  %861 = vmatprep.subr.mxu0 0.0
  %862 = vmatpush1.msra.mxu0 0.0
  %863 = vmatprep.subr.mxu0 0.0
  %864 = vmatpush1.msra.mxu0 0.0
  %865 = vmatprep.subr.mxu0 0.0
  %866 = vmatpush1.msra.mxu0 0.0
  %867 = vmatprep.mubr.f32.mxu0 0.0
  %868 = vmatmul.mubr.f32.gmra.mrb[0].mxu0 %v657
  %v869 = vpop.f32.mrb[0].mxu0
  %v870 = vadd.f32 0.0, %v869
  %v871 = vpop.f32.mrb[0].mxu0
  %872 = vmatprep.mubr.f32.mxu0 0.0
  %873 = vmatmul.mubr.f32.gmra.mrb[0].mxu0 %v660
  %v874 = vpop.f32.mrb[0].mxu0
  %v875 = vadd.f32 0.0, %v874
  %v876 = vpop.f32.mrb[0].mxu0
  %877 = vmatprep.mubr.f32.mxu0 0.0
  %878 = vmatmul.mubr.f32.gmra.mrb[0].mxu0 %v663
  %v879 = vpop.f32.mrb[0].mxu0
  %v880 = vadd.f32 0.0, %v879
  %v881 = vpop.f32.mrb[0].mxu0
  %882 = vmatprep.mubr.f32.mxu0 0.0
  %883 = vmatmul.mubr.f32.gmra.mrb[0].mxu0 %v666
  %v884 = vpop.f32.mrb[0].mxu0
  %v885 = vadd.f32 0.0, %v884
  %v886 = vpop.f32.mrb[0].mxu0
  %887 = vmatprep.mubr.f32.mxu0 0.0
  %888 = vmatmul.mubr.f32.gmra.mrb[0].mxu0 %v669
  %v889 = vpop.f32.mrb[0].mxu0
  %v890 = vadd.f32 0.0, %v889
  %v891 = vpop.f32.mrb[0].mxu0
  %892 = vmatprep.mubr.f32.mxu0 0.0
  %893 = vmatmul.mubr.f32.gmra.mrb[0].mxu0 %v672
  %v894 = vpop.f32.mrb[0].mxu0
  %v895 = vadd.f32 0.0, %v894
  %v896 = vpop.f32.mrb[0].mxu0
  %897 = vmatprep.mubr.f32.mxu0 0.0
  %898 = vmatmul.mubr.f32.gmra.mrb[0].mxu0 %v675
  %v899 = vpop.f32.mrb[0].mxu0
  %v900 = vadd.f32 0.0, %v899
  %v901 = vpop.f32.mrb[0].mxu0
  %902 = vmatprep.mubr.f32.mxu0 0.0
  %903 = vmatmul.mubr.f32.gmra.mrb[0].mxu0 %v678
  %v904 = vpop.f32.mrb[0].mxu0
  %v905 = vadd.f32 0.0, %v904
  %v906 = vpop.f32.mrb[0].mxu0
  %907 = vmatprep.mubr.f32.mxu0 0.0
  %908 = vmatmul.mubr.f32.gmra.mrb[0].mxu0 %v681
  %v909 = vpop.f32.mrb[0].mxu0
  %v910 = vadd.f32 0.0, %v909
  %v911 = vpop.f32.mrb[0].mxu0
  %912 = vmatprep.mubr.f32.mxu0 0.0
  %913 = vmatmul.mubr.f32.gmra.mrb[0].mxu0 %v684
  %v914 = vpop.f32.mrb[0].mxu0
  %v915 = vadd.f32 0.0, %v914
  %v916 = vpop.f32.mrb[0].mxu0
  %917 = vmatprep.mubr.f32.mxu0 0.0
  %918 = vmatmul.mubr.f32.gmra.mrb[0].mxu0 %v687
  %v919 = vpop.f32.mrb[0].mxu0
  %v920 = vadd.f32 0.0, %v919
  %v921 = vpop.f32.mrb[0].mxu0
  %922 = vmatprep.mubr.f32.mxu0 0.0
  %923 = vmatmul.mubr.f32.gmra.mrb[0].mxu0 %v690
  %v924 = vpop.f32.mrb[0].mxu0
  %v925 = vadd.f32 0.0, %v924
  %v926 = vpop.f32.mrb[0].mxu0
  %927 = vmatprep.mubr.f32.mxu0 0.0
  %928 = vmatmul.mubr.f32.gmra.mrb[0].mxu0 %v693
  %v929 = vpop.f32.mrb[0].mxu0
  %v930 = vadd.f32 0.0, %v929
  %v931 = vpop.f32.mrb[0].mxu0
  %932 = vmatprep.mubr.f32.mxu0 0.0
  %933 = vmatmul.mubr.f32.gmra.mrb[0].mxu0 %v696
  %v934 = vpop.f32.mrb[0].mxu0
  %v935 = vadd.f32 0.0, %v934
  %v936 = vpop.f32.mrb[0].mxu0
  %937 = vmatprep.mubr.f32.mxu0 0.0
  %938 = vmatmul.mubr.f32.gmra.mrb[0].mxu0 %v699
  %v939 = vpop.f32.mrb[0].mxu0
  %v940 = vadd.f32 0.0, %v939
  %v941 = vpop.f32.mrb[0].mxu0
  %942 = vmatprep.mubr.f32.mxu0 0.0
  %943 = vmatmul.mubr.f32.gmra.mrb[0].mxu0 %v702
  %v944 = vpop.f32.mrb[0].mxu0
  %v945 = vadd.f32 0.0, %v944
  %v946 = vpop.f32.mrb[0].mxu0
  %947 = vmatprep.mubr.f32.mxu0 0.0
  %948 = vmatmul.mubr.f32.gmra.mrb[0].mxu0 %v705
  %v949 = vpop.f32.mrb[0].mxu0
  %v950 = vadd.f32 0.0, %v949
  %v951 = vpop.f32.mrb[0].mxu0
  %952 = vmatprep.mubr.f32.mxu0 0.0
  %953 = vmatmul.mubr.f32.gmra.mrb[0].mxu0 %v708
  %v954 = vpop.f32.mrb[0].mxu0
  %v955 = vadd.f32 0.0, %v954
  %v956 = vpop.f32.mrb[0].mxu0
  %957 = vmatprep.mubr.f32.mxu0 0.0
  %958 = vmatmul.mubr.f32.gmra.mrb[0].mxu0 %v711
  %v959 = vpop.f32.mrb[0].mxu0
  %v960 = vadd.f32 0.0, %v959
  %v961 = vpop.f32.mrb[0].mxu0
  %962 = vmatprep.mubr.f32.mxu0 0.0
  %963 = vmatmul.mubr.f32.gmra.mrb[0].mxu0 %v714
  %v964 = vpop.f32.mrb[0].mxu0
  %v965 = vadd.f32 0.0, %v964
  %v966 = vpop.f32.mrb[0].mxu0
  %967 = vmatprep.mubr.f32.mxu0 0.0
  %968 = vmatmul.mubr.f32.gmra.mrb[0].mxu0 %v717
  %v969 = vpop.f32.mrb[0].mxu0
  %v970 = vadd.f32 0.0, %v969
  %v971 = vpop.f32.mrb[0].mxu0
  %972 = vmatprep.mubr.f32.mxu0 0.0
  %973 = vmatmul.mubr.f32.gmra.mrb[0].mxu0 %v720
  %v974 = vpop.f32.mrb[0].mxu0
  %v975 = vadd.f32 0.0, %v974
  %v976 = vpop.f32.mrb[0].mxu0
  %977 = vmatprep.mubr.f32.mxu0 0.0
  %978 = vmatmul.mubr.f32.gmra.mrb[0].mxu0 %v723
  %v979 = vpop.f32.mrb[0].mxu0
  %v980 = vadd.f32 0.0, %v979
  %v981 = vpop.f32.mrb[0].mxu0
  %982 = vmatprep.mubr.f32.mxu0 0.0
  %983 = vmatmul.mubr.f32.gmra.mrb[0].mxu0 %v726
  %v984 = vpop.f32.mrb[0].mxu0
  %v985 = vadd.f32 0.0, %v984
  %v986 = vpop.f32.mrb[0].mxu0
  %987 = vmatprep.mubr.f32.mxu0 0.0
  %988 = vmatmul.mubr.f32.gmra.mrb[0].mxu0 %v729
  %v989 = vpop.f32.mrb[0].mxu0
  %v990 = vadd.f32 0.0, %v989
  %v991 = vpop.f32.mrb[0].mxu0
  %992 = vmatprep.mubr.f32.mxu0 0.0
  %993 = vmatmul.mubr.f32.gmra.mrb[0].mxu0 %v732
  %v994 = vpop.f32.mrb[0].mxu0
  %v995 = vadd.f32 0.0, %v994
  %v996 = vpop.f32.mrb[0].mxu0
  %997 = vmatprep.mubr.f32.mxu0 0.0
  %998 = vmatmul.mubr.f32.gmra.mrb[0].mxu0 %v735
  %v999 = vpop.f32.mrb[0].mxu0
  %v1000 = vadd.f32 0.0, %v999
  %v1001 = vpop.f32.mrb[0].mxu0
  %1002 = vmatprep.mubr.f32.mxu0 0.0
  %1003 = vmatmul.mubr.f32.gmra.mrb[0].mxu0 %v738
  %v1004 = vpop.f32.mrb[0].mxu0
  %v1005 = vadd.f32 0.0, %v1004
  %v1006 = vpop.f32.mrb[0].mxu0
  %1007 = vmatprep.mubr.f32.mxu0 0.0
  %1008 = vmatmul.mubr.f32.gmra.mrb[0].mxu0 %v741
  %v1009 = vpop.f32.mrb[0].mxu0
  %v1010 = vadd.f32 0.0, %v1009
  %v1011 = vpop.f32.mrb[0].mxu0
  %1012 = vmatprep.mubr.f32.mxu0 0.0
  %1013 = vmatmul.mubr.f32.gmra.mrb[0].mxu0 %v744
  %v1014 = vpop.f32.mrb[0].mxu0
  %v1015 = vadd.f32 0.0, %v1014
  %v1016 = vpop.f32.mrb[0].mxu0
  %1017 = vmatprep.mubr.f32.mxu0 0.0
  %1018 = vmatmul.mubr.f32.gmra.mrb[0].mxu0 %v747
  %v1019 = vpop.f32.mrb[0].mxu0
  %v1020 = vadd.f32 0.0, %v1019
  %v1021 = vpop.f32.mrb[0].mxu0
  %1022 = vmatprep.mubr.f32.mxu0 0.0
  %1023 = vmatmul.mubr.f32.gmra.mrb[0].mxu0 %v750
  %v1024 = vpop.f32.mrb[0].mxu0
  %v1025 = vadd.f32 0.0, %v1024
  %v1026 = vpop.f32.mrb[0].mxu0
  %1027 = vmatprep.mubr.f32.mxu0 0.0
  %1028 = vmatmul.mubr.f32.gmra.mrb[0].mxu0 %v753
  %v1029 = vpop.f32.mrb[0].mxu0
  %v1030 = vadd.f32 0.0, %v1029
  %v1031 = vpop.f32.mrb[0].mxu0
  %1032 = vmatprep.mubr.f32.mxu0 0.0
  %1033 = vmatmul.mubr.f32.gmra.mrb[0].mxu0 %v756
  %v1034 = vpop.f32.mrb[0].mxu0
  %v1035 = vadd.f32 0.0, %v1034
  %v1036 = vpop.f32.mrb[0].mxu0
  %1037 = vmatprep.mubr.f32.mxu0 0.0
  %1038 = vmatmul.mubr.f32.gmra.mrb[0].mxu0 %v759
  %v1039 = vpop.f32.mrb[0].mxu0
  %v1040 = vadd.f32 0.0, %v1039
  %v1041 = vpop.f32.mrb[0].mxu0
  %1042 = vmatprep.mubr.f32.mxu0 0.0
  %1043 = vmatmul.mubr.f32.gmra.mrb[0].mxu0 %v762
  %v1044 = vpop.f32.mrb[0].mxu0
  %v1045 = vadd.f32 0.0, %v1044
  %v1046 = vpop.f32.mrb[0].mxu0
  %1047 = vmatprep.mubr.f32.mxu0 0.0
  %1048 = vmatmul.mubr.f32.gmra.mrb[0].mxu0 %v765
  %v1049 = vpop.f32.mrb[0].mxu0
  %v1050 = vadd.f32 0.0, %v1049
  %v1051 = vpop.f32.mrb[0].mxu0
  %1052 = vmatprep.mubr.f32.mxu0 0.0
  %1053 = vmatmul.mubr.f32.gmra.mrb[0].mxu0 %v768
  %v1054 = vpop.f32.mrb[0].mxu0
  %v1055 = vadd.f32 0.0, %v1054
  %v1056 = vpop.f32.mrb[0].mxu0
  %1057 = vmatprep.mubr.f32.mxu0 0.0
  %1058 = vmatmul.mubr.f32.gmra.mrb[0].mxu0 %v771
  %v1059 = vpop.f32.mrb[0].mxu0
  %v1060 = vadd.f32 0.0, %v1059
  %v1061 = vpop.f32.mrb[0].mxu0
  %1062 = vmatprep.mubr.f32.mxu0 0.0
  %1063 = vmatmul.mubr.f32.gmra.mrb[0].mxu0 %v774
  %v1064 = vpop.f32.mrb[0].mxu0
  %v1065 = vadd.f32 0.0, %v1064
  %v1066 = vpop.f32.mrb[0].mxu0
  %1067 = vmatprep.mubr.f32.mxu0 0.0
  %1068 = vmatmul.mubr.f32.gmra.mrb[0].mxu0 %v777
  %v1069 = vpop.f32.mrb[0].mxu0
  %v1070 = vadd.f32 0.0, %v1069
  %v1071 = vpop.f32.mrb[0].mxu0
  %1072 = vmatprep.mubr.f32.mxu0 0.0
  %1073 = vmatmul.mubr.f32.gmra.mrb[0].mxu0 %v780
  %v1074 = vpop.f32.mrb[0].mxu0
  %v1075 = vadd.f32 0.0, %v1074
  %v1076 = vpop.f32.mrb[0].mxu0
  %1077 = vmatprep.mubr.f32.mxu0 0.0
  %1078 = vmatmul.mubr.f32.gmra.mrb[0].mxu0 %v783
  %v1079 = vpop.f32.mrb[0].mxu0
  %v1080 = vadd.f32 0.0, %v1079
  %v1081 = vpop.f32.mrb[0].mxu0
  %1082 = vmatprep.mubr.f32.mxu0 0.0
  %1083 = vmatmul.mubr.f32.gmra.mrb[0].mxu0 %v786
  %v1084 = vpop.f32.mrb[0].mxu0
  %v1085 = vadd.f32 0.0, %v1084
  %v1086 = vpop.f32.mrb[0].mxu0
  %1087 = vmatprep.mubr.f32.mxu0 0.0
  %1088 = vmatmul.mubr.f32.gmra.mrb[0].mxu0 %v789
  %v1089 = vpop.f32.mrb[0].mxu0
  %v1090 = vadd.f32 0.0, %v1089
  %v1091 = vpop.f32.mrb[0].mxu0
  %1092 = vmatprep.mubr.f32.mxu0 0.0
  %1093 = vmatmul.mubr.f32.gmra.mrb[0].mxu0 %v792
  %v1094 = vpop.f32.mrb[0].mxu0
  %v1095 = vadd.f32 0.0, %v1094
  %v1096 = vpop.f32.mrb[0].mxu0
  %1097 = vmatprep.mubr.f32.mxu0 0.0
  %1098 = vmatmul.mubr.f32.gmra.mrb[0].mxu0 %v795
  %v1099 = vpop.f32.mrb[0].mxu0
  %v1100 = vadd.f32 0.0, %v1099
  %v1101 = vpop.f32.mrb[0].mxu0
  %1102 = vmatprep.mubr.f32.mxu0 0.0
  %1103 = vmatmul.mubr.f32.gmra.mrb[0].mxu0 %v798
  %v1104 = vpop.f32.mrb[0].mxu0
  %v1105 = vadd.f32 0.0, %v1104
  %v1106 = vpop.f32.mrb[0].mxu0
  %1107 = vmatprep.mubr.f32.mxu0 0.0
  %1108 = vmatmul.mubr.f32.gmra.mrb[0].mxu0 %v801
  %v1109 = vpop.f32.mrb[0].mxu0
  %v1110 = vadd.f32 0.0, %v1109
  %v1111 = vpop.f32.mrb[0].mxu0
  %1112 = vdwg.mxu0
  %1113 = vst [vmem:[%s5] sm:$0xff] %v870
  %1114 = vst [vmem:[%s5 + $0x8] sm:$0xff] %v875
  %1115 = vst [vmem:[%s5 + $0x10] sm:$0xff] %v880
  %1116 = vst [vmem:[%s5 + $0x18] sm:$0xff] %v885
  %1117 = vst [vmem:[%s5 + $0x20] sm:$0xff] %v890
  %1118 = vst [vmem:[%s5 + $0x28] sm:$0xff] %v895
  %1119 = vst [vmem:[%s5 + $0x30] sm:$0xff] %v900
  %1120 = vst [vmem:[%s5 + $0x38] sm:$0xff] %v905
  %1121 = vst [vmem:[%s5 + $0x40] sm:$0xff] %v910
  %1122 = vst [vmem:[%s5 + $0x48] sm:$0xff] %v915
  %1123 = vst [vmem:[%s5 + $0x50] sm:$0xff] %v920
  %1124 = vst [vmem:[%s5 + $0x58] sm:$0xff] %v925
  %1125 = vst [vmem:[%s5 + $0x60] sm:$0xff] %v930
  %1126 = vst [vmem:[%s5 + $0x68] sm:$0xff] %v935
  %1127 = vst [vmem:[%s5 + $0x70] sm:$0xff] %v940
  %1128 = vst [vmem:[%s5 + $0x78] sm:$0xff] %v945
  %1129 = vst [vmem:[%s5 + $0x80] sm:$0xff] %v950
  %1130 = vst [vmem:[%s5 + $0x88] sm:$0xff] %v955
  %1131 = vst [vmem:[%s5 + $0x90] sm:$0xff] %v960
  %1132 = vst [vmem:[%s5 + $0x98] sm:$0xff] %v965
  %1133 = vst [vmem:[%s5 + $0xa0] sm:$0xff] %v970
  %1134 = vst [vmem:[%s5 + $0xa8] sm:$0xff] %v975
  %1135 = vst [vmem:[%s5 + $0xb0] sm:$0xff] %v980
  %1136 = vst [vmem:[%s5 + $0xb8] sm:$0xff] %v985
  %1137 = vst [vmem:[%s5 + $0xc0] sm:$0xff] %v990
  %1138 = vst [vmem:[%s5 + $0xc8] sm:$0xff] %v995
  %1139 = vst [vmem:[%s5 + $0xd0] sm:$0xff] %v1000
  %1140 = vst [vmem:[%s5 + $0xd8] sm:$0xff] %v1005
  %1141 = vst [vmem:[%s5 + $0xe0] sm:$0xff] %v1010
  %1142 = vst [vmem:[%s5 + $0xe8] sm:$0xff] %v1015
  %1143 = vst [vmem:[%s5 + $0xf0] sm:$0xff] %v1020
  %1144 = vst [vmem:[%s5 + $0xf8] sm:$0xff] %v1025
  %1145 = vst [vmem:[%s5 + $0x100] sm:$0xff] %v1030
  %1146 = vst [vmem:[%s5 + $0x108] sm:$0xff] %v1035
  %1147 = vst [vmem:[%s5 + $0x110] sm:$0xff] %v1040
  %1148 = vst [vmem:[%s5 + $0x118] sm:$0xff] %v1045
  %1149 = vst [vmem:[%s5 + $0x120] sm:$0xff] %v1050
  %1150 = vst [vmem:[%s5 + $0x128] sm:$0xff] %v1055
  %1151 = vst [vmem:[%s5 + $0x130] sm:$0xff] %v1060
  %1152 = vst [vmem:[%s5 + $0x138] sm:$0xff] %v1065
  %1153 = vst [vmem:[%s5 + $0x140] sm:$0xff] %v1070
  %1154 = vst [vmem:[%s5 + $0x148] sm:$0xff] %v1075
  %1155 = vst [vmem:[%s5 + $0x150] sm:$0xff] %v1080
  %1156 = vst [vmem:[%s5 + $0x158] sm:$0xff] %v1085
  %1157 = vst [vmem:[%s5 + $0x160] sm:$0xff] %v1090
  %1158 = vst [vmem:[%s5 + $0x168] sm:$0xff] %v1095
  %1159 = vst [vmem:[%s5 + $0x170] sm:$0xff] %v1100
  %1160 = vst [vmem:[%s5 + $0x178] sm:$0xff] %v1105
  %1161 = vst [vmem:[%s5 + $0x180] sm:$0xff] %v1110
  // Predicated region
  $region22: #{mnist_generator_forward.6} parent=0 // pred_check
    _
  $region23: #{mnist_generator_forward.6} parent=0 // pred_check_branch
    %1163 = sbr.rel (0) target = $region25
  $region24: #{mnist_generator_forward.6} parent=0 // pred_region
    _
  $region25: #{mnist_generator_forward.6} parent=0 // pred_fallthru
    _
  // Predicated region
  $region26: #{mnist_generator_forward.6} parent=0 // pred_check
    _
  $region27: #{mnist_generator_forward.6} parent=0 // pred_check_branch
    %1165 = sbr.rel (0) target = $region29
  $region28: #{mnist_generator_forward.6} parent=0 // pred_region
    _
  $region29: #{mnist_generator_forward.6} parent=0 // pred_fallthru
    _

// kernel: mnist_generator_forward.7
$region0: #{mnist_generator_forward.7}
  #allocation0 [shape = 'u32[]', space=smem, size = 0x4, offset = 0x4, fixed_abs, tag = 'smem constant byte address 0x4 - core index']
  #allocation1 [shape = 'u32[144,128]{1,0:T(1,128)}', space=vmem, size = 0x12000, scoped, tag = 'internal scratch']
  #allocation2 [shape = 'f32[1,1]{1,0:T(1,128)S(1)}', space=vmem, size = 0x200, scoped, tag = 'scoped memory for mnist_generator_forward.7']
  %s0 = inlined_call_operand.vmem [shape: f32[2,784], index: 0, kind: input, shape index: {}]
  %s1 = inlined_call_operand.<no memory space> [shape: f32[1,1], index: 1, kind: input, shape index: {}]
  %s2 = inlined_call_operand.vmem [shape: f32[2,784], index: 2, kind: output, shape index: {}]
  %s3 = sld [smem:[#allocation0]]
  $region18: #{mnist_generator_forward.7} parent=0
    _
  %s5 = ssub.s32 1, %s3
  %s6 = scalar_select 0, %s5, %s3
  %v7 = vstv %s1
  %8 = vst [vmem:[#allocation2] sm:$0x1] %v7
  // Predicated region
  $region2: #{mnist_generator_forward.7} parent=0 // pred_check
    _
  $region3: #{mnist_generator_forward.7} parent=0 // pred_check_branch
    %10 = sbr.rel (0) target = $region5
  $region4: #{mnist_generator_forward.7} parent=0 // pred_region
    _
  $region5: #{mnist_generator_forward.7} parent=0 // pred_fallthru
    _
  // Predicated region
  $region6: #{mnist_generator_forward.7} parent=0 // pred_check
    _
  $region7: #{mnist_generator_forward.7} parent=0 // pred_check_branch
    %12 = sbr.rel (0) target = $region9
  $region8: #{mnist_generator_forward.7} parent=0 // pred_region
    _
  $region9: #{mnist_generator_forward.7} parent=0 // pred_fallthru
    _
  %v13 = vld [vmem:[%s0] sm:$0xff]
  %v14 = vld [vmem:[%s0 + $0x8] sm:$0x3f]
  %v15 = vld [vmem:[#allocation2] sm:$0x1]
  %v17 = vlaneseq
  %v18 = vshrl.u32 %v17, 7
  %v19 = vsub.s32 0, %v18
  %v20 = vrot.slane %v15, %v19
  %21 = vset.pattern.permute.xlu0 0
  %22 = vperm.xlu0 %21, %v20
  %v23 = vpop.permute.xlu0 %22
  %v25 = vadd.f32 %v13, %v23
  %v26 = vadd.f32 %v14, %v23
  %v27 = vxor.u32 %v25, 2147483648
  %v28 = vxor.u32 %v26, 2147483648
  %v29 = vmul.f32 %v27, 1.442695
  %v30 = vpow.pop %v29
  %v31 = vmul.f32 %v28, 1.442695
  %v32 = vpow.pop %v31
  %v33 = vadd.f32 %v30, 1.0
  %v34 = vadd.f32 %v32, 1.0
  %v35 = vrcp.pop %v33
  %v36 = vmul.f32 1.0, %v35
  %v37 = vrcp.pop %v34
  %v38 = vmul.f32 1.0, %v37
  %39 = vst [vmem:[%s2] sm:$0xff] %v36
  %vm40 = vcmask 1041408
  %vm41 = vcmask 1043458
  %vm42 = vmor %vm41, %vm40
  %vm43 = vcmask 128004
  %vm44 = vmor %vm43, %vm42
  %45 = vst.msk [vmem:[%s2 + $0x8] sm:$0x3f] %vm44, %v38
  // Predicated region
  $region10: #{mnist_generator_forward.7} parent=0 // pred_check
    _
  $region11: #{mnist_generator_forward.7} parent=0 // pred_check_branch
    %47 = sbr.rel (0) target = $region13
  $region12: #{mnist_generator_forward.7} parent=0 // pred_region
    _
  $region13: #{mnist_generator_forward.7} parent=0 // pred_fallthru
    _
  // Predicated region
  $region14: #{mnist_generator_forward.7} parent=0 // pred_check
    _
  $region15: #{mnist_generator_forward.7} parent=0 // pred_check_branch
    %49 = sbr.rel (0) target = $region17
  $region16: #{mnist_generator_forward.7} parent=0 // pred_region
    _
  $region17: #{mnist_generator_forward.7} parent=0 // pred_fallthru
    _

</llo_original>
